<compile_context>
chip_gen: v7x
topology: tpu7x:2x2x1
jax: 0.10.0
libtpu: 0.0.40
codegen_flags: <defaults>
</compile_context>

<pallas_src>
import functools

import jax
import jax.numpy as jnp
from jax.experimental import pallas as pl
from jax.experimental.pallas import tpu as pltpu

EPS = 1e-5
NEG_INF = -1e9
LANE = 128


def _round_up(x, m):
    return ((x + m - 1) // m) * m


def _layernorm(x, g, b):
    mu = jnp.mean(x, axis=-1, keepdims=True)
    var = jnp.mean(jnp.square(x - mu), axis=-1, keepdims=True)
    return (x - mu) * jax.lax.rsqrt(var + EPS) * g + b


def _vmem_limit_bytes():
    cap = 128 * 1024 * 1024
    try:
        cap = int(pltpu.get_tpu_info().vmem_capacity_bytes)
    except Exception:
        pass
    return min(100 * 1024 * 1024, (cap * 4) // 5)


# ---------------------------------------------------------------------------
# Fused transformer + ln_final + EOT gather + text projection.
# grid = (B // tb, L); residual carried in lnx_ref (output, const block over L).
# ---------------------------------------------------------------------------
def encoder_kernel(x_ref, onehot_ref,
                   g1_ref, b1_ref, wqkv_ref, bqkv_ref, wo_ref, bo_ref,
                   g2_ref, b2_ref, wfc_ref, bfc_ref, wpr_ref, bpr_ref,
                   gf_ref, bf_ref, wp_ref,
                   proj_ref, lnx_ref,
                   mask_ref, *, n_heads, f_chunk):
    l = pl.program_id(1)
    n_layers = pl.num_programs(1)

    @pl.when(l == 0)
    def _():
        # init residual carry from the embedded input (once per b-tile)
        lnx_ref[...] = x_ref[...]
        # causal mask built in VMEM (no (S,S) HBM traffic, no per-layer rebuild)
        S = mask_ref.shape[0]
        ri = jax.lax.broadcasted_iota(jnp.int32, (S, S), 0)
        ci = jax.lax.broadcasted_iota(jnp.int32, (S, S), 1)
        mask_ref[...] = jnp.where(ci > ri, NEG_INF, 0.0).astype(jnp.float32)

    x = lnx_ref[...]                               # (tb, S, D) f32 residual
    tb, S, D = x.shape
    H = n_heads
    hd = D // H
    rows = tb * S
    mask = mask_ref[...]

    # ---- attention branch -------------------------------------------------
    x2 = x.reshape(rows, D)
    h = _layernorm(x2, g1_ref[0], b1_ref[0])
    # 1/sqrt(hd) is pre-folded into the Q columns of wqkv / bqkv.
    qkv = jnp.dot(h.astype(jnp.bfloat16), wqkv_ref[0],
                  preferred_element_type=jnp.float32) + bqkv_ref[0]
    qb = qkv[:, :D].reshape(tb, S, D).astype(jnp.bfloat16)
    kb = qkv[:, D:2 * D].reshape(tb, S, D).astype(jnp.bfloat16)
    vb = qkv[:, 2 * D:].reshape(tb, S, D).astype(jnp.bfloat16)

    # TODO(synk): replace the static head loop with a single head-batched
    # dot_general ('bqhd,bkhd->bhqk') once Mosaic reliably lowers the
    # multi-batch matmul / lane-split reshape at these shapes.
    ctx_heads = []
    for hi in range(H):
        sl = slice(hi * hd, (hi + 1) * hd)
        sc = jnp.einsum('bqd,bkd->bqk', qb[:, :, sl], kb[:, :, sl],
                        preferred_element_type=jnp.float32) + mask
        sc = sc - jnp.max(sc, axis=-1, keepdims=True)
        p = jnp.exp(sc)
        p = p * pl.reciprocal(jnp.sum(p, axis=-1, keepdims=True), approx=True)
        ctx_heads.append(
            jnp.einsum('bqk,bkd->bqd', p.astype(jnp.bfloat16), vb[:, :, sl],
                       preferred_element_type=jnp.float32))
    # single K=D out-projection (full MXU depth) on concatenated head contexts
    ctx = jnp.concatenate(ctx_heads, axis=-1).reshape(rows, D)
    x2 = x2 + jnp.dot(ctx.astype(jnp.bfloat16), wo_ref[0],
                      preferred_element_type=jnp.float32) + bo_ref[0]

    # ---- MLP branch (QuickGELU), hidden dim chunked to cap VMEM ------------
    h2 = _layernorm(x2, g2_ref[0], b2_ref[0]).astype(jnp.bfloat16)
    F = wfc_ref.shape[-1]
    fc = f_chunk if (f_chunk < F and F % f_chunk == 0) else F
    acc = jnp.zeros((rows, D), jnp.float32)
    for c0 in range(0, F, fc):
        f = jnp.dot(h2, wfc_ref[0, :, c0:c0 + fc],
                    preferred_element_type=jnp.float32) + bfc_ref[0, :, c0:c0 + fc]
        f = f * jax.nn.sigmoid(1.702 * f)
        acc = acc + jnp.dot(f.astype(jnp.bfloat16), wpr_ref[0, c0:c0 + fc, :],
                            preferred_element_type=jnp.float32)
    x2 = x2 + acc + bpr_ref[0]

    lnx_ref[...] = x2.reshape(tb, S, D)            # residual carry for layer l+1

    # ---- last layer: fused ln_final + EOT gather + text projection ---------
    @pl.when(l == n_layers - 1)
    def _():
        ln = _layernorm(lnx_ref[...], gf_ref[...], bf_ref[...])   # (tb, S, D)
        lnx_ref[...] = ln
        gathered = jnp.sum(ln * onehot_ref[...], axis=1)          # (tb, D)
        proj_ref[...] = jnp.dot(gathered, wp_ref[...],
                                preferred_element_type=jnp.float32)


def encoder_pallas(x, onehot, enc, n_heads, *, f_chunk=1024):
    B, S, D = x.shape
    L = enc['wqkv'].shape[0]
    P = enc['wp'].shape[-1]
    # batch tile: keeps per-tile activation temps small; multiple of 8 so the
    # (tb, P) projection output block stays layout-legal.
    tb = B if (B <= 8 or B % 8 != 0) else 8
    nb = B // tb

    per_layer = [enc['ln1_g'], enc['ln1_b'], enc['wqkv'], enc['bqkv'],
                 enc['wo'], enc['bo'], enc['ln2_g'], enc['ln2_b'],
                 enc['wfc'], enc['bfc'], enc['wpr'], enc['bpr']]
    finals = [enc['ln_f_g'], enc['ln_f_b'], enc['wp']]

    def lspec(shape):      # stacked per-layer param, indexed by grid coord l
        n = len(shape)
        return pl.BlockSpec((1,) + shape[1:],
                            lambda b, l, _n=n: (l,) + (0,) * (_n - 1))

    def cspec(shape):      # grid-invariant param
        n = len(shape)
        return pl.BlockSpec(shape, lambda b, l, _n=n: (0,) * _n)

    in_specs = ([pl.BlockSpec((tb, S, D), lambda b, l: (b, 0, 0)),
                 pl.BlockSpec((tb, S, 1), lambda b, l: (b, 0, 0))]
                + [lspec(a.shape) for a in per_layer]
                + [cspec(a.shape) for a in finals])
    out_specs = (pl.BlockSpec((tb, P), lambda b, l: (b, 0)),
                 pl.BlockSpec((tb, S, D), lambda b, l: (b, 0, 0)))
    out_shape = (jax.ShapeDtypeStruct((B, P), jnp.float32),
                 jax.ShapeDtypeStruct((B, S, D), jnp.float32))

    return pl.pallas_call(
        functools.partial(encoder_kernel, n_heads=n_heads, f_chunk=f_chunk),
        out_shape=out_shape,
        grid=(nb, L),
        in_specs=in_specs,
        out_specs=out_specs,
        scratch_shapes=[pltpu.VMEM((S, S), jnp.float32)],
        compiler_params=pltpu.CompilerParams(
            dimension_semantics=("parallel", "arbitrary"),
            vmem_limit_bytes=_vmem_limit_bytes()),
    )(x, onehot, *per_layer, *finals)


# ---------------------------------------------------------------------------
# One-time (outside jit) weight preparation: bf16 cast + scale folding
# ---------------------------------------------------------------------------
def make_encoder_args(params, n_heads):
    D = params['wqkv'].shape[1]
    hd = D // n_heads
    scale = 1.0 / (hd ** 0.5)
    col_scale = jnp.concatenate([jnp.full((D,), scale, jnp.float32),
                                 jnp.ones((2 * D,), jnp.float32)])
    return {
        'ln1_g': params['ln1_g'], 'ln1_b': params['ln1_b'],
        'wqkv': (params['wqkv'] * col_scale).astype(jnp.bfloat16),
        'bqkv': params['bqkv'] * col_scale,
        'wo': params['wo'].astype(jnp.bfloat16), 'bo': params['bo'],
        'ln2_g': params['ln2_g'], 'ln2_b': params['ln2_b'],
        'wfc': params['wfc'].astype(jnp.bfloat16), 'bfc': params['bfc'],
        'wpr': params['wpr'].astype(jnp.bfloat16), 'bpr': params['bpr'],
        'ln_f_g': params['ln_f_g'], 'ln_f_b': params['ln_f_b'],
        'wp': params['text_projection'],
    }


# ---------------------------------------------------------------------------
# Full forward (Pallas) and pure-JAX reference
# ---------------------------------------------------------------------------
def clip_text_forward_pallas(text, params, enc_args, n_heads):
    B, S = text.shape
    x = params['tok_emb'][text] + params['pos_emb'][:S]   # glue: embedding gather
    Sp = _round_up(S, LANE)                                # lane-dense sequence
    if Sp != S:
        x = jnp.pad(x, ((0, 0), (0, Sp - S), (0, 0)))
    eot = jnp.argmax(text, axis=-1)                        # glue: EOT index
    onehot = (jnp.arange(Sp)[None, :] == eot[:, None]).astype(jnp.float32)[..., None]
    proj, ln_x = encoder_pallas(x, onehot, enc_args, n_heads)
    return proj, ln_x[:, :S]


def causal_mask(S):
    tri = jnp.triu(jnp.ones((S, S), jnp.float32), k=1)
    return jnp.where(tri > 0, NEG_INF, 0.0).astype(jnp.float32)


def _ref_block(x, p, l, mask, n_heads):
    B, S, D = x.shape
    hd = D // n_heads
    h = _layernorm(x, p['ln1_g'][l], p['ln1_b'][l])
    qkv = h @ p['wqkv'][l] + p['bqkv'][l]
    q, k, v = jnp.split(qkv, 3, axis=-1)

    def heads(t):
        return t.reshape(B, S, n_heads, hd).transpose(0, 2, 1, 3)

    qh, kh, vh = heads(q), heads(k), heads(v)
    sc = jnp.einsum('bhqd,bhkd->bhqk', qh, kh) * (1.0 / (hd ** 0.5)) + mask
    pa = jax.nn.softmax(sc, axis=-1)
    out = jnp.einsum('bhqk,bhkd->bhqd', pa, vh).transpose(0, 2, 1, 3).reshape(B, S, D)
    x = x + out @ p['wo'][l] + p['bo'][l]
    h2 = _layernorm(x, p['ln2_g'][l], p['ln2_b'][l])
    f = h2 @ p['wfc'][l] + p['bfc'][l]
    f = f * jax.nn.sigmoid(1.702 * f)
    return x + f @ p['wpr'][l] + p['bpr'][l]


def clip_text_forward_ref(text, params, n_heads):
    B, S = text.shape
    x = params['tok_emb'][text] + params['pos_emb'][:S]
    mask = causal_mask(S)
    for l in range(params['wqkv'].shape[0]):
        x = _ref_block(x, params, l, mask, n_heads)
    ln_x = _layernorm(x, params['ln_f_g'], params['ln_f_b'])
    eot = jnp.argmax(text, axis=-1)
    proj = ln_x[jnp.arange(B), eot] @ params['text_projection']
    return proj, ln_x


# ---------------------------------------------------------------------------
# Deterministic parameter init (stacked per-layer weights: leading L axis)
# ---------------------------------------------------------------------------
def init_params(key, vocab, ctx, D, L, P):
    F = 4 * D
    nrm = lambda k, shp, s: jax.random.normal(k, shp, jnp.float32) * s
    ks = jax.random.split(key, 16)
    return {
        'tok_emb': nrm(ks[0], (vocab, D), 0.02),
        'pos_emb': nrm(ks[1], (ctx, D), 0.01),
        'ln_f_g': jnp.ones((1, D), jnp.float32),
        'ln_f_b': jnp.zeros((1, D), jnp.float32),
        'text_projection': nrm(ks[2], (D, P), D ** -0.5),
        'ln1_g': 1.0 + nrm(ks[3], (L, 1, D), 0.01),
        'ln1_b': nrm(ks[4], (L, 1, D), 0.01),
        'wqkv': nrm(ks[5], (L, D, 3 * D), D ** -0.5),
        'bqkv': nrm(ks[6], (L, 1, 3 * D), 0.01),
        'wo': nrm(ks[7], (L, D, D), D ** -0.5),
        'bo': nrm(ks[8], (L, 1, D), 0.01),
        'ln2_g': 1.0 + nrm(ks[9], (L, 1, D), 0.01),
        'ln2_b': nrm(ks[10], (L, 1, D), 0.01),
        'wfc': nrm(ks[11], (L, D, F), D ** -0.5),
        'bfc': nrm(ks[12], (L, 1, F), 0.01),
        'wpr': nrm(ks[13], (L, F, D), F ** -0.5),
        'bpr': nrm(ks[14], (L, 1, D), 0.01),
    }


if __name__ == "__main__":
    B, S, D, H, L, VOCAB, CTX, P = 2, 8, 32, 4, 2, 64, 16, 16

    key = jax.random.PRNGKey(0)
    k_par, k_txt = jax.random.split(key)
    params = init_params(k_par, VOCAB, CTX, D, L, P)
    text = jax.random.randint(k_txt, (B, S), 0, VOCAB, dtype=jnp.int32)

    # bf16 cast + attention-scale folding happen once, outside the traced fwd
    enc_args = make_encoder_args(params, H)

    fwd = jax.jit(lambda t: clip_text_forward_pallas(t, params, enc_args, H))
    proj, ln_out = fwd(text)
    jax.block_until_ready((proj, ln_out))

    proj_ref, ln_ref = clip_text_forward_ref(text, params, H)
    assert proj.shape == (B, P) and ln_out.shape == (B, S, D)
    # bf16 MXU operands (f32 accumulation) -> relaxed tolerance vs f32 reference
    assert jnp.allclose(proj, proj_ref, atol=6e-2, rtol=6e-2)
    assert jnp.allclose(ln_out, ln_ref, atol=6e-2, rtol=6e-2)

    print("KERNEL_OK")
</pallas_src>

<mosaic_0001>
module attributes {stable_mosaic.version = 11 : i64} {
  func.func @encoder_kernel(%arg0: i32, %arg1: i32, %arg2: memref<2x128x32xf32, #tpu.memory_space<vmem>>, %arg3: memref<2x128x1xf32, #tpu.memory_space<vmem>>, %arg4: memref<1x1x32xf32, #tpu.memory_space<vmem>>, %arg5: memref<1x1x32xf32, #tpu.memory_space<vmem>>, %arg6: memref<1x32x96xbf16, #tpu.memory_space<vmem>>, %arg7: memref<1x1x96xf32, #tpu.memory_space<vmem>>, %arg8: memref<1x32x32xbf16, #tpu.memory_space<vmem>>, %arg9: memref<1x1x32xf32, #tpu.memory_space<vmem>>, %arg10: memref<1x1x32xf32, #tpu.memory_space<vmem>>, %arg11: memref<1x1x32xf32, #tpu.memory_space<vmem>>, %arg12: memref<1x32x128xbf16, #tpu.memory_space<vmem>>, %arg13: memref<1x1x128xf32, #tpu.memory_space<vmem>>, %arg14: memref<1x128x32xbf16, #tpu.memory_space<vmem>>, %arg15: memref<1x1x32xf32, #tpu.memory_space<vmem>>, %arg16: memref<1x32xf32, #tpu.memory_space<vmem>>, %arg17: memref<1x32xf32, #tpu.memory_space<vmem>>, %arg18: memref<32x16xf32, #tpu.memory_space<vmem>>, %arg19: memref<2x16xf32, #tpu.memory_space<vmem>>, %arg20: memref<2x128x32xf32, #tpu.memory_space<vmem>>, %arg21: memref<128x128xf32, #tpu.memory_space<vmem>>) attributes {dimension_semantics = [#tpu.dimension_semantics<parallel>, #tpu.dimension_semantics<arbitrary>], iteration_bounds = array<i64: 1, 2>, scalar_prefetch = 0 : i64, scratch_operands = 1 : i64, tpu.core_type = #tpu.core_type<tc>, window_params = [{transform_indices = @transform_0, window_bounds = array<i64: 2, 128, 32>}, {transform_indices = @transform_1, window_bounds = array<i64: 2, 128, 1>}, {transform_indices = @transform_2, window_bounds = array<i64: 1, 1, 32>}, {transform_indices = @transform_3, window_bounds = array<i64: 1, 1, 32>}, {transform_indices = @transform_4, window_bounds = array<i64: 1, 32, 96>}, {transform_indices = @transform_5, window_bounds = array<i64: 1, 1, 96>}, {transform_indices = @transform_6, window_bounds = array<i64: 1, 32, 32>}, {transform_indices = @transform_7, window_bounds = array<i64: 1, 1, 32>}, {transform_indices = @transform_8, window_bounds = array<i64: 1, 1, 32>}, {transform_indices = @transform_9, window_bounds = array<i64: 1, 1, 32>}, {transform_indices = @transform_10, window_bounds = array<i64: 1, 32, 128>}, {transform_indices = @transform_11, window_bounds = array<i64: 1, 1, 128>}, {transform_indices = @transform_12, window_bounds = array<i64: 1, 128, 32>}, {transform_indices = @transform_13, window_bounds = array<i64: 1, 1, 32>}, {pipeline_mode = #tpu.pipeline_mode<synchronous>, transform_indices = @transform_14, window_bounds = array<i64: 1, 32>}, {pipeline_mode = #tpu.pipeline_mode<synchronous>, transform_indices = @transform_15, window_bounds = array<i64: 1, 32>}, {pipeline_mode = #tpu.pipeline_mode<synchronous>, transform_indices = @transform_16, window_bounds = array<i64: 32, 16>}, {transform_indices = @transform_17, window_bounds = array<i64: 2, 16>}, {transform_indices = @transform_18, window_bounds = array<i64: 2, 128, 32>}]} {
    %c0_i32 = arith.constant 0 : i32
    %0 = arith.cmpi eq, %arg1, %c0_i32 : i32
    %1 = arith.extui %0 : i1 to i32
    %c0_i32_0 = arith.constant 0 : i32
    %2 = arith.cmpi ne, %1, %c0_i32_0 : i32
    scf.if %2 {
      %c0_77 = arith.constant 0 : index
      %c0_78 = arith.constant 0 : index
      %c0_79 = arith.constant 0 : index
      %194 = vector.load %arg2[%c0_77, %c0_78, %c0_79] : memref<2x128x32xf32, #tpu.memory_space<vmem>>, vector<2x128x32xf32>
      %c0_80 = arith.constant 0 : index
      %c0_81 = arith.constant 0 : index
      %c0_82 = arith.constant 0 : index
      %195 = vector.load %arg20[%c0_80, %c0_81, %c0_82] : memref<2x128x32xf32, #tpu.memory_space<vmem>>, vector<2x128x32xf32>
      tpu.vector_store %arg20[%c0_80, %c0_81, %c0_82], %194 {strides = array<i32>} : memref<2x128x32xf32, #tpu.memory_space<vmem>>, vector<2x128x32xf32>,
      %196 = tpu.iota {dimensions = array<i32: 0>} : vector<128x128xi32>
      %197 = tpu.iota {dimensions = array<i32: 1>} : vector<128x128xi32>
      %198 = arith.cmpi sgt, %197, %196 : vector<128x128xi32>
      %cst_83 = arith.constant -1.000000e+09 : f32
      %cst_84 = arith.constant 0.000000e+00 : f32
      %199 = vector.broadcast %cst_83 : f32 to vector<128x128xf32>
      %200 = vector.broadcast %cst_84 : f32 to vector<128x128xf32>
      %201 = arith.select %198, %199, %200 : vector<128x128xi1>, vector<128x128xf32>
      %c0_85 = arith.constant 0 : index
      %c0_86 = arith.constant 0 : index
      %202 = vector.load %arg21[%c0_85, %c0_86] : memref<128x128xf32, #tpu.memory_space<vmem>>, vector<128x128xf32>
      tpu.vector_store %arg21[%c0_85, %c0_86], %201 {strides = array<i32>} : memref<128x128xf32, #tpu.memory_space<vmem>>, vector<128x128xf32>,
    } else {
    }
    %c0 = arith.constant 0 : index
    %c0_1 = arith.constant 0 : index
    %c0_2 = arith.constant 0 : index
    %3 = vector.load %arg20[%c0, %c0_1, %c0_2] : memref<2x128x32xf32, #tpu.memory_space<vmem>>, vector<2x128x32xf32>
    %c0_3 = arith.constant 0 : index
    %c0_4 = arith.constant 0 : index
    %4 = vector.load %arg21[%c0_3, %c0_4] : memref<128x128xf32, #tpu.memory_space<vmem>>, vector<128x128xf32>
    %5 = vector.shape_cast %3 : vector<2x128x32xf32> to vector<256x32xf32>
    %c0_5 = arith.constant 0 : index
    %c0_6 = arith.constant 0 : index
    %c0_7 = arith.constant 0 : index
    %6 = vector.load %arg4[%c0_5, %c0_6, %c0_7] : memref<1x1x32xf32, #tpu.memory_space<vmem>>, vector<1x1x32xf32>
    %7 = vector.shape_cast %6 : vector<1x1x32xf32> to vector<1x32xf32>
    %c0_8 = arith.constant 0 : index
    %c0_9 = arith.constant 0 : index
    %c0_10 = arith.constant 0 : index
    %8 = vector.load %arg5[%c0_8, %c0_9, %c0_10] : memref<1x1x32xf32, #tpu.memory_space<vmem>>, vector<1x1x32xf32>
    %9 = vector.shape_cast %8 : vector<1x1x32xf32> to vector<1x32xf32>
    %cst = arith.constant dense<0.000000e+00> : vector<256xf32>
    %10 = vector.multi_reduction <add>, %5, %cst [1] : vector<256x32xf32> to vector<256xf32>
    %11 = vector.shape_cast %10 : vector<256xf32> to vector<256x1xf32>
    %cst_11 = arith.constant 3.200000e+01 : f32
    %12 = vector.broadcast %cst_11 : f32 to vector<256x1xf32>
    %13 = arith.divf %11, %12 : vector<256x1xf32>
    %14 = vector.broadcast %13 : vector<256x1xf32> to vector<256x32xf32>
    %15 = arith.subf %5, %14 : vector<256x32xf32>
    %16 = arith.mulf %15, %15 : vector<256x32xf32>
    %cst_12 = arith.constant dense<0.000000e+00> : vector<256xf32>
    %17 = vector.multi_reduction <add>, %16, %cst_12 [1] : vector<256x32xf32> to vector<256xf32>
    %18 = vector.shape_cast %17 : vector<256xf32> to vector<256x1xf32>
    %cst_13 = arith.constant 3.200000e+01 : f32
    %19 = vector.broadcast %cst_13 : f32 to vector<256x1xf32>
    %20 = arith.divf %18, %19 : vector<256x1xf32>
    %21 = vector.broadcast %13 : vector<256x1xf32> to vector<256x32xf32>
    %22 = arith.subf %5, %21 : vector<256x32xf32>
    %cst_14 = arith.constant 9.99999974E-6 : f32
    %23 = vector.broadcast %cst_14 : f32 to vector<256x1xf32>
    %24 = arith.addf %20, %23 : vector<256x1xf32>
    %25 = math.rsqrt %24 : vector<256x1xf32>
    %26 = vector.broadcast %25 : vector<256x1xf32> to vector<256x32xf32>
    %27 = arith.mulf %22, %26 : vector<256x32xf32>
    %28 = vector.broadcast %7 : vector<1x32xf32> to vector<256x32xf32>
    %29 = arith.mulf %27, %28 : vector<256x32xf32>
    %30 = vector.broadcast %9 : vector<1x32xf32> to vector<256x32xf32>
    %31 = arith.addf %29, %30 : vector<256x32xf32>
    %32 = arith.truncf %31 : vector<256x32xf32> to vector<256x32xbf16>
    %c0_15 = arith.constant 0 : index
    %c0_16 = arith.constant 0 : index
    %c0_17 = arith.constant 0 : index
    %33 = vector.load %arg6[%c0_15, %c0_16, %c0_17] : memref<1x32x96xbf16, #tpu.memory_space<vmem>>, vector<1x32x96xbf16>
    %34 = vector.shape_cast %33 : vector<1x32x96xbf16> to vector<32x96xbf16>
    %cst_18 = arith.constant dense<0.000000e+00> : vector<256x96xf32>
    %35 = tpu.matmul %32, %34, %cst_18 {dimension_numbers = #tpu.dot_dimension_numbers<[1], [0], [0], [1], [0, 0, 1, 1], [], []>} : vector<256x32xbf16>, vector<32x96xbf16>, vector<256x96xf32> -> vector<256x96xf32>
    %c0_19 = arith.constant 0 : index
    %c0_20 = arith.constant 0 : index
    %c0_21 = arith.constant 0 : index
    %36 = vector.load %arg7[%c0_19, %c0_20, %c0_21] : memref<1x1x96xf32, #tpu.memory_space<vmem>>, vector<1x1x96xf32>
    %37 = vector.shape_cast %36 : vector<1x1x96xf32> to vector<1x96xf32>
    %38 = vector.broadcast %37 : vector<1x96xf32> to vector<256x96xf32>
    %39 = arith.addf %35, %38 : vector<256x96xf32>
    %40 = vector.extract_strided_slice %39 {offsets = [0, 0], sizes = [256, 32], strides = [1, 1]} : vector<256x96xf32> to vector<256x32xf32>
    %41 = vector.shape_cast %40 : vector<256x32xf32> to vector<2x128x32xf32>
    %42 = arith.truncf %41 : vector<2x128x32xf32> to vector<2x128x32xbf16>
    %43 = vector.extract_strided_slice %39 {offsets = [0, 32], sizes = [256, 32], strides = [1, 1]} : vector<256x96xf32> to vector<256x32xf32>
    %44 = vector.shape_cast %43 : vector<256x32xf32> to vector<2x128x32xf32>
    %45 = arith.truncf %44 : vector<2x128x32xf32> to vector<2x128x32xbf16>
    %46 = vector.extract_strided_slice %39 {offsets = [0, 64], sizes = [256, 32], strides = [1, 1]} : vector<256x96xf32> to vector<256x32xf32>
    %47 = vector.shape_cast %46 : vector<256x32xf32> to vector<2x128x32xf32>
    %48 = arith.truncf %47 : vector<2x128x32xf32> to vector<2x128x32xbf16>
    %49 = vector.extract_strided_slice %42 {offsets = [0, 0, 0], sizes = [2, 128, 8], strides = [1, 1, 1]} : vector<2x128x32xbf16> to vector<2x128x8xbf16>
    %50 = vector.extract_strided_slice %45 {offsets = [0, 0, 0], sizes = [2, 128, 8], strides = [1, 1, 1]} : vector<2x128x32xbf16> to vector<2x128x8xbf16>
    "tpu.trace_start"() <{level = 10 : i32, message = "bqd,bkd->bqk"}> : () -> ()
    %cst_22 = arith.constant dense<0.000000e+00> : vector<2x128x128xf32>
    %51 = tpu.matmul %49, %50, %cst_22 {dimension_numbers = #tpu.dot_dimension_numbers<[2], [2], [1], [1], [0, 0, 0, 1, 1, 1], [0], [0]>} : vector<2x128x8xbf16>, vector<2x128x8xbf16>, vector<2x128x128xf32> -> vector<2x128x128xf32>
    "tpu.trace_stop"() : () -> ()
    %52 = vector.shape_cast %4 : vector<128x128xf32> to vector<1x128x128xf32>
    %53 = vector.broadcast %52 : vector<1x128x128xf32> to vector<2x128x128xf32>
    %54 = arith.addf %51, %53 : vector<2x128x128xf32>
    %cst_23 = arith.constant dense<0xFF800000> : vector<2x128xf32>
    %55 = vector.multi_reduction <maximumf>, %54, %cst_23 [2] : vector<2x128x128xf32> to vector<2x128xf32>
    %56 = vector.shape_cast %55 : vector<2x128xf32> to vector<2x128x1xf32>
    %57 = vector.broadcast %56 : vector<2x128x1xf32> to vector<2x128x128xf32>
    %58 = arith.subf %54, %57 : vector<2x128x128xf32>
    %59 = math.exp %58 : vector<2x128x128xf32>
    %cst_24 = arith.constant dense<0.000000e+00> : vector<2x128xf32>
    %60 = vector.multi_reduction <add>, %59, %cst_24 [2] : vector<2x128x128xf32> to vector<2x128xf32>
    %61 = vector.shape_cast %60 : vector<2x128xf32> to vector<2x128x1xf32>
    %62 = tpu.reciprocal %61 {approx = true} : vector<2x128x1xf32> -> vector<2x128x1xf32>
    %63 = vector.broadcast %62 : vector<2x128x1xf32> to vector<2x128x128xf32>
    %64 = arith.mulf %59, %63 : vector<2x128x128xf32>
    %65 = arith.truncf %64 : vector<2x128x128xf32> to vector<2x128x128xbf16>
    %66 = vector.extract_strided_slice %48 {offsets = [0, 0, 0], sizes = [2, 128, 8], strides = [1, 1, 1]} : vector<2x128x32xbf16> to vector<2x128x8xbf16>
    "tpu.trace_start"() <{level = 10 : i32, message = "bqk,bkd->bqd"}> : () -> ()
    %cst_25 = arith.constant dense<0.000000e+00> : vector<2x128x8xf32>
    %67 = tpu.matmul %65, %66, %cst_25 {dimension_numbers = #tpu.dot_dimension_numbers<[2], [1], [1], [2], [0, 0, 0, 1, 1, 2], [0], [0]>} : vector<2x128x128xbf16>, vector<2x128x8xbf16>, vector<2x128x8xf32> -> vector<2x128x8xf32>
    "tpu.trace_stop"() : () -> ()
    %68 = vector.extract_strided_slice %42 {offsets = [0, 0, 8], sizes = [2, 128, 8], strides = [1, 1, 1]} : vector<2x128x32xbf16> to vector<2x128x8xbf16>
    %69 = vector.extract_strided_slice %45 {offsets = [0, 0, 8], sizes = [2, 128, 8], strides = [1, 1, 1]} : vector<2x128x32xbf16> to vector<2x128x8xbf16>
    "tpu.trace_start"() <{level = 10 : i32, message = "bqd,bkd->bqk"}> : () -> ()
    %cst_26 = arith.constant dense<0.000000e+00> : vector<2x128x128xf32>
    %70 = tpu.matmul %68, %69, %cst_26 {dimension_numbers = #tpu.dot_dimension_numbers<[2], [2], [1], [1], [0, 0, 0, 1, 1, 1], [0], [0]>} : vector<2x128x8xbf16>, vector<2x128x8xbf16>, vector<2x128x128xf32> -> vector<2x128x128xf32>
    "tpu.trace_stop"() : () -> ()
    %71 = vector.shape_cast %4 : vector<128x128xf32> to vector<1x128x128xf32>
    %72 = vector.broadcast %71 : vector<1x128x128xf32> to vector<2x128x128xf32>
    %73 = arith.addf %70, %72 : vector<2x128x128xf32>
    %cst_27 = arith.constant dense<0xFF800000> : vector<2x128xf32>
    %74 = vector.multi_reduction <maximumf>, %73, %cst_27 [2] : vector<2x128x128xf32> to vector<2x128xf32>
    %75 = vector.shape_cast %74 : vector<2x128xf32> to vector<2x128x1xf32>
    %76 = vector.broadcast %75 : vector<2x128x1xf32> to vector<2x128x128xf32>
    %77 = arith.subf %73, %76 : vector<2x128x128xf32>
    %78 = math.exp %77 : vector<2x128x128xf32>
    %cst_28 = arith.constant dense<0.000000e+00> : vector<2x128xf32>
    %79 = vector.multi_reduction <add>, %78, %cst_28 [2] : vector<2x128x128xf32> to vector<2x128xf32>
    %80 = vector.shape_cast %79 : vector<2x128xf32> to vector<2x128x1xf32>
    %81 = tpu.reciprocal %80 {approx = true} : vector<2x128x1xf32> -> vector<2x128x1xf32>
    %82 = vector.broadcast %81 : vector<2x128x1xf32> to vector<2x128x128xf32>
    %83 = arith.mulf %78, %82 : vector<2x128x128xf32>
    %84 = arith.truncf %83 : vector<2x128x128xf32> to vector<2x128x128xbf16>
    %85 = vector.extract_strided_slice %48 {offsets = [0, 0, 8], sizes = [2, 128, 8], strides = [1, 1, 1]} : vector<2x128x32xbf16> to vector<2x128x8xbf16>
    "tpu.trace_start"() <{level = 10 : i32, message = "bqk,bkd->bqd"}> : () -> ()
    %cst_29 = arith.constant dense<0.000000e+00> : vector<2x128x8xf32>
    %86 = tpu.matmul %84, %85, %cst_29 {dimension_numbers = #tpu.dot_dimension_numbers<[2], [1], [1], [2], [0, 0, 0, 1, 1, 2], [0], [0]>} : vector<2x128x128xbf16>, vector<2x128x8xbf16>, vector<2x128x8xf32> -> vector<2x128x8xf32>
    "tpu.trace_stop"() : () -> ()
    %87 = vector.extract_strided_slice %42 {offsets = [0, 0, 16], sizes = [2, 128, 8], strides = [1, 1, 1]} : vector<2x128x32xbf16> to vector<2x128x8xbf16>
    %88 = vector.extract_strided_slice %45 {offsets = [0, 0, 16], sizes = [2, 128, 8], strides = [1, 1, 1]} : vector<2x128x32xbf16> to vector<2x128x8xbf16>
    "tpu.trace_start"() <{level = 10 : i32, message = "bqd,bkd->bqk"}> : () -> ()
    %cst_30 = arith.constant dense<0.000000e+00> : vector<2x128x128xf32>
    %89 = tpu.matmul %87, %88, %cst_30 {dimension_numbers = #tpu.dot_dimension_numbers<[2], [2], [1], [1], [0, 0, 0, 1, 1, 1], [0], [0]>} : vector<2x128x8xbf16>, vector<2x128x8xbf16>, vector<2x128x128xf32> -> vector<2x128x128xf32>
    "tpu.trace_stop"() : () -> ()
    %90 = vector.shape_cast %4 : vector<128x128xf32> to vector<1x128x128xf32>
    %91 = vector.broadcast %90 : vector<1x128x128xf32> to vector<2x128x128xf32>
    %92 = arith.addf %89, %91 : vector<2x128x128xf32>
    %cst_31 = arith.constant dense<0xFF800000> : vector<2x128xf32>
    %93 = vector.multi_reduction <maximumf>, %92, %cst_31 [2] : vector<2x128x128xf32> to vector<2x128xf32>
    %94 = vector.shape_cast %93 : vector<2x128xf32> to vector<2x128x1xf32>
    %95 = vector.broadcast %94 : vector<2x128x1xf32> to vector<2x128x128xf32>
    %96 = arith.subf %92, %95 : vector<2x128x128xf32>
    %97 = math.exp %96 : vector<2x128x128xf32>
    %cst_32 = arith.constant dense<0.000000e+00> : vector<2x128xf32>
    %98 = vector.multi_reduction <add>, %97, %cst_32 [2] : vector<2x128x128xf32> to vector<2x128xf32>
    %99 = vector.shape_cast %98 : vector<2x128xf32> to vector<2x128x1xf32>
    %100 = tpu.reciprocal %99 {approx = true} : vector<2x128x1xf32> -> vector<2x128x1xf32>
    %101 = vector.broadcast %100 : vector<2x128x1xf32> to vector<2x128x128xf32>
    %102 = arith.mulf %97, %101 : vector<2x128x128xf32>
    %103 = arith.truncf %102 : vector<2x128x128xf32> to vector<2x128x128xbf16>
    %104 = vector.extract_strided_slice %48 {offsets = [0, 0, 16], sizes = [2, 128, 8], strides = [1, 1, 1]} : vector<2x128x32xbf16> to vector<2x128x8xbf16>
    "tpu.trace_start"() <{level = 10 : i32, message = "bqk,bkd->bqd"}> : () -> ()
    %cst_33 = arith.constant dense<0.000000e+00> : vector<2x128x8xf32>
    %105 = tpu.matmul %103, %104, %cst_33 {dimension_numbers = #tpu.dot_dimension_numbers<[2], [1], [1], [2], [0, 0, 0, 1, 1, 2], [0], [0]>} : vector<2x128x128xbf16>, vector<2x128x8xbf16>, vector<2x128x8xf32> -> vector<2x128x8xf32>
    "tpu.trace_stop"() : () -> ()
    %106 = vector.extract_strided_slice %42 {offsets = [0, 0, 24], sizes = [2, 128, 8], strides = [1, 1, 1]} : vector<2x128x32xbf16> to vector<2x128x8xbf16>
    %107 = vector.extract_strided_slice %45 {offsets = [0, 0, 24], sizes = [2, 128, 8], strides = [1, 1, 1]} : vector<2x128x32xbf16> to vector<2x128x8xbf16>
    "tpu.trace_start"() <{level = 10 : i32, message = "bqd,bkd->bqk"}> : () -> ()
    %cst_34 = arith.constant dense<0.000000e+00> : vector<2x128x128xf32>
    %108 = tpu.matmul %106, %107, %cst_34 {dimension_numbers = #tpu.dot_dimension_numbers<[2], [2], [1], [1], [0, 0, 0, 1, 1, 1], [0], [0]>} : vector<2x128x8xbf16>, vector<2x128x8xbf16>, vector<2x128x128xf32> -> vector<2x128x128xf32>
    "tpu.trace_stop"() : () -> ()
    %109 = vector.shape_cast %4 : vector<128x128xf32> to vector<1x128x128xf32>
    %110 = vector.broadcast %109 : vector<1x128x128xf32> to vector<2x128x128xf32>
    %111 = arith.addf %108, %110 : vector<2x128x128xf32>
    %cst_35 = arith.constant dense<0xFF800000> : vector<2x128xf32>
    %112 = vector.multi_reduction <maximumf>, %111, %cst_35 [2] : vector<2x128x128xf32> to vector<2x128xf32>
    %113 = vector.shape_cast %112 : vector<2x128xf32> to vector<2x128x1xf32>
    %114 = vector.broadcast %113 : vector<2x128x1xf32> to vector<2x128x128xf32>
    %115 = arith.subf %111, %114 : vector<2x128x128xf32>
    %116 = math.exp %115 : vector<2x128x128xf32>
    %cst_36 = arith.constant dense<0.000000e+00> : vector<2x128xf32>
    %117 = vector.multi_reduction <add>, %116, %cst_36 [2] : vector<2x128x128xf32> to vector<2x128xf32>
    %118 = vector.shape_cast %117 : vector<2x128xf32> to vector<2x128x1xf32>
    %119 = tpu.reciprocal %118 {approx = true} : vector<2x128x1xf32> -> vector<2x128x1xf32>
    %120 = vector.broadcast %119 : vector<2x128x1xf32> to vector<2x128x128xf32>
    %121 = arith.mulf %116, %120 : vector<2x128x128xf32>
    %122 = arith.truncf %121 : vector<2x128x128xf32> to vector<2x128x128xbf16>
    %123 = vector.extract_strided_slice %48 {offsets = [0, 0, 24], sizes = [2, 128, 8], strides = [1, 1, 1]} : vector<2x128x32xbf16> to vector<2x128x8xbf16>
    "tpu.trace_start"() <{level = 10 : i32, message = "bqk,bkd->bqd"}> : () -> ()
    %cst_37 = arith.constant dense<0.000000e+00> : vector<2x128x8xf32>
    %124 = tpu.matmul %122, %123, %cst_37 {dimension_numbers = #tpu.dot_dimension_numbers<[2], [1], [1], [2], [0, 0, 0, 1, 1, 2], [0], [0]>} : vector<2x128x128xbf16>, vector<2x128x8xbf16>, vector<2x128x8xf32> -> vector<2x128x8xf32>
    "tpu.trace_stop"() : () -> ()
    %125 = tpu.concatenate %67, %86, %105, %124 in 2 : vector<2x128x8xf32>, vector<2x128x8xf32>, vector<2x128x8xf32>, vector<2x128x8xf32> -> vector<2x128x32xf32>
    %126 = vector.shape_cast %125 : vector<2x128x32xf32> to vector<256x32xf32>
    %127 = arith.truncf %126 : vector<256x32xf32> to vector<256x32xbf16>
    %c0_38 = arith.constant 0 : index
    %c0_39 = arith.constant 0 : index
    %c0_40 = arith.constant 0 : index
    %128 = vector.load %arg8[%c0_38, %c0_39, %c0_40] : memref<1x32x32xbf16, #tpu.memory_space<vmem>>, vector<1x32x32xbf16>
    %129 = vector.shape_cast %128 : vector<1x32x32xbf16> to vector<32x32xbf16>
    %cst_41 = arith.constant dense<0.000000e+00> : vector<256x32xf32>
    %130 = tpu.matmul %127, %129, %cst_41 {dimension_numbers = #tpu.dot_dimension_numbers<[1], [0], [0], [1], [0, 0, 1, 1], [], []>} : vector<256x32xbf16>, vector<32x32xbf16>, vector<256x32xf32> -> vector<256x32xf32>
    %131 = arith.addf %5, %130 : vector<256x32xf32>
    %c0_42 = arith.constant 0 : index
    %c0_43 = arith.constant 0 : index
    %c0_44 = arith.constant 0 : index
    %132 = vector.load %arg9[%c0_42, %c0_43, %c0_44] : memref<1x1x32xf32, #tpu.memory_space<vmem>>, vector<1x1x32xf32>
    %133 = vector.shape_cast %132 : vector<1x1x32xf32> to vector<1x32xf32>
    %134 = vector.broadcast %133 : vector<1x32xf32> to vector<256x32xf32>
    %135 = arith.addf %131, %134 : vector<256x32xf32>
    %c0_45 = arith.constant 0 : index
    %c0_46 = arith.constant 0 : index
    %c0_47 = arith.constant 0 : index
    %136 = vector.load %arg10[%c0_45, %c0_46, %c0_47] : memref<1x1x32xf32, #tpu.memory_space<vmem>>, vector<1x1x32xf32>
    %137 = vector.shape_cast %136 : vector<1x1x32xf32> to vector<1x32xf32>
    %c0_48 = arith.constant 0 : index
    %c0_49 = arith.constant 0 : index
    %c0_50 = arith.constant 0 : index
    %138 = vector.load %arg11[%c0_48, %c0_49, %c0_50] : memref<1x1x32xf32, #tpu.memory_space<vmem>>, vector<1x1x32xf32>
    %139 = vector.shape_cast %138 : vector<1x1x32xf32> to vector<1x32xf32>
    %cst_51 = arith.constant dense<0.000000e+00> : vector<256xf32>
    %140 = vector.multi_reduction <add>, %135, %cst_51 [1] : vector<256x32xf32> to vector<256xf32>
    %141 = vector.shape_cast %140 : vector<256xf32> to vector<256x1xf32>
    %cst_52 = arith.constant 3.200000e+01 : f32
    %142 = vector.broadcast %cst_52 : f32 to vector<256x1xf32>
    %143 = arith.divf %141, %142 : vector<256x1xf32>
    %144 = vector.broadcast %143 : vector<256x1xf32> to vector<256x32xf32>
    %145 = arith.subf %135, %144 : vector<256x32xf32>
    %146 = arith.mulf %145, %145 : vector<256x32xf32>
    %cst_53 = arith.constant dense<0.000000e+00> : vector<256xf32>
    %147 = vector.multi_reduction <add>, %146, %cst_53 [1] : vector<256x32xf32> to vector<256xf32>
    %148 = vector.shape_cast %147 : vector<256xf32> to vector<256x1xf32>
    %cst_54 = arith.constant 3.200000e+01 : f32
    %149 = vector.broadcast %cst_54 : f32 to vector<256x1xf32>
    %150 = arith.divf %148, %149 : vector<256x1xf32>
    %151 = vector.broadcast %143 : vector<256x1xf32> to vector<256x32xf32>
    %152 = arith.subf %135, %151 : vector<256x32xf32>
    %cst_55 = arith.constant 9.99999974E-6 : f32
    %153 = vector.broadcast %cst_55 : f32 to vector<256x1xf32>
    %154 = arith.addf %150, %153 : vector<256x1xf32>
    %155 = math.rsqrt %154 : vector<256x1xf32>
    %156 = vector.broadcast %155 : vector<256x1xf32> to vector<256x32xf32>
    %157 = arith.mulf %152, %156 : vector<256x32xf32>
    %158 = vector.broadcast %137 : vector<1x32xf32> to vector<256x32xf32>
    %159 = arith.mulf %157, %158 : vector<256x32xf32>
    %160 = vector.broadcast %139 : vector<1x32xf32> to vector<256x32xf32>
    %161 = arith.addf %159, %160 : vector<256x32xf32>
    %162 = arith.truncf %161 : vector<256x32xf32> to vector<256x32xbf16>
    %cst_56 = arith.constant 0.000000e+00 : f32
    %163 = vector.broadcast %cst_56 : f32 to vector<256x32xf32>
    %c0_57 = arith.constant 0 : index
    %c0_58 = arith.constant 0 : index
    %c0_59 = arith.constant 0 : index
    %164 = vector.load %arg12[%c0_57, %c0_58, %c0_59] : memref<1x32x128xbf16, #tpu.memory_space<vmem>>, vector<1x32x128xbf16>
    %165 = vector.shape_cast %164 : vector<1x32x128xbf16> to vector<32x128xbf16>
    %cst_60 = arith.constant dense<0.000000e+00> : vector<256x128xf32>
    %166 = tpu.matmul %162, %165, %cst_60 {dimension_numbers = #tpu.dot_dimension_numbers<[1], [0], [0], [1], [0, 0, 1, 1], [], []>} : vector<256x32xbf16>, vector<32x128xbf16>, vector<256x128xf32> -> vector<256x128xf32>
    %c0_61 = arith.constant 0 : index
    %c0_62 = arith.constant 0 : index
    %c0_63 = arith.constant 0 : index
    %167 = vector.load %arg13[%c0_61, %c0_62, %c0_63] : memref<1x1x128xf32, #tpu.memory_space<vmem>>, vector<1x1x128xf32>
    %168 = vector.shape_cast %167 : vector<1x1x128xf32> to vector<1x128xf32>
    %169 = vector.broadcast %168 : vector<1x128xf32> to vector<256x128xf32>
    %170 = arith.addf %166, %169 : vector<256x128xf32>
    %cst_64 = arith.constant 1.702000e+00 : f32
    %171 = vector.broadcast %cst_64 : f32 to vector<256x128xf32>
    %172 = arith.mulf %171, %170 : vector<256x128xf32>
    %173 = arith.negf %172 : vector<256x128xf32>
    %174 = math.exp %173 : vector<256x128xf32>
    %cst_65 = arith.constant 1.000000e+00 : f32
    %175 = vector.broadcast %cst_65 : f32 to vector<256x128xf32>
    %176 = arith.addf %175, %174 : vector<256x128xf32>
    %177 = arith.divf %175, %176 : vector<256x128xf32>
    %178 = arith.mulf %170, %177 : vector<256x128xf32>
    %179 = arith.truncf %178 : vector<256x128xf32> to vector<256x128xbf16>
    %c0_66 = arith.constant 0 : index
    %c0_67 = arith.constant 0 : index
    %c0_68 = arith.constant 0 : index
    %180 = vector.load %arg14[%c0_66, %c0_67, %c0_68] : memref<1x128x32xbf16, #tpu.memory_space<vmem>>, vector<1x128x32xbf16>
    %181 = vector.shape_cast %180 : vector<1x128x32xbf16> to vector<128x32xbf16>
    %cst_69 = arith.constant dense<0.000000e+00> : vector<256x32xf32>
    %182 = tpu.matmul %179, %181, %cst_69 {dimension_numbers = #tpu.dot_dimension_numbers<[1], [0], [0], [1], [0, 0, 1, 1], [], []>} : vector<256x128xbf16>, vector<128x32xbf16>, vector<256x32xf32> -> vector<256x32xf32>
    %183 = arith.addf %163, %182 : vector<256x32xf32>
    %184 = arith.addf %135, %183 : vector<256x32xf32>
    %c0_70 = arith.constant 0 : index
    %c0_71 = arith.constant 0 : index
    %c0_72 = arith.constant 0 : index
    %185 = vector.load %arg15[%c0_70, %c0_71, %c0_72] : memref<1x1x32xf32, #tpu.memory_space<vmem>>, vector<1x1x32xf32>
    %186 = vector.shape_cast %185 : vector<1x1x32xf32> to vector<1x32xf32>
    %187 = vector.broadcast %186 : vector<1x32xf32> to vector<256x32xf32>
    %188 = arith.addf %184, %187 : vector<256x32xf32>
    %189 = vector.shape_cast %188 : vector<256x32xf32> to vector<2x128x32xf32>
    %c0_73 = arith.constant 0 : index
    %c0_74 = arith.constant 0 : index
    %c0_75 = arith.constant 0 : index
    %190 = vector.load %arg20[%c0_73, %c0_74, %c0_75] : memref<2x128x32xf32, #tpu.memory_space<vmem>>, vector<2x128x32xf32>
    tpu.vector_store %arg20[%c0_73, %c0_74, %c0_75], %189 {strides = array<i32>} : memref<2x128x32xf32, #tpu.memory_space<vmem>>, vector<2x128x32xf32>,
    %c1_i32 = arith.constant 1 : i32
    %191 = arith.cmpi eq, %arg1, %c1_i32 : i32
    %192 = arith.extui %191 : i1 to i32
    %c0_i32_76 = arith.constant 0 : i32
    %193 = arith.cmpi ne, %192, %c0_i32_76 : i32
    scf.if %193 {
      %c0_77 = arith.constant 0 : index
      %c0_78 = arith.constant 0 : index
      %c0_79 = arith.constant 0 : index
      %194 = vector.load %arg20[%c0_77, %c0_78, %c0_79] : memref<2x128x32xf32, #tpu.memory_space<vmem>>, vector<2x128x32xf32>
      %c0_80 = arith.constant 0 : index
      %c0_81 = arith.constant 0 : index
      %195 = vector.load %arg16[%c0_80, %c0_81] : memref<1x32xf32, #tpu.memory_space<vmem>>, vector<1x32xf32>
      %c0_82 = arith.constant 0 : index
      %c0_83 = arith.constant 0 : index
      %196 = vector.load %arg17[%c0_82, %c0_83] : memref<1x32xf32, #tpu.memory_space<vmem>>, vector<1x32xf32>
      %cst_84 = arith.constant dense<0.000000e+00> : vector<2x128xf32>
      %197 = vector.multi_reduction <add>, %194, %cst_84 [2] : vector<2x128x32xf32> to vector<2x128xf32>
      %198 = vector.shape_cast %197 : vector<2x128xf32> to vector<2x128x1xf32>
      %cst_85 = arith.constant 3.200000e+01 : f32
      %199 = vector.broadcast %cst_85 : f32 to vector<2x128x1xf32>
      %200 = arith.divf %198, %199 : vector<2x128x1xf32>
      %201 = vector.broadcast %200 : vector<2x128x1xf32> to vector<2x128x32xf32>
      %202 = arith.subf %194, %201 : vector<2x128x32xf32>
      %203 = arith.mulf %202, %202 : vector<2x128x32xf32>
      %cst_86 = arith.constant dense<0.000000e+00> : vector<2x128xf32>
      %204 = vector.multi_reduction <add>, %203, %cst_86 [2] : vector<2x128x32xf32> to vector<2x128xf32>
      %205 = vector.shape_cast %204 : vector<2x128xf32> to vector<2x128x1xf32>
      %cst_87 = arith.constant 3.200000e+01 : f32
      %206 = vector.broadcast %cst_87 : f32 to vector<2x128x1xf32>
      %207 = arith.divf %205, %206 : vector<2x128x1xf32>
      %208 = vector.broadcast %200 : vector<2x128x1xf32> to vector<2x128x32xf32>
      %209 = arith.subf %194, %208 : vector<2x128x32xf32>
      %cst_88 = arith.constant 9.99999974E-6 : f32
      %210 = vector.broadcast %cst_88 : f32 to vector<2x128x1xf32>
      %211 = arith.addf %207, %210 : vector<2x128x1xf32>
      %212 = math.rsqrt %211 : vector<2x128x1xf32>
      %213 = vector.broadcast %212 : vector<2x128x1xf32> to vector<2x128x32xf32>
      %214 = arith.mulf %209, %213 : vector<2x128x32xf32>
      %215 = vector.shape_cast %195 : vector<1x32xf32> to vector<1x1x32xf32>
      %216 = vector.broadcast %215 : vector<1x1x32xf32> to vector<2x128x32xf32>
      %217 = arith.mulf %214, %216 : vector<2x128x32xf32>
      %218 = vector.shape_cast %196 : vector<1x32xf32> to vector<1x1x32xf32>
      %219 = vector.broadcast %218 : vector<1x1x32xf32> to vector<2x128x32xf32>
      %220 = arith.addf %217, %219 : vector<2x128x32xf32>
      %c0_89 = arith.constant 0 : index
      %c0_90 = arith.constant 0 : index
      %c0_91 = arith.constant 0 : index
      %221 = vector.load %arg20[%c0_89, %c0_90, %c0_91] : memref<2x128x32xf32, #tpu.memory_space<vmem>>, vector<2x128x32xf32>
      tpu.vector_store %arg20[%c0_89, %c0_90, %c0_91], %220 {strides = array<i32>} : memref<2x128x32xf32, #tpu.memory_space<vmem>>, vector<2x128x32xf32>,
      %c0_92 = arith.constant 0 : index
      %c0_93 = arith.constant 0 : index
      %c0_94 = arith.constant 0 : index
      %222 = vector.load %arg3[%c0_92, %c0_93, %c0_94] : memref<2x128x1xf32, #tpu.memory_space<vmem>>, vector<2x128x1xf32>
      %223 = vector.broadcast %222 : vector<2x128x1xf32> to vector<2x128x32xf32>
      %224 = arith.mulf %220, %223 : vector<2x128x32xf32>
      %cst_95 = arith.constant dense<0.000000e+00> : vector<2x32xf32>
      %225 = vector.multi_reduction <add>, %224, %cst_95 [1] : vector<2x128x32xf32> to vector<2x32xf32>
      %c0_96 = arith.constant 0 : index
      %c0_97 = arith.constant 0 : index
      %226 = vector.load %arg18[%c0_96, %c0_97] : memref<32x16xf32, #tpu.memory_space<vmem>>, vector<32x16xf32>
      %cst_98 = arith.constant dense<0.000000e+00> : vector<2x16xf32>
      %227 = tpu.matmul %225, %226, %cst_98 {dimension_numbers = #tpu.dot_dimension_numbers<[1], [0], [0], [1], [0, 0, 1, 1], [], []>} : vector<2x32xf32>, vector<32x16xf32>, vector<2x16xf32> -> vector<2x16xf32>
      %c0_99 = arith.constant 0 : index
      %c0_100 = arith.constant 0 : index
      %228 = vector.load %arg19[%c0_99, %c0_100] : memref<2x16xf32, #tpu.memory_space<vmem>>, vector<2x16xf32>
      tpu.vector_store %arg19[%c0_99, %c0_100], %227 {strides = array<i32>} : memref<2x16xf32, #tpu.memory_space<vmem>>, vector<2x16xf32>,
    } else {
    }
    return
  }
  func.func @transform_0(%arg0: i32, %arg1: i32) -> (i32, i32, i32) {
    %c0_i32 = arith.constant 0 : i32
    %c0_i32_0 = arith.constant 0 : i32
    %c0_i32_1 = arith.constant 0 : i32
    return %arg0, %c0_i32, %c0_i32_0 : i32, i32, i32
  }
  func.func @transform_1(%arg0: i32, %arg1: i32) -> (i32, i32, i32) {
    %c0_i32 = arith.constant 0 : i32
    %c0_i32_0 = arith.constant 0 : i32
    %c0_i32_1 = arith.constant 0 : i32
    return %arg0, %c0_i32, %c0_i32_0 : i32, i32, i32
  }
  func.func @transform_2(%arg0: i32, %arg1: i32) -> (i32, i32, i32) {
    %c0_i32 = arith.constant 0 : i32
    %c0_i32_0 = arith.constant 0 : i32
    %c0_i32_1 = arith.constant 0 : i32
    return %arg1, %c0_i32, %c0_i32_0 : i32, i32, i32
  }
  func.func @transform_3(%arg0: i32, %arg1: i32) -> (i32, i32, i32) {
    %c0_i32 = arith.constant 0 : i32
    %c0_i32_0 = arith.constant 0 : i32
    %c0_i32_1 = arith.constant 0 : i32
    return %arg1, %c0_i32, %c0_i32_0 : i32, i32, i32
  }
  func.func @transform_4(%arg0: i32, %arg1: i32) -> (i32, i32, i32) {
    %c0_i32 = arith.constant 0 : i32
    %c0_i32_0 = arith.constant 0 : i32
    %c0_i32_1 = arith.constant 0 : i32
    return %arg1, %c0_i32, %c0_i32_0 : i32, i32, i32
  }
  func.func @transform_5(%arg0: i32, %arg1: i32) -> (i32, i32, i32) {
    %c0_i32 = arith.constant 0 : i32
    %c0_i32_0 = arith.constant 0 : i32
    %c0_i32_1 = arith.constant 0 : i32
    return %arg1, %c0_i32, %c0_i32_0 : i32, i32, i32
  }
  func.func @transform_6(%arg0: i32, %arg1: i32) -> (i32, i32, i32) {
    %c0_i32 = arith.constant 0 : i32
    %c0_i32_0 = arith.constant 0 : i32
    %c0_i32_1 = arith.constant 0 : i32
    return %arg1, %c0_i32, %c0_i32_0 : i32, i32, i32
  }
  func.func @transform_7(%arg0: i32, %arg1: i32) -> (i32, i32, i32) {
    %c0_i32 = arith.constant 0 : i32
    %c0_i32_0 = arith.constant 0 : i32
    %c0_i32_1 = arith.constant 0 : i32
    return %arg1, %c0_i32, %c0_i32_0 : i32, i32, i32
  }
  func.func @transform_8(%arg0: i32, %arg1: i32) -> (i32, i32, i32) {
    %c0_i32 = arith.constant 0 : i32
    %c0_i32_0 = arith.constant 0 : i32
    %c0_i32_1 = arith.constant 0 : i32
    return %arg1, %c0_i32, %c0_i32_0 : i32, i32, i32
  }
  func.func @transform_9(%arg0: i32, %arg1: i32) -> (i32, i32, i32) {
    %c0_i32 = arith.constant 0 : i32
    %c0_i32_0 = arith.constant 0 : i32
    %c0_i32_1 = arith.constant 0 : i32
    return %arg1, %c0_i32, %c0_i32_0 : i32, i32, i32
  }
  func.func @transform_10(%arg0: i32, %arg1: i32) -> (i32, i32, i32) {
    %c0_i32 = arith.constant 0 : i32
    %c0_i32_0 = arith.constant 0 : i32
    %c0_i32_1 = arith.constant 0 : i32
    return %arg1, %c0_i32, %c0_i32_0 : i32, i32, i32
  }
  func.func @transform_11(%arg0: i32, %arg1: i32) -> (i32, i32, i32) {
    %c0_i32 = arith.constant 0 : i32
    %c0_i32_0 = arith.constant 0 : i32
    %c0_i32_1 = arith.constant 0 : i32
    return %arg1, %c0_i32, %c0_i32_0 : i32, i32, i32
  }
  func.func @transform_12(%arg0: i32, %arg1: i32) -> (i32, i32, i32) {
    %c0_i32 = arith.constant 0 : i32
    %c0_i32_0 = arith.constant 0 : i32
    %c0_i32_1 = arith.constant 0 : i32
    return %arg1, %c0_i32, %c0_i32_0 : i32, i32, i32
  }
  func.func @transform_13(%arg0: i32, %arg1: i32) -> (i32, i32, i32) {
    %c0_i32 = arith.constant 0 : i32
    %c0_i32_0 = arith.constant 0 : i32
    %c0_i32_1 = arith.constant 0 : i32
    return %arg1, %c0_i32, %c0_i32_0 : i32, i32, i32
  }
  func.func @transform_14(%arg0: i32, %arg1: i32) -> (i32, i32) {
    %c0_i32 = arith.constant 0 : i32
    %c0_i32_0 = arith.constant 0 : i32
    %c0_i32_1 = arith.constant 0 : i32
    return %c0_i32, %c0_i32_0 : i32, i32
  }
  func.func @transform_15(%arg0: i32, %arg1: i32) -> (i32, i32) {
    %c0_i32 = arith.constant 0 : i32
    %c0_i32_0 = arith.constant 0 : i32
    %c0_i32_1 = arith.constant 0 : i32
    return %c0_i32, %c0_i32_0 : i32, i32
  }
  func.func @transform_16(%arg0: i32, %arg1: i32) -> (i32, i32) {
    %c0_i32 = arith.constant 0 : i32
    %c0_i32_0 = arith.constant 0 : i32
    %c0_i32_1 = arith.constant 0 : i32
    return %c0_i32, %c0_i32_0 : i32, i32
  }
  func.func @transform_17(%arg0: i32, %arg1: i32) -> (i32, i32) {
    %c0_i32 = arith.constant 0 : i32
    %c0_i32_0 = arith.constant 0 : i32
    return %arg0, %c0_i32 : i32, i32
  }
  func.func @transform_18(%arg0: i32, %arg1: i32) -> (i32, i32, i32) {
    %c0_i32 = arith.constant 0 : i32
    %c0_i32_0 = arith.constant 0 : i32
    %c0_i32_1 = arith.constant 0 : i32
    return %arg0, %c0_i32, %c0_i32_0 : i32, i32, i32
  }
}

</mosaic_0001>

<llo_original>
// kernel: _lambda_.1
$region0: #{_lambda_.1}
  #allocation0 [shape = 'u32[]', space=smem, size = 0x4, offset = 0x4, fixed_abs, tag = 'smem constant byte address 0x4 - core index']
  #allocation1 [shape = 'u32[144,128]{1,0:T(1,128)}', space=vmem, size = 0x12000, scoped, tag = 'internal scratch']
  #allocation2 [shape = 'f32[128,128]{1,0:T(8,128)}', space=vmem, size = 0x10000, scoped, tag = 'scratch operand']
  %s0 = inlined_call_operand.hbm [shape: f32[2,128,32], index: 0, kind: input, shape index: {}]
  %s1 = inlined_call_operand.hbm [shape: f32[2,128,1], index: 1, kind: input, shape index: {}]
  %s2 = inlined_call_operand.hbm [shape: f32[2,1,32], index: 2, kind: input, shape index: {}]
  %s3 = inlined_call_operand.hbm [shape: f32[2,1,32], index: 3, kind: input, shape index: {}]
  %s4 = inlined_call_operand.hbm [shape: bf16[2,32,96], index: 4, kind: input, shape index: {}]
  %s5 = inlined_call_operand.hbm [shape: f32[2,1,96], index: 5, kind: input, shape index: {}]
  %s6 = inlined_call_operand.hbm [shape: bf16[2,32,32], index: 6, kind: input, shape index: {}]
  %s7 = inlined_call_operand.hbm [shape: f32[2,1,32], index: 7, kind: input, shape index: {}]
  %s8 = inlined_call_operand.hbm [shape: f32[2,1,32], index: 8, kind: input, shape index: {}]
  %s9 = inlined_call_operand.hbm [shape: f32[2,1,32], index: 9, kind: input, shape index: {}]
  %s10 = inlined_call_operand.hbm [shape: bf16[2,32,128], index: 10, kind: input, shape index: {}]
  %s11 = inlined_call_operand.hbm [shape: f32[2,1,128], index: 11, kind: input, shape index: {}]
  %s12 = inlined_call_operand.hbm [shape: bf16[2,128,32], index: 12, kind: input, shape index: {}]
  %s13 = inlined_call_operand.hbm [shape: f32[2,1,32], index: 13, kind: input, shape index: {}]
  %s14 = inlined_call_operand.hbm [shape: f32[1,32], index: 14, kind: input, shape index: {}]
  %s15 = inlined_call_operand.hbm [shape: f32[1,32], index: 15, kind: input, shape index: {}]
  %s16 = inlined_call_operand.hbm [shape: f32[32,16], index: 16, kind: input, shape index: {}]
  %s17 = inlined_call_operand.hbm [shape: f32[2,16], index: 17, kind: output, shape index: {0}]
  %s18 = inlined_call_operand.hbm [shape: f32[2,128,32], index: 18, kind: output, shape index: {1}]
  %19 = xla_tuple %s17, %s18
  %s20 = sld [smem:[#allocation0]]
  $region185: #{_lambda_.1} parent=0
    _
  %s22 = ssub.s32 1, %s20
  %s23 = scalar_select 0, %s22, %s20
  $region1: #{_lambda_.1} parent=0
    #allocation3 [shape = 'u8[131072]{0}', space=vmem, size = 0x20000, scoped, tag = 'input window, operand 0, single buffered']
    #allocation4 [shape = 's32[2]{0}', space=sflag, size = 0x8, scoped, tag = 'scoped memory for _lambda_.1']
    #allocation5 [shape = 's32[2]{0}', space=sflag, size = 0x8, scoped, tag = 'scoped memory for _lambda_.1']
    #allocation6 [shape = 'u8[131072]{0}', space=vmem, size = 0x20000, scoped, tag = 'input window, operand 1, single buffered']
    #allocation7 [shape = 's32[1]{0}', space=sflag, size = 0x4, scoped, tag = 'scoped memory for _lambda_.1']
    #allocation8 [shape = 'u8[1024]{0}', space=vmem, size = 0x400, scoped, tag = 'input window, operand 2']
    #allocation9 [shape = 'u8[1024]{0}', space=vmem, size = 0x400, scoped, tag = 'input window, operand 3']
    #allocation10 [shape = 'u8[16384]{0}', space=vmem, size = 0x4000, scoped, tag = 'input window, operand 4']
    #allocation11 [shape = 'u8[1024]{0}', space=vmem, size = 0x400, scoped, tag = 'input window, operand 5']
    #allocation12 [shape = 'u8[16384]{0}', space=vmem, size = 0x4000, scoped, tag = 'input window, operand 6']
    #allocation13 [shape = 'u8[1024]{0}', space=vmem, size = 0x400, scoped, tag = 'input window, operand 7']
    #allocation14 [shape = 'u8[1024]{0}', space=vmem, size = 0x400, scoped, tag = 'input window, operand 8']
    #allocation15 [shape = 'u8[1024]{0}', space=vmem, size = 0x400, scoped, tag = 'input window, operand 9']
    #allocation16 [shape = 'u8[16384]{0}', space=vmem, size = 0x4000, scoped, tag = 'input window, operand 10']
    #allocation17 [shape = 'u8[1024]{0}', space=vmem, size = 0x400, scoped, tag = 'input window, operand 11']
    #allocation18 [shape = 'u8[65536]{0}', space=vmem, size = 0x10000, scoped, tag = 'input window, operand 12']
    #allocation19 [shape = 'u8[1024]{0}', space=vmem, size = 0x400, scoped, tag = 'input window, operand 13']
    #allocation20 [shape = 'u8[512]{0}', space=vmem, size = 0x400, scoped, tag = 'input window, operand 14, single buffered']
    #allocation21 [shape = 'u8[512]{0}', space=vmem, size = 0x400, scoped, tag = 'input window, operand 15, single buffered']
    #allocation22 [shape = 's32[1]{0}', space=sflag, size = 0x4, scoped, tag = 'scoped memory for _lambda_.1']
    #allocation23 [shape = 'u8[16384]{0}', space=vmem, size = 0x4000, scoped, tag = 'input window, operand 16, single buffered']
    #allocation24 [shape = 'u8[1024]{0}', space=vmem, size = 0x400, scoped, tag = 'output window, operand 0, single buffered']
    #allocation25 [shape = 'u8[131072]{0}', space=vmem, size = 0x20000, scoped, tag = 'output window, operand 1, single buffered']
    #allocation26 [shape = 's32[1]{0}', space=sflag, size = 0x4, scoped, tag = 'scoped memory for _lambda_.1']
    %24 = vsyncpa [#allocation4], 0
    %25 = vsyncpa [#allocation7], 0
    %26 = vsyncpa [#allocation22], 0
    %27 = vsyncpa [#allocation5], 0
    %28 = vsyncpa [#allocation26], 0
    loop: start=0, step=1, limit=4
    $region2: #{_lambda_.1} parent=1 // loop_pre_header
      _
    $region3: #{_lambda_.1} parent=1 // loop_header
      %s30 = sphi 0, %s34
      %p31 = scmp.ge.s32.totalorder %s30, 4
      %s37 = sphi 0, %s49
      %s38 = sphi 0, %s45
      %s39 = sphi 0, %s37
      %s40 = sphi 0, %s38
      %s41 = sphi 0, %s39
      %s42 = sphi 0, %s40
      %s52 = sphi 0, %s54
      %s55 = sphi 0, %s52
      %s56 = sphi 0, %s55
      %s72 = sphi 0, %s56
      %s78 = sphi 0, %s80
      %s81 = sphi 0, %s78
      %s82 = sphi 0, %s81
      %s98 = sphi 0, %s82
      %s104 = sphi 0, %s106
      %s107 = sphi 0, %s104
      %s108 = sphi 0, %s107
      %s124 = sphi 0, %s108
      %s130 = sphi 0, %s132
      %s133 = sphi 0, %s130
      %s134 = sphi 0, %s133
      %s150 = sphi 0, %s134
      %s156 = sphi 0, %s158
      %s159 = sphi 0, %s156
      %s160 = sphi 0, %s159
      %s176 = sphi 0, %s160
      %s182 = sphi 0, %s184
      %s185 = sphi 0, %s182
      %s186 = sphi 0, %s185
      %s202 = sphi 0, %s186
      %s208 = sphi 0, %s210
      %s211 = sphi 0, %s208
      %s212 = sphi 0, %s211
      %s228 = sphi 0, %s212
      %s234 = sphi 0, %s236
      %s237 = sphi 0, %s234
      %s238 = sphi 0, %s237
      %s254 = sphi 0, %s238
      %s260 = sphi 0, %s262
      %s263 = sphi 0, %s260
      %s264 = sphi 0, %s263
      %s280 = sphi 0, %s264
      %s286 = sphi 0, %s288
      %s289 = sphi 0, %s286
      %s290 = sphi 0, %s289
      %s306 = sphi 0, %s290
      %s312 = sphi 0, %s314
      %s315 = sphi 0, %s312
      %s316 = sphi 0, %s315
      %s332 = sphi 0, %s316
      %s338 = sphi 0, %s340
      %s341 = sphi 0, %s338
      %s342 = sphi 0, %s341
      %s358 = sphi 0, %s342
      %s364 = sphi 0, %s366
      %s367 = sphi 0, %s364
      %s368 = sphi 0, %s367
      %s384 = sphi 0, %s368
      %s390 = sphi 0, %s392
      %s393 = sphi 0, %s390
      %s394 = sphi 0, %s393
      %s410 = sphi 0, %s394
      %s414 = sphi 0, %s414
      %s416 = sphi 0, %s414
      %s417 = sphi 0, %s416
      %s431 = sphi 0, %s417
      %s435 = sphi 0, %s435
      %s437 = sphi 0, %s435
      %s438 = sphi 0, %s437
      %s452 = sphi 0, %s438
      %s456 = sphi 0, %s456
      %s458 = sphi 0, %s456
      %s459 = sphi 0, %s458
      %s473 = sphi 0, %s459
      %s479 = sphi 0, %s481
      %s482 = sphi 0, %s479
      %s483 = sphi 0, %s482
      %s499 = sphi 0, %s483
      %s505 = sphi 0, %s507
      %s508 = sphi 0, %s505
      %s509 = sphi 0, %s508
      %s525 = sphi 0, %s509
    $region4: #{_lambda_.1} parent=1 // loop_header_branch
      %33 = sbr.rel (%p31) target = $region8
    $region5: #{_lambda_.1} parent=1 // loop_body
      %s35 = ssub.s32 %s30, 1
      %s36 = ssub.s32 %s30, 2
      %s43 = sadd.s32 1, %s38
      %p44 = scmp.ge.s32.totalorder %s43, 2
      %s45 = scalar_select %p44, 0, %s43
      %s46 = sadd.s32 1, %s37
      %s47 = scalar_select %p44, %s46, %s37
      %p48 = scmp.ge.s32.totalorder %s47, 1
      %s49 = scalar_select %p48, 0, %s47
      %s50 = ssub.s32 %s37, %s49
      %p51 = scmp.eq.s32.totalorder %s50, 0
      %s53 = sadd.s32 %s52, 1
      %s54 = scalar_select %p51, %s52, %s53
      %p57 = pneg %p51
      %p58 = scmp.eq.s32.totalorder %s30, 1
      %p59 = por %p57, %p58
      %p60 = scmp.ne.s32.totalorder %s52, %s55
      %p61 = scmp.eq.s32.totalorder %s30, 0
      %p62 = por %p60, %p61
      %p63 = scmp.ne.s32.totalorder %s52, %s55
      %p64 = scmp.eq.s32.totalorder %s35, 1
      %p65 = por %p63, %p64
      %p66 = scmp.ne.s32.totalorder %s55, %s56
      %p67 = scmp.eq.s32.totalorder %s35, 0
      %p68 = por %p66, %p67
      %p69 = scmp.ne.s32.totalorder %s55, %s56
      %p70 = scmp.eq.s32.totalorder %s36, 1
      %p71 = por %p69, %p70
      %p73 = scmp.ne.s32.totalorder %s56, %s72
      %p74 = scmp.eq.s32.totalorder %s36, 0
      %p75 = por %p73, %p74
      %s76 = ssub.s32 %s37, %s49
      %p77 = scmp.eq.s32.totalorder %s76, 0
      %s79 = sadd.s32 %s78, 1
      %s80 = scalar_select %p77, %s78, %s79
      %p83 = pneg %p77
      %p84 = scmp.eq.s32.totalorder %s30, 1
      %p85 = por %p83, %p84
      %p86 = scmp.ne.s32.totalorder %s78, %s81
      %p87 = scmp.eq.s32.totalorder %s30, 0
      %p88 = por %p86, %p87
      %p89 = scmp.ne.s32.totalorder %s78, %s81
      %p90 = scmp.eq.s32.totalorder %s35, 1
      %p91 = por %p89, %p90
      %p92 = scmp.ne.s32.totalorder %s81, %s82
      %p93 = scmp.eq.s32.totalorder %s35, 0
      %p94 = por %p92, %p93
      %p95 = scmp.ne.s32.totalorder %s81, %s82
      %p96 = scmp.eq.s32.totalorder %s36, 1
      %p97 = por %p95, %p96
      %p99 = scmp.ne.s32.totalorder %s82, %s98
      %p100 = scmp.eq.s32.totalorder %s36, 0
      %p101 = por %p99, %p100
      %s102 = ssub.s32 %s38, %s45
      %p103 = scmp.eq.s32.totalorder %s102, 0
      %s105 = sadd.s32 %s104, 1
      %s106 = scalar_select %p103, %s104, %s105
      %p109 = pneg %p103
      %p110 = scmp.eq.s32.totalorder %s30, 1
      %p111 = por %p109, %p110
      %p112 = scmp.ne.s32.totalorder %s104, %s107
      %p113 = scmp.eq.s32.totalorder %s30, 0
      %p114 = por %p112, %p113
      %p115 = scmp.ne.s32.totalorder %s104, %s107
      %p116 = scmp.eq.s32.totalorder %s35, 1
      %p117 = por %p115, %p116
      %p118 = scmp.ne.s32.totalorder %s107, %s108
      %p119 = scmp.eq.s32.totalorder %s35, 0
      %p120 = por %p118, %p119
      %p121 = scmp.ne.s32.totalorder %s107, %s108
      %p122 = scmp.eq.s32.totalorder %s36, 1
      %p123 = por %p121, %p122
      %p125 = scmp.ne.s32.totalorder %s108, %s124
      %p126 = scmp.eq.s32.totalorder %s36, 0
      %p127 = por %p125, %p126
      %s128 = ssub.s32 %s38, %s45
      %p129 = scmp.eq.s32.totalorder %s128, 0
      %s131 = sadd.s32 %s130, 1
      %s132 = scalar_select %p129, %s130, %s131
      %p135 = pneg %p129
      %p136 = scmp.eq.s32.totalorder %s30, 1
      %p137 = por %p135, %p136
      %p138 = scmp.ne.s32.totalorder %s130, %s133
      %p139 = scmp.eq.s32.totalorder %s30, 0
      %p140 = por %p138, %p139
      %p141 = scmp.ne.s32.totalorder %s130, %s133
      %p142 = scmp.eq.s32.totalorder %s35, 1
      %p143 = por %p141, %p142
      %p144 = scmp.ne.s32.totalorder %s133, %s134
      %p145 = scmp.eq.s32.totalorder %s35, 0
      %p146 = por %p144, %p145
      %p147 = scmp.ne.s32.totalorder %s133, %s134
      %p148 = scmp.eq.s32.totalorder %s36, 1
      %p149 = por %p147, %p148
      %p151 = scmp.ne.s32.totalorder %s134, %s150
      %p152 = scmp.eq.s32.totalorder %s36, 0
      %p153 = por %p151, %p152
      %s154 = ssub.s32 %s38, %s45
      %p155 = scmp.eq.s32.totalorder %s154, 0
      %s157 = sadd.s32 %s156, 1
      %s158 = scalar_select %p155, %s156, %s157
      %p161 = pneg %p155
      %p162 = scmp.eq.s32.totalorder %s30, 1
      %p163 = por %p161, %p162
      %p164 = scmp.ne.s32.totalorder %s156, %s159
      %p165 = scmp.eq.s32.totalorder %s30, 0
      %p166 = por %p164, %p165
      %p167 = scmp.ne.s32.totalorder %s156, %s159
      %p168 = scmp.eq.s32.totalorder %s35, 1
      %p169 = por %p167, %p168
      %p170 = scmp.ne.s32.totalorder %s159, %s160
      %p171 = scmp.eq.s32.totalorder %s35, 0
      %p172 = por %p170, %p171
      %p173 = scmp.ne.s32.totalorder %s159, %s160
      %p174 = scmp.eq.s32.totalorder %s36, 1
      %p175 = por %p173, %p174
      %p177 = scmp.ne.s32.totalorder %s160, %s176
      %p178 = scmp.eq.s32.totalorder %s36, 0
      %p179 = por %p177, %p178
      %s180 = ssub.s32 %s38, %s45
      %p181 = scmp.eq.s32.totalorder %s180, 0
      %s183 = sadd.s32 %s182, 1
      %s184 = scalar_select %p181, %s182, %s183
      %p187 = pneg %p181
      %p188 = scmp.eq.s32.totalorder %s30, 1
      %p189 = por %p187, %p188
      %p190 = scmp.ne.s32.totalorder %s182, %s185
      %p191 = scmp.eq.s32.totalorder %s30, 0
      %p192 = por %p190, %p191
      %p193 = scmp.ne.s32.totalorder %s182, %s185
      %p194 = scmp.eq.s32.totalorder %s35, 1
      %p195 = por %p193, %p194
      %p196 = scmp.ne.s32.totalorder %s185, %s186
      %p197 = scmp.eq.s32.totalorder %s35, 0
      %p198 = por %p196, %p197
      %p199 = scmp.ne.s32.totalorder %s185, %s186
      %p200 = scmp.eq.s32.totalorder %s36, 1
      %p201 = por %p199, %p200
      %p203 = scmp.ne.s32.totalorder %s186, %s202
      %p204 = scmp.eq.s32.totalorder %s36, 0
      %p205 = por %p203, %p204
      %s206 = ssub.s32 %s38, %s45
      %p207 = scmp.eq.s32.totalorder %s206, 0
      %s209 = sadd.s32 %s208, 1
      %s210 = scalar_select %p207, %s208, %s209
      %p213 = pneg %p207
      %p214 = scmp.eq.s32.totalorder %s30, 1
      %p215 = por %p213, %p214
      %p216 = scmp.ne.s32.totalorder %s208, %s211
      %p217 = scmp.eq.s32.totalorder %s30, 0
      %p218 = por %p216, %p217
      %p219 = scmp.ne.s32.totalorder %s208, %s211
      %p220 = scmp.eq.s32.totalorder %s35, 1
      %p221 = por %p219, %p220
      %p222 = scmp.ne.s32.totalorder %s211, %s212
      %p223 = scmp.eq.s32.totalorder %s35, 0
      %p224 = por %p222, %p223
      %p225 = scmp.ne.s32.totalorder %s211, %s212
      %p226 = scmp.eq.s32.totalorder %s36, 1
      %p227 = por %p225, %p226
      %p229 = scmp.ne.s32.totalorder %s212, %s228
      %p230 = scmp.eq.s32.totalorder %s36, 0
      %p231 = por %p229, %p230
      %s232 = ssub.s32 %s38, %s45
      %p233 = scmp.eq.s32.totalorder %s232, 0
      %s235 = sadd.s32 %s234, 1
      %s236 = scalar_select %p233, %s234, %s235
      %p239 = pneg %p233
      %p240 = scmp.eq.s32.totalorder %s30, 1
      %p241 = por %p239, %p240
      %p242 = scmp.ne.s32.totalorder %s234, %s237
      %p243 = scmp.eq.s32.totalorder %s30, 0
      %p244 = por %p242, %p243
      %p245 = scmp.ne.s32.totalorder %s234, %s237
      %p246 = scmp.eq.s32.totalorder %s35, 1
      %p247 = por %p245, %p246
      %p248 = scmp.ne.s32.totalorder %s237, %s238
      %p249 = scmp.eq.s32.totalorder %s35, 0
      %p250 = por %p248, %p249
      %p251 = scmp.ne.s32.totalorder %s237, %s238
      %p252 = scmp.eq.s32.totalorder %s36, 1
      %p253 = por %p251, %p252
      %p255 = scmp.ne.s32.totalorder %s238, %s254
      %p256 = scmp.eq.s32.totalorder %s36, 0
      %p257 = por %p255, %p256
      %s258 = ssub.s32 %s38, %s45
      %p259 = scmp.eq.s32.totalorder %s258, 0
      %s261 = sadd.s32 %s260, 1
      %s262 = scalar_select %p259, %s260, %s261
      %p265 = pneg %p259
      %p266 = scmp.eq.s32.totalorder %s30, 1
      %p267 = por %p265, %p266
      %p268 = scmp.ne.s32.totalorder %s260, %s263
      %p269 = scmp.eq.s32.totalorder %s30, 0
      %p270 = por %p268, %p269
      %p271 = scmp.ne.s32.totalorder %s260, %s263
      %p272 = scmp.eq.s32.totalorder %s35, 1
      %p273 = por %p271, %p272
      %p274 = scmp.ne.s32.totalorder %s263, %s264
      %p275 = scmp.eq.s32.totalorder %s35, 0
      %p276 = por %p274, %p275
      %p277 = scmp.ne.s32.totalorder %s263, %s264
      %p278 = scmp.eq.s32.totalorder %s36, 1
      %p279 = por %p277, %p278
      %p281 = scmp.ne.s32.totalorder %s264, %s280
      %p282 = scmp.eq.s32.totalorder %s36, 0
      %p283 = por %p281, %p282
      %s284 = ssub.s32 %s38, %s45
      %p285 = scmp.eq.s32.totalorder %s284, 0
      %s287 = sadd.s32 %s286, 1
      %s288 = scalar_select %p285, %s286, %s287
      %p291 = pneg %p285
      %p292 = scmp.eq.s32.totalorder %s30, 1
      %p293 = por %p291, %p292
      %p294 = scmp.ne.s32.totalorder %s286, %s289
      %p295 = scmp.eq.s32.totalorder %s30, 0
      %p296 = por %p294, %p295
      %p297 = scmp.ne.s32.totalorder %s286, %s289
      %p298 = scmp.eq.s32.totalorder %s35, 1
      %p299 = por %p297, %p298
      %p300 = scmp.ne.s32.totalorder %s289, %s290
      %p301 = scmp.eq.s32.totalorder %s35, 0
      %p302 = por %p300, %p301
      %p303 = scmp.ne.s32.totalorder %s289, %s290
      %p304 = scmp.eq.s32.totalorder %s36, 1
      %p305 = por %p303, %p304
      %p307 = scmp.ne.s32.totalorder %s290, %s306
      %p308 = scmp.eq.s32.totalorder %s36, 0
      %p309 = por %p307, %p308
      %s310 = ssub.s32 %s38, %s45
      %p311 = scmp.eq.s32.totalorder %s310, 0
      %s313 = sadd.s32 %s312, 1
      %s314 = scalar_select %p311, %s312, %s313
      %p317 = pneg %p311
      %p318 = scmp.eq.s32.totalorder %s30, 1
      %p319 = por %p317, %p318
      %p320 = scmp.ne.s32.totalorder %s312, %s315
      %p321 = scmp.eq.s32.totalorder %s30, 0
      %p322 = por %p320, %p321
      %p323 = scmp.ne.s32.totalorder %s312, %s315
      %p324 = scmp.eq.s32.totalorder %s35, 1
      %p325 = por %p323, %p324
      %p326 = scmp.ne.s32.totalorder %s315, %s316
      %p327 = scmp.eq.s32.totalorder %s35, 0
      %p328 = por %p326, %p327
      %p329 = scmp.ne.s32.totalorder %s315, %s316
      %p330 = scmp.eq.s32.totalorder %s36, 1
      %p331 = por %p329, %p330
      %p333 = scmp.ne.s32.totalorder %s316, %s332
      %p334 = scmp.eq.s32.totalorder %s36, 0
      %p335 = por %p333, %p334
      %s336 = ssub.s32 %s38, %s45
      %p337 = scmp.eq.s32.totalorder %s336, 0
      %s339 = sadd.s32 %s338, 1
      %s340 = scalar_select %p337, %s338, %s339
      %p343 = pneg %p337
      %p344 = scmp.eq.s32.totalorder %s30, 1
      %p345 = por %p343, %p344
      %p346 = scmp.ne.s32.totalorder %s338, %s341
      %p347 = scmp.eq.s32.totalorder %s30, 0
      %p348 = por %p346, %p347
      %p349 = scmp.ne.s32.totalorder %s338, %s341
      %p350 = scmp.eq.s32.totalorder %s35, 1
      %p351 = por %p349, %p350
      %p352 = scmp.ne.s32.totalorder %s341, %s342
      %p353 = scmp.eq.s32.totalorder %s35, 0
      %p354 = por %p352, %p353
      %p355 = scmp.ne.s32.totalorder %s341, %s342
      %p356 = scmp.eq.s32.totalorder %s36, 1
      %p357 = por %p355, %p356
      %p359 = scmp.ne.s32.totalorder %s342, %s358
      %p360 = scmp.eq.s32.totalorder %s36, 0
      %p361 = por %p359, %p360
      %s362 = ssub.s32 %s38, %s45
      %p363 = scmp.eq.s32.totalorder %s362, 0
      %s365 = sadd.s32 %s364, 1
      %s366 = scalar_select %p363, %s364, %s365
      %p369 = pneg %p363
      %p370 = scmp.eq.s32.totalorder %s30, 1
      %p371 = por %p369, %p370
      %p372 = scmp.ne.s32.totalorder %s364, %s367
      %p373 = scmp.eq.s32.totalorder %s30, 0
      %p374 = por %p372, %p373
      %p375 = scmp.ne.s32.totalorder %s364, %s367
      %p376 = scmp.eq.s32.totalorder %s35, 1
      %p377 = por %p375, %p376
      %p378 = scmp.ne.s32.totalorder %s367, %s368
      %p379 = scmp.eq.s32.totalorder %s35, 0
      %p380 = por %p378, %p379
      %p381 = scmp.ne.s32.totalorder %s367, %s368
      %p382 = scmp.eq.s32.totalorder %s36, 1
      %p383 = por %p381, %p382
      %p385 = scmp.ne.s32.totalorder %s368, %s384
      %p386 = scmp.eq.s32.totalorder %s36, 0
      %p387 = por %p385, %p386
      %s388 = ssub.s32 %s38, %s45
      %p389 = scmp.eq.s32.totalorder %s388, 0
      %s391 = sadd.s32 %s390, 1
      %s392 = scalar_select %p389, %s390, %s391
      %p395 = pneg %p389
      %p396 = scmp.eq.s32.totalorder %s30, 1
      %p397 = por %p395, %p396
      %p398 = scmp.ne.s32.totalorder %s390, %s393
      %p399 = scmp.eq.s32.totalorder %s30, 0
      %p400 = por %p398, %p399
      %p401 = scmp.ne.s32.totalorder %s390, %s393
      %p402 = scmp.eq.s32.totalorder %s35, 1
      %p403 = por %p401, %p402
      %p404 = scmp.ne.s32.totalorder %s393, %s394
      %p405 = scmp.eq.s32.totalorder %s35, 0
      %p406 = por %p404, %p405
      %p407 = scmp.ne.s32.totalorder %s393, %s394
      %p408 = scmp.eq.s32.totalorder %s36, 1
      %p409 = por %p407, %p408
      %p411 = scmp.ne.s32.totalorder %s394, %s410
      %p412 = scmp.eq.s32.totalorder %s36, 0
      %p413 = por %p411, %p412
      %s415 = sadd.s32 %s414, 1
      %p418 = scmp.eq.s32.totalorder %s30, 1
      %p419 = scmp.ne.s32.totalorder %s414, %s416
      %p420 = scmp.eq.s32.totalorder %s30, 0
      %p421 = por %p419, %p420
      %p422 = scmp.ne.s32.totalorder %s414, %s416
      %p423 = scmp.eq.s32.totalorder %s35, 1
      %p424 = por %p422, %p423
      %p425 = scmp.ne.s32.totalorder %s416, %s417
      %p426 = scmp.eq.s32.totalorder %s35, 0
      %p427 = por %p425, %p426
      %p428 = scmp.ne.s32.totalorder %s416, %s417
      %p429 = scmp.eq.s32.totalorder %s36, 1
      %p430 = por %p428, %p429
      %p432 = scmp.ne.s32.totalorder %s417, %s431
      %p433 = scmp.eq.s32.totalorder %s36, 0
      %p434 = por %p432, %p433
      %s436 = sadd.s32 %s435, 1
      %p439 = scmp.eq.s32.totalorder %s30, 1
      %p440 = scmp.ne.s32.totalorder %s435, %s437
      %p441 = scmp.eq.s32.totalorder %s30, 0
      %p442 = por %p440, %p441
      %p443 = scmp.ne.s32.totalorder %s435, %s437
      %p444 = scmp.eq.s32.totalorder %s35, 1
      %p445 = por %p443, %p444
      %p446 = scmp.ne.s32.totalorder %s437, %s438
      %p447 = scmp.eq.s32.totalorder %s35, 0
      %p448 = por %p446, %p447
      %p449 = scmp.ne.s32.totalorder %s437, %s438
      %p450 = scmp.eq.s32.totalorder %s36, 1
      %p451 = por %p449, %p450
      %p453 = scmp.ne.s32.totalorder %s438, %s452
      %p454 = scmp.eq.s32.totalorder %s36, 0
      %p455 = por %p453, %p454
      %s457 = sadd.s32 %s456, 1
      %p460 = scmp.eq.s32.totalorder %s30, 1
      %p461 = scmp.ne.s32.totalorder %s456, %s458
      %p462 = scmp.eq.s32.totalorder %s30, 0
      %p463 = por %p461, %p462
      %p464 = scmp.ne.s32.totalorder %s456, %s458
      %p465 = scmp.eq.s32.totalorder %s35, 1
      %p466 = por %p464, %p465
      %p467 = scmp.ne.s32.totalorder %s458, %s459
      %p468 = scmp.eq.s32.totalorder %s35, 0
      %p469 = por %p467, %p468
      %p470 = scmp.ne.s32.totalorder %s458, %s459
      %p471 = scmp.eq.s32.totalorder %s36, 1
      %p472 = por %p470, %p471
      %p474 = scmp.ne.s32.totalorder %s459, %s473
      %p475 = scmp.eq.s32.totalorder %s36, 0
      %p476 = por %p474, %p475
      %s477 = ssub.s32 %s37, %s49
      %p478 = scmp.eq.s32.totalorder %s477, 0
      %s480 = sadd.s32 %s479, 1
      %s481 = scalar_select %p478, %s479, %s480
      %p484 = pneg %p478
      %p485 = scmp.eq.s32.totalorder %s30, 1
      %p486 = por %p484, %p485
      %p487 = scmp.ne.s32.totalorder %s479, %s482
      %p488 = scmp.eq.s32.totalorder %s30, 0
      %p489 = por %p487, %p488
      %p490 = scmp.ne.s32.totalorder %s479, %s482
      %p491 = scmp.eq.s32.totalorder %s35, 1
      %p492 = por %p490, %p491
      %p493 = scmp.ne.s32.totalorder %s482, %s483
      %p494 = scmp.eq.s32.totalorder %s35, 0
      %p495 = por %p493, %p494
      %p496 = scmp.ne.s32.totalorder %s482, %s483
      %p497 = scmp.eq.s32.totalorder %s36, 1
      %p498 = por %p496, %p497
      %p500 = scmp.ne.s32.totalorder %s483, %s499
      %p501 = scmp.eq.s32.totalorder %s36, 0
      %p502 = por %p500, %p501
      %s503 = ssub.s32 %s37, %s49
      %p504 = scmp.eq.s32.totalorder %s503, 0
      %s506 = sadd.s32 %s505, 1
      %s507 = scalar_select %p504, %s505, %s506
      %p510 = pneg %p504
      %p511 = scmp.eq.s32.totalorder %s30, 1
      %p512 = por %p510, %p511
      %p513 = scmp.ne.s32.totalorder %s505, %s508
      %p514 = scmp.eq.s32.totalorder %s30, 0
      %p515 = por %p513, %p514
      %p516 = scmp.ne.s32.totalorder %s505, %s508
      %p517 = scmp.eq.s32.totalorder %s35, 1
      %p518 = por %p516, %p517
      %p519 = scmp.ne.s32.totalorder %s508, %s509
      %p520 = scmp.eq.s32.totalorder %s35, 0
      %p521 = por %p519, %p520
      %p522 = scmp.ne.s32.totalorder %s508, %s509
      %p523 = scmp.eq.s32.totalorder %s36, 1
      %p524 = por %p522, %p523
      %p526 = scmp.ne.s32.totalorder %s509, %s525
      %p527 = scmp.eq.s32.totalorder %s36, 0
      %p528 = por %p526, %p527
      %p529 = scmp.le.s32.totalorder 1, %s30
      %p530 = scmp.lt.s32.totalorder %s30, 3
      %p531 = pnand %p529, %p530
      %p532 = pneg %p531
      // Predicated region
      $region9: #{_lambda_.1} parent=5 // pred_check
        _
      $region10: #{_lambda_.1} parent=5 // pred_check_branch
        %534 = sbr.rel (%p531) target = $region12
      $region11: #{_lambda_.1} parent=5 // pred_region
        %s535 = ssub.s32 %s30, 1
        // Predicated region
        $region13: #{_lambda_.1} parent=11 // pred_check
          %p536 = pneg %p68
        $region14: #{_lambda_.1} parent=11 // pred_check_branch
          %538 = sbr.rel (%p536) target = $region16
        $region15: #{_lambda_.1} parent=11 // pred_region
          %s539 = smul.u32 2, %s39
          %s541 = ssub.s32 4096, 4096
          %542 = vsyncadd [#allocation4], %s541
          %s543 = smul.addr %s539, 16
          %s544 = smul.addr %s543, 128
          %s545 = scalar_lea.hbm %s0, %s544
          %s546 = sshll.u32 [#allocation3], 4
          %s547 = int_to_ptr.vmem [resolvable:$true] %s546
          %552 = dma.hbm_to_vmem [thread:$0]  %s545, 4096, %s547, [#allocation4], 128, 128, 8
        $region16: #{_lambda_.1} parent=11 // pred_fallthru
          _
        // Predicated region
        $region17: #{_lambda_.1} parent=11 // pred_check
          %p553 = pneg %p94
        $region18: #{_lambda_.1} parent=11 // pred_check_branch
          %555 = sbr.rel (%p553) target = $region20
        $region19: #{_lambda_.1} parent=11 // pred_region
          %s556 = smul.u32 2, %s39
          %s558 = ssub.s32 4096, 4096
          %559 = vsyncadd [#allocation7], %s558
          %s560 = smul.addr %s556, 16
          %s561 = smul.addr %s560, 128
          %s562 = scalar_lea.hbm %s1, %s561
          %s563 = sshll.u32 [#allocation6], 4
          %s564 = int_to_ptr.vmem [resolvable:$true] %s563
          %569 = dma.hbm_to_vmem [thread:$0]  %s562, 4096, %s564, [#allocation7], 128, 128, 8
        $region20: #{_lambda_.1} parent=11 // pred_fallthru
          _
        // Predicated region
        $region21: #{_lambda_.1} parent=11 // pred_check
          %p570 = pneg %p427
        $region22: #{_lambda_.1} parent=11 // pred_check_branch
          %572 = sbr.rel (%p570) target = $region24
        $region23: #{_lambda_.1} parent=11 // pred_region
          %s574 = ssub.s32 16, 16
          %575 = vsyncadd [#allocation7], %s574
          %s577 = sshll.u32 [#allocation20], 4
          %s578 = int_to_ptr.vmem [resolvable:$true] %s577
          %580 = dma.hbm_to_vmem [thread:$0]  %s14, 16, %s578, [#allocation7]
        $region24: #{_lambda_.1} parent=11 // pred_fallthru
          _
        // Predicated region
        $region25: #{_lambda_.1} parent=11 // pred_check
          %p581 = pneg %p448
        $region26: #{_lambda_.1} parent=11 // pred_check_branch
          %583 = sbr.rel (%p581) target = $region28
        $region27: #{_lambda_.1} parent=11 // pred_region
          %s585 = ssub.s32 16, 16
          %586 = vsyncadd [#allocation22], %s585
          %s588 = sshll.u32 [#allocation21], 4
          %s589 = int_to_ptr.vmem [resolvable:$true] %s588
          %591 = dma.hbm_to_vmem [thread:$0]  %s15, 16, %s589, [#allocation22]
        $region28: #{_lambda_.1} parent=11 // pred_fallthru
          _
        // Predicated region
        $region29: #{_lambda_.1} parent=11 // pred_check
          %p592 = pneg %p469
        $region30: #{_lambda_.1} parent=11 // pred_check_branch
          %594 = sbr.rel (%p592) target = $region32
        $region31: #{_lambda_.1} parent=11 // pred_region
          %s596 = ssub.s32 512, 512
          %597 = vsyncadd [#allocation22], %s596
          %s598 = sshll.u32 [#allocation23], 4
          %s599 = int_to_ptr.vmem [resolvable:$true] %s598
          %604 = dma.hbm_to_vmem [thread:$0]  %s16, 512, %s599, [#allocation22], 128, 128, 8
        $region32: #{_lambda_.1} parent=11 // pred_fallthru
          _
      $region12: #{_lambda_.1} parent=5 // pred_fallthru
        _
      %p605 = scmp.lt.s32.totalorder %s30, 2
      // Predicated region
      $region33: #{_lambda_.1} parent=5 // pred_check
        %p606 = pneg %p605
      $region34: #{_lambda_.1} parent=5 // pred_check_branch
        %608 = sbr.rel (%p606) target = $region36
      $region35: #{_lambda_.1} parent=5 // pred_region
        // Predicated region
        $region37: #{_lambda_.1} parent=35 // pred_check
          %p609 = pneg %p114
        $region38: #{_lambda_.1} parent=35 // pred_check_branch
          %611 = sbr.rel (%p609) target = $region40
        $region39: #{_lambda_.1} parent=35 // pred_region
          %s612 = sand.u32 %s30, 1
          %s613 = scalar_lea.sflag [#allocation4], %s612
          %s614 = sand.u32 %s104, 1
          %s615 = scalar_lea.vmem [#allocation8], %s614
          %s617 = ssub.s32 16, 16
          %618 = vsyncadd %s613, %s617
          %s619 = smul.addr %s38, 16
          %s620 = scalar_lea.hbm %s2, %s619
          %s622 = sshll.u32 %s615, 4
          %s623 = int_to_ptr.vmem [resolvable:$true] %s622
          %625 = dma.hbm_to_vmem [thread:$0]  %s620, 16, %s623, %s613
        $region40: #{_lambda_.1} parent=35 // pred_fallthru
          _
        // Predicated region
        $region41: #{_lambda_.1} parent=35 // pred_check
          %p626 = pneg %p140
        $region42: #{_lambda_.1} parent=35 // pred_check_branch
          %628 = sbr.rel (%p626) target = $region44
        $region43: #{_lambda_.1} parent=35 // pred_region
          %s629 = sand.u32 %s30, 1
          %s630 = scalar_lea.sflag [#allocation4], %s629
          %s631 = sand.u32 %s130, 1
          %s632 = scalar_lea.vmem [#allocation9], %s631
          %s634 = ssub.s32 16, 16
          %635 = vsyncadd %s630, %s634
          %s636 = smul.addr %s38, 16
          %s637 = scalar_lea.hbm %s3, %s636
          %s639 = sshll.u32 %s632, 4
          %s640 = int_to_ptr.vmem [resolvable:$true] %s639
          %642 = dma.hbm_to_vmem [thread:$0]  %s637, 16, %s640, %s630
        $region44: #{_lambda_.1} parent=35 // pred_fallthru
          _
        // Predicated region
        $region45: #{_lambda_.1} parent=35 // pred_check
          %p643 = pneg %p166
        $region46: #{_lambda_.1} parent=35 // pred_check_branch
          %645 = sbr.rel (%p643) target = $region48
        $region47: #{_lambda_.1} parent=35 // pred_region
          %s646 = sand.u32 %s30, 1
          %s647 = scalar_lea.sflag [#allocation4], %s646
          %s648 = sand.u32 %s156, 1
          %s649 = smul.addr %s648, 16
          %s650 = scalar_lea.vmem [#allocation10], %s649
          %s652 = ssub.s32 256, 256
          %653 = vsyncadd %s647, %s652
          %s654 = smul.addr %s38, 4
          %s655 = smul.addr %s654, 64
          %s656 = scalar_lea.hbm %s4, %s655
          %s657 = sshll.u32 %s650, 4
          %s658 = int_to_ptr.vmem [resolvable:$true] %s657
          %663 = dma.hbm_to_vmem [thread:$0]  %s656, 256, %s658, %s647, 64, 64, 4
        $region48: #{_lambda_.1} parent=35 // pred_fallthru
          _
        // Predicated region
        $region49: #{_lambda_.1} parent=35 // pred_check
          %p664 = pneg %p192
        $region50: #{_lambda_.1} parent=35 // pred_check_branch
          %666 = sbr.rel (%p664) target = $region52
        $region51: #{_lambda_.1} parent=35 // pred_region
          %s667 = sand.u32 %s30, 1
          %s668 = scalar_lea.sflag [#allocation4], %s667
          %s669 = sand.u32 %s182, 1
          %s670 = scalar_lea.vmem [#allocation11], %s669
          %s672 = ssub.s32 16, 16
          %673 = vsyncadd %s668, %s672
          %s674 = smul.addr %s38, 16
          %s675 = scalar_lea.hbm %s5, %s674
          %s677 = sshll.u32 %s670, 4
          %s678 = int_to_ptr.vmem [resolvable:$true] %s677
          %680 = dma.hbm_to_vmem [thread:$0]  %s675, 16, %s678, %s668
        $region52: #{_lambda_.1} parent=35 // pred_fallthru
          _
        // Predicated region
        $region53: #{_lambda_.1} parent=35 // pred_check
          %p681 = pneg %p218
        $region54: #{_lambda_.1} parent=35 // pred_check_branch
          %683 = sbr.rel (%p681) target = $region56
        $region55: #{_lambda_.1} parent=35 // pred_region
          %s684 = sand.u32 %s30, 1
          %s685 = scalar_lea.sflag [#allocation4], %s684
          %s686 = sand.u32 %s208, 1
          %s687 = smul.addr %s686, 16
          %s688 = scalar_lea.vmem [#allocation12], %s687
          %s690 = ssub.s32 256, 256
          %691 = vsyncadd %s685, %s690
          %s692 = smul.addr %s38, 4
          %s693 = smul.addr %s692, 64
          %s694 = scalar_lea.hbm %s6, %s693
          %s695 = sshll.u32 %s688, 4
          %s696 = int_to_ptr.vmem [resolvable:$true] %s695
          %701 = dma.hbm_to_vmem [thread:$0]  %s694, 256, %s696, %s685, 64, 64, 4
        $region56: #{_lambda_.1} parent=35 // pred_fallthru
          _
        // Predicated region
        $region57: #{_lambda_.1} parent=35 // pred_check
          %p702 = pneg %p244
        $region58: #{_lambda_.1} parent=35 // pred_check_branch
          %704 = sbr.rel (%p702) target = $region60
        $region59: #{_lambda_.1} parent=35 // pred_region
          %s705 = sand.u32 %s30, 1
          %s706 = scalar_lea.sflag [#allocation4], %s705
          %s707 = sand.u32 %s234, 1
          %s708 = scalar_lea.vmem [#allocation13], %s707
          %s710 = ssub.s32 16, 16
          %711 = vsyncadd %s706, %s710
          %s712 = smul.addr %s38, 16
          %s713 = scalar_lea.hbm %s7, %s712
          %s715 = sshll.u32 %s708, 4
          %s716 = int_to_ptr.vmem [resolvable:$true] %s715
          %718 = dma.hbm_to_vmem [thread:$0]  %s713, 16, %s716, %s706
        $region60: #{_lambda_.1} parent=35 // pred_fallthru
          _
        // Predicated region
        $region61: #{_lambda_.1} parent=35 // pred_check
          %p719 = pneg %p270
        $region62: #{_lambda_.1} parent=35 // pred_check_branch
          %721 = sbr.rel (%p719) target = $region64
        $region63: #{_lambda_.1} parent=35 // pred_region
          %s722 = sand.u32 %s30, 1
          %s723 = scalar_lea.sflag [#allocation4], %s722
          %s724 = sand.u32 %s260, 1
          %s725 = scalar_lea.vmem [#allocation14], %s724
          %s727 = ssub.s32 16, 16
          %728 = vsyncadd %s723, %s727
          %s729 = smul.addr %s38, 16
          %s730 = scalar_lea.hbm %s8, %s729
          %s732 = sshll.u32 %s725, 4
          %s733 = int_to_ptr.vmem [resolvable:$true] %s732
          %735 = dma.hbm_to_vmem [thread:$0]  %s730, 16, %s733, %s723
        $region64: #{_lambda_.1} parent=35 // pred_fallthru
          _
        // Predicated region
        $region65: #{_lambda_.1} parent=35 // pred_check
          %p736 = pneg %p296
        $region66: #{_lambda_.1} parent=35 // pred_check_branch
          %738 = sbr.rel (%p736) target = $region68
        $region67: #{_lambda_.1} parent=35 // pred_region
          %s739 = sand.u32 %s30, 1
          %s740 = scalar_lea.sflag [#allocation4], %s739
          %s741 = sand.u32 %s286, 1
          %s742 = scalar_lea.vmem [#allocation15], %s741
          %s744 = ssub.s32 16, 16
          %745 = vsyncadd %s740, %s744
          %s746 = smul.addr %s38, 16
          %s747 = scalar_lea.hbm %s9, %s746
          %s749 = sshll.u32 %s742, 4
          %s750 = int_to_ptr.vmem [resolvable:$true] %s749
          %752 = dma.hbm_to_vmem [thread:$0]  %s747, 16, %s750, %s740
        $region68: #{_lambda_.1} parent=35 // pred_fallthru
          _
        // Predicated region
        $region69: #{_lambda_.1} parent=35 // pred_check
          %p753 = pneg %p322
        $region70: #{_lambda_.1} parent=35 // pred_check_branch
          %755 = sbr.rel (%p753) target = $region72
        $region71: #{_lambda_.1} parent=35 // pred_region
          %s756 = sand.u32 %s30, 1
          %s757 = scalar_lea.sflag [#allocation4], %s756
          %s758 = sand.u32 %s312, 1
          %s759 = smul.addr %s758, 16
          %s760 = scalar_lea.vmem [#allocation16], %s759
          %s762 = ssub.s32 256, 256
          %763 = vsyncadd %s757, %s762
          %s764 = smul.addr %s38, 4
          %s765 = smul.addr %s764, 64
          %s766 = scalar_lea.hbm %s10, %s765
          %s767 = sshll.u32 %s760, 4
          %s768 = int_to_ptr.vmem [resolvable:$true] %s767
          %773 = dma.hbm_to_vmem [thread:$0]  %s766, 256, %s768, %s757, 64, 64, 4
        $region72: #{_lambda_.1} parent=35 // pred_fallthru
          _
        // Predicated region
        $region73: #{_lambda_.1} parent=35 // pred_check
          %p774 = pneg %p348
        $region74: #{_lambda_.1} parent=35 // pred_check_branch
          %776 = sbr.rel (%p774) target = $region76
        $region75: #{_lambda_.1} parent=35 // pred_region
          %s777 = sand.u32 %s30, 1
          %s778 = scalar_lea.sflag [#allocation4], %s777
          %s779 = sand.u32 %s338, 1
          %s780 = scalar_lea.vmem [#allocation17], %s779
          %s782 = ssub.s32 16, 16
          %783 = vsyncadd %s778, %s782
          %s784 = smul.addr %s38, 16
          %s785 = scalar_lea.hbm %s11, %s784
          %s787 = sshll.u32 %s780, 4
          %s788 = int_to_ptr.vmem [resolvable:$true] %s787
          %790 = dma.hbm_to_vmem [thread:$0]  %s785, 16, %s788, %s778
        $region76: #{_lambda_.1} parent=35 // pred_fallthru
          _
        // Predicated region
        $region77: #{_lambda_.1} parent=35 // pred_check
          %p791 = pneg %p374
        $region78: #{_lambda_.1} parent=35 // pred_check_branch
          %793 = sbr.rel (%p791) target = $region80
        $region79: #{_lambda_.1} parent=35 // pred_region
          %s794 = sand.u32 %s30, 1
          %s795 = scalar_lea.sflag [#allocation4], %s794
          %s796 = sand.u32 %s364, 1
          %s797 = smul.addr %s796, 64
          %s798 = scalar_lea.vmem [#allocation18], %s797
          %s800 = ssub.s32 1024, 1024
          %801 = vsyncadd %s795, %s800
          %s802 = smul.addr %s38, 16
          %s803 = smul.addr %s802, 64
          %s804 = scalar_lea.hbm %s12, %s803
          %s805 = sshll.u32 %s798, 4
          %s806 = int_to_ptr.vmem [resolvable:$true] %s805
          %811 = dma.hbm_to_vmem [thread:$0]  %s804, 1024, %s806, %s795, 64, 64, 4
        $region80: #{_lambda_.1} parent=35 // pred_fallthru
          _
        // Predicated region
        $region81: #{_lambda_.1} parent=35 // pred_check
          %p812 = pneg %p400
        $region82: #{_lambda_.1} parent=35 // pred_check_branch
          %814 = sbr.rel (%p812) target = $region84
        $region83: #{_lambda_.1} parent=35 // pred_region
          %s815 = sand.u32 %s30, 1
          %s816 = scalar_lea.sflag [#allocation4], %s815
          %s817 = sand.u32 %s390, 1
          %s818 = scalar_lea.vmem [#allocation19], %s817
          %s820 = ssub.s32 16, 16
          %821 = vsyncadd %s816, %s820
          %s822 = smul.addr %s38, 16
          %s823 = scalar_lea.hbm %s13, %s822
          %s825 = sshll.u32 %s818, 4
          %s826 = int_to_ptr.vmem [resolvable:$true] %s825
          %828 = dma.hbm_to_vmem [thread:$0]  %s823, 16, %s826, %s816
        $region84: #{_lambda_.1} parent=35 // pred_fallthru
          _
      $region36: #{_lambda_.1} parent=5 // pred_fallthru
        _
      %p829 = scmp.le.s32.totalorder 1, %s30
      %p830 = scmp.lt.s32.totalorder %s30, 3
      %p831 = pnand %p829, %p830
      %p832 = pneg %p831
      // Predicated region
      $region85: #{_lambda_.1} parent=5 // pred_check
        _
      $region86: #{_lambda_.1} parent=5 // pred_check_branch
        %834 = sbr.rel (%p831) target = $region88
      $region87: #{_lambda_.1} parent=5 // pred_region
        %s835 = ssub.s32 %s30, 1
        // Predicated region
        $region89: #{_lambda_.1} parent=87 // pred_check
          %p836 = pneg %p68
        $region90: #{_lambda_.1} parent=87 // pred_check_branch
          %838 = sbr.rel (%p836) target = $region92
        $region91: #{_lambda_.1} parent=87 // pred_region
          %839 = dma.done [#allocation4], 4096
        $region92: #{_lambda_.1} parent=87 // pred_fallthru
          _
        // Predicated region
        $region93: #{_lambda_.1} parent=87 // pred_check
          %p840 = pneg %p94
        $region94: #{_lambda_.1} parent=87 // pred_check_branch
          %842 = sbr.rel (%p840) target = $region96
        $region95: #{_lambda_.1} parent=87 // pred_region
          %843 = dma.done [#allocation7], 4096
        $region96: #{_lambda_.1} parent=87 // pred_fallthru
          _
        %s844 = sand.u32 %s35, 1
        %s845 = scalar_lea.sflag [#allocation4], %s844
        %s846 = sand.u32 %s107, 1
        %s847 = scalar_lea.vmem [#allocation8], %s846
        // Predicated region
        $region97: #{_lambda_.1} parent=87 // pred_check
          %p848 = pneg %p120
        $region98: #{_lambda_.1} parent=87 // pred_check_branch
          %850 = sbr.rel (%p848) target = $region100
        $region99: #{_lambda_.1} parent=87 // pred_region
          %851 = dma.done %s845, 16
        $region100: #{_lambda_.1} parent=87 // pred_fallthru
          _
        %s852 = sand.u32 %s35, 1
        %s853 = scalar_lea.sflag [#allocation4], %s852
        %s854 = sand.u32 %s133, 1
        %s855 = scalar_lea.vmem [#allocation9], %s854
        // Predicated region
        $region101: #{_lambda_.1} parent=87 // pred_check
          %p856 = pneg %p146
        $region102: #{_lambda_.1} parent=87 // pred_check_branch
          %858 = sbr.rel (%p856) target = $region104
        $region103: #{_lambda_.1} parent=87 // pred_region
          %859 = dma.done %s853, 16
        $region104: #{_lambda_.1} parent=87 // pred_fallthru
          _
        %s860 = sand.u32 %s35, 1
        %s861 = scalar_lea.sflag [#allocation4], %s860
        %s862 = sand.u32 %s159, 1
        %s863 = smul.addr %s862, 16
        %s864 = scalar_lea.vmem [#allocation10], %s863
        // Predicated region
        $region105: #{_lambda_.1} parent=87 // pred_check
          %p865 = pneg %p172
        $region106: #{_lambda_.1} parent=87 // pred_check_branch
          %867 = sbr.rel (%p865) target = $region108
        $region107: #{_lambda_.1} parent=87 // pred_region
          %868 = dma.done %s861, 256
        $region108: #{_lambda_.1} parent=87 // pred_fallthru
          _
        %s869 = sand.u32 %s35, 1
        %s870 = scalar_lea.sflag [#allocation4], %s869
        %s871 = sand.u32 %s185, 1
        %s872 = scalar_lea.vmem [#allocation11], %s871
        // Predicated region
        $region109: #{_lambda_.1} parent=87 // pred_check
          %p873 = pneg %p198
        $region110: #{_lambda_.1} parent=87 // pred_check_branch
          %875 = sbr.rel (%p873) target = $region112
        $region111: #{_lambda_.1} parent=87 // pred_region
          %876 = dma.done %s870, 16
        $region112: #{_lambda_.1} parent=87 // pred_fallthru
          _
        %s877 = sand.u32 %s35, 1
        %s878 = scalar_lea.sflag [#allocation4], %s877
        %s879 = sand.u32 %s211, 1
        %s880 = smul.addr %s879, 16
        %s881 = scalar_lea.vmem [#allocation12], %s880
        // Predicated region
        $region113: #{_lambda_.1} parent=87 // pred_check
          %p882 = pneg %p224
        $region114: #{_lambda_.1} parent=87 // pred_check_branch
          %884 = sbr.rel (%p882) target = $region116
        $region115: #{_lambda_.1} parent=87 // pred_region
          %885 = dma.done %s878, 256
        $region116: #{_lambda_.1} parent=87 // pred_fallthru
          _
        %s886 = sand.u32 %s35, 1
        %s887 = scalar_lea.sflag [#allocation4], %s886
        %s888 = sand.u32 %s237, 1
        %s889 = scalar_lea.vmem [#allocation13], %s888
        // Predicated region
        $region117: #{_lambda_.1} parent=87 // pred_check
          %p890 = pneg %p250
        $region118: #{_lambda_.1} parent=87 // pred_check_branch
          %892 = sbr.rel (%p890) target = $region120
        $region119: #{_lambda_.1} parent=87 // pred_region
          %893 = dma.done %s887, 16
        $region120: #{_lambda_.1} parent=87 // pred_fallthru
          _
        %s894 = sand.u32 %s35, 1
        %s895 = scalar_lea.sflag [#allocation4], %s894
        %s896 = sand.u32 %s263, 1
        %s897 = scalar_lea.vmem [#allocation14], %s896
        // Predicated region
        $region121: #{_lambda_.1} parent=87 // pred_check
          %p898 = pneg %p276
        $region122: #{_lambda_.1} parent=87 // pred_check_branch
          %900 = sbr.rel (%p898) target = $region124
        $region123: #{_lambda_.1} parent=87 // pred_region
          %901 = dma.done %s895, 16
        $region124: #{_lambda_.1} parent=87 // pred_fallthru
          _
        %s902 = sand.u32 %s35, 1
        %s903 = scalar_lea.sflag [#allocation4], %s902
        %s904 = sand.u32 %s289, 1
        %s905 = scalar_lea.vmem [#allocation15], %s904
        // Predicated region
        $region125: #{_lambda_.1} parent=87 // pred_check
          %p906 = pneg %p302
        $region126: #{_lambda_.1} parent=87 // pred_check_branch
          %908 = sbr.rel (%p906) target = $region128
        $region127: #{_lambda_.1} parent=87 // pred_region
          %909 = dma.done %s903, 16
        $region128: #{_lambda_.1} parent=87 // pred_fallthru
          _
        %s910 = sand.u32 %s35, 1
        %s911 = scalar_lea.sflag [#allocation4], %s910
        %s912 = sand.u32 %s315, 1
        %s913 = smul.addr %s912, 16
        %s914 = scalar_lea.vmem [#allocation16], %s913
        // Predicated region
        $region129: #{_lambda_.1} parent=87 // pred_check
          %p915 = pneg %p328
        $region130: #{_lambda_.1} parent=87 // pred_check_branch
          %917 = sbr.rel (%p915) target = $region132
        $region131: #{_lambda_.1} parent=87 // pred_region
          %918 = dma.done %s911, 256
        $region132: #{_lambda_.1} parent=87 // pred_fallthru
          _
        %s919 = sand.u32 %s35, 1
        %s920 = scalar_lea.sflag [#allocation4], %s919
        %s921 = sand.u32 %s341, 1
        %s922 = scalar_lea.vmem [#allocation17], %s921
        // Predicated region
        $region133: #{_lambda_.1} parent=87 // pred_check
          %p923 = pneg %p354
        $region134: #{_lambda_.1} parent=87 // pred_check_branch
          %925 = sbr.rel (%p923) target = $region136
        $region135: #{_lambda_.1} parent=87 // pred_region
          %926 = dma.done %s920, 16
        $region136: #{_lambda_.1} parent=87 // pred_fallthru
          _
        %s927 = sand.u32 %s35, 1
        %s928 = scalar_lea.sflag [#allocation4], %s927
        %s929 = sand.u32 %s367, 1
        %s930 = smul.addr %s929, 64
        %s931 = scalar_lea.vmem [#allocation18], %s930
        // Predicated region
        $region137: #{_lambda_.1} parent=87 // pred_check
          %p932 = pneg %p380
        $region138: #{_lambda_.1} parent=87 // pred_check_branch
          %934 = sbr.rel (%p932) target = $region140
        $region139: #{_lambda_.1} parent=87 // pred_region
          %935 = dma.done %s928, 1024
        $region140: #{_lambda_.1} parent=87 // pred_fallthru
          _
        %s936 = sand.u32 %s35, 1
        %s937 = scalar_lea.sflag [#allocation4], %s936
        %s938 = sand.u32 %s393, 1
        %s939 = scalar_lea.vmem [#allocation19], %s938
        // Predicated region
        $region141: #{_lambda_.1} parent=87 // pred_check
          %p940 = pneg %p406
        $region142: #{_lambda_.1} parent=87 // pred_check_branch
          %942 = sbr.rel (%p940) target = $region144
        $region143: #{_lambda_.1} parent=87 // pred_region
          %943 = dma.done %s937, 16
        $region144: #{_lambda_.1} parent=87 // pred_fallthru
          _
        // Predicated region
        $region145: #{_lambda_.1} parent=87 // pred_check
          %p944 = pneg %p427
        $region146: #{_lambda_.1} parent=87 // pred_check_branch
          %946 = sbr.rel (%p944) target = $region148
        $region147: #{_lambda_.1} parent=87 // pred_region
          %947 = dma.done [#allocation7], 16
        $region148: #{_lambda_.1} parent=87 // pred_fallthru
          _
        // Predicated region
        $region149: #{_lambda_.1} parent=87 // pred_check
          %p948 = pneg %p448
        $region150: #{_lambda_.1} parent=87 // pred_check_branch
          %950 = sbr.rel (%p948) target = $region152
        $region151: #{_lambda_.1} parent=87 // pred_region
          %951 = dma.done [#allocation22], 16
        $region152: #{_lambda_.1} parent=87 // pred_fallthru
          _
        // Predicated region
        $region153: #{_lambda_.1} parent=87 // pred_check
          %p952 = pneg %p469
        $region154: #{_lambda_.1} parent=87 // pred_check_branch
          %954 = sbr.rel (%p952) target = $region156
        $region155: #{_lambda_.1} parent=87 // pred_region
          %955 = dma.done [#allocation22], 512
        $region156: #{_lambda_.1} parent=87 // pred_fallthru
          _
        %p956 = pneg %p68
        %p957 = pneg %p65
        %p958 = pneg %p94
        %p959 = pneg %p91
        %s960 = sand.u32 %s35, 1
        %s961 = scalar_lea.sflag [#allocation4], %s960
        %s962 = sand.u32 %s107, 1
        %s963 = scalar_lea.vmem [#allocation8], %s962
        %p964 = pneg %p120
        %p965 = pneg %p117
        %s966 = sand.u32 %s35, 1
        %s967 = scalar_lea.sflag [#allocation4], %s966
        %s968 = sand.u32 %s133, 1
        %s969 = scalar_lea.vmem [#allocation9], %s968
        %p970 = pneg %p146
        %p971 = pneg %p143
        %s972 = sand.u32 %s35, 1
        %s973 = scalar_lea.sflag [#allocation4], %s972
        %s974 = sand.u32 %s159, 1
        %s975 = smul.addr %s974, 16
        %s976 = scalar_lea.vmem [#allocation10], %s975
        %p977 = pneg %p172
        %p978 = pneg %p169
        %s979 = sand.u32 %s35, 1
        %s980 = scalar_lea.sflag [#allocation4], %s979
        %s981 = sand.u32 %s185, 1
        %s982 = scalar_lea.vmem [#allocation11], %s981
        %p983 = pneg %p198
        %p984 = pneg %p195
        %s985 = sand.u32 %s35, 1
        %s986 = scalar_lea.sflag [#allocation4], %s985
        %s987 = sand.u32 %s211, 1
        %s988 = smul.addr %s987, 16
        %s989 = scalar_lea.vmem [#allocation12], %s988
        %p990 = pneg %p224
        %p991 = pneg %p221
        %s992 = sand.u32 %s35, 1
        %s993 = scalar_lea.sflag [#allocation4], %s992
        %s994 = sand.u32 %s237, 1
        %s995 = scalar_lea.vmem [#allocation13], %s994
        %p996 = pneg %p250
        %p997 = pneg %p247
        %s998 = sand.u32 %s35, 1
        %s999 = scalar_lea.sflag [#allocation4], %s998
        %s1000 = sand.u32 %s263, 1
        %s1001 = scalar_lea.vmem [#allocation14], %s1000
        %p1002 = pneg %p276
        %p1003 = pneg %p273
        %s1004 = sand.u32 %s35, 1
        %s1005 = scalar_lea.sflag [#allocation4], %s1004
        %s1006 = sand.u32 %s289, 1
        %s1007 = scalar_lea.vmem [#allocation15], %s1006
        %p1008 = pneg %p302
        %p1009 = pneg %p299
        %s1010 = sand.u32 %s35, 1
        %s1011 = scalar_lea.sflag [#allocation4], %s1010
        %s1012 = sand.u32 %s315, 1
        %s1013 = smul.addr %s1012, 16
        %s1014 = scalar_lea.vmem [#allocation16], %s1013
        %p1015 = pneg %p328
        %p1016 = pneg %p325
        %s1017 = sand.u32 %s35, 1
        %s1018 = scalar_lea.sflag [#allocation4], %s1017
        %s1019 = sand.u32 %s341, 1
        %s1020 = scalar_lea.vmem [#allocation17], %s1019
        %p1021 = pneg %p354
        %p1022 = pneg %p351
        %s1023 = sand.u32 %s35, 1
        %s1024 = scalar_lea.sflag [#allocation4], %s1023
        %s1025 = sand.u32 %s367, 1
        %s1026 = smul.addr %s1025, 64
        %s1027 = scalar_lea.vmem [#allocation18], %s1026
        %p1028 = pneg %p380
        %p1029 = pneg %p377
        %s1030 = sand.u32 %s35, 1
        %s1031 = scalar_lea.sflag [#allocation4], %s1030
        %s1032 = sand.u32 %s393, 1
        %s1033 = scalar_lea.vmem [#allocation19], %s1032
        %p1034 = pneg %p406
        %p1035 = pneg %p403
        %p1036 = pneg %p427
        %p1037 = pneg %p424
        %p1038 = pneg %p448
        %p1039 = pneg %p445
        %p1040 = pneg %p469
        %p1041 = pneg %p466
        %p1042 = pneg %p495
        %p1043 = pneg %p492
        %p1044 = pneg %p521
        %p1045 = pneg %p518
        %s1046 = smul.u32 2, %s39
        %s1047 = smul.u32 2, %s39
        %s1048 = smul.u32 2, %s39
        %p1050 = scmp.eq.s32.totalorder %s40, 0
        // Predicated region
        $region157: #{_lambda_.1} parent=87 // pred_check
          %p1051 = pneg %p1050
        $region158: #{_lambda_.1} parent=87 // pred_check_branch
          %1053 = sbr.rel (%p1051) target = $region160
        $region159: #{_lambda_.1} parent=87 // pred_region
          %v1054 = vld [vmem:[#allocation3] sm:$0xff]
          %v1055 = vld [vmem:[#allocation3 + $0x8] sm:$0xff]
          %v1056 = vld [vmem:[#allocation3 + $0x10] sm:$0xff]
          %v1057 = vld [vmem:[#allocation3 + $0x18] sm:$0xff]
          %v1058 = vld [vmem:[#allocation3 + $0x20] sm:$0xff]
          %v1059 = vld [vmem:[#allocation3 + $0x28] sm:$0xff]
          %v1060 = vld [vmem:[#allocation3 + $0x30] sm:$0xff]
          %v1061 = vld [vmem:[#allocation3 + $0x38] sm:$0xff]
          %v1062 = vld [vmem:[#allocation3 + $0x40] sm:$0xff]
          %v1063 = vld [vmem:[#allocation3 + $0x48] sm:$0xff]
          %v1064 = vld [vmem:[#allocation3 + $0x50] sm:$0xff]
          %v1065 = vld [vmem:[#allocation3 + $0x58] sm:$0xff]
          %v1066 = vld [vmem:[#allocation3 + $0x60] sm:$0xff]
          %v1067 = vld [vmem:[#allocation3 + $0x68] sm:$0xff]
          %v1068 = vld [vmem:[#allocation3 + $0x70] sm:$0xff]
          %v1069 = vld [vmem:[#allocation3 + $0x78] sm:$0xff]
          %v1070 = vld [vmem:[#allocation3 + $0x80] sm:$0xff]
          %v1071 = vld [vmem:[#allocation3 + $0x88] sm:$0xff]
          %v1072 = vld [vmem:[#allocation3 + $0x90] sm:$0xff]
          %v1073 = vld [vmem:[#allocation3 + $0x98] sm:$0xff]
          %v1074 = vld [vmem:[#allocation3 + $0xa0] sm:$0xff]
          %v1075 = vld [vmem:[#allocation3 + $0xa8] sm:$0xff]
          %v1076 = vld [vmem:[#allocation3 + $0xb0] sm:$0xff]
          %v1077 = vld [vmem:[#allocation3 + $0xb8] sm:$0xff]
          %v1078 = vld [vmem:[#allocation3 + $0xc0] sm:$0xff]
          %v1079 = vld [vmem:[#allocation3 + $0xc8] sm:$0xff]
          %v1080 = vld [vmem:[#allocation3 + $0xd0] sm:$0xff]
          %v1081 = vld [vmem:[#allocation3 + $0xd8] sm:$0xff]
          %v1082 = vld [vmem:[#allocation3 + $0xe0] sm:$0xff]
          %v1083 = vld [vmem:[#allocation3 + $0xe8] sm:$0xff]
          %v1084 = vld [vmem:[#allocation3 + $0xf0] sm:$0xff]
          %v1085 = vld [vmem:[#allocation3 + $0xf8] sm:$0xff]
          %vm1086 = vcmask 261120
          %1087 = vst.msk [vmem:[#allocation25] sm:$0xff] %vm1086, %v1054
          %1088 = vst.msk [vmem:[#allocation25 + $0x8] sm:$0xff] %vm1086, %v1055
          %1089 = vst.msk [vmem:[#allocation25 + $0x10] sm:$0xff] %vm1086, %v1056
          %1090 = vst.msk [vmem:[#allocation25 + $0x18] sm:$0xff] %vm1086, %v1057
          %1091 = vst.msk [vmem:[#allocation25 + $0x20] sm:$0xff] %vm1086, %v1058
          %1092 = vst.msk [vmem:[#allocation25 + $0x28] sm:$0xff] %vm1086, %v1059
          %1093 = vst.msk [vmem:[#allocation25 + $0x30] sm:$0xff] %vm1086, %v1060
          %1094 = vst.msk [vmem:[#allocation25 + $0x38] sm:$0xff] %vm1086, %v1061
          %1095 = vst.msk [vmem:[#allocation25 + $0x40] sm:$0xff] %vm1086, %v1062
          %1096 = vst.msk [vmem:[#allocation25 + $0x48] sm:$0xff] %vm1086, %v1063
          %1097 = vst.msk [vmem:[#allocation25 + $0x50] sm:$0xff] %vm1086, %v1064
          %1098 = vst.msk [vmem:[#allocation25 + $0x58] sm:$0xff] %vm1086, %v1065
          %1099 = vst.msk [vmem:[#allocation25 + $0x60] sm:$0xff] %vm1086, %v1066
          %1100 = vst.msk [vmem:[#allocation25 + $0x68] sm:$0xff] %vm1086, %v1067
          %1101 = vst.msk [vmem:[#allocation25 + $0x70] sm:$0xff] %vm1086, %v1068
          %1102 = vst.msk [vmem:[#allocation25 + $0x78] sm:$0xff] %vm1086, %v1069
          %1103 = vst.msk [vmem:[#allocation25 + $0x80] sm:$0xff] %vm1086, %v1070
          %1104 = vst.msk [vmem:[#allocation25 + $0x88] sm:$0xff] %vm1086, %v1071
          %1105 = vst.msk [vmem:[#allocation25 + $0x90] sm:$0xff] %vm1086, %v1072
          %1106 = vst.msk [vmem:[#allocation25 + $0x98] sm:$0xff] %vm1086, %v1073
          %1107 = vst.msk [vmem:[#allocation25 + $0xa0] sm:$0xff] %vm1086, %v1074
          %1108 = vst.msk [vmem:[#allocation25 + $0xa8] sm:$0xff] %vm1086, %v1075
          %1109 = vst.msk [vmem:[#allocation25 + $0xb0] sm:$0xff] %vm1086, %v1076
          %1110 = vst.msk [vmem:[#allocation25 + $0xb8] sm:$0xff] %vm1086, %v1077
          %1111 = vst.msk [vmem:[#allocation25 + $0xc0] sm:$0xff] %vm1086, %v1078
          %1112 = vst.msk [vmem:[#allocation25 + $0xc8] sm:$0xff] %vm1086, %v1079
          %1113 = vst.msk [vmem:[#allocation25 + $0xd0] sm:$0xff] %vm1086, %v1080
          %1114 = vst.msk [vmem:[#allocation25 + $0xd8] sm:$0xff] %vm1086, %v1081
          %1115 = vst.msk [vmem:[#allocation25 + $0xe0] sm:$0xff] %vm1086, %v1082
          %1116 = vst.msk [vmem:[#allocation25 + $0xe8] sm:$0xff] %vm1086, %v1083
          %1117 = vst.msk [vmem:[#allocation25 + $0xf0] sm:$0xff] %vm1086, %v1084
          %1118 = vst.msk [vmem:[#allocation25 + $0xf8] sm:$0xff] %vm1086, %v1085
          %v1119 = vlaneseq
          %v1120 = vshrl.u32 %v1119, 7
          %v1121 = vadd.s32 %v1120, 8
          %v1122 = vadd.s32 %v1120, 16
          %v1123 = vadd.s32 %v1120, 24
          %v1124 = vadd.s32 %v1120, 32
          %v1125 = vadd.s32 %v1120, 40
          %v1126 = vadd.s32 %v1120, 48
          %v1127 = vadd.s32 %v1120, 56
          %v1128 = vadd.s32 %v1120, 64
          %v1129 = vadd.s32 %v1120, 72
          %v1130 = vadd.s32 %v1120, 80
          %v1131 = vadd.s32 %v1120, 88
          %v1132 = vadd.s32 %v1120, 96
          %v1133 = vadd.s32 %v1120, 104
          %v1134 = vadd.s32 %v1120, 112
          %v1135 = vadd.s32 %v1120, 120
          %v1136 = vlaneseq
          %v1137 = vand.u32 %v1136, 127
          %vm1138 = vcmp.gt.s32.totalorder %v1137, %v1120
          %vm1139 = vcmp.gt.s32.totalorder %v1137, %v1121
          %vm1140 = vcmp.gt.s32.totalorder %v1137, %v1122
          %vm1141 = vcmp.gt.s32.totalorder %v1137, %v1123
          %vm1142 = vcmp.gt.s32.totalorder %v1137, %v1124
          %vm1143 = vcmp.gt.s32.totalorder %v1137, %v1125
          %vm1144 = vcmp.gt.s32.totalorder %v1137, %v1126
          %vm1145 = vcmp.gt.s32.totalorder %v1137, %v1127
          %vm1146 = vcmp.gt.s32.totalorder %v1137, %v1128
          %vm1147 = vcmp.gt.s32.totalorder %v1137, %v1129
          %vm1148 = vcmp.gt.s32.totalorder %v1137, %v1130
          %vm1149 = vcmp.gt.s32.totalorder %v1137, %v1131
          %vm1150 = vcmp.gt.s32.totalorder %v1137, %v1132
          %vm1151 = vcmp.gt.s32.totalorder %v1137, %v1133
          %vm1152 = vcmp.gt.s32.totalorder %v1137, %v1134
          %vm1153 = vcmp.gt.s32.totalorder %v1137, %v1135
          %v1154 = vsel %vm1138, -1e+09, 0.0
          %v1155 = vsel %vm1139, -1e+09, 0.0
          %v1156 = vsel %vm1140, -1e+09, 0.0
          %v1157 = vsel %vm1141, -1e+09, 0.0
          %v1158 = vsel %vm1142, -1e+09, 0.0
          %v1159 = vsel %vm1143, -1e+09, 0.0
          %v1160 = vsel %vm1144, -1e+09, 0.0
          %v1161 = vsel %vm1145, -1e+09, 0.0
          %v1162 = vsel %vm1146, -1e+09, 0.0
          %v1163 = vsel %vm1147, -1e+09, 0.0
          %v1164 = vsel %vm1148, -1e+09, 0.0
          %v1165 = vsel %vm1149, -1e+09, 0.0
          %v1166 = vsel %vm1150, -1e+09, 0.0
          %v1167 = vsel %vm1151, -1e+09, 0.0
          %v1168 = vsel %vm1152, -1e+09, 0.0
          %v1169 = vsel %vm1153, -1e+09, 0.0
          %1170 = vst [vmem:[#allocation2] sm:$0xff] %v1154
          %1171 = vst [vmem:[#allocation2 + $0x8] sm:$0xff] %v1155
          %1172 = vst [vmem:[#allocation2 + $0x10] sm:$0xff] %v1156
          %1173 = vst [vmem:[#allocation2 + $0x18] sm:$0xff] %v1157
          %1174 = vst [vmem:[#allocation2 + $0x20] sm:$0xff] %v1158
          %1175 = vst [vmem:[#allocation2 + $0x28] sm:$0xff] %v1159
          %1176 = vst [vmem:[#allocation2 + $0x30] sm:$0xff] %v1160
          %1177 = vst [vmem:[#allocation2 + $0x38] sm:$0xff] %v1161
          %1178 = vst [vmem:[#allocation2 + $0x40] sm:$0xff] %v1162
          %1179 = vst [vmem:[#allocation2 + $0x48] sm:$0xff] %v1163
          %1180 = vst [vmem:[#allocation2 + $0x50] sm:$0xff] %v1164
          %1181 = vst [vmem:[#allocation2 + $0x58] sm:$0xff] %v1165
          %1182 = vst [vmem:[#allocation2 + $0x60] sm:$0xff] %v1166
          %1183 = vst [vmem:[#allocation2 + $0x68] sm:$0xff] %v1167
          %1184 = vst [vmem:[#allocation2 + $0x70] sm:$0xff] %v1168
          %1185 = vst [vmem:[#allocation2 + $0x78] sm:$0xff] %v1169
        $region160: #{_lambda_.1} parent=87 // pred_fallthru
          _
        %v1186 = vld [vmem:[#allocation25] sm:$0xff]
        %v1187 = vld [vmem:[#allocation25 + $0x8] sm:$0xff]
        %v1188 = vld [vmem:[#allocation25 + $0x10] sm:$0xff]
        %v1189 = vld [vmem:[#allocation25 + $0x18] sm:$0xff]
        %v1190 = vld [vmem:[#allocation25 + $0x20] sm:$0xff]
        %v1191 = vld [vmem:[#allocation25 + $0x28] sm:$0xff]
        %v1192 = vld [vmem:[#allocation25 + $0x30] sm:$0xff]
        %v1193 = vld [vmem:[#allocation25 + $0x38] sm:$0xff]
        %v1194 = vld [vmem:[#allocation25 + $0x40] sm:$0xff]
        %v1195 = vld [vmem:[#allocation25 + $0x48] sm:$0xff]
        %v1196 = vld [vmem:[#allocation25 + $0x50] sm:$0xff]
        %v1197 = vld [vmem:[#allocation25 + $0x58] sm:$0xff]
        %v1198 = vld [vmem:[#allocation25 + $0x60] sm:$0xff]
        %v1199 = vld [vmem:[#allocation25 + $0x68] sm:$0xff]
        %v1200 = vld [vmem:[#allocation25 + $0x70] sm:$0xff]
        %v1201 = vld [vmem:[#allocation25 + $0x78] sm:$0xff]
        %v1202 = vld [vmem:[#allocation25 + $0x80] sm:$0xff]
        %v1203 = vld [vmem:[#allocation25 + $0x88] sm:$0xff]
        %v1204 = vld [vmem:[#allocation25 + $0x90] sm:$0xff]
        %v1205 = vld [vmem:[#allocation25 + $0x98] sm:$0xff]
        %v1206 = vld [vmem:[#allocation25 + $0xa0] sm:$0xff]
        %v1207 = vld [vmem:[#allocation25 + $0xa8] sm:$0xff]
        %v1208 = vld [vmem:[#allocation25 + $0xb0] sm:$0xff]
        %v1209 = vld [vmem:[#allocation25 + $0xb8] sm:$0xff]
        %v1210 = vld [vmem:[#allocation25 + $0xc0] sm:$0xff]
        %v1211 = vld [vmem:[#allocation25 + $0xc8] sm:$0xff]
        %v1212 = vld [vmem:[#allocation25 + $0xd0] sm:$0xff]
        %v1213 = vld [vmem:[#allocation25 + $0xd8] sm:$0xff]
        %v1214 = vld [vmem:[#allocation25 + $0xe0] sm:$0xff]
        %v1215 = vld [vmem:[#allocation25 + $0xe8] sm:$0xff]
        %v1216 = vld [vmem:[#allocation25 + $0xf0] sm:$0xff]
        %v1217 = vld [vmem:[#allocation25 + $0xf8] sm:$0xff]
        %v1218 = vld [vmem:[#allocation2] sm:$0xff]
        %v1219 = vld [vmem:[#allocation2 + $0x8] sm:$0xff]
        %v1220 = vld [vmem:[#allocation2 + $0x10] sm:$0xff]
        %v1221 = vld [vmem:[#allocation2 + $0x18] sm:$0xff]
        %v1222 = vld [vmem:[#allocation2 + $0x20] sm:$0xff]
        %v1223 = vld [vmem:[#allocation2 + $0x28] sm:$0xff]
        %v1224 = vld [vmem:[#allocation2 + $0x30] sm:$0xff]
        %v1225 = vld [vmem:[#allocation2 + $0x38] sm:$0xff]
        %v1226 = vld [vmem:[#allocation2 + $0x40] sm:$0xff]
        %v1227 = vld [vmem:[#allocation2 + $0x48] sm:$0xff]
        %v1228 = vld [vmem:[#allocation2 + $0x50] sm:$0xff]
        %v1229 = vld [vmem:[#allocation2 + $0x58] sm:$0xff]
        %v1230 = vld [vmem:[#allocation2 + $0x60] sm:$0xff]
        %v1231 = vld [vmem:[#allocation2 + $0x68] sm:$0xff]
        %v1232 = vld [vmem:[#allocation2 + $0x70] sm:$0xff]
        %v1233 = vld [vmem:[#allocation2 + $0x78] sm:$0xff]
        %v1234 = vld [vmem:[%s847] sm:$0x1]
        %v1235 = vld [vmem:[%s855] sm:$0x1]
        %vm1236 = vcmask 261120
        %v1237 = vsel %vm1236, %v1186, 0.0
        %1238 = vadd.xlane.f32.xlu0 %v1237
        %v1239 = vpop.xlane.xlu0 %1238
        %v1240 = vsel %vm1236, %v1187, 0.0
        %1241 = vadd.xlane.f32.xlu0 %v1240
        %v1242 = vpop.xlane.xlu0 %1241
        %v1243 = vsel %vm1236, %v1188, 0.0
        %1244 = vadd.xlane.f32.xlu0 %v1243
        %v1245 = vpop.xlane.xlu0 %1244
        %v1246 = vsel %vm1236, %v1189, 0.0
        %1247 = vadd.xlane.f32.xlu0 %v1246
        %v1248 = vpop.xlane.xlu0 %1247
        %v1249 = vsel %vm1236, %v1190, 0.0
        %1250 = vadd.xlane.f32.xlu0 %v1249
        %v1251 = vpop.xlane.xlu0 %1250
        %v1252 = vsel %vm1236, %v1191, 0.0
        %1253 = vadd.xlane.f32.xlu0 %v1252
        %v1254 = vpop.xlane.xlu0 %1253
        %v1255 = vsel %vm1236, %v1192, 0.0
        %1256 = vadd.xlane.f32.xlu0 %v1255
        %v1257 = vpop.xlane.xlu0 %1256
        %v1258 = vsel %vm1236, %v1193, 0.0
        %1259 = vadd.xlane.f32.xlu0 %v1258
        %v1260 = vpop.xlane.xlu0 %1259
        %v1261 = vsel %vm1236, %v1194, 0.0
        %1262 = vadd.xlane.f32.xlu0 %v1261
        %v1263 = vpop.xlane.xlu0 %1262
        %v1264 = vsel %vm1236, %v1195, 0.0
        %1265 = vadd.xlane.f32.xlu0 %v1264
        %v1266 = vpop.xlane.xlu0 %1265
        %v1267 = vsel %vm1236, %v1196, 0.0
        %1268 = vadd.xlane.f32.xlu0 %v1267
        %v1269 = vpop.xlane.xlu0 %1268
        %v1270 = vsel %vm1236, %v1197, 0.0
        %1271 = vadd.xlane.f32.xlu0 %v1270
        %v1272 = vpop.xlane.xlu0 %1271
        %v1273 = vsel %vm1236, %v1198, 0.0
        %1274 = vadd.xlane.f32.xlu0 %v1273
        %v1275 = vpop.xlane.xlu0 %1274
        %v1276 = vsel %vm1236, %v1199, 0.0
        %1277 = vadd.xlane.f32.xlu0 %v1276
        %v1278 = vpop.xlane.xlu0 %1277
        %v1279 = vsel %vm1236, %v1200, 0.0
        %1280 = vadd.xlane.f32.xlu0 %v1279
        %v1281 = vpop.xlane.xlu0 %1280
        %v1282 = vsel %vm1236, %v1201, 0.0
        %1283 = vadd.xlane.f32.xlu0 %v1282
        %v1284 = vpop.xlane.xlu0 %1283
        %v1285 = vsel %vm1236, %v1202, 0.0
        %1286 = vadd.xlane.f32.xlu0 %v1285
        %v1287 = vpop.xlane.xlu0 %1286
        %v1288 = vsel %vm1236, %v1203, 0.0
        %1289 = vadd.xlane.f32.xlu0 %v1288
        %v1290 = vpop.xlane.xlu0 %1289
        %v1291 = vsel %vm1236, %v1204, 0.0
        %1292 = vadd.xlane.f32.xlu0 %v1291
        %v1293 = vpop.xlane.xlu0 %1292
        %v1294 = vsel %vm1236, %v1205, 0.0
        %1295 = vadd.xlane.f32.xlu0 %v1294
        %v1296 = vpop.xlane.xlu0 %1295
        %v1297 = vsel %vm1236, %v1206, 0.0
        %1298 = vadd.xlane.f32.xlu0 %v1297
        %v1299 = vpop.xlane.xlu0 %1298
        %v1300 = vsel %vm1236, %v1207, 0.0
        %1301 = vadd.xlane.f32.xlu0 %v1300
        %v1302 = vpop.xlane.xlu0 %1301
        %v1303 = vsel %vm1236, %v1208, 0.0
        %1304 = vadd.xlane.f32.xlu0 %v1303
        %v1305 = vpop.xlane.xlu0 %1304
        %v1306 = vsel %vm1236, %v1209, 0.0
        %1307 = vadd.xlane.f32.xlu0 %v1306
        %v1308 = vpop.xlane.xlu0 %1307
        %v1309 = vsel %vm1236, %v1210, 0.0
        %1310 = vadd.xlane.f32.xlu0 %v1309
        %v1311 = vpop.xlane.xlu0 %1310
        %v1312 = vsel %vm1236, %v1211, 0.0
        %1313 = vadd.xlane.f32.xlu0 %v1312
        %v1314 = vpop.xlane.xlu0 %1313
        %v1315 = vsel %vm1236, %v1212, 0.0
        %1316 = vadd.xlane.f32.xlu0 %v1315
        %v1317 = vpop.xlane.xlu0 %1316
        %v1318 = vsel %vm1236, %v1213, 0.0
        %1319 = vadd.xlane.f32.xlu0 %v1318
        %v1320 = vpop.xlane.xlu0 %1319
        %v1321 = vsel %vm1236, %v1214, 0.0
        %1322 = vadd.xlane.f32.xlu0 %v1321
        %v1323 = vpop.xlane.xlu0 %1322
        %v1324 = vsel %vm1236, %v1215, 0.0
        %1325 = vadd.xlane.f32.xlu0 %v1324
        %v1326 = vpop.xlane.xlu0 %1325
        %v1327 = vsel %vm1236, %v1216, 0.0
        %1328 = vadd.xlane.f32.xlu0 %v1327
        %v1329 = vpop.xlane.xlu0 %1328
        %v1330 = vsel %vm1236, %v1217, 0.0
        %1331 = vadd.xlane.f32.xlu0 %v1330
        %v1332 = vpop.xlane.xlu0 %1331
        %v1333 = vrcp.pop 32.0
        %v1334 = vmul.f32 %v1239, %v1333
        %v1335 = vmul.f32 %v1242, %v1333
        %v1336 = vmul.f32 %v1245, %v1333
        %v1337 = vmul.f32 %v1248, %v1333
        %v1338 = vmul.f32 %v1251, %v1333
        %v1339 = vmul.f32 %v1254, %v1333
        %v1340 = vmul.f32 %v1257, %v1333
        %v1341 = vmul.f32 %v1260, %v1333
        %v1342 = vmul.f32 %v1263, %v1333
        %v1343 = vmul.f32 %v1266, %v1333
        %v1344 = vmul.f32 %v1269, %v1333
        %v1345 = vmul.f32 %v1272, %v1333
        %v1346 = vmul.f32 %v1275, %v1333
        %v1347 = vmul.f32 %v1278, %v1333
        %v1348 = vmul.f32 %v1281, %v1333
        %v1349 = vmul.f32 %v1284, %v1333
        %v1350 = vmul.f32 %v1287, %v1333
        %v1351 = vmul.f32 %v1290, %v1333
        %v1352 = vmul.f32 %v1293, %v1333
        %v1353 = vmul.f32 %v1296, %v1333
        %v1354 = vmul.f32 %v1299, %v1333
        %v1355 = vmul.f32 %v1302, %v1333
        %v1356 = vmul.f32 %v1305, %v1333
        %v1357 = vmul.f32 %v1308, %v1333
        %v1358 = vmul.f32 %v1311, %v1333
        %v1359 = vmul.f32 %v1314, %v1333
        %v1360 = vmul.f32 %v1317, %v1333
        %v1361 = vmul.f32 %v1320, %v1333
        %v1362 = vmul.f32 %v1323, %v1333
        %v1363 = vmul.f32 %v1326, %v1333
        %v1364 = vmul.f32 %v1329, %v1333
        %v1365 = vmul.f32 %v1332, %v1333
        %v1366 = vsub.f32 %v1186, %v1334
        %v1367 = vsub.f32 %v1187, %v1335
        %v1368 = vsub.f32 %v1188, %v1336
        %v1369 = vsub.f32 %v1189, %v1337
        %v1370 = vsub.f32 %v1190, %v1338
        %v1371 = vsub.f32 %v1191, %v1339
        %v1372 = vsub.f32 %v1192, %v1340
        %v1373 = vsub.f32 %v1193, %v1341
        %v1374 = vsub.f32 %v1194, %v1342
        %v1375 = vsub.f32 %v1195, %v1343
        %v1376 = vsub.f32 %v1196, %v1344
        %v1377 = vsub.f32 %v1197, %v1345
        %v1378 = vsub.f32 %v1198, %v1346
        %v1379 = vsub.f32 %v1199, %v1347
        %v1380 = vsub.f32 %v1200, %v1348
        %v1381 = vsub.f32 %v1201, %v1349
        %v1382 = vsub.f32 %v1202, %v1350
        %v1383 = vsub.f32 %v1203, %v1351
        %v1384 = vsub.f32 %v1204, %v1352
        %v1385 = vsub.f32 %v1205, %v1353
        %v1386 = vsub.f32 %v1206, %v1354
        %v1387 = vsub.f32 %v1207, %v1355
        %v1388 = vsub.f32 %v1208, %v1356
        %v1389 = vsub.f32 %v1209, %v1357
        %v1390 = vsub.f32 %v1210, %v1358
        %v1391 = vsub.f32 %v1211, %v1359
        %v1392 = vsub.f32 %v1212, %v1360
        %v1393 = vsub.f32 %v1213, %v1361
        %v1394 = vsub.f32 %v1214, %v1362
        %v1395 = vsub.f32 %v1215, %v1363
        %v1396 = vsub.f32 %v1216, %v1364
        %v1397 = vsub.f32 %v1217, %v1365
        %v1398 = vmul.f32 %v1366, %v1366
        %v1399 = vmul.f32 %v1367, %v1367
        %v1400 = vmul.f32 %v1368, %v1368
        %v1401 = vmul.f32 %v1369, %v1369
        %v1402 = vmul.f32 %v1370, %v1370
        %v1403 = vmul.f32 %v1371, %v1371
        %v1404 = vmul.f32 %v1372, %v1372
        %v1405 = vmul.f32 %v1373, %v1373
        %v1406 = vmul.f32 %v1374, %v1374
        %v1407 = vmul.f32 %v1375, %v1375
        %v1408 = vmul.f32 %v1376, %v1376
        %v1409 = vmul.f32 %v1377, %v1377
        %v1410 = vmul.f32 %v1378, %v1378
        %v1411 = vmul.f32 %v1379, %v1379
        %v1412 = vmul.f32 %v1380, %v1380
        %v1413 = vmul.f32 %v1381, %v1381
        %v1414 = vmul.f32 %v1382, %v1382
        %v1415 = vmul.f32 %v1383, %v1383
        %v1416 = vmul.f32 %v1384, %v1384
        %v1417 = vmul.f32 %v1385, %v1385
        %v1418 = vmul.f32 %v1386, %v1386
        %v1419 = vmul.f32 %v1387, %v1387
        %v1420 = vmul.f32 %v1388, %v1388
        %v1421 = vmul.f32 %v1389, %v1389
        %v1422 = vmul.f32 %v1390, %v1390
        %v1423 = vmul.f32 %v1391, %v1391
        %v1424 = vmul.f32 %v1392, %v1392
        %v1425 = vmul.f32 %v1393, %v1393
        %v1426 = vmul.f32 %v1394, %v1394
        %v1427 = vmul.f32 %v1395, %v1395
        %v1428 = vmul.f32 %v1396, %v1396
        %v1429 = vmul.f32 %v1397, %v1397
        %v1430 = vsel %vm1236, %v1398, 0.0
        %1431 = vadd.xlane.f32.xlu0 %v1430
        %v1432 = vpop.xlane.xlu0 %1431
        %v1433 = vsel %vm1236, %v1399, 0.0
        %1434 = vadd.xlane.f32.xlu0 %v1433
        %v1435 = vpop.xlane.xlu0 %1434
        %v1436 = vsel %vm1236, %v1400, 0.0
        %1437 = vadd.xlane.f32.xlu0 %v1436
        %v1438 = vpop.xlane.xlu0 %1437
        %v1439 = vsel %vm1236, %v1401, 0.0
        %1440 = vadd.xlane.f32.xlu0 %v1439
        %v1441 = vpop.xlane.xlu0 %1440
        %v1442 = vsel %vm1236, %v1402, 0.0
        %1443 = vadd.xlane.f32.xlu0 %v1442
        %v1444 = vpop.xlane.xlu0 %1443
        %v1445 = vsel %vm1236, %v1403, 0.0
        %1446 = vadd.xlane.f32.xlu0 %v1445
        %v1447 = vpop.xlane.xlu0 %1446
        %v1448 = vsel %vm1236, %v1404, 0.0
        %1449 = vadd.xlane.f32.xlu0 %v1448
        %v1450 = vpop.xlane.xlu0 %1449
        %v1451 = vsel %vm1236, %v1405, 0.0
        %1452 = vadd.xlane.f32.xlu0 %v1451
        %v1453 = vpop.xlane.xlu0 %1452
        %v1454 = vsel %vm1236, %v1406, 0.0
        %1455 = vadd.xlane.f32.xlu0 %v1454
        %v1456 = vpop.xlane.xlu0 %1455
        %v1457 = vsel %vm1236, %v1407, 0.0
        %1458 = vadd.xlane.f32.xlu0 %v1457
        %v1459 = vpop.xlane.xlu0 %1458
        %v1460 = vsel %vm1236, %v1408, 0.0
        %1461 = vadd.xlane.f32.xlu0 %v1460
        %v1462 = vpop.xlane.xlu0 %1461
        %v1463 = vsel %vm1236, %v1409, 0.0
        %1464 = vadd.xlane.f32.xlu0 %v1463
        %v1465 = vpop.xlane.xlu0 %1464
        %v1466 = vsel %vm1236, %v1410, 0.0
        %1467 = vadd.xlane.f32.xlu0 %v1466
        %v1468 = vpop.xlane.xlu0 %1467
        %v1469 = vsel %vm1236, %v1411, 0.0
        %1470 = vadd.xlane.f32.xlu0 %v1469
        %v1471 = vpop.xlane.xlu0 %1470
        %v1472 = vsel %vm1236, %v1412, 0.0
        %1473 = vadd.xlane.f32.xlu0 %v1472
        %v1474 = vpop.xlane.xlu0 %1473
        %v1475 = vsel %vm1236, %v1413, 0.0
        %1476 = vadd.xlane.f32.xlu0 %v1475
        %v1477 = vpop.xlane.xlu0 %1476
        %v1478 = vsel %vm1236, %v1414, 0.0
        %1479 = vadd.xlane.f32.xlu0 %v1478
        %v1480 = vpop.xlane.xlu0 %1479
        %v1481 = vsel %vm1236, %v1415, 0.0
        %1482 = vadd.xlane.f32.xlu0 %v1481
        %v1483 = vpop.xlane.xlu0 %1482
        %v1484 = vsel %vm1236, %v1416, 0.0
        %1485 = vadd.xlane.f32.xlu0 %v1484
        %v1486 = vpop.xlane.xlu0 %1485
        %v1487 = vsel %vm1236, %v1417, 0.0
        %1488 = vadd.xlane.f32.xlu0 %v1487
        %v1489 = vpop.xlane.xlu0 %1488
        %v1490 = vsel %vm1236, %v1418, 0.0
        %1491 = vadd.xlane.f32.xlu0 %v1490
        %v1492 = vpop.xlane.xlu0 %1491
        %v1493 = vsel %vm1236, %v1419, 0.0
        %1494 = vadd.xlane.f32.xlu0 %v1493
        %v1495 = vpop.xlane.xlu0 %1494
        %v1496 = vsel %vm1236, %v1420, 0.0
        %1497 = vadd.xlane.f32.xlu0 %v1496
        %v1498 = vpop.xlane.xlu0 %1497
        %v1499 = vsel %vm1236, %v1421, 0.0
        %1500 = vadd.xlane.f32.xlu0 %v1499
        %v1501 = vpop.xlane.xlu0 %1500
        %v1502 = vsel %vm1236, %v1422, 0.0
        %1503 = vadd.xlane.f32.xlu0 %v1502
        %v1504 = vpop.xlane.xlu0 %1503
        %v1505 = vsel %vm1236, %v1423, 0.0
        %1506 = vadd.xlane.f32.xlu0 %v1505
        %v1507 = vpop.xlane.xlu0 %1506
        %v1508 = vsel %vm1236, %v1424, 0.0
        %1509 = vadd.xlane.f32.xlu0 %v1508
        %v1510 = vpop.xlane.xlu0 %1509
        %v1511 = vsel %vm1236, %v1425, 0.0
        %1512 = vadd.xlane.f32.xlu0 %v1511
        %v1513 = vpop.xlane.xlu0 %1512
        %v1514 = vsel %vm1236, %v1426, 0.0
        %1515 = vadd.xlane.f32.xlu0 %v1514
        %v1516 = vpop.xlane.xlu0 %1515
        %v1517 = vsel %vm1236, %v1427, 0.0
        %1518 = vadd.xlane.f32.xlu0 %v1517
        %v1519 = vpop.xlane.xlu0 %1518
        %v1520 = vsel %vm1236, %v1428, 0.0
        %1521 = vadd.xlane.f32.xlu0 %v1520
        %v1522 = vpop.xlane.xlu0 %1521
        %v1523 = vsel %vm1236, %v1429, 0.0
        %1524 = vadd.xlane.f32.xlu0 %v1523
        %v1525 = vpop.xlane.xlu0 %1524
        %v1526 = vmul.f32 %v1432, %v1333
        %v1527 = vmul.f32 %v1435, %v1333
        %v1528 = vmul.f32 %v1438, %v1333
        %v1529 = vmul.f32 %v1441, %v1333
        %v1530 = vmul.f32 %v1444, %v1333
        %v1531 = vmul.f32 %v1447, %v1333
        %v1532 = vmul.f32 %v1450, %v1333
        %v1533 = vmul.f32 %v1453, %v1333
        %v1534 = vmul.f32 %v1456, %v1333
        %v1535 = vmul.f32 %v1459, %v1333
        %v1536 = vmul.f32 %v1462, %v1333
        %v1537 = vmul.f32 %v1465, %v1333
        %v1538 = vmul.f32 %v1468, %v1333
        %v1539 = vmul.f32 %v1471, %v1333
        %v1540 = vmul.f32 %v1474, %v1333
        %v1541 = vmul.f32 %v1477, %v1333
        %v1542 = vmul.f32 %v1480, %v1333
        %v1543 = vmul.f32 %v1483, %v1333
        %v1544 = vmul.f32 %v1486, %v1333
        %v1545 = vmul.f32 %v1489, %v1333
        %v1546 = vmul.f32 %v1492, %v1333
        %v1547 = vmul.f32 %v1495, %v1333
        %v1548 = vmul.f32 %v1498, %v1333
        %v1549 = vmul.f32 %v1501, %v1333
        %v1550 = vmul.f32 %v1504, %v1333
        %v1551 = vmul.f32 %v1507, %v1333
        %v1552 = vmul.f32 %v1510, %v1333
        %v1553 = vmul.f32 %v1513, %v1333
        %v1554 = vmul.f32 %v1516, %v1333
        %v1555 = vmul.f32 %v1519, %v1333
        %v1556 = vmul.f32 %v1522, %v1333
        %v1557 = vmul.f32 %v1525, %v1333
        %v1558 = vadd.f32 %v1526, 1e-05
        %v1559 = vadd.f32 %v1527, 1e-05
        %v1560 = vadd.f32 %v1528, 1e-05
        %v1561 = vadd.f32 %v1529, 1e-05
        %v1562 = vadd.f32 %v1530, 1e-05
        %v1563 = vadd.f32 %v1531, 1e-05
        %v1564 = vadd.f32 %v1532, 1e-05
        %v1565 = vadd.f32 %v1533, 1e-05
        %v1566 = vadd.f32 %v1534, 1e-05
        %v1567 = vadd.f32 %v1535, 1e-05
        %v1568 = vadd.f32 %v1536, 1e-05
        %v1569 = vadd.f32 %v1537, 1e-05
        %v1570 = vadd.f32 %v1538, 1e-05
        %v1571 = vadd.f32 %v1539, 1e-05
        %v1572 = vadd.f32 %v1540, 1e-05
        %v1573 = vadd.f32 %v1541, 1e-05
        %v1574 = vadd.f32 %v1542, 1e-05
        %v1575 = vadd.f32 %v1543, 1e-05
        %v1576 = vadd.f32 %v1544, 1e-05
        %v1577 = vadd.f32 %v1545, 1e-05
        %v1578 = vadd.f32 %v1546, 1e-05
        %v1579 = vadd.f32 %v1547, 1e-05
        %v1580 = vadd.f32 %v1548, 1e-05
        %v1581 = vadd.f32 %v1549, 1e-05
        %v1582 = vadd.f32 %v1550, 1e-05
        %v1583 = vadd.f32 %v1551, 1e-05
        %v1584 = vadd.f32 %v1552, 1e-05
        %v1585 = vadd.f32 %v1553, 1e-05
        %v1586 = vadd.f32 %v1554, 1e-05
        %v1587 = vadd.f32 %v1555, 1e-05
        %v1588 = vadd.f32 %v1556, 1e-05
        %v1589 = vadd.f32 %v1557, 1e-05
        %v1590 = vrsqrt.pop %v1558
        %v1591 = vrsqrt.pop %v1559
        %v1592 = vrsqrt.pop %v1560
        %v1593 = vrsqrt.pop %v1561
        %v1594 = vrsqrt.pop %v1562
        %v1595 = vrsqrt.pop %v1563
        %v1596 = vrsqrt.pop %v1564
        %v1597 = vrsqrt.pop %v1565
        %v1598 = vrsqrt.pop %v1566
        %v1599 = vrsqrt.pop %v1567
        %v1600 = vrsqrt.pop %v1568
        %v1601 = vrsqrt.pop %v1569
        %v1602 = vrsqrt.pop %v1570
        %v1603 = vrsqrt.pop %v1571
        %v1604 = vrsqrt.pop %v1572
        %v1605 = vrsqrt.pop %v1573
        %v1606 = vrsqrt.pop %v1574
        %v1607 = vrsqrt.pop %v1575
        %v1608 = vrsqrt.pop %v1576
        %v1609 = vrsqrt.pop %v1577
        %v1610 = vrsqrt.pop %v1578
        %v1611 = vrsqrt.pop %v1579
        %v1612 = vrsqrt.pop %v1580
        %v1613 = vrsqrt.pop %v1581
        %v1614 = vrsqrt.pop %v1582
        %v1615 = vrsqrt.pop %v1583
        %v1616 = vrsqrt.pop %v1584
        %v1617 = vrsqrt.pop %v1585
        %v1618 = vrsqrt.pop %v1586
        %v1619 = vrsqrt.pop %v1587
        %v1620 = vrsqrt.pop %v1588
        %v1621 = vrsqrt.pop %v1589
        %v1622 = vmul.f32 %v1366, %v1590
        %v1623 = vmul.f32 %v1367, %v1591
        %v1624 = vmul.f32 %v1368, %v1592
        %v1625 = vmul.f32 %v1369, %v1593
        %v1626 = vmul.f32 %v1370, %v1594
        %v1627 = vmul.f32 %v1371, %v1595
        %v1628 = vmul.f32 %v1372, %v1596
        %v1629 = vmul.f32 %v1373, %v1597
        %v1630 = vmul.f32 %v1374, %v1598
        %v1631 = vmul.f32 %v1375, %v1599
        %v1632 = vmul.f32 %v1376, %v1600
        %v1633 = vmul.f32 %v1377, %v1601
        %v1634 = vmul.f32 %v1378, %v1602
        %v1635 = vmul.f32 %v1379, %v1603
        %v1636 = vmul.f32 %v1380, %v1604
        %v1637 = vmul.f32 %v1381, %v1605
        %v1638 = vmul.f32 %v1382, %v1606
        %v1639 = vmul.f32 %v1383, %v1607
        %v1640 = vmul.f32 %v1384, %v1608
        %v1641 = vmul.f32 %v1385, %v1609
        %v1642 = vmul.f32 %v1386, %v1610
        %v1643 = vmul.f32 %v1387, %v1611
        %v1644 = vmul.f32 %v1388, %v1612
        %v1645 = vmul.f32 %v1389, %v1613
        %v1646 = vmul.f32 %v1390, %v1614
        %v1647 = vmul.f32 %v1391, %v1615
        %v1648 = vmul.f32 %v1392, %v1616
        %v1649 = vmul.f32 %v1393, %v1617
        %v1650 = vmul.f32 %v1394, %v1618
        %v1651 = vmul.f32 %v1395, %v1619
        %v1652 = vmul.f32 %v1396, %v1620
        %v1653 = vmul.f32 %v1397, %v1621
        %v1655 = vlaneseq
        %v1656 = vshrl.u32 %v1655, 7
        %v1657 = vsub.s32 0, %v1656
        %v1658 = vrot.slane %v1234, %v1657
        %v1660 = vmul.f32 %v1622, %v1658
        %v1661 = vmul.f32 %v1623, %v1658
        %v1662 = vmul.f32 %v1624, %v1658
        %v1663 = vmul.f32 %v1625, %v1658
        %v1664 = vmul.f32 %v1626, %v1658
        %v1665 = vmul.f32 %v1627, %v1658
        %v1666 = vmul.f32 %v1628, %v1658
        %v1667 = vmul.f32 %v1629, %v1658
        %v1668 = vmul.f32 %v1630, %v1658
        %v1669 = vmul.f32 %v1631, %v1658
        %v1670 = vmul.f32 %v1632, %v1658
        %v1671 = vmul.f32 %v1633, %v1658
        %v1672 = vmul.f32 %v1634, %v1658
        %v1673 = vmul.f32 %v1635, %v1658
        %v1674 = vmul.f32 %v1636, %v1658
        %v1675 = vmul.f32 %v1637, %v1658
        %v1676 = vmul.f32 %v1638, %v1658
        %v1677 = vmul.f32 %v1639, %v1658
        %v1678 = vmul.f32 %v1640, %v1658
        %v1679 = vmul.f32 %v1641, %v1658
        %v1680 = vmul.f32 %v1642, %v1658
        %v1681 = vmul.f32 %v1643, %v1658
        %v1682 = vmul.f32 %v1644, %v1658
        %v1683 = vmul.f32 %v1645, %v1658
        %v1684 = vmul.f32 %v1646, %v1658
        %v1685 = vmul.f32 %v1647, %v1658
        %v1686 = vmul.f32 %v1648, %v1658
        %v1687 = vmul.f32 %v1649, %v1658
        %v1688 = vmul.f32 %v1650, %v1658
        %v1689 = vmul.f32 %v1651, %v1658
        %v1690 = vmul.f32 %v1652, %v1658
        %v1691 = vmul.f32 %v1653, %v1658
        %v1693 = vlaneseq
        %v1694 = vshrl.u32 %v1693, 7
        %v1695 = vsub.s32 0, %v1694
        %v1696 = vrot.slane %v1235, %v1695
        %v1698 = vadd.f32 %v1660, %v1696
        %v1699 = vadd.f32 %v1661, %v1696
        %v1700 = vadd.f32 %v1662, %v1696
        %v1701 = vadd.f32 %v1663, %v1696
        %v1702 = vadd.f32 %v1664, %v1696
        %v1703 = vadd.f32 %v1665, %v1696
        %v1704 = vadd.f32 %v1666, %v1696
        %v1705 = vadd.f32 %v1667, %v1696
        %v1706 = vadd.f32 %v1668, %v1696
        %v1707 = vadd.f32 %v1669, %v1696
        %v1708 = vadd.f32 %v1670, %v1696
        %v1709 = vadd.f32 %v1671, %v1696
        %v1710 = vadd.f32 %v1672, %v1696
        %v1711 = vadd.f32 %v1673, %v1696
        %v1712 = vadd.f32 %v1674, %v1696
        %v1713 = vadd.f32 %v1675, %v1696
        %v1714 = vadd.f32 %v1676, %v1696
        %v1715 = vadd.f32 %v1677, %v1696
        %v1716 = vadd.f32 %v1678, %v1696
        %v1717 = vadd.f32 %v1679, %v1696
        %v1718 = vadd.f32 %v1680, %v1696
        %v1719 = vadd.f32 %v1681, %v1696
        %v1720 = vadd.f32 %v1682, %v1696
        %v1721 = vadd.f32 %v1683, %v1696
        %v1722 = vadd.f32 %v1684, %v1696
        %v1723 = vadd.f32 %v1685, %v1696
        %v1724 = vadd.f32 %v1686, %v1696
        %v1725 = vadd.f32 %v1687, %v1696
        %v1726 = vadd.f32 %v1688, %v1696
        %v1727 = vadd.f32 %v1689, %v1696
        %v1728 = vadd.f32 %v1690, %v1696
        %v1729 = vadd.f32 %v1691, %v1696
        %v1730 = vpack.c.bf16 %v1699, %v1698
        %v1731 = vpack.c.bf16 %v1701, %v1700
        %v1732 = vpack.c.bf16 %v1703, %v1702
        %v1733 = vpack.c.bf16 %v1705, %v1704
        %v1734 = vpack.c.bf16 %v1707, %v1706
        %v1735 = vpack.c.bf16 %v1709, %v1708
        %v1736 = vpack.c.bf16 %v1711, %v1710
        %v1737 = vpack.c.bf16 %v1713, %v1712
        %v1738 = vpack.c.bf16 %v1715, %v1714
        %v1739 = vpack.c.bf16 %v1717, %v1716
        %v1740 = vpack.c.bf16 %v1719, %v1718
        %v1741 = vpack.c.bf16 %v1721, %v1720
        %v1742 = vpack.c.bf16 %v1723, %v1722
        %v1743 = vpack.c.bf16 %v1725, %v1724
        %v1744 = vpack.c.bf16 %v1727, %v1726
        %v1745 = vpack.c.bf16 %v1729, %v1728
        %v1746 = vld [vmem:[%s864] sm:$0xf]
        %v1747 = vld [vmem:[%s864 + $0x4] sm:$0xf]
        %v1748 = vld [vmem:[%s864 + $0x8] sm:$0xf]
        %v1749 = vld [vmem:[%s864 + $0xc] sm:$0xf]
        %v1750 = vld [vmem:[%s872] sm:$0x1]
        %v1752 = vlaneseq
        %v1753 = vshrl.u32 %v1752, 7
        %v1754 = vsub.s32 0, %v1753
        %v1755 = vrot.slane %v1750, %v1754
        %v1761 = vunpack.c.l.b16 %v1746
        %v1762 = vunpack.c.l.b16 %v1747
        %v1763 = vunpack.c.l.b16 %v1748
        %v1764 = vunpack.c.l.b16 %v1749
        %v1765 = vpack.c.b16 %v1762, %v1761
        %v1766 = vpack.c.b16 %v1764, %v1763
        %v1770 = vsel %vm1236, %v1730, 0
        %v1773 = vsel %vm1236, %v1731, 0
        %v1776 = vsel %vm1236, %v1732, 0
        %v1779 = vsel %vm1236, %v1733, 0
        %v1782 = vsel %vm1236, %v1734, 0
        %v1785 = vsel %vm1236, %v1735, 0
        %v1788 = vsel %vm1236, %v1736, 0
        %v1791 = vsel %vm1236, %v1737, 0
        %v1794 = vsel %vm1236, %v1738, 0
        %v1797 = vsel %vm1236, %v1739, 0
        %v1800 = vsel %vm1236, %v1740, 0
        %v1803 = vsel %vm1236, %v1741, 0
        %v1806 = vsel %vm1236, %v1742, 0
        %v1809 = vsel %vm1236, %v1743, 0
        %v1812 = vsel %vm1236, %v1744, 0
        %v1815 = vsel %vm1236, %v1745, 0
        %1817 = vmatprep.subr.bf16.mxu0 0
        %1818 = vmatpush1.bf16.msra.mxu0 %v1765
        %1819 = vmatprep.subr.bf16.mxu0 0
        %1820 = vmatpush1.bf16.msra.mxu0 %v1766
        %1821 = vmatprep.subr.bf16.mxu0 0
        %1822 = vmatpush1.bf16.msra.mxu0 0
        %1823 = vmatprep.subr.bf16.mxu0 0
        %1824 = vmatpush1.bf16.msra.mxu0 0
        %1825 = vmatprep.subr.bf16.mxu0 0
        %1826 = vmatpush1.bf16.msra.mxu0 0
        %1827 = vmatprep.subr.bf16.mxu0 0
        %1828 = vmatpush1.bf16.msra.mxu0 0
        %1829 = vmatprep.subr.bf16.mxu0 0
        %1830 = vmatpush1.bf16.msra.mxu0 0
        %1831 = vmatprep.subr.bf16.mxu0 0
        %1832 = vmatpush1.bf16.msra.mxu0 0
        %1833 = vmatprep.subr.bf16.mxu0 0
        %1834 = vmatpush1.bf16.msra.mxu0 0
        %1835 = vmatprep.subr.bf16.mxu0 0
        %1836 = vmatpush1.bf16.msra.mxu0 0
        %1837 = vmatprep.subr.bf16.mxu0 0
        %1838 = vmatpush1.bf16.msra.mxu0 0
        %1839 = vmatprep.subr.bf16.mxu0 0
        %1840 = vmatpush1.bf16.msra.mxu0 0
        %1841 = vmatprep.subr.bf16.mxu0 0
        %1842 = vmatpush1.bf16.msra.mxu0 0
        %1843 = vmatprep.subr.bf16.mxu0 0
        %1844 = vmatpush1.bf16.msra.mxu0 0
        %1845 = vmatprep.subr.bf16.mxu0 0
        %1846 = vmatpush1.bf16.msra.mxu0 0
        %1847 = vmatprep.subr.bf16.mxu0 0
        %1848 = vmatpush1.bf16.msra.mxu0 0
        %1849 = vmatprep.mubr.bf16.mxu0 0
        %1850 = vmatmul.mubr.bf16.gmra.mrb[0].mxu0 %v1770
        %v1851 = vpop.f32.mrb[0].mxu0
        %v1852 = vadd.f32 %v1755, %v1851
        %v1853 = vpop.f32.mrb[0].mxu0
        %v1854 = vpop.f32.mrb[0].mxu0
        %v1855 = vadd.f32 %v1755, %v1854
        %v1856 = vpop.f32.mrb[0].mxu0
        %1857 = vmatprep.mubr.bf16.mxu0 0
        %1858 = vmatmul.mubr.bf16.gmra.mrb[0].mxu0 %v1773
        %v1859 = vpop.f32.mrb[0].mxu0
        %v1860 = vadd.f32 %v1755, %v1859
        %v1861 = vpop.f32.mrb[0].mxu0
        %v1862 = vpop.f32.mrb[0].mxu0
        %v1863 = vadd.f32 %v1755, %v1862
        %v1864 = vpop.f32.mrb[0].mxu0
        %1865 = vmatprep.mubr.bf16.mxu0 0
        %1866 = vmatmul.mubr.bf16.gmra.mrb[0].mxu0 %v1776
        %v1867 = vpop.f32.mrb[0].mxu0
        %v1868 = vadd.f32 %v1755, %v1867
        %v1869 = vpop.f32.mrb[0].mxu0
        %v1870 = vpop.f32.mrb[0].mxu0
        %v1871 = vadd.f32 %v1755, %v1870
        %v1872 = vpop.f32.mrb[0].mxu0
        %1873 = vmatprep.mubr.bf16.mxu0 0
        %1874 = vmatmul.mubr.bf16.gmra.mrb[0].mxu0 %v1779
        %v1875 = vpop.f32.mrb[0].mxu0
        %v1876 = vadd.f32 %v1755, %v1875
        %v1877 = vpop.f32.mrb[0].mxu0
        %v1878 = vpop.f32.mrb[0].mxu0
        %v1879 = vadd.f32 %v1755, %v1878
        %v1880 = vpop.f32.mrb[0].mxu0
        %1881 = vmatprep.mubr.bf16.mxu0 0
        %1882 = vmatmul.mubr.bf16.gmra.mrb[0].mxu0 %v1782
        %v1883 = vpop.f32.mrb[0].mxu0
        %v1884 = vadd.f32 %v1755, %v1883
        %v1885 = vpop.f32.mrb[0].mxu0
        %v1886 = vpop.f32.mrb[0].mxu0
        %v1887 = vadd.f32 %v1755, %v1886
        %v1888 = vpop.f32.mrb[0].mxu0
        %1889 = vmatprep.mubr.bf16.mxu0 0
        %1890 = vmatmul.mubr.bf16.gmra.mrb[0].mxu0 %v1785
        %v1891 = vpop.f32.mrb[0].mxu0
        %v1892 = vadd.f32 %v1755, %v1891
        %v1893 = vpop.f32.mrb[0].mxu0
        %v1894 = vpop.f32.mrb[0].mxu0
        %v1895 = vadd.f32 %v1755, %v1894
        %v1896 = vpop.f32.mrb[0].mxu0
        %1897 = vmatprep.mubr.bf16.mxu0 0
        %1898 = vmatmul.mubr.bf16.gmra.mrb[0].mxu0 %v1788
        %v1899 = vpop.f32.mrb[0].mxu0
        %v1900 = vadd.f32 %v1755, %v1899
        %v1901 = vpop.f32.mrb[0].mxu0
        %v1902 = vpop.f32.mrb[0].mxu0
        %v1903 = vadd.f32 %v1755, %v1902
        %v1904 = vpop.f32.mrb[0].mxu0
        %1905 = vmatprep.mubr.bf16.mxu0 0
        %1906 = vmatmul.mubr.bf16.gmra.mrb[0].mxu0 %v1791
        %v1907 = vpop.f32.mrb[0].mxu0
        %v1908 = vadd.f32 %v1755, %v1907
        %v1909 = vpop.f32.mrb[0].mxu0
        %v1910 = vpop.f32.mrb[0].mxu0
        %v1911 = vadd.f32 %v1755, %v1910
        %v1912 = vpop.f32.mrb[0].mxu0
        %1913 = vmatprep.mubr.bf16.mxu0 0
        %1914 = vmatmul.mubr.bf16.gmra.mrb[0].mxu0 %v1794
        %v1915 = vpop.f32.mrb[0].mxu0
        %v1916 = vadd.f32 %v1755, %v1915
        %v1917 = vpop.f32.mrb[0].mxu0
        %v1918 = vpop.f32.mrb[0].mxu0
        %v1919 = vadd.f32 %v1755, %v1918
        %v1920 = vpop.f32.mrb[0].mxu0
        %1921 = vmatprep.mubr.bf16.mxu0 0
        %1922 = vmatmul.mubr.bf16.gmra.mrb[0].mxu0 %v1797
        %v1923 = vpop.f32.mrb[0].mxu0
        %v1924 = vadd.f32 %v1755, %v1923
        %v1925 = vpop.f32.mrb[0].mxu0
        %v1926 = vpop.f32.mrb[0].mxu0
        %v1927 = vadd.f32 %v1755, %v1926
        %v1928 = vpop.f32.mrb[0].mxu0
        %1929 = vmatprep.mubr.bf16.mxu0 0
        %1930 = vmatmul.mubr.bf16.gmra.mrb[0].mxu0 %v1800
        %v1931 = vpop.f32.mrb[0].mxu0
        %v1932 = vadd.f32 %v1755, %v1931
        %v1933 = vpop.f32.mrb[0].mxu0
        %v1934 = vpop.f32.mrb[0].mxu0
        %v1935 = vadd.f32 %v1755, %v1934
        %v1936 = vpop.f32.mrb[0].mxu0
        %1937 = vmatprep.mubr.bf16.mxu0 0
        %1938 = vmatmul.mubr.bf16.gmra.mrb[0].mxu0 %v1803
        %v1939 = vpop.f32.mrb[0].mxu0
        %v1940 = vadd.f32 %v1755, %v1939
        %v1941 = vpop.f32.mrb[0].mxu0
        %v1942 = vpop.f32.mrb[0].mxu0
        %v1943 = vadd.f32 %v1755, %v1942
        %v1944 = vpop.f32.mrb[0].mxu0
        %1945 = vmatprep.mubr.bf16.mxu0 0
        %1946 = vmatmul.mubr.bf16.gmra.mrb[0].mxu0 %v1806
        %v1947 = vpop.f32.mrb[0].mxu0
        %v1948 = vadd.f32 %v1755, %v1947
        %v1949 = vpop.f32.mrb[0].mxu0
        %v1950 = vpop.f32.mrb[0].mxu0
        %v1951 = vadd.f32 %v1755, %v1950
        %v1952 = vpop.f32.mrb[0].mxu0
        %1953 = vmatprep.mubr.bf16.mxu0 0
        %1954 = vmatmul.mubr.bf16.gmra.mrb[0].mxu0 %v1809
        %v1955 = vpop.f32.mrb[0].mxu0
        %v1956 = vadd.f32 %v1755, %v1955
        %v1957 = vpop.f32.mrb[0].mxu0
        %v1958 = vpop.f32.mrb[0].mxu0
        %v1959 = vadd.f32 %v1755, %v1958
        %v1960 = vpop.f32.mrb[0].mxu0
        %1961 = vmatprep.mubr.bf16.mxu0 0
        %1962 = vmatmul.mubr.bf16.gmra.mrb[0].mxu0 %v1812
        %v1963 = vpop.f32.mrb[0].mxu0
        %v1964 = vadd.f32 %v1755, %v1963
        %v1965 = vpop.f32.mrb[0].mxu0
        %v1966 = vpop.f32.mrb[0].mxu0
        %v1967 = vadd.f32 %v1755, %v1966
        %v1968 = vpop.f32.mrb[0].mxu0
        %1969 = vmatprep.mubr.bf16.mxu0 0
        %1970 = vmatmul.mubr.bf16.gmra.mrb[0].mxu0 %v1815
        %v1971 = vpop.f32.mrb[0].mxu0
        %v1972 = vadd.f32 %v1755, %v1971
        %v1973 = vpop.f32.mrb[0].mxu0
        %v1974 = vpop.f32.mrb[0].mxu0
        %v1975 = vadd.f32 %v1755, %v1974
        %v1976 = vpop.f32.mrb[0].mxu0
        %1977 = vdwg.mxu0
        %v1978 = vpack.c.bf16 %v1855, %v1852
        %v1979 = vpack.c.bf16 %v1863, %v1860
        %v1980 = vpack.c.bf16 %v1871, %v1868
        %v1981 = vpack.c.bf16 %v1879, %v1876
        %v1982 = vpack.c.bf16 %v1887, %v1884
        %v1983 = vpack.c.bf16 %v1895, %v1892
        %v1984 = vpack.c.bf16 %v1903, %v1900
        %v1985 = vpack.c.bf16 %v1911, %v1908
        %v1986 = vpack.c.bf16 %v1919, %v1916
        %v1987 = vpack.c.bf16 %v1927, %v1924
        %v1988 = vpack.c.bf16 %v1935, %v1932
        %v1989 = vpack.c.bf16 %v1943, %v1940
        %v1990 = vpack.c.bf16 %v1951, %v1948
        %v1991 = vpack.c.bf16 %v1959, %v1956
        %v1992 = vpack.c.bf16 %v1967, %v1964
        %v1993 = vpack.c.bf16 %v1975, %v1972
        %2002 = vrot.lane.b32.xlu0 %v1978, 96
        %v2003 = vpop.permute.xlu0 %2002
        %2004 = vrot.lane.b32.xlu0 %v1979, 96
        %v2005 = vpop.permute.xlu0 %2004
        %2006 = vrot.lane.b32.xlu0 %v1980, 96
        %v2007 = vpop.permute.xlu0 %2006
        %2008 = vrot.lane.b32.xlu0 %v1981, 96
        %v2009 = vpop.permute.xlu0 %2008
        %2010 = vrot.lane.b32.xlu0 %v1982, 96
        %v2011 = vpop.permute.xlu0 %2010
        %2012 = vrot.lane.b32.xlu0 %v1983, 96
        %v2013 = vpop.permute.xlu0 %2012
        %2014 = vrot.lane.b32.xlu0 %v1984, 96
        %v2015 = vpop.permute.xlu0 %2014
        %2016 = vrot.lane.b32.xlu0 %v1985, 96
        %v2017 = vpop.permute.xlu0 %2016
        %vm2018 = vcmask 64512
        %v2020 = vsel %vm2018, %v1978, 0
        %v2023 = vsel %vm2018, %v1979, 0
        %v2026 = vsel %vm2018, %v1980, 0
        %v2029 = vsel %vm2018, %v1981, 0
        %v2032 = vsel %vm2018, %v1982, 0
        %v2035 = vsel %vm2018, %v1983, 0
        %v2038 = vsel %vm2018, %v1984, 0
        %v2041 = vsel %vm2018, %v1985, 0
        %v2044 = vsel %vm2018, %v2003, 0
        %v2047 = vsel %vm2018, %v2005, 0
        %v2050 = vsel %vm2018, %v2007, 0
        %v2053 = vsel %vm2018, %v2009, 0
        %v2056 = vsel %vm2018, %v2011, 0
        %v2059 = vsel %vm2018, %v2013, 0
        %v2062 = vsel %vm2018, %v2015, 0
        %v2065 = vsel %vm2018, %v2017, 0
        %2067 = vmatprep.subr.bf16.mxu0 0
        %2068 = vmatpush1.bf16.xpose.msra.mxu0 %v2044
        %2069 = vmatprep.subr.bf16.mxu0 0
        %2070 = vmatpush1.bf16.xpose.msra.mxu0 %v2047
        %2071 = vmatprep.subr.bf16.mxu0 0
        %2072 = vmatpush1.bf16.xpose.msra.mxu0 %v2050
        %2073 = vmatprep.subr.bf16.mxu0 0
        %2074 = vmatpush1.bf16.xpose.msra.mxu0 %v2053
        %2075 = vmatprep.subr.bf16.mxu0 0
        %2076 = vmatpush1.bf16.xpose.msra.mxu0 %v2056
        %2077 = vmatprep.subr.bf16.mxu0 0
        %2078 = vmatpush1.bf16.xpose.msra.mxu0 %v2059
        %2079 = vmatprep.subr.bf16.mxu0 0
        %2080 = vmatpush1.bf16.xpose.msra.mxu0 %v2062
        %2081 = vmatprep.subr.bf16.mxu0 0
        %2082 = vmatpush1.bf16.xpose.msra.mxu0 %v2065
        %2083 = vmatprep.subr.bf16.mxu0 0
        %2084 = vmatpush1.bf16.xpose.msra.mxu0 0
        %2085 = vmatprep.subr.bf16.mxu0 0
        %2086 = vmatpush1.bf16.xpose.msra.mxu0 0
        %2087 = vmatprep.subr.bf16.mxu0 0
        %2088 = vmatpush1.bf16.xpose.msra.mxu0 0
        %2089 = vmatprep.subr.bf16.mxu0 0
        %2090 = vmatpush1.bf16.xpose.msra.mxu0 0
        %2091 = vmatprep.subr.bf16.mxu0 0
        %2092 = vmatpush1.bf16.xpose.msra.mxu0 0
        %2093 = vmatprep.subr.bf16.mxu0 0
        %2094 = vmatpush1.bf16.xpose.msra.mxu0 0
        %2095 = vmatprep.subr.bf16.mxu0 0
        %2096 = vmatpush1.bf16.xpose.msra.mxu0 0
        %2097 = vmatprep.subr.bf16.mxu0 0
        %2098 = vmatpush1.bf16.xpose.msra.mxu0 0
        %2099 = vmatprep.mubr.bf16.mxu0 0
        %2100 = vmatmul.mubr.bf16.gmra.mrb[0].mxu0 %v2020
        %v2101 = vpop.f32.mrb[0].mxu0
        %v2102 = vadd.f32 %v1218, %v2101
        %v2103 = vpop.f32.mrb[0].mxu0
        %v2104 = vpop.f32.mrb[0].mxu0
        %v2105 = vadd.f32 %v1219, %v2104
        %v2106 = vpop.f32.mrb[0].mxu0
        %2107 = vmatprep.mubr.bf16.mxu0 0
        %2108 = vmatmul.mubr.bf16.gmra.mrb[0].mxu0 %v2023
        %v2109 = vpop.f32.mrb[0].mxu0
        %v2110 = vadd.f32 %v1220, %v2109
        %v2111 = vpop.f32.mrb[0].mxu0
        %v2112 = vpop.f32.mrb[0].mxu0
        %v2113 = vadd.f32 %v1221, %v2112
        %v2114 = vpop.f32.mrb[0].mxu0
        %2115 = vmatprep.mubr.bf16.mxu0 0
        %2116 = vmatmul.mubr.bf16.gmra.mrb[0].mxu0 %v2026
        %v2117 = vpop.f32.mrb[0].mxu0
        %v2118 = vadd.f32 %v1222, %v2117
        %v2119 = vpop.f32.mrb[0].mxu0
        %v2120 = vpop.f32.mrb[0].mxu0
        %v2121 = vadd.f32 %v1223, %v2120
        %v2122 = vpop.f32.mrb[0].mxu0
        %2123 = vmatprep.mubr.bf16.mxu0 0
        %2124 = vmatmul.mubr.bf16.gmra.mrb[0].mxu0 %v2029
        %v2125 = vpop.f32.mrb[0].mxu0
        %v2126 = vadd.f32 %v1224, %v2125
        %v2127 = vpop.f32.mrb[0].mxu0
        %v2128 = vpop.f32.mrb[0].mxu0
        %v2129 = vadd.f32 %v1225, %v2128
        %v2130 = vpop.f32.mrb[0].mxu0
        %2131 = vmatprep.mubr.bf16.mxu0 0
        %2132 = vmatmul.mubr.bf16.gmra.mrb[0].mxu0 %v2032
        %v2133 = vpop.f32.mrb[0].mxu0
        %v2134 = vadd.f32 %v1226, %v2133
        %v2135 = vpop.f32.mrb[0].mxu0
        %v2136 = vpop.f32.mrb[0].mxu0
        %v2137 = vadd.f32 %v1227, %v2136
        %v2138 = vpop.f32.mrb[0].mxu0
        %2139 = vmatprep.mubr.bf16.mxu0 0
        %2140 = vmatmul.mubr.bf16.gmra.mrb[0].mxu0 %v2035
        %v2141 = vpop.f32.mrb[0].mxu0
        %v2142 = vadd.f32 %v1228, %v2141
        %v2143 = vpop.f32.mrb[0].mxu0
        %v2144 = vpop.f32.mrb[0].mxu0
        %v2145 = vadd.f32 %v1229, %v2144
        %v2146 = vpop.f32.mrb[0].mxu0
        %2147 = vmatprep.mubr.bf16.mxu0 0
        %2148 = vmatmul.mubr.bf16.gmra.mrb[0].mxu0 %v2038
        %v2149 = vpop.f32.mrb[0].mxu0
        %v2150 = vadd.f32 %v1230, %v2149
        %v2151 = vpop.f32.mrb[0].mxu0
        %v2152 = vpop.f32.mrb[0].mxu0
        %v2153 = vadd.f32 %v1231, %v2152
        %v2154 = vpop.f32.mrb[0].mxu0
        %2155 = vmatprep.mubr.bf16.mxu0 0
        %2156 = vmatmul.mubr.bf16.gmra.mrb[0].mxu0 %v2041
        %v2157 = vpop.f32.mrb[0].mxu0
        %v2158 = vadd.f32 %v1232, %v2157
        %v2159 = vpop.f32.mrb[0].mxu0
        %v2160 = vpop.f32.mrb[0].mxu0
        %v2161 = vadd.f32 %v1233, %v2160
        %v2162 = vpop.f32.mrb[0].mxu0
        %2163 = vdwg.mxu0
        %2172 = vrot.lane.b32.xlu0 %v1986, 96
        %v2173 = vpop.permute.xlu0 %2172
        %2174 = vrot.lane.b32.xlu0 %v1987, 96
        %v2175 = vpop.permute.xlu0 %2174
        %2176 = vrot.lane.b32.xlu0 %v1988, 96
        %v2177 = vpop.permute.xlu0 %2176
        %2178 = vrot.lane.b32.xlu0 %v1989, 96
        %v2179 = vpop.permute.xlu0 %2178
        %2180 = vrot.lane.b32.xlu0 %v1990, 96
        %v2181 = vpop.permute.xlu0 %2180
        %2182 = vrot.lane.b32.xlu0 %v1991, 96
        %v2183 = vpop.permute.xlu0 %2182
        %2184 = vrot.lane.b32.xlu0 %v1992, 96
        %v2185 = vpop.permute.xlu0 %2184
        %2186 = vrot.lane.b32.xlu0 %v1993, 96
        %v2187 = vpop.permute.xlu0 %2186
        %v2189 = vsel %vm2018, %v1986, 0
        %v2192 = vsel %vm2018, %v1987, 0
        %v2195 = vsel %vm2018, %v1988, 0
        %v2198 = vsel %vm2018, %v1989, 0
        %v2201 = vsel %vm2018, %v1990, 0
        %v2204 = vsel %vm2018, %v1991, 0
        %v2207 = vsel %vm2018, %v1992, 0
        %v2210 = vsel %vm2018, %v1993, 0
        %v2213 = vsel %vm2018, %v2173, 0
        %v2216 = vsel %vm2018, %v2175, 0
        %v2219 = vsel %vm2018, %v2177, 0
        %v2222 = vsel %vm2018, %v2179, 0
        %v2225 = vsel %vm2018, %v2181, 0
        %v2228 = vsel %vm2018, %v2183, 0
        %v2231 = vsel %vm2018, %v2185, 0
        %v2234 = vsel %vm2018, %v2187, 0
        %2236 = vmatprep.subr.bf16.mxu0 0
        %2237 = vmatpush1.bf16.xpose.msra.mxu0 %v2213
        %2238 = vmatprep.subr.bf16.mxu0 0
        %2239 = vmatpush1.bf16.xpose.msra.mxu0 %v2216
        %2240 = vmatprep.subr.bf16.mxu0 0
        %2241 = vmatpush1.bf16.xpose.msra.mxu0 %v2219
        %2242 = vmatprep.subr.bf16.mxu0 0
        %2243 = vmatpush1.bf16.xpose.msra.mxu0 %v2222
        %2244 = vmatprep.subr.bf16.mxu0 0
        %2245 = vmatpush1.bf16.xpose.msra.mxu0 %v2225
        %2246 = vmatprep.subr.bf16.mxu0 0
        %2247 = vmatpush1.bf16.xpose.msra.mxu0 %v2228
        %2248 = vmatprep.subr.bf16.mxu0 0
        %2249 = vmatpush1.bf16.xpose.msra.mxu0 %v2231
        %2250 = vmatprep.subr.bf16.mxu0 0
        %2251 = vmatpush1.bf16.xpose.msra.mxu0 %v2234
        %2252 = vmatprep.subr.bf16.mxu0 0
        %2253 = vmatpush1.bf16.xpose.msra.mxu0 0
        %2254 = vmatprep.subr.bf16.mxu0 0
        %2255 = vmatpush1.bf16.xpose.msra.mxu0 0
        %2256 = vmatprep.subr.bf16.mxu0 0
        %2257 = vmatpush1.bf16.xpose.msra.mxu0 0
        %2258 = vmatprep.subr.bf16.mxu0 0
        %2259 = vmatpush1.bf16.xpose.msra.mxu0 0
        %2260 = vmatprep.subr.bf16.mxu0 0
        %2261 = vmatpush1.bf16.xpose.msra.mxu0 0
        %2262 = vmatprep.subr.bf16.mxu0 0
        %2263 = vmatpush1.bf16.xpose.msra.mxu0 0
        %2264 = vmatprep.subr.bf16.mxu0 0
        %2265 = vmatpush1.bf16.xpose.msra.mxu0 0
        %2266 = vmatprep.subr.bf16.mxu0 0
        %2267 = vmatpush1.bf16.xpose.msra.mxu0 0
        %2268 = vmatprep.mubr.bf16.mxu0 0
        %2269 = vmatmul.mubr.bf16.gmra.mrb[0].mxu0 %v2189
        %v2270 = vpop.f32.mrb[0].mxu0
        %v2271 = vadd.f32 %v1218, %v2270
        %v2272 = vpop.f32.mrb[0].mxu0
        %v2273 = vpop.f32.mrb[0].mxu0
        %v2274 = vadd.f32 %v1219, %v2273
        %v2275 = vpop.f32.mrb[0].mxu0
        %2276 = vmatprep.mubr.bf16.mxu0 0
        %2277 = vmatmul.mubr.bf16.gmra.mrb[0].mxu0 %v2192
        %v2278 = vpop.f32.mrb[0].mxu0
        %v2279 = vadd.f32 %v1220, %v2278
        %v2280 = vpop.f32.mrb[0].mxu0
        %v2281 = vpop.f32.mrb[0].mxu0
        %v2282 = vadd.f32 %v1221, %v2281
        %v2283 = vpop.f32.mrb[0].mxu0
        %2284 = vmatprep.mubr.bf16.mxu0 0
        %2285 = vmatmul.mubr.bf16.gmra.mrb[0].mxu0 %v2195
        %v2286 = vpop.f32.mrb[0].mxu0
        %v2287 = vadd.f32 %v1222, %v2286
        %v2288 = vpop.f32.mrb[0].mxu0
        %v2289 = vpop.f32.mrb[0].mxu0
        %v2290 = vadd.f32 %v1223, %v2289
        %v2291 = vpop.f32.mrb[0].mxu0
        %2292 = vmatprep.mubr.bf16.mxu0 0
        %2293 = vmatmul.mubr.bf16.gmra.mrb[0].mxu0 %v2198
        %v2294 = vpop.f32.mrb[0].mxu0
        %v2295 = vadd.f32 %v1224, %v2294
        %v2296 = vpop.f32.mrb[0].mxu0
        %v2297 = vpop.f32.mrb[0].mxu0
        %v2298 = vadd.f32 %v1225, %v2297
        %v2299 = vpop.f32.mrb[0].mxu0
        %2300 = vmatprep.mubr.bf16.mxu0 0
        %2301 = vmatmul.mubr.bf16.gmra.mrb[0].mxu0 %v2201
        %v2302 = vpop.f32.mrb[0].mxu0
        %v2303 = vadd.f32 %v1226, %v2302
        %v2304 = vpop.f32.mrb[0].mxu0
        %v2305 = vpop.f32.mrb[0].mxu0
        %v2306 = vadd.f32 %v1227, %v2305
        %v2307 = vpop.f32.mrb[0].mxu0
        %2308 = vmatprep.mubr.bf16.mxu0 0
        %2309 = vmatmul.mubr.bf16.gmra.mrb[0].mxu0 %v2204
        %v2310 = vpop.f32.mrb[0].mxu0
        %v2311 = vadd.f32 %v1228, %v2310
        %v2312 = vpop.f32.mrb[0].mxu0
        %v2313 = vpop.f32.mrb[0].mxu0
        %v2314 = vadd.f32 %v1229, %v2313
        %v2315 = vpop.f32.mrb[0].mxu0
        %2316 = vmatprep.mubr.bf16.mxu0 0
        %2317 = vmatmul.mubr.bf16.gmra.mrb[0].mxu0 %v2207
        %v2318 = vpop.f32.mrb[0].mxu0
        %v2319 = vadd.f32 %v1230, %v2318
        %v2320 = vpop.f32.mrb[0].mxu0
        %v2321 = vpop.f32.mrb[0].mxu0
        %v2322 = vadd.f32 %v1231, %v2321
        %v2323 = vpop.f32.mrb[0].mxu0
        %2324 = vmatprep.mubr.bf16.mxu0 0
        %2325 = vmatmul.mubr.bf16.gmra.mrb[0].mxu0 %v2210
        %v2326 = vpop.f32.mrb[0].mxu0
        %v2327 = vadd.f32 %v1232, %v2326
        %v2328 = vpop.f32.mrb[0].mxu0
        %v2329 = vpop.f32.mrb[0].mxu0
        %v2330 = vadd.f32 %v1233, %v2329
        %v2331 = vpop.f32.mrb[0].mxu0
        %2332 = vdwg.mxu0
        %2333 = vmax.xlane.f32.xlu0 %v2102
        %v2334 = vpop.xlane.xlu0 %2333
        %2335 = vmax.xlane.f32.xlu0 %v2105
        %v2336 = vpop.xlane.xlu0 %2335
        %2337 = vmax.xlane.f32.xlu0 %v2110
        %v2338 = vpop.xlane.xlu0 %2337
        %2339 = vmax.xlane.f32.xlu0 %v2113
        %v2340 = vpop.xlane.xlu0 %2339
        %2341 = vmax.xlane.f32.xlu0 %v2118
        %v2342 = vpop.xlane.xlu0 %2341
        %2343 = vmax.xlane.f32.xlu0 %v2121
        %v2344 = vpop.xlane.xlu0 %2343
        %2345 = vmax.xlane.f32.xlu0 %v2126
        %v2346 = vpop.xlane.xlu0 %2345
        %2347 = vmax.xlane.f32.xlu0 %v2129
        %v2348 = vpop.xlane.xlu0 %2347
        %2349 = vmax.xlane.f32.xlu0 %v2134
        %v2350 = vpop.xlane.xlu0 %2349
        %2351 = vmax.xlane.f32.xlu0 %v2137
        %v2352 = vpop.xlane.xlu0 %2351
        %2353 = vmax.xlane.f32.xlu0 %v2142
        %v2354 = vpop.xlane.xlu0 %2353
        %2355 = vmax.xlane.f32.xlu0 %v2145
        %v2356 = vpop.xlane.xlu0 %2355
        %2357 = vmax.xlane.f32.xlu0 %v2150
        %v2358 = vpop.xlane.xlu0 %2357
        %2359 = vmax.xlane.f32.xlu0 %v2153
        %v2360 = vpop.xlane.xlu0 %2359
        %2361 = vmax.xlane.f32.xlu0 %v2158
        %v2362 = vpop.xlane.xlu0 %2361
        %2363 = vmax.xlane.f32.xlu0 %v2161
        %v2364 = vpop.xlane.xlu0 %2363
        %2365 = vmax.xlane.f32.xlu0 %v2271
        %v2366 = vpop.xlane.xlu0 %2365
        %2367 = vmax.xlane.f32.xlu0 %v2274
        %v2368 = vpop.xlane.xlu0 %2367
        %2369 = vmax.xlane.f32.xlu0 %v2279
        %v2370 = vpop.xlane.xlu0 %2369
        %2371 = vmax.xlane.f32.xlu0 %v2282
        %v2372 = vpop.xlane.xlu0 %2371
        %2373 = vmax.xlane.f32.xlu0 %v2287
        %v2374 = vpop.xlane.xlu0 %2373
        %2375 = vmax.xlane.f32.xlu0 %v2290
        %v2376 = vpop.xlane.xlu0 %2375
        %2377 = vmax.xlane.f32.xlu0 %v2295
        %v2378 = vpop.xlane.xlu0 %2377
        %2379 = vmax.xlane.f32.xlu0 %v2298
        %v2380 = vpop.xlane.xlu0 %2379
        %2381 = vmax.xlane.f32.xlu0 %v2303
        %v2382 = vpop.xlane.xlu0 %2381
        %2383 = vmax.xlane.f32.xlu0 %v2306
        %v2384 = vpop.xlane.xlu0 %2383
        %2385 = vmax.xlane.f32.xlu0 %v2311
        %v2386 = vpop.xlane.xlu0 %2385
        %2387 = vmax.xlane.f32.xlu0 %v2314
        %v2388 = vpop.xlane.xlu0 %2387
        %2389 = vmax.xlane.f32.xlu0 %v2319
        %v2390 = vpop.xlane.xlu0 %2389
        %2391 = vmax.xlane.f32.xlu0 %v2322
        %v2392 = vpop.xlane.xlu0 %2391
        %2393 = vmax.xlane.f32.xlu0 %v2327
        %v2394 = vpop.xlane.xlu0 %2393
        %2395 = vmax.xlane.f32.xlu0 %v2330
        %v2396 = vpop.xlane.xlu0 %2395
        %v2397 = vsub.f32 %v2102, %v2334
        %v2398 = vsub.f32 %v2105, %v2336
        %v2399 = vsub.f32 %v2110, %v2338
        %v2400 = vsub.f32 %v2113, %v2340
        %v2401 = vsub.f32 %v2118, %v2342
        %v2402 = vsub.f32 %v2121, %v2344
        %v2403 = vsub.f32 %v2126, %v2346
        %v2404 = vsub.f32 %v2129, %v2348
        %v2405 = vsub.f32 %v2134, %v2350
        %v2406 = vsub.f32 %v2137, %v2352
        %v2407 = vsub.f32 %v2142, %v2354
        %v2408 = vsub.f32 %v2145, %v2356
        %v2409 = vsub.f32 %v2150, %v2358
        %v2410 = vsub.f32 %v2153, %v2360
        %v2411 = vsub.f32 %v2158, %v2362
        %v2412 = vsub.f32 %v2161, %v2364
        %v2413 = vsub.f32 %v2271, %v2366
        %v2414 = vsub.f32 %v2274, %v2368
        %v2415 = vsub.f32 %v2279, %v2370
        %v2416 = vsub.f32 %v2282, %v2372
        %v2417 = vsub.f32 %v2287, %v2374
        %v2418 = vsub.f32 %v2290, %v2376
        %v2419 = vsub.f32 %v2295, %v2378
        %v2420 = vsub.f32 %v2298, %v2380
        %v2421 = vsub.f32 %v2303, %v2382
        %v2422 = vsub.f32 %v2306, %v2384
        %v2423 = vsub.f32 %v2311, %v2386
        %v2424 = vsub.f32 %v2314, %v2388
        %v2425 = vsub.f32 %v2319, %v2390
        %v2426 = vsub.f32 %v2322, %v2392
        %v2427 = vsub.f32 %v2327, %v2394
        %v2428 = vsub.f32 %v2330, %v2396
        %v2429 = vmul.f32 %v2397, 1.442695
        %v2430 = vpow.pop %v2429
        %v2431 = vmul.f32 %v2398, 1.442695
        %v2432 = vpow.pop %v2431
        %v2433 = vmul.f32 %v2399, 1.442695
        %v2434 = vpow.pop %v2433
        %v2435 = vmul.f32 %v2400, 1.442695
        %v2436 = vpow.pop %v2435
        %v2437 = vmul.f32 %v2401, 1.442695
        %v2438 = vpow.pop %v2437
        %v2439 = vmul.f32 %v2402, 1.442695
        %v2440 = vpow.pop %v2439
        %v2441 = vmul.f32 %v2403, 1.442695
        %v2442 = vpow.pop %v2441
        %v2443 = vmul.f32 %v2404, 1.442695
        %v2444 = vpow.pop %v2443
        %v2445 = vmul.f32 %v2405, 1.442695
        %v2446 = vpow.pop %v2445
        %v2447 = vmul.f32 %v2406, 1.442695
        %v2448 = vpow.pop %v2447
        %v2449 = vmul.f32 %v2407, 1.442695
        %v2450 = vpow.pop %v2449
        %v2451 = vmul.f32 %v2408, 1.442695
        %v2452 = vpow.pop %v2451
        %v2453 = vmul.f32 %v2409, 1.442695
        %v2454 = vpow.pop %v2453
        %v2455 = vmul.f32 %v2410, 1.442695
        %v2456 = vpow.pop %v2455
        %v2457 = vmul.f32 %v2411, 1.442695
        %v2458 = vpow.pop %v2457
        %v2459 = vmul.f32 %v2412, 1.442695
        %v2460 = vpow.pop %v2459
        %v2461 = vmul.f32 %v2413, 1.442695
        %v2462 = vpow.pop %v2461
        %v2463 = vmul.f32 %v2414, 1.442695
        %v2464 = vpow.pop %v2463
        %v2465 = vmul.f32 %v2415, 1.442695
        %v2466 = vpow.pop %v2465
        %v2467 = vmul.f32 %v2416, 1.442695
        %v2468 = vpow.pop %v2467
        %v2469 = vmul.f32 %v2417, 1.442695
        %v2470 = vpow.pop %v2469
        %v2471 = vmul.f32 %v2418, 1.442695
        %v2472 = vpow.pop %v2471
        %v2473 = vmul.f32 %v2419, 1.442695
        %v2474 = vpow.pop %v2473
        %v2475 = vmul.f32 %v2420, 1.442695
        %v2476 = vpow.pop %v2475
        %v2477 = vmul.f32 %v2421, 1.442695
        %v2478 = vpow.pop %v2477
        %v2479 = vmul.f32 %v2422, 1.442695
        %v2480 = vpow.pop %v2479
        %v2481 = vmul.f32 %v2423, 1.442695
        %v2482 = vpow.pop %v2481
        %v2483 = vmul.f32 %v2424, 1.442695
        %v2484 = vpow.pop %v2483
        %v2485 = vmul.f32 %v2425, 1.442695
        %v2486 = vpow.pop %v2485
        %v2487 = vmul.f32 %v2426, 1.442695
        %v2488 = vpow.pop %v2487
        %v2489 = vmul.f32 %v2427, 1.442695
        %v2490 = vpow.pop %v2489
        %v2491 = vmul.f32 %v2428, 1.442695
        %v2492 = vpow.pop %v2491
        %2493 = vadd.xlane.f32.xlu0 %v2430
        %v2494 = vpop.xlane.xlu0 %2493
        %2495 = vadd.xlane.f32.xlu0 %v2432
        %v2496 = vpop.xlane.xlu0 %2495
        %2497 = vadd.xlane.f32.xlu0 %v2434
        %v2498 = vpop.xlane.xlu0 %2497
        %2499 = vadd.xlane.f32.xlu0 %v2436
        %v2500 = vpop.xlane.xlu0 %2499
        %2501 = vadd.xlane.f32.xlu0 %v2438
        %v2502 = vpop.xlane.xlu0 %2501
        %2503 = vadd.xlane.f32.xlu0 %v2440
        %v2504 = vpop.xlane.xlu0 %2503
        %2505 = vadd.xlane.f32.xlu0 %v2442
        %v2506 = vpop.xlane.xlu0 %2505
        %2507 = vadd.xlane.f32.xlu0 %v2444
        %v2508 = vpop.xlane.xlu0 %2507
        %2509 = vadd.xlane.f32.xlu0 %v2446
        %v2510 = vpop.xlane.xlu0 %2509
        %2511 = vadd.xlane.f32.xlu0 %v2448
        %v2512 = vpop.xlane.xlu0 %2511
        %2513 = vadd.xlane.f32.xlu0 %v2450
        %v2514 = vpop.xlane.xlu0 %2513
        %2515 = vadd.xlane.f32.xlu0 %v2452
        %v2516 = vpop.xlane.xlu0 %2515
        %2517 = vadd.xlane.f32.xlu0 %v2454
        %v2518 = vpop.xlane.xlu0 %2517
        %2519 = vadd.xlane.f32.xlu0 %v2456
        %v2520 = vpop.xlane.xlu0 %2519
        %2521 = vadd.xlane.f32.xlu0 %v2458
        %v2522 = vpop.xlane.xlu0 %2521
        %2523 = vadd.xlane.f32.xlu0 %v2460
        %v2524 = vpop.xlane.xlu0 %2523
        %2525 = vadd.xlane.f32.xlu0 %v2462
        %v2526 = vpop.xlane.xlu0 %2525
        %2527 = vadd.xlane.f32.xlu0 %v2464
        %v2528 = vpop.xlane.xlu0 %2527
        %2529 = vadd.xlane.f32.xlu0 %v2466
        %v2530 = vpop.xlane.xlu0 %2529
        %2531 = vadd.xlane.f32.xlu0 %v2468
        %v2532 = vpop.xlane.xlu0 %2531
        %2533 = vadd.xlane.f32.xlu0 %v2470
        %v2534 = vpop.xlane.xlu0 %2533
        %2535 = vadd.xlane.f32.xlu0 %v2472
        %v2536 = vpop.xlane.xlu0 %2535
        %2537 = vadd.xlane.f32.xlu0 %v2474
        %v2538 = vpop.xlane.xlu0 %2537
        %2539 = vadd.xlane.f32.xlu0 %v2476
        %v2540 = vpop.xlane.xlu0 %2539
        %2541 = vadd.xlane.f32.xlu0 %v2478
        %v2542 = vpop.xlane.xlu0 %2541
        %2543 = vadd.xlane.f32.xlu0 %v2480
        %v2544 = vpop.xlane.xlu0 %2543
        %2545 = vadd.xlane.f32.xlu0 %v2482
        %v2546 = vpop.xlane.xlu0 %2545
        %2547 = vadd.xlane.f32.xlu0 %v2484
        %v2548 = vpop.xlane.xlu0 %2547
        %2549 = vadd.xlane.f32.xlu0 %v2486
        %v2550 = vpop.xlane.xlu0 %2549
        %2551 = vadd.xlane.f32.xlu0 %v2488
        %v2552 = vpop.xlane.xlu0 %2551
        %2553 = vadd.xlane.f32.xlu0 %v2490
        %v2554 = vpop.xlane.xlu0 %2553
        %2555 = vadd.xlane.f32.xlu0 %v2492
        %v2556 = vpop.xlane.xlu0 %2555
        %v2557 = vrcp.pop %v2494
        %v2558 = vrcp.pop %v2496
        %v2559 = vrcp.pop %v2498
        %v2560 = vrcp.pop %v2500
        %v2561 = vrcp.pop %v2502
        %v2562 = vrcp.pop %v2504
        %v2563 = vrcp.pop %v2506
        %v2564 = vrcp.pop %v2508
        %v2565 = vrcp.pop %v2510
        %v2566 = vrcp.pop %v2512
        %v2567 = vrcp.pop %v2514
        %v2568 = vrcp.pop %v2516
        %v2569 = vrcp.pop %v2518
        %v2570 = vrcp.pop %v2520
        %v2571 = vrcp.pop %v2522
        %v2572 = vrcp.pop %v2524
        %v2573 = vrcp.pop %v2526
        %v2574 = vrcp.pop %v2528
        %v2575 = vrcp.pop %v2530
        %v2576 = vrcp.pop %v2532
        %v2577 = vrcp.pop %v2534
        %v2578 = vrcp.pop %v2536
        %v2579 = vrcp.pop %v2538
        %v2580 = vrcp.pop %v2540
        %v2581 = vrcp.pop %v2542
        %v2582 = vrcp.pop %v2544
        %v2583 = vrcp.pop %v2546
        %v2584 = vrcp.pop %v2548
        %v2585 = vrcp.pop %v2550
        %v2586 = vrcp.pop %v2552
        %v2587 = vrcp.pop %v2554
        %v2588 = vrcp.pop %v2556
        %v2589 = vmul.f32 %v2430, %v2557
        %v2590 = vmul.f32 %v2432, %v2558
        %v2591 = vmul.f32 %v2434, %v2559
        %v2592 = vmul.f32 %v2436, %v2560
        %v2593 = vmul.f32 %v2438, %v2561
        %v2594 = vmul.f32 %v2440, %v2562
        %v2595 = vmul.f32 %v2442, %v2563
        %v2596 = vmul.f32 %v2444, %v2564
        %v2597 = vmul.f32 %v2446, %v2565
        %v2598 = vmul.f32 %v2448, %v2566
        %v2599 = vmul.f32 %v2450, %v2567
        %v2600 = vmul.f32 %v2452, %v2568
        %v2601 = vmul.f32 %v2454, %v2569
        %v2602 = vmul.f32 %v2456, %v2570
        %v2603 = vmul.f32 %v2458, %v2571
        %v2604 = vmul.f32 %v2460, %v2572
        %v2605 = vmul.f32 %v2462, %v2573
        %v2606 = vmul.f32 %v2464, %v2574
        %v2607 = vmul.f32 %v2466, %v2575
        %v2608 = vmul.f32 %v2468, %v2576
        %v2609 = vmul.f32 %v2470, %v2577
        %v2610 = vmul.f32 %v2472, %v2578
        %v2611 = vmul.f32 %v2474, %v2579
        %v2612 = vmul.f32 %v2476, %v2580
        %v2613 = vmul.f32 %v2478, %v2581
        %v2614 = vmul.f32 %v2480, %v2582
        %v2615 = vmul.f32 %v2482, %v2583
        %v2616 = vmul.f32 %v2484, %v2584
        %v2617 = vmul.f32 %v2486, %v2585
        %v2618 = vmul.f32 %v2488, %v2586
        %v2619 = vmul.f32 %v2490, %v2587
        %v2620 = vmul.f32 %v2492, %v2588
        %v2621 = vpack.c.bf16 %v2590, %v2589
        %v2622 = vpack.c.bf16 %v2592, %v2591
        %v2623 = vpack.c.bf16 %v2594, %v2593
        %v2624 = vpack.c.bf16 %v2596, %v2595
        %v2625 = vpack.c.bf16 %v2598, %v2597
        %v2626 = vpack.c.bf16 %v2600, %v2599
        %v2627 = vpack.c.bf16 %v2602, %v2601
        %v2628 = vpack.c.bf16 %v2604, %v2603
        %v2629 = vpack.c.bf16 %v2606, %v2605
        %v2630 = vpack.c.bf16 %v2608, %v2607
        %v2631 = vpack.c.bf16 %v2610, %v2609
        %v2632 = vpack.c.bf16 %v2612, %v2611
        %v2633 = vpack.c.bf16 %v2614, %v2613
        %v2634 = vpack.c.bf16 %v2616, %v2615
        %v2635 = vpack.c.bf16 %v2618, %v2617
        %v2636 = vpack.c.bf16 %v2620, %v2619
        %2637 = vrot.lane.b32.xlu0 %v1978, 64
        %v2638 = vpop.permute.xlu0 %2637
        %2639 = vrot.lane.b32.xlu0 %v1979, 64
        %v2640 = vpop.permute.xlu0 %2639
        %2641 = vrot.lane.b32.xlu0 %v1980, 64
        %v2642 = vpop.permute.xlu0 %2641
        %2643 = vrot.lane.b32.xlu0 %v1981, 64
        %v2644 = vpop.permute.xlu0 %2643
        %2645 = vrot.lane.b32.xlu0 %v1982, 64
        %v2646 = vpop.permute.xlu0 %2645
        %2647 = vrot.lane.b32.xlu0 %v1983, 64
        %v2648 = vpop.permute.xlu0 %2647
        %2649 = vrot.lane.b32.xlu0 %v1984, 64
        %v2650 = vpop.permute.xlu0 %2649
        %2651 = vrot.lane.b32.xlu0 %v1985, 64
        %v2652 = vpop.permute.xlu0 %2651
        %2661 = vmatprep.subr.bf16.mxu0 0
        %2662 = vmatpush1.bf16.msra.mxu0 %v2638
        %2663 = vmatprep.subr.bf16.mxu0 0
        %2664 = vmatpush1.bf16.msra.mxu0 %v2640
        %2665 = vmatprep.subr.bf16.mxu0 0
        %2666 = vmatpush1.bf16.msra.mxu0 %v2642
        %2667 = vmatprep.subr.bf16.mxu0 0
        %2668 = vmatpush1.bf16.msra.mxu0 %v2644
        %2669 = vmatprep.subr.bf16.mxu0 0
        %2670 = vmatpush1.bf16.msra.mxu0 %v2646
        %2671 = vmatprep.subr.bf16.mxu0 0
        %2672 = vmatpush1.bf16.msra.mxu0 %v2648
        %2673 = vmatprep.subr.bf16.mxu0 0
        %2674 = vmatpush1.bf16.msra.mxu0 %v2650
        %2675 = vmatprep.subr.bf16.mxu0 0
        %2676 = vmatpush1.bf16.msra.mxu0 %v2652
        %2677 = vmatprep.subr.bf16.mxu0 0
        %2678 = vmatpush1.bf16.msra.mxu0 0
        %2679 = vmatprep.subr.bf16.mxu0 0
        %2680 = vmatpush1.bf16.msra.mxu0 0
        %2681 = vmatprep.subr.bf16.mxu0 0
        %2682 = vmatpush1.bf16.msra.mxu0 0
        %2683 = vmatprep.subr.bf16.mxu0 0
        %2684 = vmatpush1.bf16.msra.mxu0 0
        %2685 = vmatprep.subr.bf16.mxu0 0
        %2686 = vmatpush1.bf16.msra.mxu0 0
        %2687 = vmatprep.subr.bf16.mxu0 0
        %2688 = vmatpush1.bf16.msra.mxu0 0
        %2689 = vmatprep.subr.bf16.mxu0 0
        %2690 = vmatpush1.bf16.msra.mxu0 0
        %2691 = vmatprep.subr.bf16.mxu0 0
        %2692 = vmatpush1.bf16.msra.mxu0 0
        %2693 = vmatprep.mubr.bf16.mxu0 0
        %2694 = vmatmul.mubr.bf16.gmra.mrb[0].mxu0 %v2621
        %v2695 = vpop.f32.mrb[0].mxu0
        %v2696 = vadd.f32 0.0, %v2695
        %v2697 = vpop.f32.mrb[0].mxu0
        %v2698 = vpop.f32.mrb[0].mxu0
        %v2699 = vadd.f32 0.0, %v2698
        %v2700 = vpop.f32.mrb[0].mxu0
        %2701 = vmatprep.mubr.bf16.mxu0 0
        %2702 = vmatmul.mubr.bf16.gmra.mrb[0].mxu0 %v2622
        %v2703 = vpop.f32.mrb[0].mxu0
        %v2704 = vadd.f32 0.0, %v2703
        %v2705 = vpop.f32.mrb[0].mxu0
        %v2706 = vpop.f32.mrb[0].mxu0
        %v2707 = vadd.f32 0.0, %v2706
        %v2708 = vpop.f32.mrb[0].mxu0
        %2709 = vmatprep.mubr.bf16.mxu0 0
        %2710 = vmatmul.mubr.bf16.gmra.mrb[0].mxu0 %v2623
        %v2711 = vpop.f32.mrb[0].mxu0
        %v2712 = vadd.f32 0.0, %v2711
        %v2713 = vpop.f32.mrb[0].mxu0
        %v2714 = vpop.f32.mrb[0].mxu0
        %v2715 = vadd.f32 0.0, %v2714
        %v2716 = vpop.f32.mrb[0].mxu0
        %2717 = vmatprep.mubr.bf16.mxu0 0
        %2718 = vmatmul.mubr.bf16.gmra.mrb[0].mxu0 %v2624
        %v2719 = vpop.f32.mrb[0].mxu0
        %v2720 = vadd.f32 0.0, %v2719
        %v2721 = vpop.f32.mrb[0].mxu0
        %v2722 = vpop.f32.mrb[0].mxu0
        %v2723 = vadd.f32 0.0, %v2722
        %v2724 = vpop.f32.mrb[0].mxu0
        %2725 = vmatprep.mubr.bf16.mxu0 0
        %2726 = vmatmul.mubr.bf16.gmra.mrb[0].mxu0 %v2625
        %v2727 = vpop.f32.mrb[0].mxu0
        %v2728 = vadd.f32 0.0, %v2727
        %v2729 = vpop.f32.mrb[0].mxu0
        %v2730 = vpop.f32.mrb[0].mxu0
        %v2731 = vadd.f32 0.0, %v2730
        %v2732 = vpop.f32.mrb[0].mxu0
        %2733 = vmatprep.mubr.bf16.mxu0 0
        %2734 = vmatmul.mubr.bf16.gmra.mrb[0].mxu0 %v2626
        %v2735 = vpop.f32.mrb[0].mxu0
        %v2736 = vadd.f32 0.0, %v2735
        %v2737 = vpop.f32.mrb[0].mxu0
        %v2738 = vpop.f32.mrb[0].mxu0
        %v2739 = vadd.f32 0.0, %v2738
        %v2740 = vpop.f32.mrb[0].mxu0
        %2741 = vmatprep.mubr.bf16.mxu0 0
        %2742 = vmatmul.mubr.bf16.gmra.mrb[0].mxu0 %v2627
        %v2743 = vpop.f32.mrb[0].mxu0
        %v2744 = vadd.f32 0.0, %v2743
        %v2745 = vpop.f32.mrb[0].mxu0
        %v2746 = vpop.f32.mrb[0].mxu0
        %v2747 = vadd.f32 0.0, %v2746
        %v2748 = vpop.f32.mrb[0].mxu0
        %2749 = vmatprep.mubr.bf16.mxu0 0
        %2750 = vmatmul.mubr.bf16.gmra.mrb[0].mxu0 %v2628
        %v2751 = vpop.f32.mrb[0].mxu0
        %v2752 = vadd.f32 0.0, %v2751
        %v2753 = vpop.f32.mrb[0].mxu0
        %v2754 = vpop.f32.mrb[0].mxu0
        %v2755 = vadd.f32 0.0, %v2754
        %v2756 = vpop.f32.mrb[0].mxu0
        %2757 = vdwg.mxu0
        %2758 = vrot.lane.b32.xlu0 %v1986, 64
        %v2759 = vpop.permute.xlu0 %2758
        %2760 = vrot.lane.b32.xlu0 %v1987, 64
        %v2761 = vpop.permute.xlu0 %2760
        %2762 = vrot.lane.b32.xlu0 %v1988, 64
        %v2763 = vpop.permute.xlu0 %2762
        %2764 = vrot.lane.b32.xlu0 %v1989, 64
        %v2765 = vpop.permute.xlu0 %2764
        %2766 = vrot.lane.b32.xlu0 %v1990, 64
        %v2767 = vpop.permute.xlu0 %2766
        %2768 = vrot.lane.b32.xlu0 %v1991, 64
        %v2769 = vpop.permute.xlu0 %2768
        %2770 = vrot.lane.b32.xlu0 %v1992, 64
        %v2771 = vpop.permute.xlu0 %2770
        %2772 = vrot.lane.b32.xlu0 %v1993, 64
        %v2773 = vpop.permute.xlu0 %2772
        %2782 = vmatprep.subr.bf16.mxu0 0
        %2783 = vmatpush1.bf16.msra.mxu0 %v2759
        %2784 = vmatprep.subr.bf16.mxu0 0
        %2785 = vmatpush1.bf16.msra.mxu0 %v2761
        %2786 = vmatprep.subr.bf16.mxu0 0
        %2787 = vmatpush1.bf16.msra.mxu0 %v2763
        %2788 = vmatprep.subr.bf16.mxu0 0
        %2789 = vmatpush1.bf16.msra.mxu0 %v2765
        %2790 = vmatprep.subr.bf16.mxu0 0
        %2791 = vmatpush1.bf16.msra.mxu0 %v2767
        %2792 = vmatprep.subr.bf16.mxu0 0
        %2793 = vmatpush1.bf16.msra.mxu0 %v2769
        %2794 = vmatprep.subr.bf16.mxu0 0
        %2795 = vmatpush1.bf16.msra.mxu0 %v2771
        %2796 = vmatprep.subr.bf16.mxu0 0
        %2797 = vmatpush1.bf16.msra.mxu0 %v2773
        %2798 = vmatprep.subr.bf16.mxu0 0
        %2799 = vmatpush1.bf16.msra.mxu0 0
        %2800 = vmatprep.subr.bf16.mxu0 0
        %2801 = vmatpush1.bf16.msra.mxu0 0
        %2802 = vmatprep.subr.bf16.mxu0 0
        %2803 = vmatpush1.bf16.msra.mxu0 0
        %2804 = vmatprep.subr.bf16.mxu0 0
        %2805 = vmatpush1.bf16.msra.mxu0 0
        %2806 = vmatprep.subr.bf16.mxu0 0
        %2807 = vmatpush1.bf16.msra.mxu0 0
        %2808 = vmatprep.subr.bf16.mxu0 0
        %2809 = vmatpush1.bf16.msra.mxu0 0
        %2810 = vmatprep.subr.bf16.mxu0 0
        %2811 = vmatpush1.bf16.msra.mxu0 0
        %2812 = vmatprep.subr.bf16.mxu0 0
        %2813 = vmatpush1.bf16.msra.mxu0 0
        %2814 = vmatprep.mubr.bf16.mxu0 0
        %2815 = vmatmul.mubr.bf16.gmra.mrb[0].mxu0 %v2629
        %v2816 = vpop.f32.mrb[0].mxu0
        %v2817 = vadd.f32 0.0, %v2816
        %v2818 = vpop.f32.mrb[0].mxu0
        %v2819 = vpop.f32.mrb[0].mxu0
        %v2820 = vadd.f32 0.0, %v2819
        %v2821 = vpop.f32.mrb[0].mxu0
        %2822 = vmatprep.mubr.bf16.mxu0 0
        %2823 = vmatmul.mubr.bf16.gmra.mrb[0].mxu0 %v2630
        %v2824 = vpop.f32.mrb[0].mxu0
        %v2825 = vadd.f32 0.0, %v2824
        %v2826 = vpop.f32.mrb[0].mxu0
        %v2827 = vpop.f32.mrb[0].mxu0
        %v2828 = vadd.f32 0.0, %v2827
        %v2829 = vpop.f32.mrb[0].mxu0
        %2830 = vmatprep.mubr.bf16.mxu0 0
        %2831 = vmatmul.mubr.bf16.gmra.mrb[0].mxu0 %v2631
        %v2832 = vpop.f32.mrb[0].mxu0
        %v2833 = vadd.f32 0.0, %v2832
        %v2834 = vpop.f32.mrb[0].mxu0
        %v2835 = vpop.f32.mrb[0].mxu0
        %v2836 = vadd.f32 0.0, %v2835
        %v2837 = vpop.f32.mrb[0].mxu0
        %2838 = vmatprep.mubr.bf16.mxu0 0
        %2839 = vmatmul.mubr.bf16.gmra.mrb[0].mxu0 %v2632
        %v2840 = vpop.f32.mrb[0].mxu0
        %v2841 = vadd.f32 0.0, %v2840
        %v2842 = vpop.f32.mrb[0].mxu0
        %v2843 = vpop.f32.mrb[0].mxu0
        %v2844 = vadd.f32 0.0, %v2843
        %v2845 = vpop.f32.mrb[0].mxu0
        %2846 = vmatprep.mubr.bf16.mxu0 0
        %2847 = vmatmul.mubr.bf16.gmra.mrb[0].mxu0 %v2633
        %v2848 = vpop.f32.mrb[0].mxu0
        %v2849 = vadd.f32 0.0, %v2848
        %v2850 = vpop.f32.mrb[0].mxu0
        %v2851 = vpop.f32.mrb[0].mxu0
        %v2852 = vadd.f32 0.0, %v2851
        %v2853 = vpop.f32.mrb[0].mxu0
        %2854 = vmatprep.mubr.bf16.mxu0 0
        %2855 = vmatmul.mubr.bf16.gmra.mrb[0].mxu0 %v2634
        %v2856 = vpop.f32.mrb[0].mxu0
        %v2857 = vadd.f32 0.0, %v2856
        %v2858 = vpop.f32.mrb[0].mxu0
        %v2859 = vpop.f32.mrb[0].mxu0
        %v2860 = vadd.f32 0.0, %v2859
        %v2861 = vpop.f32.mrb[0].mxu0
        %2862 = vmatprep.mubr.bf16.mxu0 0
        %2863 = vmatmul.mubr.bf16.gmra.mrb[0].mxu0 %v2635
        %v2864 = vpop.f32.mrb[0].mxu0
        %v2865 = vadd.f32 0.0, %v2864
        %v2866 = vpop.f32.mrb[0].mxu0
        %v2867 = vpop.f32.mrb[0].mxu0
        %v2868 = vadd.f32 0.0, %v2867
        %v2869 = vpop.f32.mrb[0].mxu0
        %2870 = vmatprep.mubr.bf16.mxu0 0
        %2871 = vmatmul.mubr.bf16.gmra.mrb[0].mxu0 %v2636
        %v2872 = vpop.f32.mrb[0].mxu0
        %v2873 = vadd.f32 0.0, %v2872
        %v2874 = vpop.f32.mrb[0].mxu0
        %v2875 = vpop.f32.mrb[0].mxu0
        %v2876 = vadd.f32 0.0, %v2875
        %v2877 = vpop.f32.mrb[0].mxu0
        %2878 = vdwg.mxu0
        %2879 = vrot.lane.b32.xlu0 %v1978, 120
        %v2880 = vpop.permute.xlu0 %2879
        %2881 = vrot.lane.b32.xlu0 %v1979, 120
        %v2882 = vpop.permute.xlu0 %2881
        %2883 = vrot.lane.b32.xlu0 %v1980, 120
        %v2884 = vpop.permute.xlu0 %2883
        %2885 = vrot.lane.b32.xlu0 %v1981, 120
        %v2886 = vpop.permute.xlu0 %2885
        %2887 = vrot.lane.b32.xlu0 %v1982, 120
        %v2888 = vpop.permute.xlu0 %2887
        %2889 = vrot.lane.b32.xlu0 %v1983, 120
        %v2890 = vpop.permute.xlu0 %2889
        %2891 = vrot.lane.b32.xlu0 %v1984, 120
        %v2892 = vpop.permute.xlu0 %2891
        %2893 = vrot.lane.b32.xlu0 %v1985, 120
        %v2894 = vpop.permute.xlu0 %2893
        %2895 = vrot.lane.b32.xlu0 %v1978, 88
        %v2896 = vpop.permute.xlu0 %2895
        %2897 = vrot.lane.b32.xlu0 %v1979, 88
        %v2898 = vpop.permute.xlu0 %2897
        %2899 = vrot.lane.b32.xlu0 %v1980, 88
        %v2900 = vpop.permute.xlu0 %2899
        %2901 = vrot.lane.b32.xlu0 %v1981, 88
        %v2902 = vpop.permute.xlu0 %2901
        %2903 = vrot.lane.b32.xlu0 %v1982, 88
        %v2904 = vpop.permute.xlu0 %2903
        %2905 = vrot.lane.b32.xlu0 %v1983, 88
        %v2906 = vpop.permute.xlu0 %2905
        %2907 = vrot.lane.b32.xlu0 %v1984, 88
        %v2908 = vpop.permute.xlu0 %2907
        %2909 = vrot.lane.b32.xlu0 %v1985, 88
        %v2910 = vpop.permute.xlu0 %2909
        %v2912 = vsel %vm2018, %v2880, 0
        %v2915 = vsel %vm2018, %v2882, 0
        %v2918 = vsel %vm2018, %v2884, 0
        %v2921 = vsel %vm2018, %v2886, 0
        %v2924 = vsel %vm2018, %v2888, 0
        %v2927 = vsel %vm2018, %v2890, 0
        %v2930 = vsel %vm2018, %v2892, 0
        %v2933 = vsel %vm2018, %v2894, 0
        %v2936 = vsel %vm2018, %v2896, 0
        %v2939 = vsel %vm2018, %v2898, 0
        %v2942 = vsel %vm2018, %v2900, 0
        %v2945 = vsel %vm2018, %v2902, 0
        %v2948 = vsel %vm2018, %v2904, 0
        %v2951 = vsel %vm2018, %v2906, 0
        %v2954 = vsel %vm2018, %v2908, 0
        %v2957 = vsel %vm2018, %v2910, 0
        %2959 = vmatprep.subr.bf16.mxu0 0
        %2960 = vmatpush1.bf16.xpose.msra.mxu0 %v2936
        %2961 = vmatprep.subr.bf16.mxu0 0
        %2962 = vmatpush1.bf16.xpose.msra.mxu0 %v2939
        %2963 = vmatprep.subr.bf16.mxu0 0
        %2964 = vmatpush1.bf16.xpose.msra.mxu0 %v2942
        %2965 = vmatprep.subr.bf16.mxu0 0
        %2966 = vmatpush1.bf16.xpose.msra.mxu0 %v2945
        %2967 = vmatprep.subr.bf16.mxu0 0
        %2968 = vmatpush1.bf16.xpose.msra.mxu0 %v2948
        %2969 = vmatprep.subr.bf16.mxu0 0
        %2970 = vmatpush1.bf16.xpose.msra.mxu0 %v2951
        %2971 = vmatprep.subr.bf16.mxu0 0
        %2972 = vmatpush1.bf16.xpose.msra.mxu0 %v2954
        %2973 = vmatprep.subr.bf16.mxu0 0
        %2974 = vmatpush1.bf16.xpose.msra.mxu0 %v2957
        %2975 = vmatprep.subr.bf16.mxu0 0
        %2976 = vmatpush1.bf16.xpose.msra.mxu0 0
        %2977 = vmatprep.subr.bf16.mxu0 0
        %2978 = vmatpush1.bf16.xpose.msra.mxu0 0
        %2979 = vmatprep.subr.bf16.mxu0 0
        %2980 = vmatpush1.bf16.xpose.msra.mxu0 0
        %2981 = vmatprep.subr.bf16.mxu0 0
        %2982 = vmatpush1.bf16.xpose.msra.mxu0 0
        %2983 = vmatprep.subr.bf16.mxu0 0
        %2984 = vmatpush1.bf16.xpose.msra.mxu0 0
        %2985 = vmatprep.subr.bf16.mxu0 0
        %2986 = vmatpush1.bf16.xpose.msra.mxu0 0
        %2987 = vmatprep.subr.bf16.mxu0 0
        %2988 = vmatpush1.bf16.xpose.msra.mxu0 0
        %2989 = vmatprep.subr.bf16.mxu0 0
        %2990 = vmatpush1.bf16.xpose.msra.mxu0 0
        %2991 = vmatprep.mubr.bf16.mxu0 0
        %2992 = vmatmul.mubr.bf16.gmra.mrb[0].mxu0 %v2912
        %v2993 = vpop.f32.mrb[0].mxu0
        %v2994 = vadd.f32 %v1218, %v2993
        %v2995 = vpop.f32.mrb[0].mxu0
        %v2996 = vpop.f32.mrb[0].mxu0
        %v2997 = vadd.f32 %v1219, %v2996
        %v2998 = vpop.f32.mrb[0].mxu0
        %2999 = vmatprep.mubr.bf16.mxu0 0
        %3000 = vmatmul.mubr.bf16.gmra.mrb[0].mxu0 %v2915
        %v3001 = vpop.f32.mrb[0].mxu0
        %v3002 = vadd.f32 %v1220, %v3001
        %v3003 = vpop.f32.mrb[0].mxu0
        %v3004 = vpop.f32.mrb[0].mxu0
        %v3005 = vadd.f32 %v1221, %v3004
        %v3006 = vpop.f32.mrb[0].mxu0
        %3007 = vmatprep.mubr.bf16.mxu0 0
        %3008 = vmatmul.mubr.bf16.gmra.mrb[0].mxu0 %v2918
        %v3009 = vpop.f32.mrb[0].mxu0
        %v3010 = vadd.f32 %v1222, %v3009
        %v3011 = vpop.f32.mrb[0].mxu0
        %v3012 = vpop.f32.mrb[0].mxu0
        %v3013 = vadd.f32 %v1223, %v3012
        %v3014 = vpop.f32.mrb[0].mxu0
        %3015 = vmatprep.mubr.bf16.mxu0 0
        %3016 = vmatmul.mubr.bf16.gmra.mrb[0].mxu0 %v2921
        %v3017 = vpop.f32.mrb[0].mxu0
        %v3018 = vadd.f32 %v1224, %v3017
        %v3019 = vpop.f32.mrb[0].mxu0
        %v3020 = vpop.f32.mrb[0].mxu0
        %v3021 = vadd.f32 %v1225, %v3020
        %v3022 = vpop.f32.mrb[0].mxu0
        %3023 = vmatprep.mubr.bf16.mxu0 0
        %3024 = vmatmul.mubr.bf16.gmra.mrb[0].mxu0 %v2924
        %v3025 = vpop.f32.mrb[0].mxu0
        %v3026 = vadd.f32 %v1226, %v3025
        %v3027 = vpop.f32.mrb[0].mxu0
        %v3028 = vpop.f32.mrb[0].mxu0
        %v3029 = vadd.f32 %v1227, %v3028
        %v3030 = vpop.f32.mrb[0].mxu0
        %3031 = vmatprep.mubr.bf16.mxu0 0
        %3032 = vmatmul.mubr.bf16.gmra.mrb[0].mxu0 %v2927
        %v3033 = vpop.f32.mrb[0].mxu0
        %v3034 = vadd.f32 %v1228, %v3033
        %v3035 = vpop.f32.mrb[0].mxu0
        %v3036 = vpop.f32.mrb[0].mxu0
        %v3037 = vadd.f32 %v1229, %v3036
        %v3038 = vpop.f32.mrb[0].mxu0
        %3039 = vmatprep.mubr.bf16.mxu0 0
        %3040 = vmatmul.mubr.bf16.gmra.mrb[0].mxu0 %v2930
        %v3041 = vpop.f32.mrb[0].mxu0
        %v3042 = vadd.f32 %v1230, %v3041
        %v3043 = vpop.f32.mrb[0].mxu0
        %v3044 = vpop.f32.mrb[0].mxu0
        %v3045 = vadd.f32 %v1231, %v3044
        %v3046 = vpop.f32.mrb[0].mxu0
        %3047 = vmatprep.mubr.bf16.mxu0 0
        %3048 = vmatmul.mubr.bf16.gmra.mrb[0].mxu0 %v2933
        %v3049 = vpop.f32.mrb[0].mxu0
        %v3050 = vadd.f32 %v1232, %v3049
        %v3051 = vpop.f32.mrb[0].mxu0
        %v3052 = vpop.f32.mrb[0].mxu0
        %v3053 = vadd.f32 %v1233, %v3052
        %v3054 = vpop.f32.mrb[0].mxu0
        %3055 = vdwg.mxu0
        %3056 = vrot.lane.b32.xlu0 %v1986, 120
        %v3057 = vpop.permute.xlu0 %3056
        %3058 = vrot.lane.b32.xlu0 %v1987, 120
        %v3059 = vpop.permute.xlu0 %3058
        %3060 = vrot.lane.b32.xlu0 %v1988, 120
        %v3061 = vpop.permute.xlu0 %3060
        %3062 = vrot.lane.b32.xlu0 %v1989, 120
        %v3063 = vpop.permute.xlu0 %3062
        %3064 = vrot.lane.b32.xlu0 %v1990, 120
        %v3065 = vpop.permute.xlu0 %3064
        %3066 = vrot.lane.b32.xlu0 %v1991, 120
        %v3067 = vpop.permute.xlu0 %3066
        %3068 = vrot.lane.b32.xlu0 %v1992, 120
        %v3069 = vpop.permute.xlu0 %3068
        %3070 = vrot.lane.b32.xlu0 %v1993, 120
        %v3071 = vpop.permute.xlu0 %3070
        %3072 = vrot.lane.b32.xlu0 %v1986, 88
        %v3073 = vpop.permute.xlu0 %3072
        %3074 = vrot.lane.b32.xlu0 %v1987, 88
        %v3075 = vpop.permute.xlu0 %3074
        %3076 = vrot.lane.b32.xlu0 %v1988, 88
        %v3077 = vpop.permute.xlu0 %3076
        %3078 = vrot.lane.b32.xlu0 %v1989, 88
        %v3079 = vpop.permute.xlu0 %3078
        %3080 = vrot.lane.b32.xlu0 %v1990, 88
        %v3081 = vpop.permute.xlu0 %3080
        %3082 = vrot.lane.b32.xlu0 %v1991, 88
        %v3083 = vpop.permute.xlu0 %3082
        %3084 = vrot.lane.b32.xlu0 %v1992, 88
        %v3085 = vpop.permute.xlu0 %3084
        %3086 = vrot.lane.b32.xlu0 %v1993, 88
        %v3087 = vpop.permute.xlu0 %3086
        %v3089 = vsel %vm2018, %v3057, 0
        %v3092 = vsel %vm2018, %v3059, 0
        %v3095 = vsel %vm2018, %v3061, 0
        %v3098 = vsel %vm2018, %v3063, 0
        %v3101 = vsel %vm2018, %v3065, 0
        %v3104 = vsel %vm2018, %v3067, 0
        %v3107 = vsel %vm2018, %v3069, 0
        %v3110 = vsel %vm2018, %v3071, 0
        %v3113 = vsel %vm2018, %v3073, 0
        %v3116 = vsel %vm2018, %v3075, 0
        %v3119 = vsel %vm2018, %v3077, 0
        %v3122 = vsel %vm2018, %v3079, 0
        %v3125 = vsel %vm2018, %v3081, 0
        %v3128 = vsel %vm2018, %v3083, 0
        %v3131 = vsel %vm2018, %v3085, 0
        %v3134 = vsel %vm2018, %v3087, 0
        %3136 = vmatprep.subr.bf16.mxu0 0
        %3137 = vmatpush1.bf16.xpose.msra.mxu0 %v3113
        %3138 = vmatprep.subr.bf16.mxu0 0
        %3139 = vmatpush1.bf16.xpose.msra.mxu0 %v3116
        %3140 = vmatprep.subr.bf16.mxu0 0
        %3141 = vmatpush1.bf16.xpose.msra.mxu0 %v3119
        %3142 = vmatprep.subr.bf16.mxu0 0
        %3143 = vmatpush1.bf16.xpose.msra.mxu0 %v3122
        %3144 = vmatprep.subr.bf16.mxu0 0
        %3145 = vmatpush1.bf16.xpose.msra.mxu0 %v3125
        %3146 = vmatprep.subr.bf16.mxu0 0
        %3147 = vmatpush1.bf16.xpose.msra.mxu0 %v3128
        %3148 = vmatprep.subr.bf16.mxu0 0
        %3149 = vmatpush1.bf16.xpose.msra.mxu0 %v3131
        %3150 = vmatprep.subr.bf16.mxu0 0
        %3151 = vmatpush1.bf16.xpose.msra.mxu0 %v3134
        %3152 = vmatprep.subr.bf16.mxu0 0
        %3153 = vmatpush1.bf16.xpose.msra.mxu0 0
        %3154 = vmatprep.subr.bf16.mxu0 0
        %3155 = vmatpush1.bf16.xpose.msra.mxu0 0
        %3156 = vmatprep.subr.bf16.mxu0 0
        %3157 = vmatpush1.bf16.xpose.msra.mxu0 0
        %3158 = vmatprep.subr.bf16.mxu0 0
        %3159 = vmatpush1.bf16.xpose.msra.mxu0 0
        %3160 = vmatprep.subr.bf16.mxu0 0
        %3161 = vmatpush1.bf16.xpose.msra.mxu0 0
        %3162 = vmatprep.subr.bf16.mxu0 0
        %3163 = vmatpush1.bf16.xpose.msra.mxu0 0
        %3164 = vmatprep.subr.bf16.mxu0 0
        %3165 = vmatpush1.bf16.xpose.msra.mxu0 0
        %3166 = vmatprep.subr.bf16.mxu0 0
        %3167 = vmatpush1.bf16.xpose.msra.mxu0 0
        %3168 = vmatprep.mubr.bf16.mxu0 0
        %3169 = vmatmul.mubr.bf16.gmra.mrb[0].mxu0 %v3089
        %v3170 = vpop.f32.mrb[0].mxu0
        %v3171 = vadd.f32 %v1218, %v3170
        %v3172 = vpop.f32.mrb[0].mxu0
        %v3173 = vpop.f32.mrb[0].mxu0
        %v3174 = vadd.f32 %v1219, %v3173
        %v3175 = vpop.f32.mrb[0].mxu0
        %3176 = vmatprep.mubr.bf16.mxu0 0
        %3177 = vmatmul.mubr.bf16.gmra.mrb[0].mxu0 %v3092
        %v3178 = vpop.f32.mrb[0].mxu0
        %v3179 = vadd.f32 %v1220, %v3178
        %v3180 = vpop.f32.mrb[0].mxu0
        %v3181 = vpop.f32.mrb[0].mxu0
        %v3182 = vadd.f32 %v1221, %v3181
        %v3183 = vpop.f32.mrb[0].mxu0
        %3184 = vmatprep.mubr.bf16.mxu0 0
        %3185 = vmatmul.mubr.bf16.gmra.mrb[0].mxu0 %v3095
        %v3186 = vpop.f32.mrb[0].mxu0
        %v3187 = vadd.f32 %v1222, %v3186
        %v3188 = vpop.f32.mrb[0].mxu0
        %v3189 = vpop.f32.mrb[0].mxu0
        %v3190 = vadd.f32 %v1223, %v3189
        %v3191 = vpop.f32.mrb[0].mxu0
        %3192 = vmatprep.mubr.bf16.mxu0 0
        %3193 = vmatmul.mubr.bf16.gmra.mrb[0].mxu0 %v3098
        %v3194 = vpop.f32.mrb[0].mxu0
        %v3195 = vadd.f32 %v1224, %v3194
        %v3196 = vpop.f32.mrb[0].mxu0
        %v3197 = vpop.f32.mrb[0].mxu0
        %v3198 = vadd.f32 %v1225, %v3197
        %v3199 = vpop.f32.mrb[0].mxu0
        %3200 = vmatprep.mubr.bf16.mxu0 0
        %3201 = vmatmul.mubr.bf16.gmra.mrb[0].mxu0 %v3101
        %v3202 = vpop.f32.mrb[0].mxu0
        %v3203 = vadd.f32 %v1226, %v3202
        %v3204 = vpop.f32.mrb[0].mxu0
        %v3205 = vpop.f32.mrb[0].mxu0
        %v3206 = vadd.f32 %v1227, %v3205
        %v3207 = vpop.f32.mrb[0].mxu0
        %3208 = vmatprep.mubr.bf16.mxu0 0
        %3209 = vmatmul.mubr.bf16.gmra.mrb[0].mxu0 %v3104
        %v3210 = vpop.f32.mrb[0].mxu0
        %v3211 = vadd.f32 %v1228, %v3210
        %v3212 = vpop.f32.mrb[0].mxu0
        %v3213 = vpop.f32.mrb[0].mxu0
        %v3214 = vadd.f32 %v1229, %v3213
        %v3215 = vpop.f32.mrb[0].mxu0
        %3216 = vmatprep.mubr.bf16.mxu0 0
        %3217 = vmatmul.mubr.bf16.gmra.mrb[0].mxu0 %v3107
        %v3218 = vpop.f32.mrb[0].mxu0
        %v3219 = vadd.f32 %v1230, %v3218
        %v3220 = vpop.f32.mrb[0].mxu0
        %v3221 = vpop.f32.mrb[0].mxu0
        %v3222 = vadd.f32 %v1231, %v3221
        %v3223 = vpop.f32.mrb[0].mxu0
        %3224 = vmatprep.mubr.bf16.mxu0 0
        %3225 = vmatmul.mubr.bf16.gmra.mrb[0].mxu0 %v3110
        %v3226 = vpop.f32.mrb[0].mxu0
        %v3227 = vadd.f32 %v1232, %v3226
        %v3228 = vpop.f32.mrb[0].mxu0
        %v3229 = vpop.f32.mrb[0].mxu0
        %v3230 = vadd.f32 %v1233, %v3229
        %v3231 = vpop.f32.mrb[0].mxu0
        %3232 = vdwg.mxu0
        %3233 = vmax.xlane.f32.xlu0 %v2994
        %v3234 = vpop.xlane.xlu0 %3233
        %3235 = vmax.xlane.f32.xlu0 %v2997
        %v3236 = vpop.xlane.xlu0 %3235
        %3237 = vmax.xlane.f32.xlu0 %v3002
        %v3238 = vpop.xlane.xlu0 %3237
        %3239 = vmax.xlane.f32.xlu0 %v3005
        %v3240 = vpop.xlane.xlu0 %3239
        %3241 = vmax.xlane.f32.xlu0 %v3010
        %v3242 = vpop.xlane.xlu0 %3241
        %3243 = vmax.xlane.f32.xlu0 %v3013
        %v3244 = vpop.xlane.xlu0 %3243
        %3245 = vmax.xlane.f32.xlu0 %v3018
        %v3246 = vpop.xlane.xlu0 %3245
        %3247 = vmax.xlane.f32.xlu0 %v3021
        %v3248 = vpop.xlane.xlu0 %3247
        %3249 = vmax.xlane.f32.xlu0 %v3026
        %v3250 = vpop.xlane.xlu0 %3249
        %3251 = vmax.xlane.f32.xlu0 %v3029
        %v3252 = vpop.xlane.xlu0 %3251
        %3253 = vmax.xlane.f32.xlu0 %v3034
        %v3254 = vpop.xlane.xlu0 %3253
        %3255 = vmax.xlane.f32.xlu0 %v3037
        %v3256 = vpop.xlane.xlu0 %3255
        %3257 = vmax.xlane.f32.xlu0 %v3042
        %v3258 = vpop.xlane.xlu0 %3257
        %3259 = vmax.xlane.f32.xlu0 %v3045
        %v3260 = vpop.xlane.xlu0 %3259
        %3261 = vmax.xlane.f32.xlu0 %v3050
        %v3262 = vpop.xlane.xlu0 %3261
        %3263 = vmax.xlane.f32.xlu0 %v3053
        %v3264 = vpop.xlane.xlu0 %3263
        %3265 = vmax.xlane.f32.xlu0 %v3171
        %v3266 = vpop.xlane.xlu0 %3265
        %3267 = vmax.xlane.f32.xlu0 %v3174
        %v3268 = vpop.xlane.xlu0 %3267
        %3269 = vmax.xlane.f32.xlu0 %v3179
        %v3270 = vpop.xlane.xlu0 %3269
        %3271 = vmax.xlane.f32.xlu0 %v3182
        %v3272 = vpop.xlane.xlu0 %3271
        %3273 = vmax.xlane.f32.xlu0 %v3187
        %v3274 = vpop.xlane.xlu0 %3273
        %3275 = vmax.xlane.f32.xlu0 %v3190
        %v3276 = vpop.xlane.xlu0 %3275
        %3277 = vmax.xlane.f32.xlu0 %v3195
        %v3278 = vpop.xlane.xlu0 %3277
        %3279 = vmax.xlane.f32.xlu0 %v3198
        %v3280 = vpop.xlane.xlu0 %3279
        %3281 = vmax.xlane.f32.xlu0 %v3203
        %v3282 = vpop.xlane.xlu0 %3281
        %3283 = vmax.xlane.f32.xlu0 %v3206
        %v3284 = vpop.xlane.xlu0 %3283
        %3285 = vmax.xlane.f32.xlu0 %v3211
        %v3286 = vpop.xlane.xlu0 %3285
        %3287 = vmax.xlane.f32.xlu0 %v3214
        %v3288 = vpop.xlane.xlu0 %3287
        %3289 = vmax.xlane.f32.xlu0 %v3219
        %v3290 = vpop.xlane.xlu0 %3289
        %3291 = vmax.xlane.f32.xlu0 %v3222
        %v3292 = vpop.xlane.xlu0 %3291
        %3293 = vmax.xlane.f32.xlu0 %v3227
        %v3294 = vpop.xlane.xlu0 %3293
        %3295 = vmax.xlane.f32.xlu0 %v3230
        %v3296 = vpop.xlane.xlu0 %3295
        %v3297 = vsub.f32 %v2994, %v3234
        %v3298 = vsub.f32 %v2997, %v3236
        %v3299 = vsub.f32 %v3002, %v3238
        %v3300 = vsub.f32 %v3005, %v3240
        %v3301 = vsub.f32 %v3010, %v3242
        %v3302 = vsub.f32 %v3013, %v3244
        %v3303 = vsub.f32 %v3018, %v3246
        %v3304 = vsub.f32 %v3021, %v3248
        %v3305 = vsub.f32 %v3026, %v3250
        %v3306 = vsub.f32 %v3029, %v3252
        %v3307 = vsub.f32 %v3034, %v3254
        %v3308 = vsub.f32 %v3037, %v3256
        %v3309 = vsub.f32 %v3042, %v3258
        %v3310 = vsub.f32 %v3045, %v3260
        %v3311 = vsub.f32 %v3050, %v3262
        %v3312 = vsub.f32 %v3053, %v3264
        %v3313 = vsub.f32 %v3171, %v3266
        %v3314 = vsub.f32 %v3174, %v3268
        %v3315 = vsub.f32 %v3179, %v3270
        %v3316 = vsub.f32 %v3182, %v3272
        %v3317 = vsub.f32 %v3187, %v3274
        %v3318 = vsub.f32 %v3190, %v3276
        %v3319 = vsub.f32 %v3195, %v3278
        %v3320 = vsub.f32 %v3198, %v3280
        %v3321 = vsub.f32 %v3203, %v3282
        %v3322 = vsub.f32 %v3206, %v3284
        %v3323 = vsub.f32 %v3211, %v3286
        %v3324 = vsub.f32 %v3214, %v3288
        %v3325 = vsub.f32 %v3219, %v3290
        %v3326 = vsub.f32 %v3222, %v3292
        %v3327 = vsub.f32 %v3227, %v3294
        %v3328 = vsub.f32 %v3230, %v3296
        %v3329 = vmul.f32 %v3297, 1.442695
        %v3330 = vpow.pop %v3329
        %v3331 = vmul.f32 %v3298, 1.442695
        %v3332 = vpow.pop %v3331
        %v3333 = vmul.f32 %v3299, 1.442695
        %v3334 = vpow.pop %v3333
        %v3335 = vmul.f32 %v3300, 1.442695
        %v3336 = vpow.pop %v3335
        %v3337 = vmul.f32 %v3301, 1.442695
        %v3338 = vpow.pop %v3337
        %v3339 = vmul.f32 %v3302, 1.442695
        %v3340 = vpow.pop %v3339
        %v3341 = vmul.f32 %v3303, 1.442695
        %v3342 = vpow.pop %v3341
        %v3343 = vmul.f32 %v3304, 1.442695
        %v3344 = vpow.pop %v3343
        %v3345 = vmul.f32 %v3305, 1.442695
        %v3346 = vpow.pop %v3345
        %v3347 = vmul.f32 %v3306, 1.442695
        %v3348 = vpow.pop %v3347
        %v3349 = vmul.f32 %v3307, 1.442695
        %v3350 = vpow.pop %v3349
        %v3351 = vmul.f32 %v3308, 1.442695
        %v3352 = vpow.pop %v3351
        %v3353 = vmul.f32 %v3309, 1.442695
        %v3354 = vpow.pop %v3353
        %v3355 = vmul.f32 %v3310, 1.442695
        %v3356 = vpow.pop %v3355
        %v3357 = vmul.f32 %v3311, 1.442695
        %v3358 = vpow.pop %v3357
        %v3359 = vmul.f32 %v3312, 1.442695
        %v3360 = vpow.pop %v3359
        %v3361 = vmul.f32 %v3313, 1.442695
        %v3362 = vpow.pop %v3361
        %v3363 = vmul.f32 %v3314, 1.442695
        %v3364 = vpow.pop %v3363
        %v3365 = vmul.f32 %v3315, 1.442695
        %v3366 = vpow.pop %v3365
        %v3367 = vmul.f32 %v3316, 1.442695
        %v3368 = vpow.pop %v3367
        %v3369 = vmul.f32 %v3317, 1.442695
        %v3370 = vpow.pop %v3369
        %v3371 = vmul.f32 %v3318, 1.442695
        %v3372 = vpow.pop %v3371
        %v3373 = vmul.f32 %v3319, 1.442695
        %v3374 = vpow.pop %v3373
        %v3375 = vmul.f32 %v3320, 1.442695
        %v3376 = vpow.pop %v3375
        %v3377 = vmul.f32 %v3321, 1.442695
        %v3378 = vpow.pop %v3377
        %v3379 = vmul.f32 %v3322, 1.442695
        %v3380 = vpow.pop %v3379
        %v3381 = vmul.f32 %v3323, 1.442695
        %v3382 = vpow.pop %v3381
        %v3383 = vmul.f32 %v3324, 1.442695
        %v3384 = vpow.pop %v3383
        %v3385 = vmul.f32 %v3325, 1.442695
        %v3386 = vpow.pop %v3385
        %v3387 = vmul.f32 %v3326, 1.442695
        %v3388 = vpow.pop %v3387
        %v3389 = vmul.f32 %v3327, 1.442695
        %v3390 = vpow.pop %v3389
        %v3391 = vmul.f32 %v3328, 1.442695
        %v3392 = vpow.pop %v3391
        %3393 = vadd.xlane.f32.xlu0 %v3330
        %v3394 = vpop.xlane.xlu0 %3393
        %3395 = vadd.xlane.f32.xlu0 %v3332
        %v3396 = vpop.xlane.xlu0 %3395
        %3397 = vadd.xlane.f32.xlu0 %v3334
        %v3398 = vpop.xlane.xlu0 %3397
        %3399 = vadd.xlane.f32.xlu0 %v3336
        %v3400 = vpop.xlane.xlu0 %3399
        %3401 = vadd.xlane.f32.xlu0 %v3338
        %v3402 = vpop.xlane.xlu0 %3401
        %3403 = vadd.xlane.f32.xlu0 %v3340
        %v3404 = vpop.xlane.xlu0 %3403
        %3405 = vadd.xlane.f32.xlu0 %v3342
        %v3406 = vpop.xlane.xlu0 %3405
        %3407 = vadd.xlane.f32.xlu0 %v3344
        %v3408 = vpop.xlane.xlu0 %3407
        %3409 = vadd.xlane.f32.xlu0 %v3346
        %v3410 = vpop.xlane.xlu0 %3409
        %3411 = vadd.xlane.f32.xlu0 %v3348
        %v3412 = vpop.xlane.xlu0 %3411
        %3413 = vadd.xlane.f32.xlu0 %v3350
        %v3414 = vpop.xlane.xlu0 %3413
        %3415 = vadd.xlane.f32.xlu0 %v3352
        %v3416 = vpop.xlane.xlu0 %3415
        %3417 = vadd.xlane.f32.xlu0 %v3354
        %v3418 = vpop.xlane.xlu0 %3417
        %3419 = vadd.xlane.f32.xlu0 %v3356
        %v3420 = vpop.xlane.xlu0 %3419
        %3421 = vadd.xlane.f32.xlu0 %v3358
        %v3422 = vpop.xlane.xlu0 %3421
        %3423 = vadd.xlane.f32.xlu0 %v3360
        %v3424 = vpop.xlane.xlu0 %3423
        %3425 = vadd.xlane.f32.xlu0 %v3362
        %v3426 = vpop.xlane.xlu0 %3425
        %3427 = vadd.xlane.f32.xlu0 %v3364
        %v3428 = vpop.xlane.xlu0 %3427
        %3429 = vadd.xlane.f32.xlu0 %v3366
        %v3430 = vpop.xlane.xlu0 %3429
        %3431 = vadd.xlane.f32.xlu0 %v3368
        %v3432 = vpop.xlane.xlu0 %3431
        %3433 = vadd.xlane.f32.xlu0 %v3370
        %v3434 = vpop.xlane.xlu0 %3433
        %3435 = vadd.xlane.f32.xlu0 %v3372
        %v3436 = vpop.xlane.xlu0 %3435
        %3437 = vadd.xlane.f32.xlu0 %v3374
        %v3438 = vpop.xlane.xlu0 %3437
        %3439 = vadd.xlane.f32.xlu0 %v3376
        %v3440 = vpop.xlane.xlu0 %3439
        %3441 = vadd.xlane.f32.xlu0 %v3378
        %v3442 = vpop.xlane.xlu0 %3441
        %3443 = vadd.xlane.f32.xlu0 %v3380
        %v3444 = vpop.xlane.xlu0 %3443
        %3445 = vadd.xlane.f32.xlu0 %v3382
        %v3446 = vpop.xlane.xlu0 %3445
        %3447 = vadd.xlane.f32.xlu0 %v3384
        %v3448 = vpop.xlane.xlu0 %3447
        %3449 = vadd.xlane.f32.xlu0 %v3386
        %v3450 = vpop.xlane.xlu0 %3449
        %3451 = vadd.xlane.f32.xlu0 %v3388
        %v3452 = vpop.xlane.xlu0 %3451
        %3453 = vadd.xlane.f32.xlu0 %v3390
        %v3454 = vpop.xlane.xlu0 %3453
        %3455 = vadd.xlane.f32.xlu0 %v3392
        %v3456 = vpop.xlane.xlu0 %3455
        %v3457 = vrcp.pop %v3394
        %v3458 = vrcp.pop %v3396
        %v3459 = vrcp.pop %v3398
        %v3460 = vrcp.pop %v3400
        %v3461 = vrcp.pop %v3402
        %v3462 = vrcp.pop %v3404
        %v3463 = vrcp.pop %v3406
        %v3464 = vrcp.pop %v3408
        %v3465 = vrcp.pop %v3410
        %v3466 = vrcp.pop %v3412
        %v3467 = vrcp.pop %v3414
        %v3468 = vrcp.pop %v3416
        %v3469 = vrcp.pop %v3418
        %v3470 = vrcp.pop %v3420
        %v3471 = vrcp.pop %v3422
        %v3472 = vrcp.pop %v3424
        %v3473 = vrcp.pop %v3426
        %v3474 = vrcp.pop %v3428
        %v3475 = vrcp.pop %v3430
        %v3476 = vrcp.pop %v3432
        %v3477 = vrcp.pop %v3434
        %v3478 = vrcp.pop %v3436
        %v3479 = vrcp.pop %v3438
        %v3480 = vrcp.pop %v3440
        %v3481 = vrcp.pop %v3442
        %v3482 = vrcp.pop %v3444
        %v3483 = vrcp.pop %v3446
        %v3484 = vrcp.pop %v3448
        %v3485 = vrcp.pop %v3450
        %v3486 = vrcp.pop %v3452
        %v3487 = vrcp.pop %v3454
        %v3488 = vrcp.pop %v3456
        %v3489 = vmul.f32 %v3330, %v3457
        %v3490 = vmul.f32 %v3332, %v3458
        %v3491 = vmul.f32 %v3334, %v3459
        %v3492 = vmul.f32 %v3336, %v3460
        %v3493 = vmul.f32 %v3338, %v3461
        %v3494 = vmul.f32 %v3340, %v3462
        %v3495 = vmul.f32 %v3342, %v3463
        %v3496 = vmul.f32 %v3344, %v3464
        %v3497 = vmul.f32 %v3346, %v3465
        %v3498 = vmul.f32 %v3348, %v3466
        %v3499 = vmul.f32 %v3350, %v3467
        %v3500 = vmul.f32 %v3352, %v3468
        %v3501 = vmul.f32 %v3354, %v3469
        %v3502 = vmul.f32 %v3356, %v3470
        %v3503 = vmul.f32 %v3358, %v3471
        %v3504 = vmul.f32 %v3360, %v3472
        %v3505 = vmul.f32 %v3362, %v3473
        %v3506 = vmul.f32 %v3364, %v3474
        %v3507 = vmul.f32 %v3366, %v3475
        %v3508 = vmul.f32 %v3368, %v3476
        %v3509 = vmul.f32 %v3370, %v3477
        %v3510 = vmul.f32 %v3372, %v3478
        %v3511 = vmul.f32 %v3374, %v3479
        %v3512 = vmul.f32 %v3376, %v3480
        %v3513 = vmul.f32 %v3378, %v3481
        %v3514 = vmul.f32 %v3380, %v3482
        %v3515 = vmul.f32 %v3382, %v3483
        %v3516 = vmul.f32 %v3384, %v3484
        %v3517 = vmul.f32 %v3386, %v3485
        %v3518 = vmul.f32 %v3388, %v3486
        %v3519 = vmul.f32 %v3390, %v3487
        %v3520 = vmul.f32 %v3392, %v3488
        %v3521 = vpack.c.bf16 %v3490, %v3489
        %v3522 = vpack.c.bf16 %v3492, %v3491
        %v3523 = vpack.c.bf16 %v3494, %v3493
        %v3524 = vpack.c.bf16 %v3496, %v3495
        %v3525 = vpack.c.bf16 %v3498, %v3497
        %v3526 = vpack.c.bf16 %v3500, %v3499
        %v3527 = vpack.c.bf16 %v3502, %v3501
        %v3528 = vpack.c.bf16 %v3504, %v3503
        %v3529 = vpack.c.bf16 %v3506, %v3505
        %v3530 = vpack.c.bf16 %v3508, %v3507
        %v3531 = vpack.c.bf16 %v3510, %v3509
        %v3532 = vpack.c.bf16 %v3512, %v3511
        %v3533 = vpack.c.bf16 %v3514, %v3513
        %v3534 = vpack.c.bf16 %v3516, %v3515
        %v3535 = vpack.c.bf16 %v3518, %v3517
        %v3536 = vpack.c.bf16 %v3520, %v3519
        %3537 = vrot.lane.b32.xlu0 %v1978, 56
        %v3538 = vpop.permute.xlu0 %3537
        %3539 = vrot.lane.b32.xlu0 %v1979, 56
        %v3540 = vpop.permute.xlu0 %3539
        %3541 = vrot.lane.b32.xlu0 %v1980, 56
        %v3542 = vpop.permute.xlu0 %3541
        %3543 = vrot.lane.b32.xlu0 %v1981, 56
        %v3544 = vpop.permute.xlu0 %3543
        %3545 = vrot.lane.b32.xlu0 %v1982, 56
        %v3546 = vpop.permute.xlu0 %3545
        %3547 = vrot.lane.b32.xlu0 %v1983, 56
        %v3548 = vpop.permute.xlu0 %3547
        %3549 = vrot.lane.b32.xlu0 %v1984, 56
        %v3550 = vpop.permute.xlu0 %3549
        %3551 = vrot.lane.b32.xlu0 %v1985, 56
        %v3552 = vpop.permute.xlu0 %3551
        %3561 = vmatprep.subr.bf16.mxu0 0
        %3562 = vmatpush1.bf16.msra.mxu0 %v3538
        %3563 = vmatprep.subr.bf16.mxu0 0
        %3564 = vmatpush1.bf16.msra.mxu0 %v3540
        %3565 = vmatprep.subr.bf16.mxu0 0
        %3566 = vmatpush1.bf16.msra.mxu0 %v3542
        %3567 = vmatprep.subr.bf16.mxu0 0
        %3568 = vmatpush1.bf16.msra.mxu0 %v3544
        %3569 = vmatprep.subr.bf16.mxu0 0
        %3570 = vmatpush1.bf16.msra.mxu0 %v3546
        %3571 = vmatprep.subr.bf16.mxu0 0
        %3572 = vmatpush1.bf16.msra.mxu0 %v3548
        %3573 = vmatprep.subr.bf16.mxu0 0
        %3574 = vmatpush1.bf16.msra.mxu0 %v3550
        %3575 = vmatprep.subr.bf16.mxu0 0
        %3576 = vmatpush1.bf16.msra.mxu0 %v3552
        %3577 = vmatprep.subr.bf16.mxu0 0
        %3578 = vmatpush1.bf16.msra.mxu0 0
        %3579 = vmatprep.subr.bf16.mxu0 0
        %3580 = vmatpush1.bf16.msra.mxu0 0
        %3581 = vmatprep.subr.bf16.mxu0 0
        %3582 = vmatpush1.bf16.msra.mxu0 0
        %3583 = vmatprep.subr.bf16.mxu0 0
        %3584 = vmatpush1.bf16.msra.mxu0 0
        %3585 = vmatprep.subr.bf16.mxu0 0
        %3586 = vmatpush1.bf16.msra.mxu0 0
        %3587 = vmatprep.subr.bf16.mxu0 0
        %3588 = vmatpush1.bf16.msra.mxu0 0
        %3589 = vmatprep.subr.bf16.mxu0 0
        %3590 = vmatpush1.bf16.msra.mxu0 0
        %3591 = vmatprep.subr.bf16.mxu0 0
        %3592 = vmatpush1.bf16.msra.mxu0 0
        %3593 = vmatprep.mubr.bf16.mxu0 0
        %3594 = vmatmul.mubr.bf16.gmra.mrb[0].mxu0 %v3521
        %v3595 = vpop.f32.mrb[0].mxu0
        %v3596 = vadd.f32 0.0, %v3595
        %v3597 = vpop.f32.mrb[0].mxu0
        %v3598 = vpop.f32.mrb[0].mxu0
        %v3599 = vadd.f32 0.0, %v3598
        %v3600 = vpop.f32.mrb[0].mxu0
        %3601 = vmatprep.mubr.bf16.mxu0 0
        %3602 = vmatmul.mubr.bf16.gmra.mrb[0].mxu0 %v3522
        %v3603 = vpop.f32.mrb[0].mxu0
        %v3604 = vadd.f32 0.0, %v3603
        %v3605 = vpop.f32.mrb[0].mxu0
        %v3606 = vpop.f32.mrb[0].mxu0
        %v3607 = vadd.f32 0.0, %v3606
        %v3608 = vpop.f32.mrb[0].mxu0
        %3609 = vmatprep.mubr.bf16.mxu0 0
        %3610 = vmatmul.mubr.bf16.gmra.mrb[0].mxu0 %v3523
        %v3611 = vpop.f32.mrb[0].mxu0
        %v3612 = vadd.f32 0.0, %v3611
        %v3613 = vpop.f32.mrb[0].mxu0
        %v3614 = vpop.f32.mrb[0].mxu0
        %v3615 = vadd.f32 0.0, %v3614
        %v3616 = vpop.f32.mrb[0].mxu0
        %3617 = vmatprep.mubr.bf16.mxu0 0
        %3618 = vmatmul.mubr.bf16.gmra.mrb[0].mxu0 %v3524
        %v3619 = vpop.f32.mrb[0].mxu0
        %v3620 = vadd.f32 0.0, %v3619
        %v3621 = vpop.f32.mrb[0].mxu0
        %v3622 = vpop.f32.mrb[0].mxu0
        %v3623 = vadd.f32 0.0, %v3622
        %v3624 = vpop.f32.mrb[0].mxu0
        %3625 = vmatprep.mubr.bf16.mxu0 0
        %3626 = vmatmul.mubr.bf16.gmra.mrb[0].mxu0 %v3525
        %v3627 = vpop.f32.mrb[0].mxu0
        %v3628 = vadd.f32 0.0, %v3627
        %v3629 = vpop.f32.mrb[0].mxu0
        %v3630 = vpop.f32.mrb[0].mxu0
        %v3631 = vadd.f32 0.0, %v3630
        %v3632 = vpop.f32.mrb[0].mxu0
        %3633 = vmatprep.mubr.bf16.mxu0 0
        %3634 = vmatmul.mubr.bf16.gmra.mrb[0].mxu0 %v3526
        %v3635 = vpop.f32.mrb[0].mxu0
        %v3636 = vadd.f32 0.0, %v3635
        %v3637 = vpop.f32.mrb[0].mxu0
        %v3638 = vpop.f32.mrb[0].mxu0
        %v3639 = vadd.f32 0.0, %v3638
        %v3640 = vpop.f32.mrb[0].mxu0
        %3641 = vmatprep.mubr.bf16.mxu0 0
        %3642 = vmatmul.mubr.bf16.gmra.mrb[0].mxu0 %v3527
        %v3643 = vpop.f32.mrb[0].mxu0
        %v3644 = vadd.f32 0.0, %v3643
        %v3645 = vpop.f32.mrb[0].mxu0
        %v3646 = vpop.f32.mrb[0].mxu0
        %v3647 = vadd.f32 0.0, %v3646
        %v3648 = vpop.f32.mrb[0].mxu0
        %3649 = vmatprep.mubr.bf16.mxu0 0
        %3650 = vmatmul.mubr.bf16.gmra.mrb[0].mxu0 %v3528
        %v3651 = vpop.f32.mrb[0].mxu0
        %v3652 = vadd.f32 0.0, %v3651
        %v3653 = vpop.f32.mrb[0].mxu0
        %v3654 = vpop.f32.mrb[0].mxu0
        %v3655 = vadd.f32 0.0, %v3654
        %v3656 = vpop.f32.mrb[0].mxu0
        %3657 = vdwg.mxu0
        %3658 = vrot.lane.b32.xlu0 %v1986, 56
        %v3659 = vpop.permute.xlu0 %3658
        %3660 = vrot.lane.b32.xlu0 %v1987, 56
        %v3661 = vpop.permute.xlu0 %3660
        %3662 = vrot.lane.b32.xlu0 %v1988, 56
        %v3663 = vpop.permute.xlu0 %3662
        %3664 = vrot.lane.b32.xlu0 %v1989, 56
        %v3665 = vpop.permute.xlu0 %3664
        %3666 = vrot.lane.b32.xlu0 %v1990, 56
        %v3667 = vpop.permute.xlu0 %3666
        %3668 = vrot.lane.b32.xlu0 %v1991, 56
        %v3669 = vpop.permute.xlu0 %3668
        %3670 = vrot.lane.b32.xlu0 %v1992, 56
        %v3671 = vpop.permute.xlu0 %3670
        %3672 = vrot.lane.b32.xlu0 %v1993, 56
        %v3673 = vpop.permute.xlu0 %3672
        %3682 = vmatprep.subr.bf16.mxu0 0
        %3683 = vmatpush1.bf16.msra.mxu0 %v3659
        %3684 = vmatprep.subr.bf16.mxu0 0
        %3685 = vmatpush1.bf16.msra.mxu0 %v3661
        %3686 = vmatprep.subr.bf16.mxu0 0
        %3687 = vmatpush1.bf16.msra.mxu0 %v3663
        %3688 = vmatprep.subr.bf16.mxu0 0
        %3689 = vmatpush1.bf16.msra.mxu0 %v3665
        %3690 = vmatprep.subr.bf16.mxu0 0
        %3691 = vmatpush1.bf16.msra.mxu0 %v3667
        %3692 = vmatprep.subr.bf16.mxu0 0
        %3693 = vmatpush1.bf16.msra.mxu0 %v3669
        %3694 = vmatprep.subr.bf16.mxu0 0
        %3695 = vmatpush1.bf16.msra.mxu0 %v3671
        %3696 = vmatprep.subr.bf16.mxu0 0
        %3697 = vmatpush1.bf16.msra.mxu0 %v3673
        %3698 = vmatprep.subr.bf16.mxu0 0
        %3699 = vmatpush1.bf16.msra.mxu0 0
        %3700 = vmatprep.subr.bf16.mxu0 0
        %3701 = vmatpush1.bf16.msra.mxu0 0
        %3702 = vmatprep.subr.bf16.mxu0 0
        %3703 = vmatpush1.bf16.msra.mxu0 0
        %3704 = vmatprep.subr.bf16.mxu0 0
        %3705 = vmatpush1.bf16.msra.mxu0 0
        %3706 = vmatprep.subr.bf16.mxu0 0
        %3707 = vmatpush1.bf16.msra.mxu0 0
        %3708 = vmatprep.subr.bf16.mxu0 0
        %3709 = vmatpush1.bf16.msra.mxu0 0
        %3710 = vmatprep.subr.bf16.mxu0 0
        %3711 = vmatpush1.bf16.msra.mxu0 0
        %3712 = vmatprep.subr.bf16.mxu0 0
        %3713 = vmatpush1.bf16.msra.mxu0 0
        %3714 = vmatprep.mubr.bf16.mxu0 0
        %3715 = vmatmul.mubr.bf16.gmra.mrb[0].mxu0 %v3529
        %v3716 = vpop.f32.mrb[0].mxu0
        %v3717 = vadd.f32 0.0, %v3716
        %v3718 = vpop.f32.mrb[0].mxu0
        %v3719 = vpop.f32.mrb[0].mxu0
        %v3720 = vadd.f32 0.0, %v3719
        %v3721 = vpop.f32.mrb[0].mxu0
        %3722 = vmatprep.mubr.bf16.mxu0 0
        %3723 = vmatmul.mubr.bf16.gmra.mrb[0].mxu0 %v3530
        %v3724 = vpop.f32.mrb[0].mxu0
        %v3725 = vadd.f32 0.0, %v3724
        %v3726 = vpop.f32.mrb[0].mxu0
        %v3727 = vpop.f32.mrb[0].mxu0
        %v3728 = vadd.f32 0.0, %v3727
        %v3729 = vpop.f32.mrb[0].mxu0
        %3730 = vmatprep.mubr.bf16.mxu0 0
        %3731 = vmatmul.mubr.bf16.gmra.mrb[0].mxu0 %v3531
        %v3732 = vpop.f32.mrb[0].mxu0
        %v3733 = vadd.f32 0.0, %v3732
        %v3734 = vpop.f32.mrb[0].mxu0
        %v3735 = vpop.f32.mrb[0].mxu0
        %v3736 = vadd.f32 0.0, %v3735
        %v3737 = vpop.f32.mrb[0].mxu0
        %3738 = vmatprep.mubr.bf16.mxu0 0
        %3739 = vmatmul.mubr.bf16.gmra.mrb[0].mxu0 %v3532
        %v3740 = vpop.f32.mrb[0].mxu0
        %v3741 = vadd.f32 0.0, %v3740
        %v3742 = vpop.f32.mrb[0].mxu0
        %v3743 = vpop.f32.mrb[0].mxu0
        %v3744 = vadd.f32 0.0, %v3743
        %v3745 = vpop.f32.mrb[0].mxu0
        %3746 = vmatprep.mubr.bf16.mxu0 0
        %3747 = vmatmul.mubr.bf16.gmra.mrb[0].mxu0 %v3533
        %v3748 = vpop.f32.mrb[0].mxu0
        %v3749 = vadd.f32 0.0, %v3748
        %v3750 = vpop.f32.mrb[0].mxu0
        %v3751 = vpop.f32.mrb[0].mxu0
        %v3752 = vadd.f32 0.0, %v3751
        %v3753 = vpop.f32.mrb[0].mxu0
        %3754 = vmatprep.mubr.bf16.mxu0 0
        %3755 = vmatmul.mubr.bf16.gmra.mrb[0].mxu0 %v3534
        %v3756 = vpop.f32.mrb[0].mxu0
        %v3757 = vadd.f32 0.0, %v3756
        %v3758 = vpop.f32.mrb[0].mxu0
        %v3759 = vpop.f32.mrb[0].mxu0
        %v3760 = vadd.f32 0.0, %v3759
        %v3761 = vpop.f32.mrb[0].mxu0
        %3762 = vmatprep.mubr.bf16.mxu0 0
        %3763 = vmatmul.mubr.bf16.gmra.mrb[0].mxu0 %v3535
        %v3764 = vpop.f32.mrb[0].mxu0
        %v3765 = vadd.f32 0.0, %v3764
        %v3766 = vpop.f32.mrb[0].mxu0
        %v3767 = vpop.f32.mrb[0].mxu0
        %v3768 = vadd.f32 0.0, %v3767
        %v3769 = vpop.f32.mrb[0].mxu0
        %3770 = vmatprep.mubr.bf16.mxu0 0
        %3771 = vmatmul.mubr.bf16.gmra.mrb[0].mxu0 %v3536
        %v3772 = vpop.f32.mrb[0].mxu0
        %v3773 = vadd.f32 0.0, %v3772
        %v3774 = vpop.f32.mrb[0].mxu0
        %v3775 = vpop.f32.mrb[0].mxu0
        %v3776 = vadd.f32 0.0, %v3775
        %v3777 = vpop.f32.mrb[0].mxu0
        %3778 = vdwg.mxu0
        %3779 = vrot.lane.b32.xlu0 %v1978, 112
        %v3780 = vpop.permute.xlu0 %3779
        %3781 = vrot.lane.b32.xlu0 %v1979, 112
        %v3782 = vpop.permute.xlu0 %3781
        %3783 = vrot.lane.b32.xlu0 %v1980, 112
        %v3784 = vpop.permute.xlu0 %3783
        %3785 = vrot.lane.b32.xlu0 %v1981, 112
        %v3786 = vpop.permute.xlu0 %3785
        %3787 = vrot.lane.b32.xlu0 %v1982, 112
        %v3788 = vpop.permute.xlu0 %3787
        %3789 = vrot.lane.b32.xlu0 %v1983, 112
        %v3790 = vpop.permute.xlu0 %3789
        %3791 = vrot.lane.b32.xlu0 %v1984, 112
        %v3792 = vpop.permute.xlu0 %3791
        %3793 = vrot.lane.b32.xlu0 %v1985, 112
        %v3794 = vpop.permute.xlu0 %3793
        %3795 = vrot.lane.b32.xlu0 %v1978, 80
        %v3796 = vpop.permute.xlu0 %3795
        %3797 = vrot.lane.b32.xlu0 %v1979, 80
        %v3798 = vpop.permute.xlu0 %3797
        %3799 = vrot.lane.b32.xlu0 %v1980, 80
        %v3800 = vpop.permute.xlu0 %3799
        %3801 = vrot.lane.b32.xlu0 %v1981, 80
        %v3802 = vpop.permute.xlu0 %3801
        %3803 = vrot.lane.b32.xlu0 %v1982, 80
        %v3804 = vpop.permute.xlu0 %3803
        %3805 = vrot.lane.b32.xlu0 %v1983, 80
        %v3806 = vpop.permute.xlu0 %3805
        %3807 = vrot.lane.b32.xlu0 %v1984, 80
        %v3808 = vpop.permute.xlu0 %3807
        %3809 = vrot.lane.b32.xlu0 %v1985, 80
        %v3810 = vpop.permute.xlu0 %3809
        %v3812 = vsel %vm2018, %v3780, 0
        %v3815 = vsel %vm2018, %v3782, 0
        %v3818 = vsel %vm2018, %v3784, 0
        %v3821 = vsel %vm2018, %v3786, 0
        %v3824 = vsel %vm2018, %v3788, 0
        %v3827 = vsel %vm2018, %v3790, 0
        %v3830 = vsel %vm2018, %v3792, 0
        %v3833 = vsel %vm2018, %v3794, 0
        %v3836 = vsel %vm2018, %v3796, 0
        %v3839 = vsel %vm2018, %v3798, 0
        %v3842 = vsel %vm2018, %v3800, 0
        %v3845 = vsel %vm2018, %v3802, 0
        %v3848 = vsel %vm2018, %v3804, 0
        %v3851 = vsel %vm2018, %v3806, 0
        %v3854 = vsel %vm2018, %v3808, 0
        %v3857 = vsel %vm2018, %v3810, 0
        %3859 = vmatprep.subr.bf16.mxu0 0
        %3860 = vmatpush1.bf16.xpose.msra.mxu0 %v3836
        %3861 = vmatprep.subr.bf16.mxu0 0
        %3862 = vmatpush1.bf16.xpose.msra.mxu0 %v3839
        %3863 = vmatprep.subr.bf16.mxu0 0
        %3864 = vmatpush1.bf16.xpose.msra.mxu0 %v3842
        %3865 = vmatprep.subr.bf16.mxu0 0
        %3866 = vmatpush1.bf16.xpose.msra.mxu0 %v3845
        %3867 = vmatprep.subr.bf16.mxu0 0
        %3868 = vmatpush1.bf16.xpose.msra.mxu0 %v3848
        %3869 = vmatprep.subr.bf16.mxu0 0
        %3870 = vmatpush1.bf16.xpose.msra.mxu0 %v3851
        %3871 = vmatprep.subr.bf16.mxu0 0
        %3872 = vmatpush1.bf16.xpose.msra.mxu0 %v3854
        %3873 = vmatprep.subr.bf16.mxu0 0
        %3874 = vmatpush1.bf16.xpose.msra.mxu0 %v3857
        %3875 = vmatprep.subr.bf16.mxu0 0
        %3876 = vmatpush1.bf16.xpose.msra.mxu0 0
        %3877 = vmatprep.subr.bf16.mxu0 0
        %3878 = vmatpush1.bf16.xpose.msra.mxu0 0
        %3879 = vmatprep.subr.bf16.mxu0 0
        %3880 = vmatpush1.bf16.xpose.msra.mxu0 0
        %3881 = vmatprep.subr.bf16.mxu0 0
        %3882 = vmatpush1.bf16.xpose.msra.mxu0 0
        %3883 = vmatprep.subr.bf16.mxu0 0
        %3884 = vmatpush1.bf16.xpose.msra.mxu0 0
        %3885 = vmatprep.subr.bf16.mxu0 0
        %3886 = vmatpush1.bf16.xpose.msra.mxu0 0
        %3887 = vmatprep.subr.bf16.mxu0 0
        %3888 = vmatpush1.bf16.xpose.msra.mxu0 0
        %3889 = vmatprep.subr.bf16.mxu0 0
        %3890 = vmatpush1.bf16.xpose.msra.mxu0 0
        %3891 = vmatprep.mubr.bf16.mxu0 0
        %3892 = vmatmul.mubr.bf16.gmra.mrb[0].mxu0 %v3812
        %v3893 = vpop.f32.mrb[0].mxu0
        %v3894 = vadd.f32 %v1218, %v3893
        %v3895 = vpop.f32.mrb[0].mxu0
        %v3896 = vpop.f32.mrb[0].mxu0
        %v3897 = vadd.f32 %v1219, %v3896
        %v3898 = vpop.f32.mrb[0].mxu0
        %3899 = vmatprep.mubr.bf16.mxu0 0
        %3900 = vmatmul.mubr.bf16.gmra.mrb[0].mxu0 %v3815
        %v3901 = vpop.f32.mrb[0].mxu0
        %v3902 = vadd.f32 %v1220, %v3901
        %v3903 = vpop.f32.mrb[0].mxu0
        %v3904 = vpop.f32.mrb[0].mxu0
        %v3905 = vadd.f32 %v1221, %v3904
        %v3906 = vpop.f32.mrb[0].mxu0
        %3907 = vmatprep.mubr.bf16.mxu0 0
        %3908 = vmatmul.mubr.bf16.gmra.mrb[0].mxu0 %v3818
        %v3909 = vpop.f32.mrb[0].mxu0
        %v3910 = vadd.f32 %v1222, %v3909
        %v3911 = vpop.f32.mrb[0].mxu0
        %v3912 = vpop.f32.mrb[0].mxu0
        %v3913 = vadd.f32 %v1223, %v3912
        %v3914 = vpop.f32.mrb[0].mxu0
        %3915 = vmatprep.mubr.bf16.mxu0 0
        %3916 = vmatmul.mubr.bf16.gmra.mrb[0].mxu0 %v3821
        %v3917 = vpop.f32.mrb[0].mxu0
        %v3918 = vadd.f32 %v1224, %v3917
        %v3919 = vpop.f32.mrb[0].mxu0
        %v3920 = vpop.f32.mrb[0].mxu0
        %v3921 = vadd.f32 %v1225, %v3920
        %v3922 = vpop.f32.mrb[0].mxu0
        %3923 = vmatprep.mubr.bf16.mxu0 0
        %3924 = vmatmul.mubr.bf16.gmra.mrb[0].mxu0 %v3824
        %v3925 = vpop.f32.mrb[0].mxu0
        %v3926 = vadd.f32 %v1226, %v3925
        %v3927 = vpop.f32.mrb[0].mxu0
        %v3928 = vpop.f32.mrb[0].mxu0
        %v3929 = vadd.f32 %v1227, %v3928
        %v3930 = vpop.f32.mrb[0].mxu0
        %3931 = vmatprep.mubr.bf16.mxu0 0
        %3932 = vmatmul.mubr.bf16.gmra.mrb[0].mxu0 %v3827
        %v3933 = vpop.f32.mrb[0].mxu0
        %v3934 = vadd.f32 %v1228, %v3933
        %v3935 = vpop.f32.mrb[0].mxu0
        %v3936 = vpop.f32.mrb[0].mxu0
        %v3937 = vadd.f32 %v1229, %v3936
        %v3938 = vpop.f32.mrb[0].mxu0
        %3939 = vmatprep.mubr.bf16.mxu0 0
        %3940 = vmatmul.mubr.bf16.gmra.mrb[0].mxu0 %v3830
        %v3941 = vpop.f32.mrb[0].mxu0
        %v3942 = vadd.f32 %v1230, %v3941
        %v3943 = vpop.f32.mrb[0].mxu0
        %v3944 = vpop.f32.mrb[0].mxu0
        %v3945 = vadd.f32 %v1231, %v3944
        %v3946 = vpop.f32.mrb[0].mxu0
        %3947 = vmatprep.mubr.bf16.mxu0 0
        %3948 = vmatmul.mubr.bf16.gmra.mrb[0].mxu0 %v3833
        %v3949 = vpop.f32.mrb[0].mxu0
        %v3950 = vadd.f32 %v1232, %v3949
        %v3951 = vpop.f32.mrb[0].mxu0
        %v3952 = vpop.f32.mrb[0].mxu0
        %v3953 = vadd.f32 %v1233, %v3952
        %v3954 = vpop.f32.mrb[0].mxu0
        %3955 = vdwg.mxu0
        %3956 = vrot.lane.b32.xlu0 %v1986, 112
        %v3957 = vpop.permute.xlu0 %3956
        %3958 = vrot.lane.b32.xlu0 %v1987, 112
        %v3959 = vpop.permute.xlu0 %3958
        %3960 = vrot.lane.b32.xlu0 %v1988, 112
        %v3961 = vpop.permute.xlu0 %3960
        %3962 = vrot.lane.b32.xlu0 %v1989, 112
        %v3963 = vpop.permute.xlu0 %3962
        %3964 = vrot.lane.b32.xlu0 %v1990, 112
        %v3965 = vpop.permute.xlu0 %3964
        %3966 = vrot.lane.b32.xlu0 %v1991, 112
        %v3967 = vpop.permute.xlu0 %3966
        %3968 = vrot.lane.b32.xlu0 %v1992, 112
        %v3969 = vpop.permute.xlu0 %3968
        %3970 = vrot.lane.b32.xlu0 %v1993, 112
        %v3971 = vpop.permute.xlu0 %3970
        %3972 = vrot.lane.b32.xlu0 %v1986, 80
        %v3973 = vpop.permute.xlu0 %3972
        %3974 = vrot.lane.b32.xlu0 %v1987, 80
        %v3975 = vpop.permute.xlu0 %3974
        %3976 = vrot.lane.b32.xlu0 %v1988, 80
        %v3977 = vpop.permute.xlu0 %3976
        %3978 = vrot.lane.b32.xlu0 %v1989, 80
        %v3979 = vpop.permute.xlu0 %3978
        %3980 = vrot.lane.b32.xlu0 %v1990, 80
        %v3981 = vpop.permute.xlu0 %3980
        %3982 = vrot.lane.b32.xlu0 %v1991, 80
        %v3983 = vpop.permute.xlu0 %3982
        %3984 = vrot.lane.b32.xlu0 %v1992, 80
        %v3985 = vpop.permute.xlu0 %3984
        %3986 = vrot.lane.b32.xlu0 %v1993, 80
        %v3987 = vpop.permute.xlu0 %3986
        %v3989 = vsel %vm2018, %v3957, 0
        %v3992 = vsel %vm2018, %v3959, 0
        %v3995 = vsel %vm2018, %v3961, 0
        %v3998 = vsel %vm2018, %v3963, 0
        %v4001 = vsel %vm2018, %v3965, 0
        %v4004 = vsel %vm2018, %v3967, 0
        %v4007 = vsel %vm2018, %v3969, 0
        %v4010 = vsel %vm2018, %v3971, 0
        %v4013 = vsel %vm2018, %v3973, 0
        %v4016 = vsel %vm2018, %v3975, 0
        %v4019 = vsel %vm2018, %v3977, 0
        %v4022 = vsel %vm2018, %v3979, 0
        %v4025 = vsel %vm2018, %v3981, 0
        %v4028 = vsel %vm2018, %v3983, 0
        %v4031 = vsel %vm2018, %v3985, 0
        %v4034 = vsel %vm2018, %v3987, 0
        %4036 = vmatprep.subr.bf16.mxu0 0
        %4037 = vmatpush1.bf16.xpose.msra.mxu0 %v4013
        %4038 = vmatprep.subr.bf16.mxu0 0
        %4039 = vmatpush1.bf16.xpose.msra.mxu0 %v4016
        %4040 = vmatprep.subr.bf16.mxu0 0
        %4041 = vmatpush1.bf16.xpose.msra.mxu0 %v4019
        %4042 = vmatprep.subr.bf16.mxu0 0
        %4043 = vmatpush1.bf16.xpose.msra.mxu0 %v4022
        %4044 = vmatprep.subr.bf16.mxu0 0
        %4045 = vmatpush1.bf16.xpose.msra.mxu0 %v4025
        %4046 = vmatprep.subr.bf16.mxu0 0
        %4047 = vmatpush1.bf16.xpose.msra.mxu0 %v4028
        %4048 = vmatprep.subr.bf16.mxu0 0
        %4049 = vmatpush1.bf16.xpose.msra.mxu0 %v4031
        %4050 = vmatprep.subr.bf16.mxu0 0
        %4051 = vmatpush1.bf16.xpose.msra.mxu0 %v4034
        %4052 = vmatprep.subr.bf16.mxu0 0
        %4053 = vmatpush1.bf16.xpose.msra.mxu0 0
        %4054 = vmatprep.subr.bf16.mxu0 0
        %4055 = vmatpush1.bf16.xpose.msra.mxu0 0
        %4056 = vmatprep.subr.bf16.mxu0 0
        %4057 = vmatpush1.bf16.xpose.msra.mxu0 0
        %4058 = vmatprep.subr.bf16.mxu0 0
        %4059 = vmatpush1.bf16.xpose.msra.mxu0 0
        %4060 = vmatprep.subr.bf16.mxu0 0
        %4061 = vmatpush1.bf16.xpose.msra.mxu0 0
        %4062 = vmatprep.subr.bf16.mxu0 0
        %4063 = vmatpush1.bf16.xpose.msra.mxu0 0
        %4064 = vmatprep.subr.bf16.mxu0 0
        %4065 = vmatpush1.bf16.xpose.msra.mxu0 0
        %4066 = vmatprep.subr.bf16.mxu0 0
        %4067 = vmatpush1.bf16.xpose.msra.mxu0 0
        %4068 = vmatprep.mubr.bf16.mxu0 0
        %4069 = vmatmul.mubr.bf16.gmra.mrb[0].mxu0 %v3989
        %v4070 = vpop.f32.mrb[0].mxu0
        %v4071 = vadd.f32 %v1218, %v4070
        %v4072 = vpop.f32.mrb[0].mxu0
        %v4073 = vpop.f32.mrb[0].mxu0
        %v4074 = vadd.f32 %v1219, %v4073
        %v4075 = vpop.f32.mrb[0].mxu0
        %4076 = vmatprep.mubr.bf16.mxu0 0
        %4077 = vmatmul.mubr.bf16.gmra.mrb[0].mxu0 %v3992
        %v4078 = vpop.f32.mrb[0].mxu0
        %v4079 = vadd.f32 %v1220, %v4078
        %v4080 = vpop.f32.mrb[0].mxu0
        %v4081 = vpop.f32.mrb[0].mxu0
        %v4082 = vadd.f32 %v1221, %v4081
        %v4083 = vpop.f32.mrb[0].mxu0
        %4084 = vmatprep.mubr.bf16.mxu0 0
        %4085 = vmatmul.mubr.bf16.gmra.mrb[0].mxu0 %v3995
        %v4086 = vpop.f32.mrb[0].mxu0
        %v4087 = vadd.f32 %v1222, %v4086
        %v4088 = vpop.f32.mrb[0].mxu0
        %v4089 = vpop.f32.mrb[0].mxu0
        %v4090 = vadd.f32 %v1223, %v4089
        %v4091 = vpop.f32.mrb[0].mxu0
        %4092 = vmatprep.mubr.bf16.mxu0 0
        %4093 = vmatmul.mubr.bf16.gmra.mrb[0].mxu0 %v3998
        %v4094 = vpop.f32.mrb[0].mxu0
        %v4095 = vadd.f32 %v1224, %v4094
        %v4096 = vpop.f32.mrb[0].mxu0
        %v4097 = vpop.f32.mrb[0].mxu0
        %v4098 = vadd.f32 %v1225, %v4097
        %v4099 = vpop.f32.mrb[0].mxu0
        %4100 = vmatprep.mubr.bf16.mxu0 0
        %4101 = vmatmul.mubr.bf16.gmra.mrb[0].mxu0 %v4001
        %v4102 = vpop.f32.mrb[0].mxu0
        %v4103 = vadd.f32 %v1226, %v4102
        %v4104 = vpop.f32.mrb[0].mxu0
        %v4105 = vpop.f32.mrb[0].mxu0
        %v4106 = vadd.f32 %v1227, %v4105
        %v4107 = vpop.f32.mrb[0].mxu0
        %4108 = vmatprep.mubr.bf16.mxu0 0
        %4109 = vmatmul.mubr.bf16.gmra.mrb[0].mxu0 %v4004
        %v4110 = vpop.f32.mrb[0].mxu0
        %v4111 = vadd.f32 %v1228, %v4110
        %v4112 = vpop.f32.mrb[0].mxu0
        %v4113 = vpop.f32.mrb[0].mxu0
        %v4114 = vadd.f32 %v1229, %v4113
        %v4115 = vpop.f32.mrb[0].mxu0
        %4116 = vmatprep.mubr.bf16.mxu0 0
        %4117 = vmatmul.mubr.bf16.gmra.mrb[0].mxu0 %v4007
        %v4118 = vpop.f32.mrb[0].mxu0
        %v4119 = vadd.f32 %v1230, %v4118
        %v4120 = vpop.f32.mrb[0].mxu0
        %v4121 = vpop.f32.mrb[0].mxu0
        %v4122 = vadd.f32 %v1231, %v4121
        %v4123 = vpop.f32.mrb[0].mxu0
        %4124 = vmatprep.mubr.bf16.mxu0 0
        %4125 = vmatmul.mubr.bf16.gmra.mrb[0].mxu0 %v4010
        %v4126 = vpop.f32.mrb[0].mxu0
        %v4127 = vadd.f32 %v1232, %v4126
        %v4128 = vpop.f32.mrb[0].mxu0
        %v4129 = vpop.f32.mrb[0].mxu0
        %v4130 = vadd.f32 %v1233, %v4129
        %v4131 = vpop.f32.mrb[0].mxu0
        %4132 = vdwg.mxu0
        %4133 = vmax.xlane.f32.xlu0 %v3894
        %v4134 = vpop.xlane.xlu0 %4133
        %4135 = vmax.xlane.f32.xlu0 %v3897
        %v4136 = vpop.xlane.xlu0 %4135
        %4137 = vmax.xlane.f32.xlu0 %v3902
        %v4138 = vpop.xlane.xlu0 %4137
        %4139 = vmax.xlane.f32.xlu0 %v3905
        %v4140 = vpop.xlane.xlu0 %4139
        %4141 = vmax.xlane.f32.xlu0 %v3910
        %v4142 = vpop.xlane.xlu0 %4141
        %4143 = vmax.xlane.f32.xlu0 %v3913
        %v4144 = vpop.xlane.xlu0 %4143
        %4145 = vmax.xlane.f32.xlu0 %v3918
        %v4146 = vpop.xlane.xlu0 %4145
        %4147 = vmax.xlane.f32.xlu0 %v3921
        %v4148 = vpop.xlane.xlu0 %4147
        %4149 = vmax.xlane.f32.xlu0 %v3926
        %v4150 = vpop.xlane.xlu0 %4149
        %4151 = vmax.xlane.f32.xlu0 %v3929
        %v4152 = vpop.xlane.xlu0 %4151
        %4153 = vmax.xlane.f32.xlu0 %v3934
        %v4154 = vpop.xlane.xlu0 %4153
        %4155 = vmax.xlane.f32.xlu0 %v3937
        %v4156 = vpop.xlane.xlu0 %4155
        %4157 = vmax.xlane.f32.xlu0 %v3942
        %v4158 = vpop.xlane.xlu0 %4157
        %4159 = vmax.xlane.f32.xlu0 %v3945
        %v4160 = vpop.xlane.xlu0 %4159
        %4161 = vmax.xlane.f32.xlu0 %v3950
        %v4162 = vpop.xlane.xlu0 %4161
        %4163 = vmax.xlane.f32.xlu0 %v3953
        %v4164 = vpop.xlane.xlu0 %4163
        %4165 = vmax.xlane.f32.xlu0 %v4071
        %v4166 = vpop.xlane.xlu0 %4165
        %4167 = vmax.xlane.f32.xlu0 %v4074
        %v4168 = vpop.xlane.xlu0 %4167
        %4169 = vmax.xlane.f32.xlu0 %v4079
        %v4170 = vpop.xlane.xlu0 %4169
        %4171 = vmax.xlane.f32.xlu0 %v4082
        %v4172 = vpop.xlane.xlu0 %4171
        %4173 = vmax.xlane.f32.xlu0 %v4087
        %v4174 = vpop.xlane.xlu0 %4173
        %4175 = vmax.xlane.f32.xlu0 %v4090
        %v4176 = vpop.xlane.xlu0 %4175
        %4177 = vmax.xlane.f32.xlu0 %v4095
        %v4178 = vpop.xlane.xlu0 %4177
        %4179 = vmax.xlane.f32.xlu0 %v4098
        %v4180 = vpop.xlane.xlu0 %4179
        %4181 = vmax.xlane.f32.xlu0 %v4103
        %v4182 = vpop.xlane.xlu0 %4181
        %4183 = vmax.xlane.f32.xlu0 %v4106
        %v4184 = vpop.xlane.xlu0 %4183
        %4185 = vmax.xlane.f32.xlu0 %v4111
        %v4186 = vpop.xlane.xlu0 %4185
        %4187 = vmax.xlane.f32.xlu0 %v4114
        %v4188 = vpop.xlane.xlu0 %4187
        %4189 = vmax.xlane.f32.xlu0 %v4119
        %v4190 = vpop.xlane.xlu0 %4189
        %4191 = vmax.xlane.f32.xlu0 %v4122
        %v4192 = vpop.xlane.xlu0 %4191
        %4193 = vmax.xlane.f32.xlu0 %v4127
        %v4194 = vpop.xlane.xlu0 %4193
        %4195 = vmax.xlane.f32.xlu0 %v4130
        %v4196 = vpop.xlane.xlu0 %4195
        %v4197 = vsub.f32 %v3894, %v4134
        %v4198 = vsub.f32 %v3897, %v4136
        %v4199 = vsub.f32 %v3902, %v4138
        %v4200 = vsub.f32 %v3905, %v4140
        %v4201 = vsub.f32 %v3910, %v4142
        %v4202 = vsub.f32 %v3913, %v4144
        %v4203 = vsub.f32 %v3918, %v4146
        %v4204 = vsub.f32 %v3921, %v4148
        %v4205 = vsub.f32 %v3926, %v4150
        %v4206 = vsub.f32 %v3929, %v4152
        %v4207 = vsub.f32 %v3934, %v4154
        %v4208 = vsub.f32 %v3937, %v4156
        %v4209 = vsub.f32 %v3942, %v4158
        %v4210 = vsub.f32 %v3945, %v4160
        %v4211 = vsub.f32 %v3950, %v4162
        %v4212 = vsub.f32 %v3953, %v4164
        %v4213 = vsub.f32 %v4071, %v4166
        %v4214 = vsub.f32 %v4074, %v4168
        %v4215 = vsub.f32 %v4079, %v4170
        %v4216 = vsub.f32 %v4082, %v4172
        %v4217 = vsub.f32 %v4087, %v4174
        %v4218 = vsub.f32 %v4090, %v4176
        %v4219 = vsub.f32 %v4095, %v4178
        %v4220 = vsub.f32 %v4098, %v4180
        %v4221 = vsub.f32 %v4103, %v4182
        %v4222 = vsub.f32 %v4106, %v4184
        %v4223 = vsub.f32 %v4111, %v4186
        %v4224 = vsub.f32 %v4114, %v4188
        %v4225 = vsub.f32 %v4119, %v4190
        %v4226 = vsub.f32 %v4122, %v4192
        %v4227 = vsub.f32 %v4127, %v4194
        %v4228 = vsub.f32 %v4130, %v4196
        %v4229 = vmul.f32 %v4197, 1.442695
        %v4230 = vpow.pop %v4229
        %v4231 = vmul.f32 %v4198, 1.442695
        %v4232 = vpow.pop %v4231
        %v4233 = vmul.f32 %v4199, 1.442695
        %v4234 = vpow.pop %v4233
        %v4235 = vmul.f32 %v4200, 1.442695
        %v4236 = vpow.pop %v4235
        %v4237 = vmul.f32 %v4201, 1.442695
        %v4238 = vpow.pop %v4237
        %v4239 = vmul.f32 %v4202, 1.442695
        %v4240 = vpow.pop %v4239
        %v4241 = vmul.f32 %v4203, 1.442695
        %v4242 = vpow.pop %v4241
        %v4243 = vmul.f32 %v4204, 1.442695
        %v4244 = vpow.pop %v4243
        %v4245 = vmul.f32 %v4205, 1.442695
        %v4246 = vpow.pop %v4245
        %v4247 = vmul.f32 %v4206, 1.442695
        %v4248 = vpow.pop %v4247
        %v4249 = vmul.f32 %v4207, 1.442695
        %v4250 = vpow.pop %v4249
        %v4251 = vmul.f32 %v4208, 1.442695
        %v4252 = vpow.pop %v4251
        %v4253 = vmul.f32 %v4209, 1.442695
        %v4254 = vpow.pop %v4253
        %v4255 = vmul.f32 %v4210, 1.442695
        %v4256 = vpow.pop %v4255
        %v4257 = vmul.f32 %v4211, 1.442695
        %v4258 = vpow.pop %v4257
        %v4259 = vmul.f32 %v4212, 1.442695
        %v4260 = vpow.pop %v4259
        %v4261 = vmul.f32 %v4213, 1.442695
        %v4262 = vpow.pop %v4261
        %v4263 = vmul.f32 %v4214, 1.442695
        %v4264 = vpow.pop %v4263
        %v4265 = vmul.f32 %v4215, 1.442695
        %v4266 = vpow.pop %v4265
        %v4267 = vmul.f32 %v4216, 1.442695
        %v4268 = vpow.pop %v4267
        %v4269 = vmul.f32 %v4217, 1.442695
        %v4270 = vpow.pop %v4269
        %v4271 = vmul.f32 %v4218, 1.442695
        %v4272 = vpow.pop %v4271
        %v4273 = vmul.f32 %v4219, 1.442695
        %v4274 = vpow.pop %v4273
        %v4275 = vmul.f32 %v4220, 1.442695
        %v4276 = vpow.pop %v4275
        %v4277 = vmul.f32 %v4221, 1.442695
        %v4278 = vpow.pop %v4277
        %v4279 = vmul.f32 %v4222, 1.442695
        %v4280 = vpow.pop %v4279
        %v4281 = vmul.f32 %v4223, 1.442695
        %v4282 = vpow.pop %v4281
        %v4283 = vmul.f32 %v4224, 1.442695
        %v4284 = vpow.pop %v4283
        %v4285 = vmul.f32 %v4225, 1.442695
        %v4286 = vpow.pop %v4285
        %v4287 = vmul.f32 %v4226, 1.442695
        %v4288 = vpow.pop %v4287
        %v4289 = vmul.f32 %v4227, 1.442695
        %v4290 = vpow.pop %v4289
        %v4291 = vmul.f32 %v4228, 1.442695
        %v4292 = vpow.pop %v4291
        %4293 = vadd.xlane.f32.xlu0 %v4230
        %v4294 = vpop.xlane.xlu0 %4293
        %4295 = vadd.xlane.f32.xlu0 %v4232
        %v4296 = vpop.xlane.xlu0 %4295
        %4297 = vadd.xlane.f32.xlu0 %v4234
        %v4298 = vpop.xlane.xlu0 %4297
        %4299 = vadd.xlane.f32.xlu0 %v4236
        %v4300 = vpop.xlane.xlu0 %4299
        %4301 = vadd.xlane.f32.xlu0 %v4238
        %v4302 = vpop.xlane.xlu0 %4301
        %4303 = vadd.xlane.f32.xlu0 %v4240
        %v4304 = vpop.xlane.xlu0 %4303
        %4305 = vadd.xlane.f32.xlu0 %v4242
        %v4306 = vpop.xlane.xlu0 %4305
        %4307 = vadd.xlane.f32.xlu0 %v4244
        %v4308 = vpop.xlane.xlu0 %4307
        %4309 = vadd.xlane.f32.xlu0 %v4246
        %v4310 = vpop.xlane.xlu0 %4309
        %4311 = vadd.xlane.f32.xlu0 %v4248
        %v4312 = vpop.xlane.xlu0 %4311
        %4313 = vadd.xlane.f32.xlu0 %v4250
        %v4314 = vpop.xlane.xlu0 %4313
        %4315 = vadd.xlane.f32.xlu0 %v4252
        %v4316 = vpop.xlane.xlu0 %4315
        %4317 = vadd.xlane.f32.xlu0 %v4254
        %v4318 = vpop.xlane.xlu0 %4317
        %4319 = vadd.xlane.f32.xlu0 %v4256
        %v4320 = vpop.xlane.xlu0 %4319
        %4321 = vadd.xlane.f32.xlu0 %v4258
        %v4322 = vpop.xlane.xlu0 %4321
        %4323 = vadd.xlane.f32.xlu0 %v4260
        %v4324 = vpop.xlane.xlu0 %4323
        %4325 = vadd.xlane.f32.xlu0 %v4262
        %v4326 = vpop.xlane.xlu0 %4325
        %4327 = vadd.xlane.f32.xlu0 %v4264
        %v4328 = vpop.xlane.xlu0 %4327
        %4329 = vadd.xlane.f32.xlu0 %v4266
        %v4330 = vpop.xlane.xlu0 %4329
        %4331 = vadd.xlane.f32.xlu0 %v4268
        %v4332 = vpop.xlane.xlu0 %4331
        %4333 = vadd.xlane.f32.xlu0 %v4270
        %v4334 = vpop.xlane.xlu0 %4333
        %4335 = vadd.xlane.f32.xlu0 %v4272
        %v4336 = vpop.xlane.xlu0 %4335
        %4337 = vadd.xlane.f32.xlu0 %v4274
        %v4338 = vpop.xlane.xlu0 %4337
        %4339 = vadd.xlane.f32.xlu0 %v4276
        %v4340 = vpop.xlane.xlu0 %4339
        %4341 = vadd.xlane.f32.xlu0 %v4278
        %v4342 = vpop.xlane.xlu0 %4341
        %4343 = vadd.xlane.f32.xlu0 %v4280
        %v4344 = vpop.xlane.xlu0 %4343
        %4345 = vadd.xlane.f32.xlu0 %v4282
        %v4346 = vpop.xlane.xlu0 %4345
        %4347 = vadd.xlane.f32.xlu0 %v4284
        %v4348 = vpop.xlane.xlu0 %4347
        %4349 = vadd.xlane.f32.xlu0 %v4286
        %v4350 = vpop.xlane.xlu0 %4349
        %4351 = vadd.xlane.f32.xlu0 %v4288
        %v4352 = vpop.xlane.xlu0 %4351
        %4353 = vadd.xlane.f32.xlu0 %v4290
        %v4354 = vpop.xlane.xlu0 %4353
        %4355 = vadd.xlane.f32.xlu0 %v4292
        %v4356 = vpop.xlane.xlu0 %4355
        %v4357 = vrcp.pop %v4294
        %v4358 = vrcp.pop %v4296
        %v4359 = vrcp.pop %v4298
        %v4360 = vrcp.pop %v4300
        %v4361 = vrcp.pop %v4302
        %v4362 = vrcp.pop %v4304
        %v4363 = vrcp.pop %v4306
        %v4364 = vrcp.pop %v4308
        %v4365 = vrcp.pop %v4310
        %v4366 = vrcp.pop %v4312
        %v4367 = vrcp.pop %v4314
        %v4368 = vrcp.pop %v4316
        %v4369 = vrcp.pop %v4318
        %v4370 = vrcp.pop %v4320
        %v4371 = vrcp.pop %v4322
        %v4372 = vrcp.pop %v4324
        %v4373 = vrcp.pop %v4326
        %v4374 = vrcp.pop %v4328
        %v4375 = vrcp.pop %v4330
        %v4376 = vrcp.pop %v4332
        %v4377 = vrcp.pop %v4334
        %v4378 = vrcp.pop %v4336
        %v4379 = vrcp.pop %v4338
        %v4380 = vrcp.pop %v4340
        %v4381 = vrcp.pop %v4342
        %v4382 = vrcp.pop %v4344
        %v4383 = vrcp.pop %v4346
        %v4384 = vrcp.pop %v4348
        %v4385 = vrcp.pop %v4350
        %v4386 = vrcp.pop %v4352
        %v4387 = vrcp.pop %v4354
        %v4388 = vrcp.pop %v4356
        %v4389 = vmul.f32 %v4230, %v4357
        %v4390 = vmul.f32 %v4232, %v4358
        %v4391 = vmul.f32 %v4234, %v4359
        %v4392 = vmul.f32 %v4236, %v4360
        %v4393 = vmul.f32 %v4238, %v4361
        %v4394 = vmul.f32 %v4240, %v4362
        %v4395 = vmul.f32 %v4242, %v4363
        %v4396 = vmul.f32 %v4244, %v4364
        %v4397 = vmul.f32 %v4246, %v4365
        %v4398 = vmul.f32 %v4248, %v4366
        %v4399 = vmul.f32 %v4250, %v4367
        %v4400 = vmul.f32 %v4252, %v4368
        %v4401 = vmul.f32 %v4254, %v4369
        %v4402 = vmul.f32 %v4256, %v4370
        %v4403 = vmul.f32 %v4258, %v4371
        %v4404 = vmul.f32 %v4260, %v4372
        %v4405 = vmul.f32 %v4262, %v4373
        %v4406 = vmul.f32 %v4264, %v4374
        %v4407 = vmul.f32 %v4266, %v4375
        %v4408 = vmul.f32 %v4268, %v4376
        %v4409 = vmul.f32 %v4270, %v4377
        %v4410 = vmul.f32 %v4272, %v4378
        %v4411 = vmul.f32 %v4274, %v4379
        %v4412 = vmul.f32 %v4276, %v4380
        %v4413 = vmul.f32 %v4278, %v4381
        %v4414 = vmul.f32 %v4280, %v4382
        %v4415 = vmul.f32 %v4282, %v4383
        %v4416 = vmul.f32 %v4284, %v4384
        %v4417 = vmul.f32 %v4286, %v4385
        %v4418 = vmul.f32 %v4288, %v4386
        %v4419 = vmul.f32 %v4290, %v4387
        %v4420 = vmul.f32 %v4292, %v4388
        %v4421 = vpack.c.bf16 %v4390, %v4389
        %v4422 = vpack.c.bf16 %v4392, %v4391
        %v4423 = vpack.c.bf16 %v4394, %v4393
        %v4424 = vpack.c.bf16 %v4396, %v4395
        %v4425 = vpack.c.bf16 %v4398, %v4397
        %v4426 = vpack.c.bf16 %v4400, %v4399
        %v4427 = vpack.c.bf16 %v4402, %v4401
        %v4428 = vpack.c.bf16 %v4404, %v4403
        %v4429 = vpack.c.bf16 %v4406, %v4405
        %v4430 = vpack.c.bf16 %v4408, %v4407
        %v4431 = vpack.c.bf16 %v4410, %v4409
        %v4432 = vpack.c.bf16 %v4412, %v4411
        %v4433 = vpack.c.bf16 %v4414, %v4413
        %v4434 = vpack.c.bf16 %v4416, %v4415
        %v4435 = vpack.c.bf16 %v4418, %v4417
        %v4436 = vpack.c.bf16 %v4420, %v4419
        %4437 = vrot.lane.b32.xlu0 %v1978, 48
        %v4438 = vpop.permute.xlu0 %4437
        %4439 = vrot.lane.b32.xlu0 %v1979, 48
        %v4440 = vpop.permute.xlu0 %4439
        %4441 = vrot.lane.b32.xlu0 %v1980, 48
        %v4442 = vpop.permute.xlu0 %4441
        %4443 = vrot.lane.b32.xlu0 %v1981, 48
        %v4444 = vpop.permute.xlu0 %4443
        %4445 = vrot.lane.b32.xlu0 %v1982, 48
        %v4446 = vpop.permute.xlu0 %4445
        %4447 = vrot.lane.b32.xlu0 %v1983, 48
        %v4448 = vpop.permute.xlu0 %4447
        %4449 = vrot.lane.b32.xlu0 %v1984, 48
        %v4450 = vpop.permute.xlu0 %4449
        %4451 = vrot.lane.b32.xlu0 %v1985, 48
        %v4452 = vpop.permute.xlu0 %4451
        %4461 = vmatprep.subr.bf16.mxu0 0
        %4462 = vmatpush1.bf16.msra.mxu0 %v4438
        %4463 = vmatprep.subr.bf16.mxu0 0
        %4464 = vmatpush1.bf16.msra.mxu0 %v4440
        %4465 = vmatprep.subr.bf16.mxu0 0
        %4466 = vmatpush1.bf16.msra.mxu0 %v4442
        %4467 = vmatprep.subr.bf16.mxu0 0
        %4468 = vmatpush1.bf16.msra.mxu0 %v4444
        %4469 = vmatprep.subr.bf16.mxu0 0
        %4470 = vmatpush1.bf16.msra.mxu0 %v4446
        %4471 = vmatprep.subr.bf16.mxu0 0
        %4472 = vmatpush1.bf16.msra.mxu0 %v4448
        %4473 = vmatprep.subr.bf16.mxu0 0
        %4474 = vmatpush1.bf16.msra.mxu0 %v4450
        %4475 = vmatprep.subr.bf16.mxu0 0
        %4476 = vmatpush1.bf16.msra.mxu0 %v4452
        %4477 = vmatprep.subr.bf16.mxu0 0
        %4478 = vmatpush1.bf16.msra.mxu0 0
        %4479 = vmatprep.subr.bf16.mxu0 0
        %4480 = vmatpush1.bf16.msra.mxu0 0
        %4481 = vmatprep.subr.bf16.mxu0 0
        %4482 = vmatpush1.bf16.msra.mxu0 0
        %4483 = vmatprep.subr.bf16.mxu0 0
        %4484 = vmatpush1.bf16.msra.mxu0 0
        %4485 = vmatprep.subr.bf16.mxu0 0
        %4486 = vmatpush1.bf16.msra.mxu0 0
        %4487 = vmatprep.subr.bf16.mxu0 0
        %4488 = vmatpush1.bf16.msra.mxu0 0
        %4489 = vmatprep.subr.bf16.mxu0 0
        %4490 = vmatpush1.bf16.msra.mxu0 0
        %4491 = vmatprep.subr.bf16.mxu0 0
        %4492 = vmatpush1.bf16.msra.mxu0 0
        %4493 = vmatprep.mubr.bf16.mxu0 0
        %4494 = vmatmul.mubr.bf16.gmra.mrb[0].mxu0 %v4421
        %v4495 = vpop.f32.mrb[0].mxu0
        %v4496 = vadd.f32 0.0, %v4495
        %v4497 = vpop.f32.mrb[0].mxu0
        %v4498 = vpop.f32.mrb[0].mxu0
        %v4499 = vadd.f32 0.0, %v4498
        %v4500 = vpop.f32.mrb[0].mxu0
        %4501 = vmatprep.mubr.bf16.mxu0 0
        %4502 = vmatmul.mubr.bf16.gmra.mrb[0].mxu0 %v4422
        %v4503 = vpop.f32.mrb[0].mxu0
        %v4504 = vadd.f32 0.0, %v4503
        %v4505 = vpop.f32.mrb[0].mxu0
        %v4506 = vpop.f32.mrb[0].mxu0
        %v4507 = vadd.f32 0.0, %v4506
        %v4508 = vpop.f32.mrb[0].mxu0
        %4509 = vmatprep.mubr.bf16.mxu0 0
        %4510 = vmatmul.mubr.bf16.gmra.mrb[0].mxu0 %v4423
        %v4511 = vpop.f32.mrb[0].mxu0
        %v4512 = vadd.f32 0.0, %v4511
        %v4513 = vpop.f32.mrb[0].mxu0
        %v4514 = vpop.f32.mrb[0].mxu0
        %v4515 = vadd.f32 0.0, %v4514
        %v4516 = vpop.f32.mrb[0].mxu0
        %4517 = vmatprep.mubr.bf16.mxu0 0
        %4518 = vmatmul.mubr.bf16.gmra.mrb[0].mxu0 %v4424
        %v4519 = vpop.f32.mrb[0].mxu0
        %v4520 = vadd.f32 0.0, %v4519
        %v4521 = vpop.f32.mrb[0].mxu0
        %v4522 = vpop.f32.mrb[0].mxu0
        %v4523 = vadd.f32 0.0, %v4522
        %v4524 = vpop.f32.mrb[0].mxu0
        %4525 = vmatprep.mubr.bf16.mxu0 0
        %4526 = vmatmul.mubr.bf16.gmra.mrb[0].mxu0 %v4425
        %v4527 = vpop.f32.mrb[0].mxu0
        %v4528 = vadd.f32 0.0, %v4527
        %v4529 = vpop.f32.mrb[0].mxu0
        %v4530 = vpop.f32.mrb[0].mxu0
        %v4531 = vadd.f32 0.0, %v4530
        %v4532 = vpop.f32.mrb[0].mxu0
        %4533 = vmatprep.mubr.bf16.mxu0 0
        %4534 = vmatmul.mubr.bf16.gmra.mrb[0].mxu0 %v4426
        %v4535 = vpop.f32.mrb[0].mxu0
        %v4536 = vadd.f32 0.0, %v4535
        %v4537 = vpop.f32.mrb[0].mxu0
        %v4538 = vpop.f32.mrb[0].mxu0
        %v4539 = vadd.f32 0.0, %v4538
        %v4540 = vpop.f32.mrb[0].mxu0
        %4541 = vmatprep.mubr.bf16.mxu0 0
        %4542 = vmatmul.mubr.bf16.gmra.mrb[0].mxu0 %v4427
        %v4543 = vpop.f32.mrb[0].mxu0
        %v4544 = vadd.f32 0.0, %v4543
        %v4545 = vpop.f32.mrb[0].mxu0
        %v4546 = vpop.f32.mrb[0].mxu0
        %v4547 = vadd.f32 0.0, %v4546
        %v4548 = vpop.f32.mrb[0].mxu0
        %4549 = vmatprep.mubr.bf16.mxu0 0
        %4550 = vmatmul.mubr.bf16.gmra.mrb[0].mxu0 %v4428
        %v4551 = vpop.f32.mrb[0].mxu0
        %v4552 = vadd.f32 0.0, %v4551
        %v4553 = vpop.f32.mrb[0].mxu0
        %v4554 = vpop.f32.mrb[0].mxu0
        %v4555 = vadd.f32 0.0, %v4554
        %v4556 = vpop.f32.mrb[0].mxu0
        %4557 = vdwg.mxu0
        %4558 = vrot.lane.b32.xlu0 %v1986, 48
        %v4559 = vpop.permute.xlu0 %4558
        %4560 = vrot.lane.b32.xlu0 %v1987, 48
        %v4561 = vpop.permute.xlu0 %4560
        %4562 = vrot.lane.b32.xlu0 %v1988, 48
        %v4563 = vpop.permute.xlu0 %4562
        %4564 = vrot.lane.b32.xlu0 %v1989, 48
        %v4565 = vpop.permute.xlu0 %4564
        %4566 = vrot.lane.b32.xlu0 %v1990, 48
        %v4567 = vpop.permute.xlu0 %4566
        %4568 = vrot.lane.b32.xlu0 %v1991, 48
        %v4569 = vpop.permute.xlu0 %4568
        %4570 = vrot.lane.b32.xlu0 %v1992, 48
        %v4571 = vpop.permute.xlu0 %4570
        %4572 = vrot.lane.b32.xlu0 %v1993, 48
        %v4573 = vpop.permute.xlu0 %4572
        %4582 = vmatprep.subr.bf16.mxu0 0
        %4583 = vmatpush1.bf16.msra.mxu0 %v4559
        %4584 = vmatprep.subr.bf16.mxu0 0
        %4585 = vmatpush1.bf16.msra.mxu0 %v4561
        %4586 = vmatprep.subr.bf16.mxu0 0
        %4587 = vmatpush1.bf16.msra.mxu0 %v4563
        %4588 = vmatprep.subr.bf16.mxu0 0
        %4589 = vmatpush1.bf16.msra.mxu0 %v4565
        %4590 = vmatprep.subr.bf16.mxu0 0
        %4591 = vmatpush1.bf16.msra.mxu0 %v4567
        %4592 = vmatprep.subr.bf16.mxu0 0
        %4593 = vmatpush1.bf16.msra.mxu0 %v4569
        %4594 = vmatprep.subr.bf16.mxu0 0
        %4595 = vmatpush1.bf16.msra.mxu0 %v4571
        %4596 = vmatprep.subr.bf16.mxu0 0
        %4597 = vmatpush1.bf16.msra.mxu0 %v4573
        %4598 = vmatprep.subr.bf16.mxu0 0
        %4599 = vmatpush1.bf16.msra.mxu0 0
        %4600 = vmatprep.subr.bf16.mxu0 0
        %4601 = vmatpush1.bf16.msra.mxu0 0
        %4602 = vmatprep.subr.bf16.mxu0 0
        %4603 = vmatpush1.bf16.msra.mxu0 0
        %4604 = vmatprep.subr.bf16.mxu0 0
        %4605 = vmatpush1.bf16.msra.mxu0 0
        %4606 = vmatprep.subr.bf16.mxu0 0
        %4607 = vmatpush1.bf16.msra.mxu0 0
        %4608 = vmatprep.subr.bf16.mxu0 0
        %4609 = vmatpush1.bf16.msra.mxu0 0
        %4610 = vmatprep.subr.bf16.mxu0 0
        %4611 = vmatpush1.bf16.msra.mxu0 0
        %4612 = vmatprep.subr.bf16.mxu0 0
        %4613 = vmatpush1.bf16.msra.mxu0 0
        %4614 = vmatprep.mubr.bf16.mxu0 0
        %4615 = vmatmul.mubr.bf16.gmra.mrb[0].mxu0 %v4429
        %v4616 = vpop.f32.mrb[0].mxu0
        %v4617 = vadd.f32 0.0, %v4616
        %v4618 = vpop.f32.mrb[0].mxu0
        %v4619 = vpop.f32.mrb[0].mxu0
        %v4620 = vadd.f32 0.0, %v4619
        %v4621 = vpop.f32.mrb[0].mxu0
        %4622 = vmatprep.mubr.bf16.mxu0 0
        %4623 = vmatmul.mubr.bf16.gmra.mrb[0].mxu0 %v4430
        %v4624 = vpop.f32.mrb[0].mxu0
        %v4625 = vadd.f32 0.0, %v4624
        %v4626 = vpop.f32.mrb[0].mxu0
        %v4627 = vpop.f32.mrb[0].mxu0
        %v4628 = vadd.f32 0.0, %v4627
        %v4629 = vpop.f32.mrb[0].mxu0
        %4630 = vmatprep.mubr.bf16.mxu0 0
        %4631 = vmatmul.mubr.bf16.gmra.mrb[0].mxu0 %v4431
        %v4632 = vpop.f32.mrb[0].mxu0
        %v4633 = vadd.f32 0.0, %v4632
        %v4634 = vpop.f32.mrb[0].mxu0
        %v4635 = vpop.f32.mrb[0].mxu0
        %v4636 = vadd.f32 0.0, %v4635
        %v4637 = vpop.f32.mrb[0].mxu0
        %4638 = vmatprep.mubr.bf16.mxu0 0
        %4639 = vmatmul.mubr.bf16.gmra.mrb[0].mxu0 %v4432
        %v4640 = vpop.f32.mrb[0].mxu0
        %v4641 = vadd.f32 0.0, %v4640
        %v4642 = vpop.f32.mrb[0].mxu0
        %v4643 = vpop.f32.mrb[0].mxu0
        %v4644 = vadd.f32 0.0, %v4643
        %v4645 = vpop.f32.mrb[0].mxu0
        %4646 = vmatprep.mubr.bf16.mxu0 0
        %4647 = vmatmul.mubr.bf16.gmra.mrb[0].mxu0 %v4433
        %v4648 = vpop.f32.mrb[0].mxu0
        %v4649 = vadd.f32 0.0, %v4648
        %v4650 = vpop.f32.mrb[0].mxu0
        %v4651 = vpop.f32.mrb[0].mxu0
        %v4652 = vadd.f32 0.0, %v4651
        %v4653 = vpop.f32.mrb[0].mxu0
        %4654 = vmatprep.mubr.bf16.mxu0 0
        %4655 = vmatmul.mubr.bf16.gmra.mrb[0].mxu0 %v4434
        %v4656 = vpop.f32.mrb[0].mxu0
        %v4657 = vadd.f32 0.0, %v4656
        %v4658 = vpop.f32.mrb[0].mxu0
        %v4659 = vpop.f32.mrb[0].mxu0
        %v4660 = vadd.f32 0.0, %v4659
        %v4661 = vpop.f32.mrb[0].mxu0
        %4662 = vmatprep.mubr.bf16.mxu0 0
        %4663 = vmatmul.mubr.bf16.gmra.mrb[0].mxu0 %v4435
        %v4664 = vpop.f32.mrb[0].mxu0
        %v4665 = vadd.f32 0.0, %v4664
        %v4666 = vpop.f32.mrb[0].mxu0
        %v4667 = vpop.f32.mrb[0].mxu0
        %v4668 = vadd.f32 0.0, %v4667
        %v4669 = vpop.f32.mrb[0].mxu0
        %4670 = vmatprep.mubr.bf16.mxu0 0
        %4671 = vmatmul.mubr.bf16.gmra.mrb[0].mxu0 %v4436
        %v4672 = vpop.f32.mrb[0].mxu0
        %v4673 = vadd.f32 0.0, %v4672
        %v4674 = vpop.f32.mrb[0].mxu0
        %v4675 = vpop.f32.mrb[0].mxu0
        %v4676 = vadd.f32 0.0, %v4675
        %v4677 = vpop.f32.mrb[0].mxu0
        %4678 = vdwg.mxu0
        %4679 = vrot.lane.b32.xlu0 %v1978, 104
        %v4680 = vpop.permute.xlu0 %4679
        %4681 = vrot.lane.b32.xlu0 %v1979, 104
        %v4682 = vpop.permute.xlu0 %4681
        %4683 = vrot.lane.b32.xlu0 %v1980, 104
        %v4684 = vpop.permute.xlu0 %4683
        %4685 = vrot.lane.b32.xlu0 %v1981, 104
        %v4686 = vpop.permute.xlu0 %4685
        %4687 = vrot.lane.b32.xlu0 %v1982, 104
        %v4688 = vpop.permute.xlu0 %4687
        %4689 = vrot.lane.b32.xlu0 %v1983, 104
        %v4690 = vpop.permute.xlu0 %4689
        %4691 = vrot.lane.b32.xlu0 %v1984, 104
        %v4692 = vpop.permute.xlu0 %4691
        %4693 = vrot.lane.b32.xlu0 %v1985, 104
        %v4694 = vpop.permute.xlu0 %4693
        %4695 = vrot.lane.b32.xlu0 %v1978, 72
        %v4696 = vpop.permute.xlu0 %4695
        %4697 = vrot.lane.b32.xlu0 %v1979, 72
        %v4698 = vpop.permute.xlu0 %4697
        %4699 = vrot.lane.b32.xlu0 %v1980, 72
        %v4700 = vpop.permute.xlu0 %4699
        %4701 = vrot.lane.b32.xlu0 %v1981, 72
        %v4702 = vpop.permute.xlu0 %4701
        %4703 = vrot.lane.b32.xlu0 %v1982, 72
        %v4704 = vpop.permute.xlu0 %4703
        %4705 = vrot.lane.b32.xlu0 %v1983, 72
        %v4706 = vpop.permute.xlu0 %4705
        %4707 = vrot.lane.b32.xlu0 %v1984, 72
        %v4708 = vpop.permute.xlu0 %4707
        %4709 = vrot.lane.b32.xlu0 %v1985, 72
        %v4710 = vpop.permute.xlu0 %4709
        %v4712 = vsel %vm2018, %v4680, 0
        %v4715 = vsel %vm2018, %v4682, 0
        %v4718 = vsel %vm2018, %v4684, 0
        %v4721 = vsel %vm2018, %v4686, 0
        %v4724 = vsel %vm2018, %v4688, 0
        %v4727 = vsel %vm2018, %v4690, 0
        %v4730 = vsel %vm2018, %v4692, 0
        %v4733 = vsel %vm2018, %v4694, 0
        %v4736 = vsel %vm2018, %v4696, 0
        %v4739 = vsel %vm2018, %v4698, 0
        %v4742 = vsel %vm2018, %v4700, 0
        %v4745 = vsel %vm2018, %v4702, 0
        %v4748 = vsel %vm2018, %v4704, 0
        %v4751 = vsel %vm2018, %v4706, 0
        %v4754 = vsel %vm2018, %v4708, 0
        %v4757 = vsel %vm2018, %v4710, 0
        %4759 = vmatprep.subr.bf16.mxu0 0
        %4760 = vmatpush1.bf16.xpose.msra.mxu0 %v4736
        %4761 = vmatprep.subr.bf16.mxu0 0
        %4762 = vmatpush1.bf16.xpose.msra.mxu0 %v4739
        %4763 = vmatprep.subr.bf16.mxu0 0
        %4764 = vmatpush1.bf16.xpose.msra.mxu0 %v4742
        %4765 = vmatprep.subr.bf16.mxu0 0
        %4766 = vmatpush1.bf16.xpose.msra.mxu0 %v4745
        %4767 = vmatprep.subr.bf16.mxu0 0
        %4768 = vmatpush1.bf16.xpose.msra.mxu0 %v4748
        %4769 = vmatprep.subr.bf16.mxu0 0
        %4770 = vmatpush1.bf16.xpose.msra.mxu0 %v4751
        %4771 = vmatprep.subr.bf16.mxu0 0
        %4772 = vmatpush1.bf16.xpose.msra.mxu0 %v4754
        %4773 = vmatprep.subr.bf16.mxu0 0
        %4774 = vmatpush1.bf16.xpose.msra.mxu0 %v4757
        %4775 = vmatprep.subr.bf16.mxu0 0
        %4776 = vmatpush1.bf16.xpose.msra.mxu0 0
        %4777 = vmatprep.subr.bf16.mxu0 0
        %4778 = vmatpush1.bf16.xpose.msra.mxu0 0
        %4779 = vmatprep.subr.bf16.mxu0 0
        %4780 = vmatpush1.bf16.xpose.msra.mxu0 0
        %4781 = vmatprep.subr.bf16.mxu0 0
        %4782 = vmatpush1.bf16.xpose.msra.mxu0 0
        %4783 = vmatprep.subr.bf16.mxu0 0
        %4784 = vmatpush1.bf16.xpose.msra.mxu0 0
        %4785 = vmatprep.subr.bf16.mxu0 0
        %4786 = vmatpush1.bf16.xpose.msra.mxu0 0
        %4787 = vmatprep.subr.bf16.mxu0 0
        %4788 = vmatpush1.bf16.xpose.msra.mxu0 0
        %4789 = vmatprep.subr.bf16.mxu0 0
        %4790 = vmatpush1.bf16.xpose.msra.mxu0 0
        %4791 = vmatprep.mubr.bf16.mxu0 0
        %4792 = vmatmul.mubr.bf16.gmra.mrb[0].mxu0 %v4712
        %v4793 = vpop.f32.mrb[0].mxu0
        %v4794 = vadd.f32 %v1218, %v4793
        %v4795 = vpop.f32.mrb[0].mxu0
        %v4796 = vpop.f32.mrb[0].mxu0
        %v4797 = vadd.f32 %v1219, %v4796
        %v4798 = vpop.f32.mrb[0].mxu0
        %4799 = vmatprep.mubr.bf16.mxu0 0
        %4800 = vmatmul.mubr.bf16.gmra.mrb[0].mxu0 %v4715
        %v4801 = vpop.f32.mrb[0].mxu0
        %v4802 = vadd.f32 %v1220, %v4801
        %v4803 = vpop.f32.mrb[0].mxu0
        %v4804 = vpop.f32.mrb[0].mxu0
        %v4805 = vadd.f32 %v1221, %v4804
        %v4806 = vpop.f32.mrb[0].mxu0
        %4807 = vmatprep.mubr.bf16.mxu0 0
        %4808 = vmatmul.mubr.bf16.gmra.mrb[0].mxu0 %v4718
        %v4809 = vpop.f32.mrb[0].mxu0
        %v4810 = vadd.f32 %v1222, %v4809
        %v4811 = vpop.f32.mrb[0].mxu0
        %v4812 = vpop.f32.mrb[0].mxu0
        %v4813 = vadd.f32 %v1223, %v4812
        %v4814 = vpop.f32.mrb[0].mxu0
        %4815 = vmatprep.mubr.bf16.mxu0 0
        %4816 = vmatmul.mubr.bf16.gmra.mrb[0].mxu0 %v4721
        %v4817 = vpop.f32.mrb[0].mxu0
        %v4818 = vadd.f32 %v1224, %v4817
        %v4819 = vpop.f32.mrb[0].mxu0
        %v4820 = vpop.f32.mrb[0].mxu0
        %v4821 = vadd.f32 %v1225, %v4820
        %v4822 = vpop.f32.mrb[0].mxu0
        %4823 = vmatprep.mubr.bf16.mxu0 0
        %4824 = vmatmul.mubr.bf16.gmra.mrb[0].mxu0 %v4724
        %v4825 = vpop.f32.mrb[0].mxu0
        %v4826 = vadd.f32 %v1226, %v4825
        %v4827 = vpop.f32.mrb[0].mxu0
        %v4828 = vpop.f32.mrb[0].mxu0
        %v4829 = vadd.f32 %v1227, %v4828
        %v4830 = vpop.f32.mrb[0].mxu0
        %4831 = vmatprep.mubr.bf16.mxu0 0
        %4832 = vmatmul.mubr.bf16.gmra.mrb[0].mxu0 %v4727
        %v4833 = vpop.f32.mrb[0].mxu0
        %v4834 = vadd.f32 %v1228, %v4833
        %v4835 = vpop.f32.mrb[0].mxu0
        %v4836 = vpop.f32.mrb[0].mxu0
        %v4837 = vadd.f32 %v1229, %v4836
        %v4838 = vpop.f32.mrb[0].mxu0
        %4839 = vmatprep.mubr.bf16.mxu0 0
        %4840 = vmatmul.mubr.bf16.gmra.mrb[0].mxu0 %v4730
        %v4841 = vpop.f32.mrb[0].mxu0
        %v4842 = vadd.f32 %v1230, %v4841
        %v4843 = vpop.f32.mrb[0].mxu0
        %v4844 = vpop.f32.mrb[0].mxu0
        %v4845 = vadd.f32 %v1231, %v4844
        %v4846 = vpop.f32.mrb[0].mxu0
        %4847 = vmatprep.mubr.bf16.mxu0 0
        %4848 = vmatmul.mubr.bf16.gmra.mrb[0].mxu0 %v4733
        %v4849 = vpop.f32.mrb[0].mxu0
        %v4850 = vadd.f32 %v1232, %v4849
        %v4851 = vpop.f32.mrb[0].mxu0
        %v4852 = vpop.f32.mrb[0].mxu0
        %v4853 = vadd.f32 %v1233, %v4852
        %v4854 = vpop.f32.mrb[0].mxu0
        %4855 = vdwg.mxu0
        %4856 = vrot.lane.b32.xlu0 %v1986, 104
        %v4857 = vpop.permute.xlu0 %4856
        %4858 = vrot.lane.b32.xlu0 %v1987, 104
        %v4859 = vpop.permute.xlu0 %4858
        %4860 = vrot.lane.b32.xlu0 %v1988, 104
        %v4861 = vpop.permute.xlu0 %4860
        %4862 = vrot.lane.b32.xlu0 %v1989, 104
        %v4863 = vpop.permute.xlu0 %4862
        %4864 = vrot.lane.b32.xlu0 %v1990, 104
        %v4865 = vpop.permute.xlu0 %4864
        %4866 = vrot.lane.b32.xlu0 %v1991, 104
        %v4867 = vpop.permute.xlu0 %4866
        %4868 = vrot.lane.b32.xlu0 %v1992, 104
        %v4869 = vpop.permute.xlu0 %4868
        %4870 = vrot.lane.b32.xlu0 %v1993, 104
        %v4871 = vpop.permute.xlu0 %4870
        %4872 = vrot.lane.b32.xlu0 %v1986, 72
        %v4873 = vpop.permute.xlu0 %4872
        %4874 = vrot.lane.b32.xlu0 %v1987, 72
        %v4875 = vpop.permute.xlu0 %4874
        %4876 = vrot.lane.b32.xlu0 %v1988, 72
        %v4877 = vpop.permute.xlu0 %4876
        %4878 = vrot.lane.b32.xlu0 %v1989, 72
        %v4879 = vpop.permute.xlu0 %4878
        %4880 = vrot.lane.b32.xlu0 %v1990, 72
        %v4881 = vpop.permute.xlu0 %4880
        %4882 = vrot.lane.b32.xlu0 %v1991, 72
        %v4883 = vpop.permute.xlu0 %4882
        %4884 = vrot.lane.b32.xlu0 %v1992, 72
        %v4885 = vpop.permute.xlu0 %4884
        %4886 = vrot.lane.b32.xlu0 %v1993, 72
        %v4887 = vpop.permute.xlu0 %4886
        %v4889 = vsel %vm2018, %v4857, 0
        %v4892 = vsel %vm2018, %v4859, 0
        %v4895 = vsel %vm2018, %v4861, 0
        %v4898 = vsel %vm2018, %v4863, 0
        %v4901 = vsel %vm2018, %v4865, 0
        %v4904 = vsel %vm2018, %v4867, 0
        %v4907 = vsel %vm2018, %v4869, 0
        %v4910 = vsel %vm2018, %v4871, 0
        %v4913 = vsel %vm2018, %v4873, 0
        %v4916 = vsel %vm2018, %v4875, 0
        %v4919 = vsel %vm2018, %v4877, 0
        %v4922 = vsel %vm2018, %v4879, 0
        %v4925 = vsel %vm2018, %v4881, 0
        %v4928 = vsel %vm2018, %v4883, 0
        %v4931 = vsel %vm2018, %v4885, 0
        %v4934 = vsel %vm2018, %v4887, 0
        %4936 = vmatprep.subr.bf16.mxu0 0
        %4937 = vmatpush1.bf16.xpose.msra.mxu0 %v4913
        %4938 = vmatprep.subr.bf16.mxu0 0
        %4939 = vmatpush1.bf16.xpose.msra.mxu0 %v4916
        %4940 = vmatprep.subr.bf16.mxu0 0
        %4941 = vmatpush1.bf16.xpose.msra.mxu0 %v4919
        %4942 = vmatprep.subr.bf16.mxu0 0
        %4943 = vmatpush1.bf16.xpose.msra.mxu0 %v4922
        %4944 = vmatprep.subr.bf16.mxu0 0
        %4945 = vmatpush1.bf16.xpose.msra.mxu0 %v4925
        %4946 = vmatprep.subr.bf16.mxu0 0
        %4947 = vmatpush1.bf16.xpose.msra.mxu0 %v4928
        %4948 = vmatprep.subr.bf16.mxu0 0
        %4949 = vmatpush1.bf16.xpose.msra.mxu0 %v4931
        %4950 = vmatprep.subr.bf16.mxu0 0
        %4951 = vmatpush1.bf16.xpose.msra.mxu0 %v4934
        %4952 = vmatprep.subr.bf16.mxu0 0
        %4953 = vmatpush1.bf16.xpose.msra.mxu0 0
        %4954 = vmatprep.subr.bf16.mxu0 0
        %4955 = vmatpush1.bf16.xpose.msra.mxu0 0
        %4956 = vmatprep.subr.bf16.mxu0 0
        %4957 = vmatpush1.bf16.xpose.msra.mxu0 0
        %4958 = vmatprep.subr.bf16.mxu0 0
        %4959 = vmatpush1.bf16.xpose.msra.mxu0 0
        %4960 = vmatprep.subr.bf16.mxu0 0
        %4961 = vmatpush1.bf16.xpose.msra.mxu0 0
        %4962 = vmatprep.subr.bf16.mxu0 0
        %4963 = vmatpush1.bf16.xpose.msra.mxu0 0
        %4964 = vmatprep.subr.bf16.mxu0 0
        %4965 = vmatpush1.bf16.xpose.msra.mxu0 0
        %4966 = vmatprep.subr.bf16.mxu0 0
        %4967 = vmatpush1.bf16.xpose.msra.mxu0 0
        %4968 = vmatprep.mubr.bf16.mxu0 0
        %4969 = vmatmul.mubr.bf16.gmra.mrb[0].mxu0 %v4889
        %v4970 = vpop.f32.mrb[0].mxu0
        %v4971 = vadd.f32 %v1218, %v4970
        %v4972 = vpop.f32.mrb[0].mxu0
        %v4973 = vpop.f32.mrb[0].mxu0
        %v4974 = vadd.f32 %v1219, %v4973
        %v4975 = vpop.f32.mrb[0].mxu0
        %4976 = vmatprep.mubr.bf16.mxu0 0
        %4977 = vmatmul.mubr.bf16.gmra.mrb[0].mxu0 %v4892
        %v4978 = vpop.f32.mrb[0].mxu0
        %v4979 = vadd.f32 %v1220, %v4978
        %v4980 = vpop.f32.mrb[0].mxu0
        %v4981 = vpop.f32.mrb[0].mxu0
        %v4982 = vadd.f32 %v1221, %v4981
        %v4983 = vpop.f32.mrb[0].mxu0
        %4984 = vmatprep.mubr.bf16.mxu0 0
        %4985 = vmatmul.mubr.bf16.gmra.mrb[0].mxu0 %v4895
        %v4986 = vpop.f32.mrb[0].mxu0
        %v4987 = vadd.f32 %v1222, %v4986
        %v4988 = vpop.f32.mrb[0].mxu0
        %v4989 = vpop.f32.mrb[0].mxu0
        %v4990 = vadd.f32 %v1223, %v4989
        %v4991 = vpop.f32.mrb[0].mxu0
        %4992 = vmatprep.mubr.bf16.mxu0 0
        %4993 = vmatmul.mubr.bf16.gmra.mrb[0].mxu0 %v4898
        %v4994 = vpop.f32.mrb[0].mxu0
        %v4995 = vadd.f32 %v1224, %v4994
        %v4996 = vpop.f32.mrb[0].mxu0
        %v4997 = vpop.f32.mrb[0].mxu0
        %v4998 = vadd.f32 %v1225, %v4997
        %v4999 = vpop.f32.mrb[0].mxu0
        %5000 = vmatprep.mubr.bf16.mxu0 0
        %5001 = vmatmul.mubr.bf16.gmra.mrb[0].mxu0 %v4901
        %v5002 = vpop.f32.mrb[0].mxu0
        %v5003 = vadd.f32 %v1226, %v5002
        %v5004 = vpop.f32.mrb[0].mxu0
        %v5005 = vpop.f32.mrb[0].mxu0
        %v5006 = vadd.f32 %v1227, %v5005
        %v5007 = vpop.f32.mrb[0].mxu0
        %5008 = vmatprep.mubr.bf16.mxu0 0
        %5009 = vmatmul.mubr.bf16.gmra.mrb[0].mxu0 %v4904
        %v5010 = vpop.f32.mrb[0].mxu0
        %v5011 = vadd.f32 %v1228, %v5010
        %v5012 = vpop.f32.mrb[0].mxu0
        %v5013 = vpop.f32.mrb[0].mxu0
        %v5014 = vadd.f32 %v1229, %v5013
        %v5015 = vpop.f32.mrb[0].mxu0
        %5016 = vmatprep.mubr.bf16.mxu0 0
        %5017 = vmatmul.mubr.bf16.gmra.mrb[0].mxu0 %v4907
        %v5018 = vpop.f32.mrb[0].mxu0
        %v5019 = vadd.f32 %v1230, %v5018
        %v5020 = vpop.f32.mrb[0].mxu0
        %v5021 = vpop.f32.mrb[0].mxu0
        %v5022 = vadd.f32 %v1231, %v5021
        %v5023 = vpop.f32.mrb[0].mxu0
        %5024 = vmatprep.mubr.bf16.mxu0 0
        %5025 = vmatmul.mubr.bf16.gmra.mrb[0].mxu0 %v4910
        %v5026 = vpop.f32.mrb[0].mxu0
        %v5027 = vadd.f32 %v1232, %v5026
        %v5028 = vpop.f32.mrb[0].mxu0
        %v5029 = vpop.f32.mrb[0].mxu0
        %v5030 = vadd.f32 %v1233, %v5029
        %v5031 = vpop.f32.mrb[0].mxu0
        %5032 = vdwg.mxu0
        %5033 = vmax.xlane.f32.xlu0 %v4794
        %v5034 = vpop.xlane.xlu0 %5033
        %5035 = vmax.xlane.f32.xlu0 %v4797
        %v5036 = vpop.xlane.xlu0 %5035
        %5037 = vmax.xlane.f32.xlu0 %v4802
        %v5038 = vpop.xlane.xlu0 %5037
        %5039 = vmax.xlane.f32.xlu0 %v4805
        %v5040 = vpop.xlane.xlu0 %5039
        %5041 = vmax.xlane.f32.xlu0 %v4810
        %v5042 = vpop.xlane.xlu0 %5041
        %5043 = vmax.xlane.f32.xlu0 %v4813
        %v5044 = vpop.xlane.xlu0 %5043
        %5045 = vmax.xlane.f32.xlu0 %v4818
        %v5046 = vpop.xlane.xlu0 %5045
        %5047 = vmax.xlane.f32.xlu0 %v4821
        %v5048 = vpop.xlane.xlu0 %5047
        %5049 = vmax.xlane.f32.xlu0 %v4826
        %v5050 = vpop.xlane.xlu0 %5049
        %5051 = vmax.xlane.f32.xlu0 %v4829
        %v5052 = vpop.xlane.xlu0 %5051
        %5053 = vmax.xlane.f32.xlu0 %v4834
        %v5054 = vpop.xlane.xlu0 %5053
        %5055 = vmax.xlane.f32.xlu0 %v4837
        %v5056 = vpop.xlane.xlu0 %5055
        %5057 = vmax.xlane.f32.xlu0 %v4842
        %v5058 = vpop.xlane.xlu0 %5057
        %5059 = vmax.xlane.f32.xlu0 %v4845
        %v5060 = vpop.xlane.xlu0 %5059
        %5061 = vmax.xlane.f32.xlu0 %v4850
        %v5062 = vpop.xlane.xlu0 %5061
        %5063 = vmax.xlane.f32.xlu0 %v4853
        %v5064 = vpop.xlane.xlu0 %5063
        %5065 = vmax.xlane.f32.xlu0 %v4971
        %v5066 = vpop.xlane.xlu0 %5065
        %5067 = vmax.xlane.f32.xlu0 %v4974
        %v5068 = vpop.xlane.xlu0 %5067
        %5069 = vmax.xlane.f32.xlu0 %v4979
        %v5070 = vpop.xlane.xlu0 %5069
        %5071 = vmax.xlane.f32.xlu0 %v4982
        %v5072 = vpop.xlane.xlu0 %5071
        %5073 = vmax.xlane.f32.xlu0 %v4987
        %v5074 = vpop.xlane.xlu0 %5073
        %5075 = vmax.xlane.f32.xlu0 %v4990
        %v5076 = vpop.xlane.xlu0 %5075
        %5077 = vmax.xlane.f32.xlu0 %v4995
        %v5078 = vpop.xlane.xlu0 %5077
        %5079 = vmax.xlane.f32.xlu0 %v4998
        %v5080 = vpop.xlane.xlu0 %5079
        %5081 = vmax.xlane.f32.xlu0 %v5003
        %v5082 = vpop.xlane.xlu0 %5081
        %5083 = vmax.xlane.f32.xlu0 %v5006
        %v5084 = vpop.xlane.xlu0 %5083
        %5085 = vmax.xlane.f32.xlu0 %v5011
        %v5086 = vpop.xlane.xlu0 %5085
        %5087 = vmax.xlane.f32.xlu0 %v5014
        %v5088 = vpop.xlane.xlu0 %5087
        %5089 = vmax.xlane.f32.xlu0 %v5019
        %v5090 = vpop.xlane.xlu0 %5089
        %5091 = vmax.xlane.f32.xlu0 %v5022
        %v5092 = vpop.xlane.xlu0 %5091
        %5093 = vmax.xlane.f32.xlu0 %v5027
        %v5094 = vpop.xlane.xlu0 %5093
        %5095 = vmax.xlane.f32.xlu0 %v5030
        %v5096 = vpop.xlane.xlu0 %5095
        %v5097 = vsub.f32 %v4794, %v5034
        %v5098 = vsub.f32 %v4797, %v5036
        %v5099 = vsub.f32 %v4802, %v5038
        %v5100 = vsub.f32 %v4805, %v5040
        %v5101 = vsub.f32 %v4810, %v5042
        %v5102 = vsub.f32 %v4813, %v5044
        %v5103 = vsub.f32 %v4818, %v5046
        %v5104 = vsub.f32 %v4821, %v5048
        %v5105 = vsub.f32 %v4826, %v5050
        %v5106 = vsub.f32 %v4829, %v5052
        %v5107 = vsub.f32 %v4834, %v5054
        %v5108 = vsub.f32 %v4837, %v5056
        %v5109 = vsub.f32 %v4842, %v5058
        %v5110 = vsub.f32 %v4845, %v5060
        %v5111 = vsub.f32 %v4850, %v5062
        %v5112 = vsub.f32 %v4853, %v5064
        %v5113 = vsub.f32 %v4971, %v5066
        %v5114 = vsub.f32 %v4974, %v5068
        %v5115 = vsub.f32 %v4979, %v5070
        %v5116 = vsub.f32 %v4982, %v5072
        %v5117 = vsub.f32 %v4987, %v5074
        %v5118 = vsub.f32 %v4990, %v5076
        %v5119 = vsub.f32 %v4995, %v5078
        %v5120 = vsub.f32 %v4998, %v5080
        %v5121 = vsub.f32 %v5003, %v5082
        %v5122 = vsub.f32 %v5006, %v5084
        %v5123 = vsub.f32 %v5011, %v5086
        %v5124 = vsub.f32 %v5014, %v5088
        %v5125 = vsub.f32 %v5019, %v5090
        %v5126 = vsub.f32 %v5022, %v5092
        %v5127 = vsub.f32 %v5027, %v5094
        %v5128 = vsub.f32 %v5030, %v5096
        %v5129 = vmul.f32 %v5097, 1.442695
        %v5130 = vpow.pop %v5129
        %v5131 = vmul.f32 %v5098, 1.442695
        %v5132 = vpow.pop %v5131
        %v5133 = vmul.f32 %v5099, 1.442695
        %v5134 = vpow.pop %v5133
        %v5135 = vmul.f32 %v5100, 1.442695
        %v5136 = vpow.pop %v5135
        %v5137 = vmul.f32 %v5101, 1.442695
        %v5138 = vpow.pop %v5137
        %v5139 = vmul.f32 %v5102, 1.442695
        %v5140 = vpow.pop %v5139
        %v5141 = vmul.f32 %v5103, 1.442695
        %v5142 = vpow.pop %v5141
        %v5143 = vmul.f32 %v5104, 1.442695
        %v5144 = vpow.pop %v5143
        %v5145 = vmul.f32 %v5105, 1.442695
        %v5146 = vpow.pop %v5145
        %v5147 = vmul.f32 %v5106, 1.442695
        %v5148 = vpow.pop %v5147
        %v5149 = vmul.f32 %v5107, 1.442695
        %v5150 = vpow.pop %v5149
        %v5151 = vmul.f32 %v5108, 1.442695
        %v5152 = vpow.pop %v5151
        %v5153 = vmul.f32 %v5109, 1.442695
        %v5154 = vpow.pop %v5153
        %v5155 = vmul.f32 %v5110, 1.442695
        %v5156 = vpow.pop %v5155
        %v5157 = vmul.f32 %v5111, 1.442695
        %v5158 = vpow.pop %v5157
        %v5159 = vmul.f32 %v5112, 1.442695
        %v5160 = vpow.pop %v5159
        %v5161 = vmul.f32 %v5113, 1.442695
        %v5162 = vpow.pop %v5161
        %v5163 = vmul.f32 %v5114, 1.442695
        %v5164 = vpow.pop %v5163
        %v5165 = vmul.f32 %v5115, 1.442695
        %v5166 = vpow.pop %v5165
        %v5167 = vmul.f32 %v5116, 1.442695
        %v5168 = vpow.pop %v5167
        %v5169 = vmul.f32 %v5117, 1.442695
        %v5170 = vpow.pop %v5169
        %v5171 = vmul.f32 %v5118, 1.442695
        %v5172 = vpow.pop %v5171
        %v5173 = vmul.f32 %v5119, 1.442695
        %v5174 = vpow.pop %v5173
        %v5175 = vmul.f32 %v5120, 1.442695
        %v5176 = vpow.pop %v5175
        %v5177 = vmul.f32 %v5121, 1.442695
        %v5178 = vpow.pop %v5177
        %v5179 = vmul.f32 %v5122, 1.442695
        %v5180 = vpow.pop %v5179
        %v5181 = vmul.f32 %v5123, 1.442695
        %v5182 = vpow.pop %v5181
        %v5183 = vmul.f32 %v5124, 1.442695
        %v5184 = vpow.pop %v5183
        %v5185 = vmul.f32 %v5125, 1.442695
        %v5186 = vpow.pop %v5185
        %v5187 = vmul.f32 %v5126, 1.442695
        %v5188 = vpow.pop %v5187
        %v5189 = vmul.f32 %v5127, 1.442695
        %v5190 = vpow.pop %v5189
        %v5191 = vmul.f32 %v5128, 1.442695
        %v5192 = vpow.pop %v5191
        %5193 = vadd.xlane.f32.xlu0 %v5130
        %v5194 = vpop.xlane.xlu0 %5193
        %5195 = vadd.xlane.f32.xlu0 %v5132
        %v5196 = vpop.xlane.xlu0 %5195
        %5197 = vadd.xlane.f32.xlu0 %v5134
        %v5198 = vpop.xlane.xlu0 %5197
        %5199 = vadd.xlane.f32.xlu0 %v5136
        %v5200 = vpop.xlane.xlu0 %5199
        %5201 = vadd.xlane.f32.xlu0 %v5138
        %v5202 = vpop.xlane.xlu0 %5201
        %5203 = vadd.xlane.f32.xlu0 %v5140
        %v5204 = vpop.xlane.xlu0 %5203
        %5205 = vadd.xlane.f32.xlu0 %v5142
        %v5206 = vpop.xlane.xlu0 %5205
        %5207 = vadd.xlane.f32.xlu0 %v5144
        %v5208 = vpop.xlane.xlu0 %5207
        %5209 = vadd.xlane.f32.xlu0 %v5146
        %v5210 = vpop.xlane.xlu0 %5209
        %5211 = vadd.xlane.f32.xlu0 %v5148
        %v5212 = vpop.xlane.xlu0 %5211
        %5213 = vadd.xlane.f32.xlu0 %v5150
        %v5214 = vpop.xlane.xlu0 %5213
        %5215 = vadd.xlane.f32.xlu0 %v5152
        %v5216 = vpop.xlane.xlu0 %5215
        %5217 = vadd.xlane.f32.xlu0 %v5154
        %v5218 = vpop.xlane.xlu0 %5217
        %5219 = vadd.xlane.f32.xlu0 %v5156
        %v5220 = vpop.xlane.xlu0 %5219
        %5221 = vadd.xlane.f32.xlu0 %v5158
        %v5222 = vpop.xlane.xlu0 %5221
        %5223 = vadd.xlane.f32.xlu0 %v5160
        %v5224 = vpop.xlane.xlu0 %5223
        %5225 = vadd.xlane.f32.xlu0 %v5162
        %v5226 = vpop.xlane.xlu0 %5225
        %5227 = vadd.xlane.f32.xlu0 %v5164
        %v5228 = vpop.xlane.xlu0 %5227
        %5229 = vadd.xlane.f32.xlu0 %v5166
        %v5230 = vpop.xlane.xlu0 %5229
        %5231 = vadd.xlane.f32.xlu0 %v5168
        %v5232 = vpop.xlane.xlu0 %5231
        %5233 = vadd.xlane.f32.xlu0 %v5170
        %v5234 = vpop.xlane.xlu0 %5233
        %5235 = vadd.xlane.f32.xlu0 %v5172
        %v5236 = vpop.xlane.xlu0 %5235
        %5237 = vadd.xlane.f32.xlu0 %v5174
        %v5238 = vpop.xlane.xlu0 %5237
        %5239 = vadd.xlane.f32.xlu0 %v5176
        %v5240 = vpop.xlane.xlu0 %5239
        %5241 = vadd.xlane.f32.xlu0 %v5178
        %v5242 = vpop.xlane.xlu0 %5241
        %5243 = vadd.xlane.f32.xlu0 %v5180
        %v5244 = vpop.xlane.xlu0 %5243
        %5245 = vadd.xlane.f32.xlu0 %v5182
        %v5246 = vpop.xlane.xlu0 %5245
        %5247 = vadd.xlane.f32.xlu0 %v5184
        %v5248 = vpop.xlane.xlu0 %5247
        %5249 = vadd.xlane.f32.xlu0 %v5186
        %v5250 = vpop.xlane.xlu0 %5249
        %5251 = vadd.xlane.f32.xlu0 %v5188
        %v5252 = vpop.xlane.xlu0 %5251
        %5253 = vadd.xlane.f32.xlu0 %v5190
        %v5254 = vpop.xlane.xlu0 %5253
        %5255 = vadd.xlane.f32.xlu0 %v5192
        %v5256 = vpop.xlane.xlu0 %5255
        %v5257 = vrcp.pop %v5194
        %v5258 = vrcp.pop %v5196
        %v5259 = vrcp.pop %v5198
        %v5260 = vrcp.pop %v5200
        %v5261 = vrcp.pop %v5202
        %v5262 = vrcp.pop %v5204
        %v5263 = vrcp.pop %v5206
        %v5264 = vrcp.pop %v5208
        %v5265 = vrcp.pop %v5210
        %v5266 = vrcp.pop %v5212
        %v5267 = vrcp.pop %v5214
        %v5268 = vrcp.pop %v5216
        %v5269 = vrcp.pop %v5218
        %v5270 = vrcp.pop %v5220
        %v5271 = vrcp.pop %v5222
        %v5272 = vrcp.pop %v5224
        %v5273 = vrcp.pop %v5226
        %v5274 = vrcp.pop %v5228
        %v5275 = vrcp.pop %v5230
        %v5276 = vrcp.pop %v5232
        %v5277 = vrcp.pop %v5234
        %v5278 = vrcp.pop %v5236
        %v5279 = vrcp.pop %v5238
        %v5280 = vrcp.pop %v5240
        %v5281 = vrcp.pop %v5242
        %v5282 = vrcp.pop %v5244
        %v5283 = vrcp.pop %v5246
        %v5284 = vrcp.pop %v5248
        %v5285 = vrcp.pop %v5250
        %v5286 = vrcp.pop %v5252
        %v5287 = vrcp.pop %v5254
        %v5288 = vrcp.pop %v5256
        %v5289 = vmul.f32 %v5130, %v5257
        %v5290 = vmul.f32 %v5132, %v5258
        %v5291 = vmul.f32 %v5134, %v5259
        %v5292 = vmul.f32 %v5136, %v5260
        %v5293 = vmul.f32 %v5138, %v5261
        %v5294 = vmul.f32 %v5140, %v5262
        %v5295 = vmul.f32 %v5142, %v5263
        %v5296 = vmul.f32 %v5144, %v5264
        %v5297 = vmul.f32 %v5146, %v5265
        %v5298 = vmul.f32 %v5148, %v5266
        %v5299 = vmul.f32 %v5150, %v5267
        %v5300 = vmul.f32 %v5152, %v5268
        %v5301 = vmul.f32 %v5154, %v5269
        %v5302 = vmul.f32 %v5156, %v5270
        %v5303 = vmul.f32 %v5158, %v5271
        %v5304 = vmul.f32 %v5160, %v5272
        %v5305 = vmul.f32 %v5162, %v5273
        %v5306 = vmul.f32 %v5164, %v5274
        %v5307 = vmul.f32 %v5166, %v5275
        %v5308 = vmul.f32 %v5168, %v5276
        %v5309 = vmul.f32 %v5170, %v5277
        %v5310 = vmul.f32 %v5172, %v5278
        %v5311 = vmul.f32 %v5174, %v5279
        %v5312 = vmul.f32 %v5176, %v5280
        %v5313 = vmul.f32 %v5178, %v5281
        %v5314 = vmul.f32 %v5180, %v5282
        %v5315 = vmul.f32 %v5182, %v5283
        %v5316 = vmul.f32 %v5184, %v5284
        %v5317 = vmul.f32 %v5186, %v5285
        %v5318 = vmul.f32 %v5188, %v5286
        %v5319 = vmul.f32 %v5190, %v5287
        %v5320 = vmul.f32 %v5192, %v5288
        %v5321 = vpack.c.bf16 %v5290, %v5289
        %v5322 = vpack.c.bf16 %v5292, %v5291
        %v5323 = vpack.c.bf16 %v5294, %v5293
        %v5324 = vpack.c.bf16 %v5296, %v5295
        %v5325 = vpack.c.bf16 %v5298, %v5297
        %v5326 = vpack.c.bf16 %v5300, %v5299
        %v5327 = vpack.c.bf16 %v5302, %v5301
        %v5328 = vpack.c.bf16 %v5304, %v5303
        %v5329 = vpack.c.bf16 %v5306, %v5305
        %v5330 = vpack.c.bf16 %v5308, %v5307
        %v5331 = vpack.c.bf16 %v5310, %v5309
        %v5332 = vpack.c.bf16 %v5312, %v5311
        %v5333 = vpack.c.bf16 %v5314, %v5313
        %v5334 = vpack.c.bf16 %v5316, %v5315
        %v5335 = vpack.c.bf16 %v5318, %v5317
        %v5336 = vpack.c.bf16 %v5320, %v5319
        %5337 = vrot.lane.b32.xlu0 %v1978, 40
        %v5338 = vpop.permute.xlu0 %5337
        %5339 = vrot.lane.b32.xlu0 %v1979, 40
        %v5340 = vpop.permute.xlu0 %5339
        %5341 = vrot.lane.b32.xlu0 %v1980, 40
        %v5342 = vpop.permute.xlu0 %5341
        %5343 = vrot.lane.b32.xlu0 %v1981, 40
        %v5344 = vpop.permute.xlu0 %5343
        %5345 = vrot.lane.b32.xlu0 %v1982, 40
        %v5346 = vpop.permute.xlu0 %5345
        %5347 = vrot.lane.b32.xlu0 %v1983, 40
        %v5348 = vpop.permute.xlu0 %5347
        %5349 = vrot.lane.b32.xlu0 %v1984, 40
        %v5350 = vpop.permute.xlu0 %5349
        %5351 = vrot.lane.b32.xlu0 %v1985, 40
        %v5352 = vpop.permute.xlu0 %5351
        %5361 = vmatprep.subr.bf16.mxu0 0
        %5362 = vmatpush1.bf16.msra.mxu0 %v5338
        %5363 = vmatprep.subr.bf16.mxu0 0
        %5364 = vmatpush1.bf16.msra.mxu0 %v5340
        %5365 = vmatprep.subr.bf16.mxu0 0
        %5366 = vmatpush1.bf16.msra.mxu0 %v5342
        %5367 = vmatprep.subr.bf16.mxu0 0
        %5368 = vmatpush1.bf16.msra.mxu0 %v5344
        %5369 = vmatprep.subr.bf16.mxu0 0
        %5370 = vmatpush1.bf16.msra.mxu0 %v5346
        %5371 = vmatprep.subr.bf16.mxu0 0
        %5372 = vmatpush1.bf16.msra.mxu0 %v5348
        %5373 = vmatprep.subr.bf16.mxu0 0
        %5374 = vmatpush1.bf16.msra.mxu0 %v5350
        %5375 = vmatprep.subr.bf16.mxu0 0
        %5376 = vmatpush1.bf16.msra.mxu0 %v5352
        %5377 = vmatprep.subr.bf16.mxu0 0
        %5378 = vmatpush1.bf16.msra.mxu0 0
        %5379 = vmatprep.subr.bf16.mxu0 0
        %5380 = vmatpush1.bf16.msra.mxu0 0
        %5381 = vmatprep.subr.bf16.mxu0 0
        %5382 = vmatpush1.bf16.msra.mxu0 0
        %5383 = vmatprep.subr.bf16.mxu0 0
        %5384 = vmatpush1.bf16.msra.mxu0 0
        %5385 = vmatprep.subr.bf16.mxu0 0
        %5386 = vmatpush1.bf16.msra.mxu0 0
        %5387 = vmatprep.subr.bf16.mxu0 0
        %5388 = vmatpush1.bf16.msra.mxu0 0
        %5389 = vmatprep.subr.bf16.mxu0 0
        %5390 = vmatpush1.bf16.msra.mxu0 0
        %5391 = vmatprep.subr.bf16.mxu0 0
        %5392 = vmatpush1.bf16.msra.mxu0 0
        %5393 = vmatprep.mubr.bf16.mxu0 0
        %5394 = vmatmul.mubr.bf16.gmra.mrb[0].mxu0 %v5321
        %v5395 = vpop.f32.mrb[0].mxu0
        %v5396 = vadd.f32 0.0, %v5395
        %v5397 = vpop.f32.mrb[0].mxu0
        %v5398 = vpop.f32.mrb[0].mxu0
        %v5399 = vadd.f32 0.0, %v5398
        %v5400 = vpop.f32.mrb[0].mxu0
        %5401 = vmatprep.mubr.bf16.mxu0 0
        %5402 = vmatmul.mubr.bf16.gmra.mrb[0].mxu0 %v5322
        %v5403 = vpop.f32.mrb[0].mxu0
        %v5404 = vadd.f32 0.0, %v5403
        %v5405 = vpop.f32.mrb[0].mxu0
        %v5406 = vpop.f32.mrb[0].mxu0
        %v5407 = vadd.f32 0.0, %v5406
        %v5408 = vpop.f32.mrb[0].mxu0
        %5409 = vmatprep.mubr.bf16.mxu0 0
        %5410 = vmatmul.mubr.bf16.gmra.mrb[0].mxu0 %v5323
        %v5411 = vpop.f32.mrb[0].mxu0
        %v5412 = vadd.f32 0.0, %v5411
        %v5413 = vpop.f32.mrb[0].mxu0
        %v5414 = vpop.f32.mrb[0].mxu0
        %v5415 = vadd.f32 0.0, %v5414
        %v5416 = vpop.f32.mrb[0].mxu0
        %5417 = vmatprep.mubr.bf16.mxu0 0
        %5418 = vmatmul.mubr.bf16.gmra.mrb[0].mxu0 %v5324
        %v5419 = vpop.f32.mrb[0].mxu0
        %v5420 = vadd.f32 0.0, %v5419
        %v5421 = vpop.f32.mrb[0].mxu0
        %v5422 = vpop.f32.mrb[0].mxu0
        %v5423 = vadd.f32 0.0, %v5422
        %v5424 = vpop.f32.mrb[0].mxu0
        %5425 = vmatprep.mubr.bf16.mxu0 0
        %5426 = vmatmul.mubr.bf16.gmra.mrb[0].mxu0 %v5325
        %v5427 = vpop.f32.mrb[0].mxu0
        %v5428 = vadd.f32 0.0, %v5427
        %v5429 = vpop.f32.mrb[0].mxu0
        %v5430 = vpop.f32.mrb[0].mxu0
        %v5431 = vadd.f32 0.0, %v5430
        %v5432 = vpop.f32.mrb[0].mxu0
        %5433 = vmatprep.mubr.bf16.mxu0 0
        %5434 = vmatmul.mubr.bf16.gmra.mrb[0].mxu0 %v5326
        %v5435 = vpop.f32.mrb[0].mxu0
        %v5436 = vadd.f32 0.0, %v5435
        %v5437 = vpop.f32.mrb[0].mxu0
        %v5438 = vpop.f32.mrb[0].mxu0
        %v5439 = vadd.f32 0.0, %v5438
        %v5440 = vpop.f32.mrb[0].mxu0
        %5441 = vmatprep.mubr.bf16.mxu0 0
        %5442 = vmatmul.mubr.bf16.gmra.mrb[0].mxu0 %v5327
        %v5443 = vpop.f32.mrb[0].mxu0
        %v5444 = vadd.f32 0.0, %v5443
        %v5445 = vpop.f32.mrb[0].mxu0
        %v5446 = vpop.f32.mrb[0].mxu0
        %v5447 = vadd.f32 0.0, %v5446
        %v5448 = vpop.f32.mrb[0].mxu0
        %5449 = vmatprep.mubr.bf16.mxu0 0
        %5450 = vmatmul.mubr.bf16.gmra.mrb[0].mxu0 %v5328
        %v5451 = vpop.f32.mrb[0].mxu0
        %v5452 = vadd.f32 0.0, %v5451
        %v5453 = vpop.f32.mrb[0].mxu0
        %v5454 = vpop.f32.mrb[0].mxu0
        %v5455 = vadd.f32 0.0, %v5454
        %v5456 = vpop.f32.mrb[0].mxu0
        %5457 = vdwg.mxu0
        %5458 = vrot.lane.b32.xlu0 %v1986, 40
        %v5459 = vpop.permute.xlu0 %5458
        %5460 = vrot.lane.b32.xlu0 %v1987, 40
        %v5461 = vpop.permute.xlu0 %5460
        %5462 = vrot.lane.b32.xlu0 %v1988, 40
        %v5463 = vpop.permute.xlu0 %5462
        %5464 = vrot.lane.b32.xlu0 %v1989, 40
        %v5465 = vpop.permute.xlu0 %5464
        %5466 = vrot.lane.b32.xlu0 %v1990, 40
        %v5467 = vpop.permute.xlu0 %5466
        %5468 = vrot.lane.b32.xlu0 %v1991, 40
        %v5469 = vpop.permute.xlu0 %5468
        %5470 = vrot.lane.b32.xlu0 %v1992, 40
        %v5471 = vpop.permute.xlu0 %5470
        %5472 = vrot.lane.b32.xlu0 %v1993, 40
        %v5473 = vpop.permute.xlu0 %5472
        %5482 = vmatprep.subr.bf16.mxu0 0
        %5483 = vmatpush1.bf16.msra.mxu0 %v5459
        %5484 = vmatprep.subr.bf16.mxu0 0
        %5485 = vmatpush1.bf16.msra.mxu0 %v5461
        %5486 = vmatprep.subr.bf16.mxu0 0
        %5487 = vmatpush1.bf16.msra.mxu0 %v5463
        %5488 = vmatprep.subr.bf16.mxu0 0
        %5489 = vmatpush1.bf16.msra.mxu0 %v5465
        %5490 = vmatprep.subr.bf16.mxu0 0
        %5491 = vmatpush1.bf16.msra.mxu0 %v5467
        %5492 = vmatprep.subr.bf16.mxu0 0
        %5493 = vmatpush1.bf16.msra.mxu0 %v5469
        %5494 = vmatprep.subr.bf16.mxu0 0
        %5495 = vmatpush1.bf16.msra.mxu0 %v5471
        %5496 = vmatprep.subr.bf16.mxu0 0
        %5497 = vmatpush1.bf16.msra.mxu0 %v5473
        %5498 = vmatprep.subr.bf16.mxu0 0
        %5499 = vmatpush1.bf16.msra.mxu0 0
        %5500 = vmatprep.subr.bf16.mxu0 0
        %5501 = vmatpush1.bf16.msra.mxu0 0
        %5502 = vmatprep.subr.bf16.mxu0 0
        %5503 = vmatpush1.bf16.msra.mxu0 0
        %5504 = vmatprep.subr.bf16.mxu0 0
        %5505 = vmatpush1.bf16.msra.mxu0 0
        %5506 = vmatprep.subr.bf16.mxu0 0
        %5507 = vmatpush1.bf16.msra.mxu0 0
        %5508 = vmatprep.subr.bf16.mxu0 0
        %5509 = vmatpush1.bf16.msra.mxu0 0
        %5510 = vmatprep.subr.bf16.mxu0 0
        %5511 = vmatpush1.bf16.msra.mxu0 0
        %5512 = vmatprep.subr.bf16.mxu0 0
        %5513 = vmatpush1.bf16.msra.mxu0 0
        %5514 = vmatprep.mubr.bf16.mxu0 0
        %5515 = vmatmul.mubr.bf16.gmra.mrb[0].mxu0 %v5329
        %v5516 = vpop.f32.mrb[0].mxu0
        %v5517 = vadd.f32 0.0, %v5516
        %v5518 = vpop.f32.mrb[0].mxu0
        %v5519 = vpop.f32.mrb[0].mxu0
        %v5520 = vadd.f32 0.0, %v5519
        %v5521 = vpop.f32.mrb[0].mxu0
        %5522 = vmatprep.mubr.bf16.mxu0 0
        %5523 = vmatmul.mubr.bf16.gmra.mrb[0].mxu0 %v5330
        %v5524 = vpop.f32.mrb[0].mxu0
        %v5525 = vadd.f32 0.0, %v5524
        %v5526 = vpop.f32.mrb[0].mxu0
        %v5527 = vpop.f32.mrb[0].mxu0
        %v5528 = vadd.f32 0.0, %v5527
        %v5529 = vpop.f32.mrb[0].mxu0
        %5530 = vmatprep.mubr.bf16.mxu0 0
        %5531 = vmatmul.mubr.bf16.gmra.mrb[0].mxu0 %v5331
        %v5532 = vpop.f32.mrb[0].mxu0
        %v5533 = vadd.f32 0.0, %v5532
        %v5534 = vpop.f32.mrb[0].mxu0
        %v5535 = vpop.f32.mrb[0].mxu0
        %v5536 = vadd.f32 0.0, %v5535
        %v5537 = vpop.f32.mrb[0].mxu0
        %5538 = vmatprep.mubr.bf16.mxu0 0
        %5539 = vmatmul.mubr.bf16.gmra.mrb[0].mxu0 %v5332
        %v5540 = vpop.f32.mrb[0].mxu0
        %v5541 = vadd.f32 0.0, %v5540
        %v5542 = vpop.f32.mrb[0].mxu0
        %v5543 = vpop.f32.mrb[0].mxu0
        %v5544 = vadd.f32 0.0, %v5543
        %v5545 = vpop.f32.mrb[0].mxu0
        %5546 = vmatprep.mubr.bf16.mxu0 0
        %5547 = vmatmul.mubr.bf16.gmra.mrb[0].mxu0 %v5333
        %v5548 = vpop.f32.mrb[0].mxu0
        %v5549 = vadd.f32 0.0, %v5548
        %v5550 = vpop.f32.mrb[0].mxu0
        %v5551 = vpop.f32.mrb[0].mxu0
        %v5552 = vadd.f32 0.0, %v5551
        %v5553 = vpop.f32.mrb[0].mxu0
        %5554 = vmatprep.mubr.bf16.mxu0 0
        %5555 = vmatmul.mubr.bf16.gmra.mrb[0].mxu0 %v5334
        %v5556 = vpop.f32.mrb[0].mxu0
        %v5557 = vadd.f32 0.0, %v5556
        %v5558 = vpop.f32.mrb[0].mxu0
        %v5559 = vpop.f32.mrb[0].mxu0
        %v5560 = vadd.f32 0.0, %v5559
        %v5561 = vpop.f32.mrb[0].mxu0
        %5562 = vmatprep.mubr.bf16.mxu0 0
        %5563 = vmatmul.mubr.bf16.gmra.mrb[0].mxu0 %v5335
        %v5564 = vpop.f32.mrb[0].mxu0
        %v5565 = vadd.f32 0.0, %v5564
        %v5566 = vpop.f32.mrb[0].mxu0
        %v5567 = vpop.f32.mrb[0].mxu0
        %v5568 = vadd.f32 0.0, %v5567
        %v5569 = vpop.f32.mrb[0].mxu0
        %5570 = vmatprep.mubr.bf16.mxu0 0
        %5571 = vmatmul.mubr.bf16.gmra.mrb[0].mxu0 %v5336
        %v5572 = vpop.f32.mrb[0].mxu0
        %v5573 = vadd.f32 0.0, %v5572
        %v5574 = vpop.f32.mrb[0].mxu0
        %v5575 = vpop.f32.mrb[0].mxu0
        %v5576 = vadd.f32 0.0, %v5575
        %v5577 = vpop.f32.mrb[0].mxu0
        %5578 = vdwg.mxu0
        %5611 = vrot.lane.b32.xlu0 %v3596, 8
        %v5612 = vpop.permute.xlu0 %5611
        %5613 = vrot.lane.b32.xlu0 %v3599, 8
        %v5614 = vpop.permute.xlu0 %5613
        %5615 = vrot.lane.b32.xlu0 %v3604, 8
        %v5616 = vpop.permute.xlu0 %5615
        %5617 = vrot.lane.b32.xlu0 %v3607, 8
        %v5618 = vpop.permute.xlu0 %5617
        %5619 = vrot.lane.b32.xlu0 %v3612, 8
        %v5620 = vpop.permute.xlu0 %5619
        %5621 = vrot.lane.b32.xlu0 %v3615, 8
        %v5622 = vpop.permute.xlu0 %5621
        %5623 = vrot.lane.b32.xlu0 %v3620, 8
        %v5624 = vpop.permute.xlu0 %5623
        %5625 = vrot.lane.b32.xlu0 %v3623, 8
        %v5626 = vpop.permute.xlu0 %5625
        %5627 = vrot.lane.b32.xlu0 %v3628, 8
        %v5628 = vpop.permute.xlu0 %5627
        %5629 = vrot.lane.b32.xlu0 %v3631, 8
        %v5630 = vpop.permute.xlu0 %5629
        %5631 = vrot.lane.b32.xlu0 %v3636, 8
        %v5632 = vpop.permute.xlu0 %5631
        %5633 = vrot.lane.b32.xlu0 %v3639, 8
        %v5634 = vpop.permute.xlu0 %5633
        %5635 = vrot.lane.b32.xlu0 %v3644, 8
        %v5636 = vpop.permute.xlu0 %5635
        %5637 = vrot.lane.b32.xlu0 %v3647, 8
        %v5638 = vpop.permute.xlu0 %5637
        %5639 = vrot.lane.b32.xlu0 %v3652, 8
        %v5640 = vpop.permute.xlu0 %5639
        %5641 = vrot.lane.b32.xlu0 %v3655, 8
        %v5642 = vpop.permute.xlu0 %5641
        %5643 = vrot.lane.b32.xlu0 %v3717, 8
        %v5644 = vpop.permute.xlu0 %5643
        %5645 = vrot.lane.b32.xlu0 %v3720, 8
        %v5646 = vpop.permute.xlu0 %5645
        %5647 = vrot.lane.b32.xlu0 %v3725, 8
        %v5648 = vpop.permute.xlu0 %5647
        %5649 = vrot.lane.b32.xlu0 %v3728, 8
        %v5650 = vpop.permute.xlu0 %5649
        %5651 = vrot.lane.b32.xlu0 %v3733, 8
        %v5652 = vpop.permute.xlu0 %5651
        %5653 = vrot.lane.b32.xlu0 %v3736, 8
        %v5654 = vpop.permute.xlu0 %5653
        %5655 = vrot.lane.b32.xlu0 %v3741, 8
        %v5656 = vpop.permute.xlu0 %5655
        %5657 = vrot.lane.b32.xlu0 %v3744, 8
        %v5658 = vpop.permute.xlu0 %5657
        %5659 = vrot.lane.b32.xlu0 %v3749, 8
        %v5660 = vpop.permute.xlu0 %5659
        %5661 = vrot.lane.b32.xlu0 %v3752, 8
        %v5662 = vpop.permute.xlu0 %5661
        %5663 = vrot.lane.b32.xlu0 %v3757, 8
        %v5664 = vpop.permute.xlu0 %5663
        %5665 = vrot.lane.b32.xlu0 %v3760, 8
        %v5666 = vpop.permute.xlu0 %5665
        %5667 = vrot.lane.b32.xlu0 %v3765, 8
        %v5668 = vpop.permute.xlu0 %5667
        %5669 = vrot.lane.b32.xlu0 %v3768, 8
        %v5670 = vpop.permute.xlu0 %5669
        %5671 = vrot.lane.b32.xlu0 %v3773, 8
        %v5672 = vpop.permute.xlu0 %5671
        %5673 = vrot.lane.b32.xlu0 %v3776, 8
        %v5674 = vpop.permute.xlu0 %5673
        %5739 = vrot.lane.b32.xlu0 %v4496, 16
        %v5740 = vpop.permute.xlu0 %5739
        %5741 = vrot.lane.b32.xlu0 %v4499, 16
        %v5742 = vpop.permute.xlu0 %5741
        %5743 = vrot.lane.b32.xlu0 %v4504, 16
        %v5744 = vpop.permute.xlu0 %5743
        %5745 = vrot.lane.b32.xlu0 %v4507, 16
        %v5746 = vpop.permute.xlu0 %5745
        %5747 = vrot.lane.b32.xlu0 %v4512, 16
        %v5748 = vpop.permute.xlu0 %5747
        %5749 = vrot.lane.b32.xlu0 %v4515, 16
        %v5750 = vpop.permute.xlu0 %5749
        %5751 = vrot.lane.b32.xlu0 %v4520, 16
        %v5752 = vpop.permute.xlu0 %5751
        %5753 = vrot.lane.b32.xlu0 %v4523, 16
        %v5754 = vpop.permute.xlu0 %5753
        %5755 = vrot.lane.b32.xlu0 %v4528, 16
        %v5756 = vpop.permute.xlu0 %5755
        %5757 = vrot.lane.b32.xlu0 %v4531, 16
        %v5758 = vpop.permute.xlu0 %5757
        %5759 = vrot.lane.b32.xlu0 %v4536, 16
        %v5760 = vpop.permute.xlu0 %5759
        %5761 = vrot.lane.b32.xlu0 %v4539, 16
        %v5762 = vpop.permute.xlu0 %5761
        %5763 = vrot.lane.b32.xlu0 %v4544, 16
        %v5764 = vpop.permute.xlu0 %5763
        %5765 = vrot.lane.b32.xlu0 %v4547, 16
        %v5766 = vpop.permute.xlu0 %5765
        %5767 = vrot.lane.b32.xlu0 %v4552, 16
        %v5768 = vpop.permute.xlu0 %5767
        %5769 = vrot.lane.b32.xlu0 %v4555, 16
        %v5770 = vpop.permute.xlu0 %5769
        %5771 = vrot.lane.b32.xlu0 %v4617, 16
        %v5772 = vpop.permute.xlu0 %5771
        %5773 = vrot.lane.b32.xlu0 %v4620, 16
        %v5774 = vpop.permute.xlu0 %5773
        %5775 = vrot.lane.b32.xlu0 %v4625, 16
        %v5776 = vpop.permute.xlu0 %5775
        %5777 = vrot.lane.b32.xlu0 %v4628, 16
        %v5778 = vpop.permute.xlu0 %5777
        %5779 = vrot.lane.b32.xlu0 %v4633, 16
        %v5780 = vpop.permute.xlu0 %5779
        %5781 = vrot.lane.b32.xlu0 %v4636, 16
        %v5782 = vpop.permute.xlu0 %5781
        %5783 = vrot.lane.b32.xlu0 %v4641, 16
        %v5784 = vpop.permute.xlu0 %5783
        %5785 = vrot.lane.b32.xlu0 %v4644, 16
        %v5786 = vpop.permute.xlu0 %5785
        %5787 = vrot.lane.b32.xlu0 %v4649, 16
        %v5788 = vpop.permute.xlu0 %5787
        %5789 = vrot.lane.b32.xlu0 %v4652, 16
        %v5790 = vpop.permute.xlu0 %5789
        %5791 = vrot.lane.b32.xlu0 %v4657, 16
        %v5792 = vpop.permute.xlu0 %5791
        %5793 = vrot.lane.b32.xlu0 %v4660, 16
        %v5794 = vpop.permute.xlu0 %5793
        %5795 = vrot.lane.b32.xlu0 %v4665, 16
        %v5796 = vpop.permute.xlu0 %5795
        %5797 = vrot.lane.b32.xlu0 %v4668, 16
        %v5798 = vpop.permute.xlu0 %5797
        %5799 = vrot.lane.b32.xlu0 %v4673, 16
        %v5800 = vpop.permute.xlu0 %5799
        %5801 = vrot.lane.b32.xlu0 %v4676, 16
        %v5802 = vpop.permute.xlu0 %5801
        %5867 = vrot.lane.b32.xlu0 %v5396, 24
        %v5868 = vpop.permute.xlu0 %5867
        %5869 = vrot.lane.b32.xlu0 %v5399, 24
        %v5870 = vpop.permute.xlu0 %5869
        %5871 = vrot.lane.b32.xlu0 %v5404, 24
        %v5872 = vpop.permute.xlu0 %5871
        %5873 = vrot.lane.b32.xlu0 %v5407, 24
        %v5874 = vpop.permute.xlu0 %5873
        %5875 = vrot.lane.b32.xlu0 %v5412, 24
        %v5876 = vpop.permute.xlu0 %5875
        %5877 = vrot.lane.b32.xlu0 %v5415, 24
        %v5878 = vpop.permute.xlu0 %5877
        %5879 = vrot.lane.b32.xlu0 %v5420, 24
        %v5880 = vpop.permute.xlu0 %5879
        %5881 = vrot.lane.b32.xlu0 %v5423, 24
        %v5882 = vpop.permute.xlu0 %5881
        %5883 = vrot.lane.b32.xlu0 %v5428, 24
        %v5884 = vpop.permute.xlu0 %5883
        %5885 = vrot.lane.b32.xlu0 %v5431, 24
        %v5886 = vpop.permute.xlu0 %5885
        %5887 = vrot.lane.b32.xlu0 %v5436, 24
        %v5888 = vpop.permute.xlu0 %5887
        %5889 = vrot.lane.b32.xlu0 %v5439, 24
        %v5890 = vpop.permute.xlu0 %5889
        %5891 = vrot.lane.b32.xlu0 %v5444, 24
        %v5892 = vpop.permute.xlu0 %5891
        %5893 = vrot.lane.b32.xlu0 %v5447, 24
        %v5894 = vpop.permute.xlu0 %5893
        %5895 = vrot.lane.b32.xlu0 %v5452, 24
        %v5896 = vpop.permute.xlu0 %5895
        %5897 = vrot.lane.b32.xlu0 %v5455, 24
        %v5898 = vpop.permute.xlu0 %5897
        %5899 = vrot.lane.b32.xlu0 %v5517, 24
        %v5900 = vpop.permute.xlu0 %5899
        %5901 = vrot.lane.b32.xlu0 %v5520, 24
        %v5902 = vpop.permute.xlu0 %5901
        %5903 = vrot.lane.b32.xlu0 %v5525, 24
        %v5904 = vpop.permute.xlu0 %5903
        %5905 = vrot.lane.b32.xlu0 %v5528, 24
        %v5906 = vpop.permute.xlu0 %5905
        %5907 = vrot.lane.b32.xlu0 %v5533, 24
        %v5908 = vpop.permute.xlu0 %5907
        %5909 = vrot.lane.b32.xlu0 %v5536, 24
        %v5910 = vpop.permute.xlu0 %5909
        %5911 = vrot.lane.b32.xlu0 %v5541, 24
        %v5912 = vpop.permute.xlu0 %5911
        %5913 = vrot.lane.b32.xlu0 %v5544, 24
        %v5914 = vpop.permute.xlu0 %5913
        %5915 = vrot.lane.b32.xlu0 %v5549, 24
        %v5916 = vpop.permute.xlu0 %5915
        %5917 = vrot.lane.b32.xlu0 %v5552, 24
        %v5918 = vpop.permute.xlu0 %5917
        %5919 = vrot.lane.b32.xlu0 %v5557, 24
        %v5920 = vpop.permute.xlu0 %5919
        %5921 = vrot.lane.b32.xlu0 %v5560, 24
        %v5922 = vpop.permute.xlu0 %5921
        %5923 = vrot.lane.b32.xlu0 %v5565, 24
        %v5924 = vpop.permute.xlu0 %5923
        %5925 = vrot.lane.b32.xlu0 %v5568, 24
        %v5926 = vpop.permute.xlu0 %5925
        %5927 = vrot.lane.b32.xlu0 %v5573, 24
        %v5928 = vpop.permute.xlu0 %5927
        %5929 = vrot.lane.b32.xlu0 %v5576, 24
        %v5930 = vpop.permute.xlu0 %5929
        %v5963 = vsel %vm2018, %v2696, %v5612
        %v5964 = vsel %vm2018, %v2699, %v5614
        %v5965 = vsel %vm2018, %v2704, %v5616
        %v5966 = vsel %vm2018, %v2707, %v5618
        %v5967 = vsel %vm2018, %v2712, %v5620
        %v5968 = vsel %vm2018, %v2715, %v5622
        %v5969 = vsel %vm2018, %v2720, %v5624
        %v5970 = vsel %vm2018, %v2723, %v5626
        %v5971 = vsel %vm2018, %v2728, %v5628
        %v5972 = vsel %vm2018, %v2731, %v5630
        %v5973 = vsel %vm2018, %v2736, %v5632
        %v5974 = vsel %vm2018, %v2739, %v5634
        %v5975 = vsel %vm2018, %v2744, %v5636
        %v5976 = vsel %vm2018, %v2747, %v5638
        %v5977 = vsel %vm2018, %v2752, %v5640
        %v5978 = vsel %vm2018, %v2755, %v5642
        %v5979 = vsel %vm2018, %v2817, %v5644
        %v5980 = vsel %vm2018, %v2820, %v5646
        %v5981 = vsel %vm2018, %v2825, %v5648
        %v5982 = vsel %vm2018, %v2828, %v5650
        %v5983 = vsel %vm2018, %v2833, %v5652
        %v5984 = vsel %vm2018, %v2836, %v5654
        %v5985 = vsel %vm2018, %v2841, %v5656
        %v5986 = vsel %vm2018, %v2844, %v5658
        %v5987 = vsel %vm2018, %v2849, %v5660
        %v5988 = vsel %vm2018, %v2852, %v5662
        %v5989 = vsel %vm2018, %v2857, %v5664
        %v5990 = vsel %vm2018, %v2860, %v5666
        %v5991 = vsel %vm2018, %v2865, %v5668
        %v5992 = vsel %vm2018, %v2868, %v5670
        %v5993 = vsel %vm2018, %v2873, %v5672
        %v5994 = vsel %vm2018, %v2876, %v5674
        %vm5995 = vcmask 130048
        %v5996 = vsel %vm5995, %v5963, %v5740
        %v5997 = vsel %vm5995, %v5964, %v5742
        %v5998 = vsel %vm5995, %v5965, %v5744
        %v5999 = vsel %vm5995, %v5966, %v5746
        %v6000 = vsel %vm5995, %v5967, %v5748
        %v6001 = vsel %vm5995, %v5968, %v5750
        %v6002 = vsel %vm5995, %v5969, %v5752
        %v6003 = vsel %vm5995, %v5970, %v5754
        %v6004 = vsel %vm5995, %v5971, %v5756
        %v6005 = vsel %vm5995, %v5972, %v5758
        %v6006 = vsel %vm5995, %v5973, %v5760
        %v6007 = vsel %vm5995, %v5974, %v5762
        %v6008 = vsel %vm5995, %v5975, %v5764
        %v6009 = vsel %vm5995, %v5976, %v5766
        %v6010 = vsel %vm5995, %v5977, %v5768
        %v6011 = vsel %vm5995, %v5978, %v5770
        %v6012 = vsel %vm5995, %v5979, %v5772
        %v6013 = vsel %vm5995, %v5980, %v5774
        %v6014 = vsel %vm5995, %v5981, %v5776
        %v6015 = vsel %vm5995, %v5982, %v5778
        %v6016 = vsel %vm5995, %v5983, %v5780
        %v6017 = vsel %vm5995, %v5984, %v5782
        %v6018 = vsel %vm5995, %v5985, %v5784
        %v6019 = vsel %vm5995, %v5986, %v5786
        %v6020 = vsel %vm5995, %v5987, %v5788
        %v6021 = vsel %vm5995, %v5988, %v5790
        %v6022 = vsel %vm5995, %v5989, %v5792
        %v6023 = vsel %vm5995, %v5990, %v5794
        %v6024 = vsel %vm5995, %v5991, %v5796
        %v6025 = vsel %vm5995, %v5992, %v5798
        %v6026 = vsel %vm5995, %v5993, %v5800
        %v6027 = vsel %vm5995, %v5994, %v5802
        %vm6028 = vcmask 195584
        %v6029 = vsel %vm6028, %v5996, %v5868
        %v6030 = vsel %vm6028, %v5997, %v5870
        %v6031 = vsel %vm6028, %v5998, %v5872
        %v6032 = vsel %vm6028, %v5999, %v5874
        %v6033 = vsel %vm6028, %v6000, %v5876
        %v6034 = vsel %vm6028, %v6001, %v5878
        %v6035 = vsel %vm6028, %v6002, %v5880
        %v6036 = vsel %vm6028, %v6003, %v5882
        %v6037 = vsel %vm6028, %v6004, %v5884
        %v6038 = vsel %vm6028, %v6005, %v5886
        %v6039 = vsel %vm6028, %v6006, %v5888
        %v6040 = vsel %vm6028, %v6007, %v5890
        %v6041 = vsel %vm6028, %v6008, %v5892
        %v6042 = vsel %vm6028, %v6009, %v5894
        %v6043 = vsel %vm6028, %v6010, %v5896
        %v6044 = vsel %vm6028, %v6011, %v5898
        %v6045 = vsel %vm6028, %v6012, %v5900
        %v6046 = vsel %vm6028, %v6013, %v5902
        %v6047 = vsel %vm6028, %v6014, %v5904
        %v6048 = vsel %vm6028, %v6015, %v5906
        %v6049 = vsel %vm6028, %v6016, %v5908
        %v6050 = vsel %vm6028, %v6017, %v5910
        %v6051 = vsel %vm6028, %v6018, %v5912
        %v6052 = vsel %vm6028, %v6019, %v5914
        %v6053 = vsel %vm6028, %v6020, %v5916
        %v6054 = vsel %vm6028, %v6021, %v5918
        %v6055 = vsel %vm6028, %v6022, %v5920
        %v6056 = vsel %vm6028, %v6023, %v5922
        %v6057 = vsel %vm6028, %v6024, %v5924
        %v6058 = vsel %vm6028, %v6025, %v5926
        %v6059 = vsel %vm6028, %v6026, %v5928
        %v6060 = vsel %vm6028, %v6027, %v5930
        %v6061 = vpack.c.bf16 %v6030, %v6029
        %v6062 = vpack.c.bf16 %v6032, %v6031
        %v6063 = vpack.c.bf16 %v6034, %v6033
        %v6064 = vpack.c.bf16 %v6036, %v6035
        %v6065 = vpack.c.bf16 %v6038, %v6037
        %v6066 = vpack.c.bf16 %v6040, %v6039
        %v6067 = vpack.c.bf16 %v6042, %v6041
        %v6068 = vpack.c.bf16 %v6044, %v6043
        %v6069 = vpack.c.bf16 %v6046, %v6045
        %v6070 = vpack.c.bf16 %v6048, %v6047
        %v6071 = vpack.c.bf16 %v6050, %v6049
        %v6072 = vpack.c.bf16 %v6052, %v6051
        %v6073 = vpack.c.bf16 %v6054, %v6053
        %v6074 = vpack.c.bf16 %v6056, %v6055
        %v6075 = vpack.c.bf16 %v6058, %v6057
        %v6076 = vpack.c.bf16 %v6060, %v6059
        %v6077 = vld [vmem:[%s881] sm:$0xf]
        %v6078 = vld [vmem:[%s881 + $0x4] sm:$0xf]
        %v6079 = vld [vmem:[%s881 + $0x8] sm:$0xf]
        %v6080 = vld [vmem:[%s881 + $0xc] sm:$0xf]
        %v6085 = vunpack.c.l.b16 %v6077
        %v6086 = vunpack.c.l.b16 %v6078
        %v6087 = vunpack.c.l.b16 %v6079
        %v6088 = vunpack.c.l.b16 %v6080
        %v6089 = vpack.c.b16 %v6086, %v6085
        %v6090 = vpack.c.b16 %v6088, %v6087
        %v6094 = vsel %vm1236, %v6061, 0
        %v6097 = vsel %vm1236, %v6062, 0
        %v6100 = vsel %vm1236, %v6063, 0
        %v6103 = vsel %vm1236, %v6064, 0
        %v6106 = vsel %vm1236, %v6065, 0
        %v6109 = vsel %vm1236, %v6066, 0
        %v6112 = vsel %vm1236, %v6067, 0
        %v6115 = vsel %vm1236, %v6068, 0
        %v6118 = vsel %vm1236, %v6069, 0
        %v6121 = vsel %vm1236, %v6070, 0
        %v6124 = vsel %vm1236, %v6071, 0
        %v6127 = vsel %vm1236, %v6072, 0
        %v6130 = vsel %vm1236, %v6073, 0
        %v6133 = vsel %vm1236, %v6074, 0
        %v6136 = vsel %vm1236, %v6075, 0
        %v6139 = vsel %vm1236, %v6076, 0
        %6141 = vmatprep.subr.bf16.mxu0 0
        %6142 = vmatpush1.bf16.msra.mxu0 %v6089
        %6143 = vmatprep.subr.bf16.mxu0 0
        %6144 = vmatpush1.bf16.msra.mxu0 %v6090
        %6145 = vmatprep.subr.bf16.mxu0 0
        %6146 = vmatpush1.bf16.msra.mxu0 0
        %6147 = vmatprep.subr.bf16.mxu0 0
        %6148 = vmatpush1.bf16.msra.mxu0 0
        %6149 = vmatprep.subr.bf16.mxu0 0
        %6150 = vmatpush1.bf16.msra.mxu0 0
        %6151 = vmatprep.subr.bf16.mxu0 0
        %6152 = vmatpush1.bf16.msra.mxu0 0
        %6153 = vmatprep.subr.bf16.mxu0 0
        %6154 = vmatpush1.bf16.msra.mxu0 0
        %6155 = vmatprep.subr.bf16.mxu0 0
        %6156 = vmatpush1.bf16.msra.mxu0 0
        %6157 = vmatprep.subr.bf16.mxu0 0
        %6158 = vmatpush1.bf16.msra.mxu0 0
        %6159 = vmatprep.subr.bf16.mxu0 0
        %6160 = vmatpush1.bf16.msra.mxu0 0
        %6161 = vmatprep.subr.bf16.mxu0 0
        %6162 = vmatpush1.bf16.msra.mxu0 0
        %6163 = vmatprep.subr.bf16.mxu0 0
        %6164 = vmatpush1.bf16.msra.mxu0 0
        %6165 = vmatprep.subr.bf16.mxu0 0
        %6166 = vmatpush1.bf16.msra.mxu0 0
        %6167 = vmatprep.subr.bf16.mxu0 0
        %6168 = vmatpush1.bf16.msra.mxu0 0
        %6169 = vmatprep.subr.bf16.mxu0 0
        %6170 = vmatpush1.bf16.msra.mxu0 0
        %6171 = vmatprep.subr.bf16.mxu0 0
        %6172 = vmatpush1.bf16.msra.mxu0 0
        %6173 = vmatprep.mubr.bf16.mxu0 0
        %6174 = vmatmul.mubr.bf16.gmra.mrb[0].mxu0 %v6094
        %v6175 = vpop.f32.mrb[0].mxu0
        %v6176 = vadd.f32 0.0, %v6175
        %v6177 = vpop.f32.mrb[0].mxu0
        %v6178 = vpop.f32.mrb[0].mxu0
        %v6179 = vadd.f32 0.0, %v6178
        %v6180 = vpop.f32.mrb[0].mxu0
        %6181 = vmatprep.mubr.bf16.mxu0 0
        %6182 = vmatmul.mubr.bf16.gmra.mrb[0].mxu0 %v6097
        %v6183 = vpop.f32.mrb[0].mxu0
        %v6184 = vadd.f32 0.0, %v6183
        %v6185 = vpop.f32.mrb[0].mxu0
        %v6186 = vpop.f32.mrb[0].mxu0
        %v6187 = vadd.f32 0.0, %v6186
        %v6188 = vpop.f32.mrb[0].mxu0
        %6189 = vmatprep.mubr.bf16.mxu0 0
        %6190 = vmatmul.mubr.bf16.gmra.mrb[0].mxu0 %v6100
        %v6191 = vpop.f32.mrb[0].mxu0
        %v6192 = vadd.f32 0.0, %v6191
        %v6193 = vpop.f32.mrb[0].mxu0
        %v6194 = vpop.f32.mrb[0].mxu0
        %v6195 = vadd.f32 0.0, %v6194
        %v6196 = vpop.f32.mrb[0].mxu0
        %6197 = vmatprep.mubr.bf16.mxu0 0
        %6198 = vmatmul.mubr.bf16.gmra.mrb[0].mxu0 %v6103
        %v6199 = vpop.f32.mrb[0].mxu0
        %v6200 = vadd.f32 0.0, %v6199
        %v6201 = vpop.f32.mrb[0].mxu0
        %v6202 = vpop.f32.mrb[0].mxu0
        %v6203 = vadd.f32 0.0, %v6202
        %v6204 = vpop.f32.mrb[0].mxu0
        %6205 = vmatprep.mubr.bf16.mxu0 0
        %6206 = vmatmul.mubr.bf16.gmra.mrb[0].mxu0 %v6106
        %v6207 = vpop.f32.mrb[0].mxu0
        %v6208 = vadd.f32 0.0, %v6207
        %v6209 = vpop.f32.mrb[0].mxu0
        %v6210 = vpop.f32.mrb[0].mxu0
        %v6211 = vadd.f32 0.0, %v6210
        %v6212 = vpop.f32.mrb[0].mxu0
        %6213 = vmatprep.mubr.bf16.mxu0 0
        %6214 = vmatmul.mubr.bf16.gmra.mrb[0].mxu0 %v6109
        %v6215 = vpop.f32.mrb[0].mxu0
        %v6216 = vadd.f32 0.0, %v6215
        %v6217 = vpop.f32.mrb[0].mxu0
        %v6218 = vpop.f32.mrb[0].mxu0
        %v6219 = vadd.f32 0.0, %v6218
        %v6220 = vpop.f32.mrb[0].mxu0
        %6221 = vmatprep.mubr.bf16.mxu0 0
        %6222 = vmatmul.mubr.bf16.gmra.mrb[0].mxu0 %v6112
        %v6223 = vpop.f32.mrb[0].mxu0
        %v6224 = vadd.f32 0.0, %v6223
        %v6225 = vpop.f32.mrb[0].mxu0
        %v6226 = vpop.f32.mrb[0].mxu0
        %v6227 = vadd.f32 0.0, %v6226
        %v6228 = vpop.f32.mrb[0].mxu0
        %6229 = vmatprep.mubr.bf16.mxu0 0
        %6230 = vmatmul.mubr.bf16.gmra.mrb[0].mxu0 %v6115
        %v6231 = vpop.f32.mrb[0].mxu0
        %v6232 = vadd.f32 0.0, %v6231
        %v6233 = vpop.f32.mrb[0].mxu0
        %v6234 = vpop.f32.mrb[0].mxu0
        %v6235 = vadd.f32 0.0, %v6234
        %v6236 = vpop.f32.mrb[0].mxu0
        %6237 = vmatprep.mubr.bf16.mxu0 0
        %6238 = vmatmul.mubr.bf16.gmra.mrb[0].mxu0 %v6118
        %v6239 = vpop.f32.mrb[0].mxu0
        %v6240 = vadd.f32 0.0, %v6239
        %v6241 = vpop.f32.mrb[0].mxu0
        %v6242 = vpop.f32.mrb[0].mxu0
        %v6243 = vadd.f32 0.0, %v6242
        %v6244 = vpop.f32.mrb[0].mxu0
        %6245 = vmatprep.mubr.bf16.mxu0 0
        %6246 = vmatmul.mubr.bf16.gmra.mrb[0].mxu0 %v6121
        %v6247 = vpop.f32.mrb[0].mxu0
        %v6248 = vadd.f32 0.0, %v6247
        %v6249 = vpop.f32.mrb[0].mxu0
        %v6250 = vpop.f32.mrb[0].mxu0
        %v6251 = vadd.f32 0.0, %v6250
        %v6252 = vpop.f32.mrb[0].mxu0
        %6253 = vmatprep.mubr.bf16.mxu0 0
        %6254 = vmatmul.mubr.bf16.gmra.mrb[0].mxu0 %v6124
        %v6255 = vpop.f32.mrb[0].mxu0
        %v6256 = vadd.f32 0.0, %v6255
        %v6257 = vpop.f32.mrb[0].mxu0
        %v6258 = vpop.f32.mrb[0].mxu0
        %v6259 = vadd.f32 0.0, %v6258
        %v6260 = vpop.f32.mrb[0].mxu0
        %6261 = vmatprep.mubr.bf16.mxu0 0
        %6262 = vmatmul.mubr.bf16.gmra.mrb[0].mxu0 %v6127
        %v6263 = vpop.f32.mrb[0].mxu0
        %v6264 = vadd.f32 0.0, %v6263
        %v6265 = vpop.f32.mrb[0].mxu0
        %v6266 = vpop.f32.mrb[0].mxu0
        %v6267 = vadd.f32 0.0, %v6266
        %v6268 = vpop.f32.mrb[0].mxu0
        %6269 = vmatprep.mubr.bf16.mxu0 0
        %6270 = vmatmul.mubr.bf16.gmra.mrb[0].mxu0 %v6130
        %v6271 = vpop.f32.mrb[0].mxu0
        %v6272 = vadd.f32 0.0, %v6271
        %v6273 = vpop.f32.mrb[0].mxu0
        %v6274 = vpop.f32.mrb[0].mxu0
        %v6275 = vadd.f32 0.0, %v6274
        %v6276 = vpop.f32.mrb[0].mxu0
        %6277 = vmatprep.mubr.bf16.mxu0 0
        %6278 = vmatmul.mubr.bf16.gmra.mrb[0].mxu0 %v6133
        %v6279 = vpop.f32.mrb[0].mxu0
        %v6280 = vadd.f32 0.0, %v6279
        %v6281 = vpop.f32.mrb[0].mxu0
        %v6282 = vpop.f32.mrb[0].mxu0
        %v6283 = vadd.f32 0.0, %v6282
        %v6284 = vpop.f32.mrb[0].mxu0
        %6285 = vmatprep.mubr.bf16.mxu0 0
        %6286 = vmatmul.mubr.bf16.gmra.mrb[0].mxu0 %v6136
        %v6287 = vpop.f32.mrb[0].mxu0
        %v6288 = vadd.f32 0.0, %v6287
        %v6289 = vpop.f32.mrb[0].mxu0
        %v6290 = vpop.f32.mrb[0].mxu0
        %v6291 = vadd.f32 0.0, %v6290
        %v6292 = vpop.f32.mrb[0].mxu0
        %6293 = vmatprep.mubr.bf16.mxu0 0
        %6294 = vmatmul.mubr.bf16.gmra.mrb[0].mxu0 %v6139
        %v6295 = vpop.f32.mrb[0].mxu0
        %v6296 = vadd.f32 0.0, %v6295
        %v6297 = vpop.f32.mrb[0].mxu0
        %v6298 = vpop.f32.mrb[0].mxu0
        %v6299 = vadd.f32 0.0, %v6298
        %v6300 = vpop.f32.mrb[0].mxu0
        %6301 = vdwg.mxu0
        %v6302 = vadd.f32 %v1186, %v6176
        %v6303 = vadd.f32 %v1187, %v6179
        %v6304 = vadd.f32 %v1188, %v6184
        %v6305 = vadd.f32 %v1189, %v6187
        %v6306 = vadd.f32 %v1190, %v6192
        %v6307 = vadd.f32 %v1191, %v6195
        %v6308 = vadd.f32 %v1192, %v6200
        %v6309 = vadd.f32 %v1193, %v6203
        %v6310 = vadd.f32 %v1194, %v6208
        %v6311 = vadd.f32 %v1195, %v6211
        %v6312 = vadd.f32 %v1196, %v6216
        %v6313 = vadd.f32 %v1197, %v6219
        %v6314 = vadd.f32 %v1198, %v6224
        %v6315 = vadd.f32 %v1199, %v6227
        %v6316 = vadd.f32 %v1200, %v6232
        %v6317 = vadd.f32 %v1201, %v6235
        %v6318 = vadd.f32 %v1202, %v6240
        %v6319 = vadd.f32 %v1203, %v6243
        %v6320 = vadd.f32 %v1204, %v6248
        %v6321 = vadd.f32 %v1205, %v6251
        %v6322 = vadd.f32 %v1206, %v6256
        %v6323 = vadd.f32 %v1207, %v6259
        %v6324 = vadd.f32 %v1208, %v6264
        %v6325 = vadd.f32 %v1209, %v6267
        %v6326 = vadd.f32 %v1210, %v6272
        %v6327 = vadd.f32 %v1211, %v6275
        %v6328 = vadd.f32 %v1212, %v6280
        %v6329 = vadd.f32 %v1213, %v6283
        %v6330 = vadd.f32 %v1214, %v6288
        %v6331 = vadd.f32 %v1215, %v6291
        %v6332 = vadd.f32 %v1216, %v6296
        %v6333 = vadd.f32 %v1217, %v6299
        %v6334 = vld [vmem:[%s889] sm:$0x1]
        %v6336 = vlaneseq
        %v6337 = vshrl.u32 %v6336, 7
        %v6338 = vsub.s32 0, %v6337
        %v6339 = vrot.slane %v6334, %v6338
        %v6341 = vadd.f32 %v6302, %v6339
        %v6342 = vadd.f32 %v6303, %v6339
        %v6343 = vadd.f32 %v6304, %v6339
        %v6344 = vadd.f32 %v6305, %v6339
        %v6345 = vadd.f32 %v6306, %v6339
        %v6346 = vadd.f32 %v6307, %v6339
        %v6347 = vadd.f32 %v6308, %v6339
        %v6348 = vadd.f32 %v6309, %v6339
        %v6349 = vadd.f32 %v6310, %v6339
        %v6350 = vadd.f32 %v6311, %v6339
        %v6351 = vadd.f32 %v6312, %v6339
        %v6352 = vadd.f32 %v6313, %v6339
        %v6353 = vadd.f32 %v6314, %v6339
        %v6354 = vadd.f32 %v6315, %v6339
        %v6355 = vadd.f32 %v6316, %v6339
        %v6356 = vadd.f32 %v6317, %v6339
        %v6357 = vadd.f32 %v6318, %v6339
        %v6358 = vadd.f32 %v6319, %v6339
        %v6359 = vadd.f32 %v6320, %v6339
        %v6360 = vadd.f32 %v6321, %v6339
        %v6361 = vadd.f32 %v6322, %v6339
        %v6362 = vadd.f32 %v6323, %v6339
        %v6363 = vadd.f32 %v6324, %v6339
        %v6364 = vadd.f32 %v6325, %v6339
        %v6365 = vadd.f32 %v6326, %v6339
        %v6366 = vadd.f32 %v6327, %v6339
        %v6367 = vadd.f32 %v6328, %v6339
        %v6368 = vadd.f32 %v6329, %v6339
        %v6369 = vadd.f32 %v6330, %v6339
        %v6370 = vadd.f32 %v6331, %v6339
        %v6371 = vadd.f32 %v6332, %v6339
        %v6372 = vadd.f32 %v6333, %v6339
        %v6373 = vld [vmem:[%s897] sm:$0x1]
        %v6374 = vld [vmem:[%s905] sm:$0x1]
        %v6375 = vsel %vm1236, %v6341, 0.0
        %6376 = vadd.xlane.f32.xlu0 %v6375
        %v6377 = vpop.xlane.xlu0 %6376
        %v6378 = vsel %vm1236, %v6342, 0.0
        %6379 = vadd.xlane.f32.xlu0 %v6378
        %v6380 = vpop.xlane.xlu0 %6379
        %v6381 = vsel %vm1236, %v6343, 0.0
        %6382 = vadd.xlane.f32.xlu0 %v6381
        %v6383 = vpop.xlane.xlu0 %6382
        %v6384 = vsel %vm1236, %v6344, 0.0
        %6385 = vadd.xlane.f32.xlu0 %v6384
        %v6386 = vpop.xlane.xlu0 %6385
        %v6387 = vsel %vm1236, %v6345, 0.0
        %6388 = vadd.xlane.f32.xlu0 %v6387
        %v6389 = vpop.xlane.xlu0 %6388
        %v6390 = vsel %vm1236, %v6346, 0.0
        %6391 = vadd.xlane.f32.xlu0 %v6390
        %v6392 = vpop.xlane.xlu0 %6391
        %v6393 = vsel %vm1236, %v6347, 0.0
        %6394 = vadd.xlane.f32.xlu0 %v6393
        %v6395 = vpop.xlane.xlu0 %6394
        %v6396 = vsel %vm1236, %v6348, 0.0
        %6397 = vadd.xlane.f32.xlu0 %v6396
        %v6398 = vpop.xlane.xlu0 %6397
        %v6399 = vsel %vm1236, %v6349, 0.0
        %6400 = vadd.xlane.f32.xlu0 %v6399
        %v6401 = vpop.xlane.xlu0 %6400
        %v6402 = vsel %vm1236, %v6350, 0.0
        %6403 = vadd.xlane.f32.xlu0 %v6402
        %v6404 = vpop.xlane.xlu0 %6403
        %v6405 = vsel %vm1236, %v6351, 0.0
        %6406 = vadd.xlane.f32.xlu0 %v6405
        %v6407 = vpop.xlane.xlu0 %6406
        %v6408 = vsel %vm1236, %v6352, 0.0
        %6409 = vadd.xlane.f32.xlu0 %v6408
        %v6410 = vpop.xlane.xlu0 %6409
        %v6411 = vsel %vm1236, %v6353, 0.0
        %6412 = vadd.xlane.f32.xlu0 %v6411
        %v6413 = vpop.xlane.xlu0 %6412
        %v6414 = vsel %vm1236, %v6354, 0.0
        %6415 = vadd.xlane.f32.xlu0 %v6414
        %v6416 = vpop.xlane.xlu0 %6415
        %v6417 = vsel %vm1236, %v6355, 0.0
        %6418 = vadd.xlane.f32.xlu0 %v6417
        %v6419 = vpop.xlane.xlu0 %6418
        %v6420 = vsel %vm1236, %v6356, 0.0
        %6421 = vadd.xlane.f32.xlu0 %v6420
        %v6422 = vpop.xlane.xlu0 %6421
        %v6423 = vsel %vm1236, %v6357, 0.0
        %6424 = vadd.xlane.f32.xlu0 %v6423
        %v6425 = vpop.xlane.xlu0 %6424
        %v6426 = vsel %vm1236, %v6358, 0.0
        %6427 = vadd.xlane.f32.xlu0 %v6426
        %v6428 = vpop.xlane.xlu0 %6427
        %v6429 = vsel %vm1236, %v6359, 0.0
        %6430 = vadd.xlane.f32.xlu0 %v6429
        %v6431 = vpop.xlane.xlu0 %6430
        %v6432 = vsel %vm1236, %v6360, 0.0
        %6433 = vadd.xlane.f32.xlu0 %v6432
        %v6434 = vpop.xlane.xlu0 %6433
        %v6435 = vsel %vm1236, %v6361, 0.0
        %6436 = vadd.xlane.f32.xlu0 %v6435
        %v6437 = vpop.xlane.xlu0 %6436
        %v6438 = vsel %vm1236, %v6362, 0.0
        %6439 = vadd.xlane.f32.xlu0 %v6438
        %v6440 = vpop.xlane.xlu0 %6439
        %v6441 = vsel %vm1236, %v6363, 0.0
        %6442 = vadd.xlane.f32.xlu0 %v6441
        %v6443 = vpop.xlane.xlu0 %6442
        %v6444 = vsel %vm1236, %v6364, 0.0
        %6445 = vadd.xlane.f32.xlu0 %v6444
        %v6446 = vpop.xlane.xlu0 %6445
        %v6447 = vsel %vm1236, %v6365, 0.0
        %6448 = vadd.xlane.f32.xlu0 %v6447
        %v6449 = vpop.xlane.xlu0 %6448
        %v6450 = vsel %vm1236, %v6366, 0.0
        %6451 = vadd.xlane.f32.xlu0 %v6450
        %v6452 = vpop.xlane.xlu0 %6451
        %v6453 = vsel %vm1236, %v6367, 0.0
        %6454 = vadd.xlane.f32.xlu0 %v6453
        %v6455 = vpop.xlane.xlu0 %6454
        %v6456 = vsel %vm1236, %v6368, 0.0
        %6457 = vadd.xlane.f32.xlu0 %v6456
        %v6458 = vpop.xlane.xlu0 %6457
        %v6459 = vsel %vm1236, %v6369, 0.0
        %6460 = vadd.xlane.f32.xlu0 %v6459
        %v6461 = vpop.xlane.xlu0 %6460
        %v6462 = vsel %vm1236, %v6370, 0.0
        %6463 = vadd.xlane.f32.xlu0 %v6462
        %v6464 = vpop.xlane.xlu0 %6463
        %v6465 = vsel %vm1236, %v6371, 0.0
        %6466 = vadd.xlane.f32.xlu0 %v6465
        %v6467 = vpop.xlane.xlu0 %6466
        %v6468 = vsel %vm1236, %v6372, 0.0
        %6469 = vadd.xlane.f32.xlu0 %v6468
        %v6470 = vpop.xlane.xlu0 %6469
        %v6471 = vmul.f32 %v6377, %v1333
        %v6472 = vmul.f32 %v6380, %v1333
        %v6473 = vmul.f32 %v6383, %v1333
        %v6474 = vmul.f32 %v6386, %v1333
        %v6475 = vmul.f32 %v6389, %v1333
        %v6476 = vmul.f32 %v6392, %v1333
        %v6477 = vmul.f32 %v6395, %v1333
        %v6478 = vmul.f32 %v6398, %v1333
        %v6479 = vmul.f32 %v6401, %v1333
        %v6480 = vmul.f32 %v6404, %v1333
        %v6481 = vmul.f32 %v6407, %v1333
        %v6482 = vmul.f32 %v6410, %v1333
        %v6483 = vmul.f32 %v6413, %v1333
        %v6484 = vmul.f32 %v6416, %v1333
        %v6485 = vmul.f32 %v6419, %v1333
        %v6486 = vmul.f32 %v6422, %v1333
        %v6487 = vmul.f32 %v6425, %v1333
        %v6488 = vmul.f32 %v6428, %v1333
        %v6489 = vmul.f32 %v6431, %v1333
        %v6490 = vmul.f32 %v6434, %v1333
        %v6491 = vmul.f32 %v6437, %v1333
        %v6492 = vmul.f32 %v6440, %v1333
        %v6493 = vmul.f32 %v6443, %v1333
        %v6494 = vmul.f32 %v6446, %v1333
        %v6495 = vmul.f32 %v6449, %v1333
        %v6496 = vmul.f32 %v6452, %v1333
        %v6497 = vmul.f32 %v6455, %v1333
        %v6498 = vmul.f32 %v6458, %v1333
        %v6499 = vmul.f32 %v6461, %v1333
        %v6500 = vmul.f32 %v6464, %v1333
        %v6501 = vmul.f32 %v6467, %v1333
        %v6502 = vmul.f32 %v6470, %v1333
        %v6503 = vsub.f32 %v6341, %v6471
        %v6504 = vsub.f32 %v6342, %v6472
        %v6505 = vsub.f32 %v6343, %v6473
        %v6506 = vsub.f32 %v6344, %v6474
        %v6507 = vsub.f32 %v6345, %v6475
        %v6508 = vsub.f32 %v6346, %v6476
        %v6509 = vsub.f32 %v6347, %v6477
        %v6510 = vsub.f32 %v6348, %v6478
        %v6511 = vsub.f32 %v6349, %v6479
        %v6512 = vsub.f32 %v6350, %v6480
        %v6513 = vsub.f32 %v6351, %v6481
        %v6514 = vsub.f32 %v6352, %v6482
        %v6515 = vsub.f32 %v6353, %v6483
        %v6516 = vsub.f32 %v6354, %v6484
        %v6517 = vsub.f32 %v6355, %v6485
        %v6518 = vsub.f32 %v6356, %v6486
        %v6519 = vsub.f32 %v6357, %v6487
        %v6520 = vsub.f32 %v6358, %v6488
        %v6521 = vsub.f32 %v6359, %v6489
        %v6522 = vsub.f32 %v6360, %v6490
        %v6523 = vsub.f32 %v6361, %v6491
        %v6524 = vsub.f32 %v6362, %v6492
        %v6525 = vsub.f32 %v6363, %v6493
        %v6526 = vsub.f32 %v6364, %v6494
        %v6527 = vsub.f32 %v6365, %v6495
        %v6528 = vsub.f32 %v6366, %v6496
        %v6529 = vsub.f32 %v6367, %v6497
        %v6530 = vsub.f32 %v6368, %v6498
        %v6531 = vsub.f32 %v6369, %v6499
        %v6532 = vsub.f32 %v6370, %v6500
        %v6533 = vsub.f32 %v6371, %v6501
        %v6534 = vsub.f32 %v6372, %v6502
        %v6535 = vmul.f32 %v6503, %v6503
        %v6536 = vmul.f32 %v6504, %v6504
        %v6537 = vmul.f32 %v6505, %v6505
        %v6538 = vmul.f32 %v6506, %v6506
        %v6539 = vmul.f32 %v6507, %v6507
        %v6540 = vmul.f32 %v6508, %v6508
        %v6541 = vmul.f32 %v6509, %v6509
        %v6542 = vmul.f32 %v6510, %v6510
        %v6543 = vmul.f32 %v6511, %v6511
        %v6544 = vmul.f32 %v6512, %v6512
        %v6545 = vmul.f32 %v6513, %v6513
        %v6546 = vmul.f32 %v6514, %v6514
        %v6547 = vmul.f32 %v6515, %v6515
        %v6548 = vmul.f32 %v6516, %v6516
        %v6549 = vmul.f32 %v6517, %v6517
        %v6550 = vmul.f32 %v6518, %v6518
        %v6551 = vmul.f32 %v6519, %v6519
        %v6552 = vmul.f32 %v6520, %v6520
        %v6553 = vmul.f32 %v6521, %v6521
        %v6554 = vmul.f32 %v6522, %v6522
        %v6555 = vmul.f32 %v6523, %v6523
        %v6556 = vmul.f32 %v6524, %v6524
        %v6557 = vmul.f32 %v6525, %v6525
        %v6558 = vmul.f32 %v6526, %v6526
        %v6559 = vmul.f32 %v6527, %v6527
        %v6560 = vmul.f32 %v6528, %v6528
        %v6561 = vmul.f32 %v6529, %v6529
        %v6562 = vmul.f32 %v6530, %v6530
        %v6563 = vmul.f32 %v6531, %v6531
        %v6564 = vmul.f32 %v6532, %v6532
        %v6565 = vmul.f32 %v6533, %v6533
        %v6566 = vmul.f32 %v6534, %v6534
        %v6567 = vsel %vm1236, %v6535, 0.0
        %6568 = vadd.xlane.f32.xlu0 %v6567
        %v6569 = vpop.xlane.xlu0 %6568
        %v6570 = vsel %vm1236, %v6536, 0.0
        %6571 = vadd.xlane.f32.xlu0 %v6570
        %v6572 = vpop.xlane.xlu0 %6571
        %v6573 = vsel %vm1236, %v6537, 0.0
        %6574 = vadd.xlane.f32.xlu0 %v6573
        %v6575 = vpop.xlane.xlu0 %6574
        %v6576 = vsel %vm1236, %v6538, 0.0
        %6577 = vadd.xlane.f32.xlu0 %v6576
        %v6578 = vpop.xlane.xlu0 %6577
        %v6579 = vsel %vm1236, %v6539, 0.0
        %6580 = vadd.xlane.f32.xlu0 %v6579
        %v6581 = vpop.xlane.xlu0 %6580
        %v6582 = vsel %vm1236, %v6540, 0.0
        %6583 = vadd.xlane.f32.xlu0 %v6582
        %v6584 = vpop.xlane.xlu0 %6583
        %v6585 = vsel %vm1236, %v6541, 0.0
        %6586 = vadd.xlane.f32.xlu0 %v6585
        %v6587 = vpop.xlane.xlu0 %6586
        %v6588 = vsel %vm1236, %v6542, 0.0
        %6589 = vadd.xlane.f32.xlu0 %v6588
        %v6590 = vpop.xlane.xlu0 %6589
        %v6591 = vsel %vm1236, %v6543, 0.0
        %6592 = vadd.xlane.f32.xlu0 %v6591
        %v6593 = vpop.xlane.xlu0 %6592
        %v6594 = vsel %vm1236, %v6544, 0.0
        %6595 = vadd.xlane.f32.xlu0 %v6594
        %v6596 = vpop.xlane.xlu0 %6595
        %v6597 = vsel %vm1236, %v6545, 0.0
        %6598 = vadd.xlane.f32.xlu0 %v6597
        %v6599 = vpop.xlane.xlu0 %6598
        %v6600 = vsel %vm1236, %v6546, 0.0
        %6601 = vadd.xlane.f32.xlu0 %v6600
        %v6602 = vpop.xlane.xlu0 %6601
        %v6603 = vsel %vm1236, %v6547, 0.0
        %6604 = vadd.xlane.f32.xlu0 %v6603
        %v6605 = vpop.xlane.xlu0 %6604
        %v6606 = vsel %vm1236, %v6548, 0.0
        %6607 = vadd.xlane.f32.xlu0 %v6606
        %v6608 = vpop.xlane.xlu0 %6607
        %v6609 = vsel %vm1236, %v6549, 0.0
        %6610 = vadd.xlane.f32.xlu0 %v6609
        %v6611 = vpop.xlane.xlu0 %6610
        %v6612 = vsel %vm1236, %v6550, 0.0
        %6613 = vadd.xlane.f32.xlu0 %v6612
        %v6614 = vpop.xlane.xlu0 %6613
        %v6615 = vsel %vm1236, %v6551, 0.0
        %6616 = vadd.xlane.f32.xlu0 %v6615
        %v6617 = vpop.xlane.xlu0 %6616
        %v6618 = vsel %vm1236, %v6552, 0.0
        %6619 = vadd.xlane.f32.xlu0 %v6618
        %v6620 = vpop.xlane.xlu0 %6619
        %v6621 = vsel %vm1236, %v6553, 0.0
        %6622 = vadd.xlane.f32.xlu0 %v6621
        %v6623 = vpop.xlane.xlu0 %6622
        %v6624 = vsel %vm1236, %v6554, 0.0
        %6625 = vadd.xlane.f32.xlu0 %v6624
        %v6626 = vpop.xlane.xlu0 %6625
        %v6627 = vsel %vm1236, %v6555, 0.0
        %6628 = vadd.xlane.f32.xlu0 %v6627
        %v6629 = vpop.xlane.xlu0 %6628
        %v6630 = vsel %vm1236, %v6556, 0.0
        %6631 = vadd.xlane.f32.xlu0 %v6630
        %v6632 = vpop.xlane.xlu0 %6631
        %v6633 = vsel %vm1236, %v6557, 0.0
        %6634 = vadd.xlane.f32.xlu0 %v6633
        %v6635 = vpop.xlane.xlu0 %6634
        %v6636 = vsel %vm1236, %v6558, 0.0
        %6637 = vadd.xlane.f32.xlu0 %v6636
        %v6638 = vpop.xlane.xlu0 %6637
        %v6639 = vsel %vm1236, %v6559, 0.0
        %6640 = vadd.xlane.f32.xlu0 %v6639
        %v6641 = vpop.xlane.xlu0 %6640
        %v6642 = vsel %vm1236, %v6560, 0.0
        %6643 = vadd.xlane.f32.xlu0 %v6642
        %v6644 = vpop.xlane.xlu0 %6643
        %v6645 = vsel %vm1236, %v6561, 0.0
        %6646 = vadd.xlane.f32.xlu0 %v6645
        %v6647 = vpop.xlane.xlu0 %6646
        %v6648 = vsel %vm1236, %v6562, 0.0
        %6649 = vadd.xlane.f32.xlu0 %v6648
        %v6650 = vpop.xlane.xlu0 %6649
        %v6651 = vsel %vm1236, %v6563, 0.0
        %6652 = vadd.xlane.f32.xlu0 %v6651
        %v6653 = vpop.xlane.xlu0 %6652
        %v6654 = vsel %vm1236, %v6564, 0.0
        %6655 = vadd.xlane.f32.xlu0 %v6654
        %v6656 = vpop.xlane.xlu0 %6655
        %v6657 = vsel %vm1236, %v6565, 0.0
        %6658 = vadd.xlane.f32.xlu0 %v6657
        %v6659 = vpop.xlane.xlu0 %6658
        %v6660 = vsel %vm1236, %v6566, 0.0
        %6661 = vadd.xlane.f32.xlu0 %v6660
        %v6662 = vpop.xlane.xlu0 %6661
        %v6663 = vmul.f32 %v6569, %v1333
        %v6664 = vmul.f32 %v6572, %v1333
        %v6665 = vmul.f32 %v6575, %v1333
        %v6666 = vmul.f32 %v6578, %v1333
        %v6667 = vmul.f32 %v6581, %v1333
        %v6668 = vmul.f32 %v6584, %v1333
        %v6669 = vmul.f32 %v6587, %v1333
        %v6670 = vmul.f32 %v6590, %v1333
        %v6671 = vmul.f32 %v6593, %v1333
        %v6672 = vmul.f32 %v6596, %v1333
        %v6673 = vmul.f32 %v6599, %v1333
        %v6674 = vmul.f32 %v6602, %v1333
        %v6675 = vmul.f32 %v6605, %v1333
        %v6676 = vmul.f32 %v6608, %v1333
        %v6677 = vmul.f32 %v6611, %v1333
        %v6678 = vmul.f32 %v6614, %v1333
        %v6679 = vmul.f32 %v6617, %v1333
        %v6680 = vmul.f32 %v6620, %v1333
        %v6681 = vmul.f32 %v6623, %v1333
        %v6682 = vmul.f32 %v6626, %v1333
        %v6683 = vmul.f32 %v6629, %v1333
        %v6684 = vmul.f32 %v6632, %v1333
        %v6685 = vmul.f32 %v6635, %v1333
        %v6686 = vmul.f32 %v6638, %v1333
        %v6687 = vmul.f32 %v6641, %v1333
        %v6688 = vmul.f32 %v6644, %v1333
        %v6689 = vmul.f32 %v6647, %v1333
        %v6690 = vmul.f32 %v6650, %v1333
        %v6691 = vmul.f32 %v6653, %v1333
        %v6692 = vmul.f32 %v6656, %v1333
        %v6693 = vmul.f32 %v6659, %v1333
        %v6694 = vmul.f32 %v6662, %v1333
        %v6695 = vadd.f32 %v6663, 1e-05
        %v6696 = vadd.f32 %v6664, 1e-05
        %v6697 = vadd.f32 %v6665, 1e-05
        %v6698 = vadd.f32 %v6666, 1e-05
        %v6699 = vadd.f32 %v6667, 1e-05
        %v6700 = vadd.f32 %v6668, 1e-05
        %v6701 = vadd.f32 %v6669, 1e-05
        %v6702 = vadd.f32 %v6670, 1e-05
        %v6703 = vadd.f32 %v6671, 1e-05
        %v6704 = vadd.f32 %v6672, 1e-05
        %v6705 = vadd.f32 %v6673, 1e-05
        %v6706 = vadd.f32 %v6674, 1e-05
        %v6707 = vadd.f32 %v6675, 1e-05
        %v6708 = vadd.f32 %v6676, 1e-05
        %v6709 = vadd.f32 %v6677, 1e-05
        %v6710 = vadd.f32 %v6678, 1e-05
        %v6711 = vadd.f32 %v6679, 1e-05
        %v6712 = vadd.f32 %v6680, 1e-05
        %v6713 = vadd.f32 %v6681, 1e-05
        %v6714 = vadd.f32 %v6682, 1e-05
        %v6715 = vadd.f32 %v6683, 1e-05
        %v6716 = vadd.f32 %v6684, 1e-05
        %v6717 = vadd.f32 %v6685, 1e-05
        %v6718 = vadd.f32 %v6686, 1e-05
        %v6719 = vadd.f32 %v6687, 1e-05
        %v6720 = vadd.f32 %v6688, 1e-05
        %v6721 = vadd.f32 %v6689, 1e-05
        %v6722 = vadd.f32 %v6690, 1e-05
        %v6723 = vadd.f32 %v6691, 1e-05
        %v6724 = vadd.f32 %v6692, 1e-05
        %v6725 = vadd.f32 %v6693, 1e-05
        %v6726 = vadd.f32 %v6694, 1e-05
        %v6727 = vrsqrt.pop %v6695
        %v6728 = vrsqrt.pop %v6696
        %v6729 = vrsqrt.pop %v6697
        %v6730 = vrsqrt.pop %v6698
        %v6731 = vrsqrt.pop %v6699
        %v6732 = vrsqrt.pop %v6700
        %v6733 = vrsqrt.pop %v6701
        %v6734 = vrsqrt.pop %v6702
        %v6735 = vrsqrt.pop %v6703
        %v6736 = vrsqrt.pop %v6704
        %v6737 = vrsqrt.pop %v6705
        %v6738 = vrsqrt.pop %v6706
        %v6739 = vrsqrt.pop %v6707
        %v6740 = vrsqrt.pop %v6708
        %v6741 = vrsqrt.pop %v6709
        %v6742 = vrsqrt.pop %v6710
        %v6743 = vrsqrt.pop %v6711
        %v6744 = vrsqrt.pop %v6712
        %v6745 = vrsqrt.pop %v6713
        %v6746 = vrsqrt.pop %v6714
        %v6747 = vrsqrt.pop %v6715
        %v6748 = vrsqrt.pop %v6716
        %v6749 = vrsqrt.pop %v6717
        %v6750 = vrsqrt.pop %v6718
        %v6751 = vrsqrt.pop %v6719
        %v6752 = vrsqrt.pop %v6720
        %v6753 = vrsqrt.pop %v6721
        %v6754 = vrsqrt.pop %v6722
        %v6755 = vrsqrt.pop %v6723
        %v6756 = vrsqrt.pop %v6724
        %v6757 = vrsqrt.pop %v6725
        %v6758 = vrsqrt.pop %v6726
        %v6759 = vmul.f32 %v6503, %v6727
        %v6760 = vmul.f32 %v6504, %v6728
        %v6761 = vmul.f32 %v6505, %v6729
        %v6762 = vmul.f32 %v6506, %v6730
        %v6763 = vmul.f32 %v6507, %v6731
        %v6764 = vmul.f32 %v6508, %v6732
        %v6765 = vmul.f32 %v6509, %v6733
        %v6766 = vmul.f32 %v6510, %v6734
        %v6767 = vmul.f32 %v6511, %v6735
        %v6768 = vmul.f32 %v6512, %v6736
        %v6769 = vmul.f32 %v6513, %v6737
        %v6770 = vmul.f32 %v6514, %v6738
        %v6771 = vmul.f32 %v6515, %v6739
        %v6772 = vmul.f32 %v6516, %v6740
        %v6773 = vmul.f32 %v6517, %v6741
        %v6774 = vmul.f32 %v6518, %v6742
        %v6775 = vmul.f32 %v6519, %v6743
        %v6776 = vmul.f32 %v6520, %v6744
        %v6777 = vmul.f32 %v6521, %v6745
        %v6778 = vmul.f32 %v6522, %v6746
        %v6779 = vmul.f32 %v6523, %v6747
        %v6780 = vmul.f32 %v6524, %v6748
        %v6781 = vmul.f32 %v6525, %v6749
        %v6782 = vmul.f32 %v6526, %v6750
        %v6783 = vmul.f32 %v6527, %v6751
        %v6784 = vmul.f32 %v6528, %v6752
        %v6785 = vmul.f32 %v6529, %v6753
        %v6786 = vmul.f32 %v6530, %v6754
        %v6787 = vmul.f32 %v6531, %v6755
        %v6788 = vmul.f32 %v6532, %v6756
        %v6789 = vmul.f32 %v6533, %v6757
        %v6790 = vmul.f32 %v6534, %v6758
        %v6792 = vlaneseq
        %v6793 = vshrl.u32 %v6792, 7
        %v6794 = vsub.s32 0, %v6793
        %v6795 = vrot.slane %v6373, %v6794
        %v6797 = vmul.f32 %v6759, %v6795
        %v6798 = vmul.f32 %v6760, %v6795
        %v6799 = vmul.f32 %v6761, %v6795
        %v6800 = vmul.f32 %v6762, %v6795
        %v6801 = vmul.f32 %v6763, %v6795
        %v6802 = vmul.f32 %v6764, %v6795
        %v6803 = vmul.f32 %v6765, %v6795
        %v6804 = vmul.f32 %v6766, %v6795
        %v6805 = vmul.f32 %v6767, %v6795
        %v6806 = vmul.f32 %v6768, %v6795
        %v6807 = vmul.f32 %v6769, %v6795
        %v6808 = vmul.f32 %v6770, %v6795
        %v6809 = vmul.f32 %v6771, %v6795
        %v6810 = vmul.f32 %v6772, %v6795
        %v6811 = vmul.f32 %v6773, %v6795
        %v6812 = vmul.f32 %v6774, %v6795
        %v6813 = vmul.f32 %v6775, %v6795
        %v6814 = vmul.f32 %v6776, %v6795
        %v6815 = vmul.f32 %v6777, %v6795
        %v6816 = vmul.f32 %v6778, %v6795
        %v6817 = vmul.f32 %v6779, %v6795
        %v6818 = vmul.f32 %v6780, %v6795
        %v6819 = vmul.f32 %v6781, %v6795
        %v6820 = vmul.f32 %v6782, %v6795
        %v6821 = vmul.f32 %v6783, %v6795
        %v6822 = vmul.f32 %v6784, %v6795
        %v6823 = vmul.f32 %v6785, %v6795
        %v6824 = vmul.f32 %v6786, %v6795
        %v6825 = vmul.f32 %v6787, %v6795
        %v6826 = vmul.f32 %v6788, %v6795
        %v6827 = vmul.f32 %v6789, %v6795
        %v6828 = vmul.f32 %v6790, %v6795
        %v6830 = vlaneseq
        %v6831 = vshrl.u32 %v6830, 7
        %v6832 = vsub.s32 0, %v6831
        %v6833 = vrot.slane %v6374, %v6832
        %v6835 = vadd.f32 %v6797, %v6833
        %v6836 = vadd.f32 %v6798, %v6833
        %v6837 = vadd.f32 %v6799, %v6833
        %v6838 = vadd.f32 %v6800, %v6833
        %v6839 = vadd.f32 %v6801, %v6833
        %v6840 = vadd.f32 %v6802, %v6833
        %v6841 = vadd.f32 %v6803, %v6833
        %v6842 = vadd.f32 %v6804, %v6833
        %v6843 = vadd.f32 %v6805, %v6833
        %v6844 = vadd.f32 %v6806, %v6833
        %v6845 = vadd.f32 %v6807, %v6833
        %v6846 = vadd.f32 %v6808, %v6833
        %v6847 = vadd.f32 %v6809, %v6833
        %v6848 = vadd.f32 %v6810, %v6833
        %v6849 = vadd.f32 %v6811, %v6833
        %v6850 = vadd.f32 %v6812, %v6833
        %v6851 = vadd.f32 %v6813, %v6833
        %v6852 = vadd.f32 %v6814, %v6833
        %v6853 = vadd.f32 %v6815, %v6833
        %v6854 = vadd.f32 %v6816, %v6833
        %v6855 = vadd.f32 %v6817, %v6833
        %v6856 = vadd.f32 %v6818, %v6833
        %v6857 = vadd.f32 %v6819, %v6833
        %v6858 = vadd.f32 %v6820, %v6833
        %v6859 = vadd.f32 %v6821, %v6833
        %v6860 = vadd.f32 %v6822, %v6833
        %v6861 = vadd.f32 %v6823, %v6833
        %v6862 = vadd.f32 %v6824, %v6833
        %v6863 = vadd.f32 %v6825, %v6833
        %v6864 = vadd.f32 %v6826, %v6833
        %v6865 = vadd.f32 %v6827, %v6833
        %v6866 = vadd.f32 %v6828, %v6833
        %v6867 = vpack.c.bf16 %v6836, %v6835
        %v6868 = vpack.c.bf16 %v6838, %v6837
        %v6869 = vpack.c.bf16 %v6840, %v6839
        %v6870 = vpack.c.bf16 %v6842, %v6841
        %v6871 = vpack.c.bf16 %v6844, %v6843
        %v6872 = vpack.c.bf16 %v6846, %v6845
        %v6873 = vpack.c.bf16 %v6848, %v6847
        %v6874 = vpack.c.bf16 %v6850, %v6849
        %v6875 = vpack.c.bf16 %v6852, %v6851
        %v6876 = vpack.c.bf16 %v6854, %v6853
        %v6877 = vpack.c.bf16 %v6856, %v6855
        %v6878 = vpack.c.bf16 %v6858, %v6857
        %v6879 = vpack.c.bf16 %v6860, %v6859
        %v6880 = vpack.c.bf16 %v6862, %v6861
        %v6881 = vpack.c.bf16 %v6864, %v6863
        %v6882 = vpack.c.bf16 %v6866, %v6865
        %v6883 = vld [vmem:[%s914] sm:$0xf]
        %v6884 = vld [vmem:[%s914 + $0x4] sm:$0xf]
        %v6885 = vld [vmem:[%s914 + $0x8] sm:$0xf]
        %v6886 = vld [vmem:[%s914 + $0xc] sm:$0xf]
        %v6887 = vld [vmem:[%s922] sm:$0x1]
        %v6889 = vlaneseq
        %v6890 = vshrl.u32 %v6889, 7
        %v6891 = vsub.s32 0, %v6890
        %v6892 = vrot.slane %v6887, %v6891
        %v6898 = vunpack.c.l.b16 %v6883
        %v6899 = vunpack.c.l.b16 %v6884
        %v6900 = vunpack.c.l.b16 %v6885
        %v6901 = vunpack.c.l.b16 %v6886
        %v6902 = vpack.c.b16 %v6899, %v6898
        %v6903 = vpack.c.b16 %v6901, %v6900
        %v6907 = vsel %vm1236, %v6867, 0
        %v6910 = vsel %vm1236, %v6868, 0
        %v6913 = vsel %vm1236, %v6869, 0
        %v6916 = vsel %vm1236, %v6870, 0
        %v6919 = vsel %vm1236, %v6871, 0
        %v6922 = vsel %vm1236, %v6872, 0
        %v6925 = vsel %vm1236, %v6873, 0
        %v6928 = vsel %vm1236, %v6874, 0
        %v6931 = vsel %vm1236, %v6875, 0
        %v6934 = vsel %vm1236, %v6876, 0
        %v6937 = vsel %vm1236, %v6877, 0
        %v6940 = vsel %vm1236, %v6878, 0
        %v6943 = vsel %vm1236, %v6879, 0
        %v6946 = vsel %vm1236, %v6880, 0
        %v6949 = vsel %vm1236, %v6881, 0
        %v6952 = vsel %vm1236, %v6882, 0
        %6954 = vmatprep.subr.bf16.mxu0 0
        %6955 = vmatpush1.bf16.msra.mxu0 %v6902
        %6956 = vmatprep.subr.bf16.mxu0 0
        %6957 = vmatpush1.bf16.msra.mxu0 %v6903
        %6958 = vmatprep.subr.bf16.mxu0 0
        %6959 = vmatpush1.bf16.msra.mxu0 0
        %6960 = vmatprep.subr.bf16.mxu0 0
        %6961 = vmatpush1.bf16.msra.mxu0 0
        %6962 = vmatprep.subr.bf16.mxu0 0
        %6963 = vmatpush1.bf16.msra.mxu0 0
        %6964 = vmatprep.subr.bf16.mxu0 0
        %6965 = vmatpush1.bf16.msra.mxu0 0
        %6966 = vmatprep.subr.bf16.mxu0 0
        %6967 = vmatpush1.bf16.msra.mxu0 0
        %6968 = vmatprep.subr.bf16.mxu0 0
        %6969 = vmatpush1.bf16.msra.mxu0 0
        %6970 = vmatprep.subr.bf16.mxu0 0
        %6971 = vmatpush1.bf16.msra.mxu0 0
        %6972 = vmatprep.subr.bf16.mxu0 0
        %6973 = vmatpush1.bf16.msra.mxu0 0
        %6974 = vmatprep.subr.bf16.mxu0 0
        %6975 = vmatpush1.bf16.msra.mxu0 0
        %6976 = vmatprep.subr.bf16.mxu0 0
        %6977 = vmatpush1.bf16.msra.mxu0 0
        %6978 = vmatprep.subr.bf16.mxu0 0
        %6979 = vmatpush1.bf16.msra.mxu0 0
        %6980 = vmatprep.subr.bf16.mxu0 0
        %6981 = vmatpush1.bf16.msra.mxu0 0
        %6982 = vmatprep.subr.bf16.mxu0 0
        %6983 = vmatpush1.bf16.msra.mxu0 0
        %6984 = vmatprep.subr.bf16.mxu0 0
        %6985 = vmatpush1.bf16.msra.mxu0 0
        %6986 = vmatprep.mubr.bf16.mxu0 0
        %6987 = vmatmul.mubr.bf16.gmra.mrb[0].mxu0 %v6907
        %v6988 = vpop.f32.mrb[0].mxu0
        %v6989 = vadd.f32 %v6892, %v6988
        %v6990 = vpop.f32.mrb[0].mxu0
        %v6991 = vpop.f32.mrb[0].mxu0
        %v6992 = vadd.f32 %v6892, %v6991
        %v6993 = vpop.f32.mrb[0].mxu0
        %6994 = vmatprep.mubr.bf16.mxu0 0
        %6995 = vmatmul.mubr.bf16.gmra.mrb[0].mxu0 %v6910
        %v6996 = vpop.f32.mrb[0].mxu0
        %v6997 = vadd.f32 %v6892, %v6996
        %v6998 = vpop.f32.mrb[0].mxu0
        %v6999 = vpop.f32.mrb[0].mxu0
        %v7000 = vadd.f32 %v6892, %v6999
        %v7001 = vpop.f32.mrb[0].mxu0
        %7002 = vmatprep.mubr.bf16.mxu0 0
        %7003 = vmatmul.mubr.bf16.gmra.mrb[0].mxu0 %v6913
        %v7004 = vpop.f32.mrb[0].mxu0
        %v7005 = vadd.f32 %v6892, %v7004
        %v7006 = vpop.f32.mrb[0].mxu0
        %v7007 = vpop.f32.mrb[0].mxu0
        %v7008 = vadd.f32 %v6892, %v7007
        %v7009 = vpop.f32.mrb[0].mxu0
        %7010 = vmatprep.mubr.bf16.mxu0 0
        %7011 = vmatmul.mubr.bf16.gmra.mrb[0].mxu0 %v6916
        %v7012 = vpop.f32.mrb[0].mxu0
        %v7013 = vadd.f32 %v6892, %v7012
        %v7014 = vpop.f32.mrb[0].mxu0
        %v7015 = vpop.f32.mrb[0].mxu0
        %v7016 = vadd.f32 %v6892, %v7015
        %v7017 = vpop.f32.mrb[0].mxu0
        %7018 = vmatprep.mubr.bf16.mxu0 0
        %7019 = vmatmul.mubr.bf16.gmra.mrb[0].mxu0 %v6919
        %v7020 = vpop.f32.mrb[0].mxu0
        %v7021 = vadd.f32 %v6892, %v7020
        %v7022 = vpop.f32.mrb[0].mxu0
        %v7023 = vpop.f32.mrb[0].mxu0
        %v7024 = vadd.f32 %v6892, %v7023
        %v7025 = vpop.f32.mrb[0].mxu0
        %7026 = vmatprep.mubr.bf16.mxu0 0
        %7027 = vmatmul.mubr.bf16.gmra.mrb[0].mxu0 %v6922
        %v7028 = vpop.f32.mrb[0].mxu0
        %v7029 = vadd.f32 %v6892, %v7028
        %v7030 = vpop.f32.mrb[0].mxu0
        %v7031 = vpop.f32.mrb[0].mxu0
        %v7032 = vadd.f32 %v6892, %v7031
        %v7033 = vpop.f32.mrb[0].mxu0
        %7034 = vmatprep.mubr.bf16.mxu0 0
        %7035 = vmatmul.mubr.bf16.gmra.mrb[0].mxu0 %v6925
        %v7036 = vpop.f32.mrb[0].mxu0
        %v7037 = vadd.f32 %v6892, %v7036
        %v7038 = vpop.f32.mrb[0].mxu0
        %v7039 = vpop.f32.mrb[0].mxu0
        %v7040 = vadd.f32 %v6892, %v7039
        %v7041 = vpop.f32.mrb[0].mxu0
        %7042 = vmatprep.mubr.bf16.mxu0 0
        %7043 = vmatmul.mubr.bf16.gmra.mrb[0].mxu0 %v6928
        %v7044 = vpop.f32.mrb[0].mxu0
        %v7045 = vadd.f32 %v6892, %v7044
        %v7046 = vpop.f32.mrb[0].mxu0
        %v7047 = vpop.f32.mrb[0].mxu0
        %v7048 = vadd.f32 %v6892, %v7047
        %v7049 = vpop.f32.mrb[0].mxu0
        %7050 = vmatprep.mubr.bf16.mxu0 0
        %7051 = vmatmul.mubr.bf16.gmra.mrb[0].mxu0 %v6931
        %v7052 = vpop.f32.mrb[0].mxu0
        %v7053 = vadd.f32 %v6892, %v7052
        %v7054 = vpop.f32.mrb[0].mxu0
        %v7055 = vpop.f32.mrb[0].mxu0
        %v7056 = vadd.f32 %v6892, %v7055
        %v7057 = vpop.f32.mrb[0].mxu0
        %7058 = vmatprep.mubr.bf16.mxu0 0
        %7059 = vmatmul.mubr.bf16.gmra.mrb[0].mxu0 %v6934
        %v7060 = vpop.f32.mrb[0].mxu0
        %v7061 = vadd.f32 %v6892, %v7060
        %v7062 = vpop.f32.mrb[0].mxu0
        %v7063 = vpop.f32.mrb[0].mxu0
        %v7064 = vadd.f32 %v6892, %v7063
        %v7065 = vpop.f32.mrb[0].mxu0
        %7066 = vmatprep.mubr.bf16.mxu0 0
        %7067 = vmatmul.mubr.bf16.gmra.mrb[0].mxu0 %v6937
        %v7068 = vpop.f32.mrb[0].mxu0
        %v7069 = vadd.f32 %v6892, %v7068
        %v7070 = vpop.f32.mrb[0].mxu0
        %v7071 = vpop.f32.mrb[0].mxu0
        %v7072 = vadd.f32 %v6892, %v7071
        %v7073 = vpop.f32.mrb[0].mxu0
        %7074 = vmatprep.mubr.bf16.mxu0 0
        %7075 = vmatmul.mubr.bf16.gmra.mrb[0].mxu0 %v6940
        %v7076 = vpop.f32.mrb[0].mxu0
        %v7077 = vadd.f32 %v6892, %v7076
        %v7078 = vpop.f32.mrb[0].mxu0
        %v7079 = vpop.f32.mrb[0].mxu0
        %v7080 = vadd.f32 %v6892, %v7079
        %v7081 = vpop.f32.mrb[0].mxu0
        %7082 = vmatprep.mubr.bf16.mxu0 0
        %7083 = vmatmul.mubr.bf16.gmra.mrb[0].mxu0 %v6943
        %v7084 = vpop.f32.mrb[0].mxu0
        %v7085 = vadd.f32 %v6892, %v7084
        %v7086 = vpop.f32.mrb[0].mxu0
        %v7087 = vpop.f32.mrb[0].mxu0
        %v7088 = vadd.f32 %v6892, %v7087
        %v7089 = vpop.f32.mrb[0].mxu0
        %7090 = vmatprep.mubr.bf16.mxu0 0
        %7091 = vmatmul.mubr.bf16.gmra.mrb[0].mxu0 %v6946
        %v7092 = vpop.f32.mrb[0].mxu0
        %v7093 = vadd.f32 %v6892, %v7092
        %v7094 = vpop.f32.mrb[0].mxu0
        %v7095 = vpop.f32.mrb[0].mxu0
        %v7096 = vadd.f32 %v6892, %v7095
        %v7097 = vpop.f32.mrb[0].mxu0
        %7098 = vmatprep.mubr.bf16.mxu0 0
        %7099 = vmatmul.mubr.bf16.gmra.mrb[0].mxu0 %v6949
        %v7100 = vpop.f32.mrb[0].mxu0
        %v7101 = vadd.f32 %v6892, %v7100
        %v7102 = vpop.f32.mrb[0].mxu0
        %v7103 = vpop.f32.mrb[0].mxu0
        %v7104 = vadd.f32 %v6892, %v7103
        %v7105 = vpop.f32.mrb[0].mxu0
        %7106 = vmatprep.mubr.bf16.mxu0 0
        %7107 = vmatmul.mubr.bf16.gmra.mrb[0].mxu0 %v6952
        %v7108 = vpop.f32.mrb[0].mxu0
        %v7109 = vadd.f32 %v6892, %v7108
        %v7110 = vpop.f32.mrb[0].mxu0
        %v7111 = vpop.f32.mrb[0].mxu0
        %v7112 = vadd.f32 %v6892, %v7111
        %v7113 = vpop.f32.mrb[0].mxu0
        %7114 = vdwg.mxu0
        %v7115 = vmul.f32 %v6989, 1.702
        %v7116 = vmul.f32 %v6992, 1.702
        %v7117 = vmul.f32 %v6997, 1.702
        %v7118 = vmul.f32 %v7000, 1.702
        %v7119 = vmul.f32 %v7005, 1.702
        %v7120 = vmul.f32 %v7008, 1.702
        %v7121 = vmul.f32 %v7013, 1.702
        %v7122 = vmul.f32 %v7016, 1.702
        %v7123 = vmul.f32 %v7021, 1.702
        %v7124 = vmul.f32 %v7024, 1.702
        %v7125 = vmul.f32 %v7029, 1.702
        %v7126 = vmul.f32 %v7032, 1.702
        %v7127 = vmul.f32 %v7037, 1.702
        %v7128 = vmul.f32 %v7040, 1.702
        %v7129 = vmul.f32 %v7045, 1.702
        %v7130 = vmul.f32 %v7048, 1.702
        %v7131 = vmul.f32 %v7053, 1.702
        %v7132 = vmul.f32 %v7056, 1.702
        %v7133 = vmul.f32 %v7061, 1.702
        %v7134 = vmul.f32 %v7064, 1.702
        %v7135 = vmul.f32 %v7069, 1.702
        %v7136 = vmul.f32 %v7072, 1.702
        %v7137 = vmul.f32 %v7077, 1.702
        %v7138 = vmul.f32 %v7080, 1.702
        %v7139 = vmul.f32 %v7085, 1.702
        %v7140 = vmul.f32 %v7088, 1.702
        %v7141 = vmul.f32 %v7093, 1.702
        %v7142 = vmul.f32 %v7096, 1.702
        %v7143 = vmul.f32 %v7101, 1.702
        %v7144 = vmul.f32 %v7104, 1.702
        %v7145 = vmul.f32 %v7109, 1.702
        %v7146 = vmul.f32 %v7112, 1.702
        %v7147 = vxor.u32 %v7115, 2147483648
        %v7148 = vxor.u32 %v7116, 2147483648
        %v7149 = vxor.u32 %v7117, 2147483648
        %v7150 = vxor.u32 %v7118, 2147483648
        %v7151 = vxor.u32 %v7119, 2147483648
        %v7152 = vxor.u32 %v7120, 2147483648
        %v7153 = vxor.u32 %v7121, 2147483648
        %v7154 = vxor.u32 %v7122, 2147483648
        %v7155 = vxor.u32 %v7123, 2147483648
        %v7156 = vxor.u32 %v7124, 2147483648
        %v7157 = vxor.u32 %v7125, 2147483648
        %v7158 = vxor.u32 %v7126, 2147483648
        %v7159 = vxor.u32 %v7127, 2147483648
        %v7160 = vxor.u32 %v7128, 2147483648
        %v7161 = vxor.u32 %v7129, 2147483648
        %v7162 = vxor.u32 %v7130, 2147483648
        %v7163 = vxor.u32 %v7131, 2147483648
        %v7164 = vxor.u32 %v7132, 2147483648
        %v7165 = vxor.u32 %v7133, 2147483648
        %v7166 = vxor.u32 %v7134, 2147483648
        %v7167 = vxor.u32 %v7135, 2147483648
        %v7168 = vxor.u32 %v7136, 2147483648
        %v7169 = vxor.u32 %v7137, 2147483648
        %v7170 = vxor.u32 %v7138, 2147483648
        %v7171 = vxor.u32 %v7139, 2147483648
        %v7172 = vxor.u32 %v7140, 2147483648
        %v7173 = vxor.u32 %v7141, 2147483648
        %v7174 = vxor.u32 %v7142, 2147483648
        %v7175 = vxor.u32 %v7143, 2147483648
        %v7176 = vxor.u32 %v7144, 2147483648
        %v7177 = vxor.u32 %v7145, 2147483648
        %v7178 = vxor.u32 %v7146, 2147483648
        %v7179 = vmul.f32 %v7147, 1.442695
        %v7180 = vpow.pop %v7179
        %v7181 = vmul.f32 %v7148, 1.442695
        %v7182 = vpow.pop %v7181
        %v7183 = vmul.f32 %v7149, 1.442695
        %v7184 = vpow.pop %v7183
        %v7185 = vmul.f32 %v7150, 1.442695
        %v7186 = vpow.pop %v7185
        %v7187 = vmul.f32 %v7151, 1.442695
        %v7188 = vpow.pop %v7187
        %v7189 = vmul.f32 %v7152, 1.442695
        %v7190 = vpow.pop %v7189
        %v7191 = vmul.f32 %v7153, 1.442695
        %v7192 = vpow.pop %v7191
        %v7193 = vmul.f32 %v7154, 1.442695
        %v7194 = vpow.pop %v7193
        %v7195 = vmul.f32 %v7155, 1.442695
        %v7196 = vpow.pop %v7195
        %v7197 = vmul.f32 %v7156, 1.442695
        %v7198 = vpow.pop %v7197
        %v7199 = vmul.f32 %v7157, 1.442695
        %v7200 = vpow.pop %v7199
        %v7201 = vmul.f32 %v7158, 1.442695
        %v7202 = vpow.pop %v7201
        %v7203 = vmul.f32 %v7159, 1.442695
        %v7204 = vpow.pop %v7203
        %v7205 = vmul.f32 %v7160, 1.442695
        %v7206 = vpow.pop %v7205
        %v7207 = vmul.f32 %v7161, 1.442695
        %v7208 = vpow.pop %v7207
        %v7209 = vmul.f32 %v7162, 1.442695
        %v7210 = vpow.pop %v7209
        %v7211 = vmul.f32 %v7163, 1.442695
        %v7212 = vpow.pop %v7211
        %v7213 = vmul.f32 %v7164, 1.442695
        %v7214 = vpow.pop %v7213
        %v7215 = vmul.f32 %v7165, 1.442695
        %v7216 = vpow.pop %v7215
        %v7217 = vmul.f32 %v7166, 1.442695
        %v7218 = vpow.pop %v7217
        %v7219 = vmul.f32 %v7167, 1.442695
        %v7220 = vpow.pop %v7219
        %v7221 = vmul.f32 %v7168, 1.442695
        %v7222 = vpow.pop %v7221
        %v7223 = vmul.f32 %v7169, 1.442695
        %v7224 = vpow.pop %v7223
        %v7225 = vmul.f32 %v7170, 1.442695
        %v7226 = vpow.pop %v7225
        %v7227 = vmul.f32 %v7171, 1.442695
        %v7228 = vpow.pop %v7227
        %v7229 = vmul.f32 %v7172, 1.442695
        %v7230 = vpow.pop %v7229
        %v7231 = vmul.f32 %v7173, 1.442695
        %v7232 = vpow.pop %v7231
        %v7233 = vmul.f32 %v7174, 1.442695
        %v7234 = vpow.pop %v7233
        %v7235 = vmul.f32 %v7175, 1.442695
        %v7236 = vpow.pop %v7235
        %v7237 = vmul.f32 %v7176, 1.442695
        %v7238 = vpow.pop %v7237
        %v7239 = vmul.f32 %v7177, 1.442695
        %v7240 = vpow.pop %v7239
        %v7241 = vmul.f32 %v7178, 1.442695
        %v7242 = vpow.pop %v7241
        %v7243 = vadd.f32 %v7180, 1.0
        %v7244 = vadd.f32 %v7182, 1.0
        %v7245 = vadd.f32 %v7184, 1.0
        %v7246 = vadd.f32 %v7186, 1.0
        %v7247 = vadd.f32 %v7188, 1.0
        %v7248 = vadd.f32 %v7190, 1.0
        %v7249 = vadd.f32 %v7192, 1.0
        %v7250 = vadd.f32 %v7194, 1.0
        %v7251 = vadd.f32 %v7196, 1.0
        %v7252 = vadd.f32 %v7198, 1.0
        %v7253 = vadd.f32 %v7200, 1.0
        %v7254 = vadd.f32 %v7202, 1.0
        %v7255 = vadd.f32 %v7204, 1.0
        %v7256 = vadd.f32 %v7206, 1.0
        %v7257 = vadd.f32 %v7208, 1.0
        %v7258 = vadd.f32 %v7210, 1.0
        %v7259 = vadd.f32 %v7212, 1.0
        %v7260 = vadd.f32 %v7214, 1.0
        %v7261 = vadd.f32 %v7216, 1.0
        %v7262 = vadd.f32 %v7218, 1.0
        %v7263 = vadd.f32 %v7220, 1.0
        %v7264 = vadd.f32 %v7222, 1.0
        %v7265 = vadd.f32 %v7224, 1.0
        %v7266 = vadd.f32 %v7226, 1.0
        %v7267 = vadd.f32 %v7228, 1.0
        %v7268 = vadd.f32 %v7230, 1.0
        %v7269 = vadd.f32 %v7232, 1.0
        %v7270 = vadd.f32 %v7234, 1.0
        %v7271 = vadd.f32 %v7236, 1.0
        %v7272 = vadd.f32 %v7238, 1.0
        %v7273 = vadd.f32 %v7240, 1.0
        %v7274 = vadd.f32 %v7242, 1.0
        %v7275 = vrcp.pop %v7243
        %v7276 = vmul.f32 1.0, %v7275
        %v7277 = vrcp.pop %v7244
        %v7278 = vmul.f32 1.0, %v7277
        %v7279 = vrcp.pop %v7245
        %v7280 = vmul.f32 1.0, %v7279
        %v7281 = vrcp.pop %v7246
        %v7282 = vmul.f32 1.0, %v7281
        %v7283 = vrcp.pop %v7247
        %v7284 = vmul.f32 1.0, %v7283
        %v7285 = vrcp.pop %v7248
        %v7286 = vmul.f32 1.0, %v7285
        %v7287 = vrcp.pop %v7249
        %v7288 = vmul.f32 1.0, %v7287
        %v7289 = vrcp.pop %v7250
        %v7290 = vmul.f32 1.0, %v7289
        %v7291 = vrcp.pop %v7251
        %v7292 = vmul.f32 1.0, %v7291
        %v7293 = vrcp.pop %v7252
        %v7294 = vmul.f32 1.0, %v7293
        %v7295 = vrcp.pop %v7253
        %v7296 = vmul.f32 1.0, %v7295
        %v7297 = vrcp.pop %v7254
        %v7298 = vmul.f32 1.0, %v7297
        %v7299 = vrcp.pop %v7255
        %v7300 = vmul.f32 1.0, %v7299
        %v7301 = vrcp.pop %v7256
        %v7302 = vmul.f32 1.0, %v7301
        %v7303 = vrcp.pop %v7257
        %v7304 = vmul.f32 1.0, %v7303
        %v7305 = vrcp.pop %v7258
        %v7306 = vmul.f32 1.0, %v7305
        %v7307 = vrcp.pop %v7259
        %v7308 = vmul.f32 1.0, %v7307
        %v7309 = vrcp.pop %v7260
        %v7310 = vmul.f32 1.0, %v7309
        %v7311 = vrcp.pop %v7261
        %v7312 = vmul.f32 1.0, %v7311
        %v7313 = vrcp.pop %v7262
        %v7314 = vmul.f32 1.0, %v7313
        %v7315 = vrcp.pop %v7263
        %v7316 = vmul.f32 1.0, %v7315
        %v7317 = vrcp.pop %v7264
        %v7318 = vmul.f32 1.0, %v7317
        %v7319 = vrcp.pop %v7265
        %v7320 = vmul.f32 1.0, %v7319
        %v7321 = vrcp.pop %v7266
        %v7322 = vmul.f32 1.0, %v7321
        %v7323 = vrcp.pop %v7267
        %v7324 = vmul.f32 1.0, %v7323
        %v7325 = vrcp.pop %v7268
        %v7326 = vmul.f32 1.0, %v7325
        %v7327 = vrcp.pop %v7269
        %v7328 = vmul.f32 1.0, %v7327
        %v7329 = vrcp.pop %v7270
        %v7330 = vmul.f32 1.0, %v7329
        %v7331 = vrcp.pop %v7271
        %v7332 = vmul.f32 1.0, %v7331
        %v7333 = vrcp.pop %v7272
        %v7334 = vmul.f32 1.0, %v7333
        %v7335 = vrcp.pop %v7273
        %v7336 = vmul.f32 1.0, %v7335
        %v7337 = vrcp.pop %v7274
        %v7338 = vmul.f32 1.0, %v7337
        %v7339 = vmul.f32 %v6989, %v7276
        %v7340 = vmul.f32 %v6992, %v7278
        %v7341 = vmul.f32 %v6997, %v7280
        %v7342 = vmul.f32 %v7000, %v7282
        %v7343 = vmul.f32 %v7005, %v7284
        %v7344 = vmul.f32 %v7008, %v7286
        %v7345 = vmul.f32 %v7013, %v7288
        %v7346 = vmul.f32 %v7016, %v7290
        %v7347 = vmul.f32 %v7021, %v7292
        %v7348 = vmul.f32 %v7024, %v7294
        %v7349 = vmul.f32 %v7029, %v7296
        %v7350 = vmul.f32 %v7032, %v7298
        %v7351 = vmul.f32 %v7037, %v7300
        %v7352 = vmul.f32 %v7040, %v7302
        %v7353 = vmul.f32 %v7045, %v7304
        %v7354 = vmul.f32 %v7048, %v7306
        %v7355 = vmul.f32 %v7053, %v7308
        %v7356 = vmul.f32 %v7056, %v7310
        %v7357 = vmul.f32 %v7061, %v7312
        %v7358 = vmul.f32 %v7064, %v7314
        %v7359 = vmul.f32 %v7069, %v7316
        %v7360 = vmul.f32 %v7072, %v7318
        %v7361 = vmul.f32 %v7077, %v7320
        %v7362 = vmul.f32 %v7080, %v7322
        %v7363 = vmul.f32 %v7085, %v7324
        %v7364 = vmul.f32 %v7088, %v7326
        %v7365 = vmul.f32 %v7093, %v7328
        %v7366 = vmul.f32 %v7096, %v7330
        %v7367 = vmul.f32 %v7101, %v7332
        %v7368 = vmul.f32 %v7104, %v7334
        %v7369 = vmul.f32 %v7109, %v7336
        %v7370 = vmul.f32 %v7112, %v7338
        %v7371 = vpack.c.bf16 %v7340, %v7339
        %v7372 = vpack.c.bf16 %v7342, %v7341
        %v7373 = vpack.c.bf16 %v7344, %v7343
        %v7374 = vpack.c.bf16 %v7346, %v7345
        %v7375 = vpack.c.bf16 %v7348, %v7347
        %v7376 = vpack.c.bf16 %v7350, %v7349
        %v7377 = vpack.c.bf16 %v7352, %v7351
        %v7378 = vpack.c.bf16 %v7354, %v7353
        %v7379 = vpack.c.bf16 %v7356, %v7355
        %v7380 = vpack.c.bf16 %v7358, %v7357
        %v7381 = vpack.c.bf16 %v7360, %v7359
        %v7382 = vpack.c.bf16 %v7362, %v7361
        %v7383 = vpack.c.bf16 %v7364, %v7363
        %v7384 = vpack.c.bf16 %v7366, %v7365
        %v7385 = vpack.c.bf16 %v7368, %v7367
        %v7386 = vpack.c.bf16 %v7370, %v7369
        %v7387 = vld [vmem:[%s931] sm:$0xf]
        %v7388 = vld [vmem:[%s931 + $0x4] sm:$0xf]
        %v7389 = vld [vmem:[%s931 + $0x8] sm:$0xf]
        %v7390 = vld [vmem:[%s931 + $0xc] sm:$0xf]
        %v7391 = vld [vmem:[%s931 + $0x10] sm:$0xf]
        %v7392 = vld [vmem:[%s931 + $0x14] sm:$0xf]
        %v7393 = vld [vmem:[%s931 + $0x18] sm:$0xf]
        %v7394 = vld [vmem:[%s931 + $0x1c] sm:$0xf]
        %v7395 = vld [vmem:[%s931 + $0x20] sm:$0xf]
        %v7396 = vld [vmem:[%s931 + $0x24] sm:$0xf]
        %v7397 = vld [vmem:[%s931 + $0x28] sm:$0xf]
        %v7398 = vld [vmem:[%s931 + $0x2c] sm:$0xf]
        %v7399 = vld [vmem:[%s931 + $0x30] sm:$0xf]
        %v7400 = vld [vmem:[%s931 + $0x34] sm:$0xf]
        %v7401 = vld [vmem:[%s931 + $0x38] sm:$0xf]
        %v7402 = vld [vmem:[%s931 + $0x3c] sm:$0xf]
        %v7419 = vunpack.c.l.b16 %v7387
        %v7420 = vunpack.c.l.b16 %v7388
        %v7421 = vunpack.c.l.b16 %v7389
        %v7422 = vunpack.c.l.b16 %v7390
        %v7423 = vunpack.c.l.b16 %v7391
        %v7424 = vunpack.c.l.b16 %v7392
        %v7425 = vunpack.c.l.b16 %v7393
        %v7426 = vunpack.c.l.b16 %v7394
        %v7427 = vunpack.c.l.b16 %v7395
        %v7428 = vunpack.c.l.b16 %v7396
        %v7429 = vunpack.c.l.b16 %v7397
        %v7430 = vunpack.c.l.b16 %v7398
        %v7431 = vunpack.c.l.b16 %v7399
        %v7432 = vunpack.c.l.b16 %v7400
        %v7433 = vunpack.c.l.b16 %v7401
        %v7434 = vunpack.c.l.b16 %v7402
        %v7435 = vpack.c.b16 %v7420, %v7419
        %v7436 = vpack.c.b16 %v7422, %v7421
        %v7437 = vpack.c.b16 %v7424, %v7423
        %v7438 = vpack.c.b16 %v7426, %v7425
        %v7439 = vpack.c.b16 %v7428, %v7427
        %v7440 = vpack.c.b16 %v7430, %v7429
        %v7441 = vpack.c.b16 %v7432, %v7431
        %v7442 = vpack.c.b16 %v7434, %v7433
        %7451 = vmatprep.subr.bf16.mxu0 0
        %7452 = vmatpush1.bf16.msra.mxu0 %v7435
        %7453 = vmatprep.subr.bf16.mxu0 0
        %7454 = vmatpush1.bf16.msra.mxu0 %v7436
        %7455 = vmatprep.subr.bf16.mxu0 0
        %7456 = vmatpush1.bf16.msra.mxu0 %v7437
        %7457 = vmatprep.subr.bf16.mxu0 0
        %7458 = vmatpush1.bf16.msra.mxu0 %v7438
        %7459 = vmatprep.subr.bf16.mxu0 0
        %7460 = vmatpush1.bf16.msra.mxu0 %v7439
        %7461 = vmatprep.subr.bf16.mxu0 0
        %7462 = vmatpush1.bf16.msra.mxu0 %v7440
        %7463 = vmatprep.subr.bf16.mxu0 0
        %7464 = vmatpush1.bf16.msra.mxu0 %v7441
        %7465 = vmatprep.subr.bf16.mxu0 0
        %7466 = vmatpush1.bf16.msra.mxu0 %v7442
        %7467 = vmatprep.subr.bf16.mxu0 0
        %7468 = vmatpush1.bf16.msra.mxu0 0
        %7469 = vmatprep.subr.bf16.mxu0 0
        %7470 = vmatpush1.bf16.msra.mxu0 0
        %7471 = vmatprep.subr.bf16.mxu0 0
        %7472 = vmatpush1.bf16.msra.mxu0 0
        %7473 = vmatprep.subr.bf16.mxu0 0
        %7474 = vmatpush1.bf16.msra.mxu0 0
        %7475 = vmatprep.subr.bf16.mxu0 0
        %7476 = vmatpush1.bf16.msra.mxu0 0
        %7477 = vmatprep.subr.bf16.mxu0 0
        %7478 = vmatpush1.bf16.msra.mxu0 0
        %7479 = vmatprep.subr.bf16.mxu0 0
        %7480 = vmatpush1.bf16.msra.mxu0 0
        %7481 = vmatprep.subr.bf16.mxu0 0
        %7482 = vmatpush1.bf16.msra.mxu0 0
        %7483 = vmatprep.mubr.bf16.mxu0 0
        %7484 = vmatmul.mubr.bf16.gmra.mrb[0].mxu0 %v7371
        %v7485 = vpop.f32.mrb[0].mxu0
        %v7486 = vadd.f32 0.0, %v7485
        %v7487 = vpop.f32.mrb[0].mxu0
        %v7488 = vpop.f32.mrb[0].mxu0
        %v7489 = vadd.f32 0.0, %v7488
        %v7490 = vpop.f32.mrb[0].mxu0
        %7491 = vmatprep.mubr.bf16.mxu0 0
        %7492 = vmatmul.mubr.bf16.gmra.mrb[0].mxu0 %v7372
        %v7493 = vpop.f32.mrb[0].mxu0
        %v7494 = vadd.f32 0.0, %v7493
        %v7495 = vpop.f32.mrb[0].mxu0
        %v7496 = vpop.f32.mrb[0].mxu0
        %v7497 = vadd.f32 0.0, %v7496
        %v7498 = vpop.f32.mrb[0].mxu0
        %7499 = vmatprep.mubr.bf16.mxu0 0
        %7500 = vmatmul.mubr.bf16.gmra.mrb[0].mxu0 %v7373
        %v7501 = vpop.f32.mrb[0].mxu0
        %v7502 = vadd.f32 0.0, %v7501
        %v7503 = vpop.f32.mrb[0].mxu0
        %v7504 = vpop.f32.mrb[0].mxu0
        %v7505 = vadd.f32 0.0, %v7504
        %v7506 = vpop.f32.mrb[0].mxu0
        %7507 = vmatprep.mubr.bf16.mxu0 0
        %7508 = vmatmul.mubr.bf16.gmra.mrb[0].mxu0 %v7374
        %v7509 = vpop.f32.mrb[0].mxu0
        %v7510 = vadd.f32 0.0, %v7509
        %v7511 = vpop.f32.mrb[0].mxu0
        %v7512 = vpop.f32.mrb[0].mxu0
        %v7513 = vadd.f32 0.0, %v7512
        %v7514 = vpop.f32.mrb[0].mxu0
        %7515 = vmatprep.mubr.bf16.mxu0 0
        %7516 = vmatmul.mubr.bf16.gmra.mrb[0].mxu0 %v7375
        %v7517 = vpop.f32.mrb[0].mxu0
        %v7518 = vadd.f32 0.0, %v7517
        %v7519 = vpop.f32.mrb[0].mxu0
        %v7520 = vpop.f32.mrb[0].mxu0
        %v7521 = vadd.f32 0.0, %v7520
        %v7522 = vpop.f32.mrb[0].mxu0
        %7523 = vmatprep.mubr.bf16.mxu0 0
        %7524 = vmatmul.mubr.bf16.gmra.mrb[0].mxu0 %v7376
        %v7525 = vpop.f32.mrb[0].mxu0
        %v7526 = vadd.f32 0.0, %v7525
        %v7527 = vpop.f32.mrb[0].mxu0
        %v7528 = vpop.f32.mrb[0].mxu0
        %v7529 = vadd.f32 0.0, %v7528
        %v7530 = vpop.f32.mrb[0].mxu0
        %7531 = vmatprep.mubr.bf16.mxu0 0
        %7532 = vmatmul.mubr.bf16.gmra.mrb[0].mxu0 %v7377
        %v7533 = vpop.f32.mrb[0].mxu0
        %v7534 = vadd.f32 0.0, %v7533
        %v7535 = vpop.f32.mrb[0].mxu0
        %v7536 = vpop.f32.mrb[0].mxu0
        %v7537 = vadd.f32 0.0, %v7536
        %v7538 = vpop.f32.mrb[0].mxu0
        %7539 = vmatprep.mubr.bf16.mxu0 0
        %7540 = vmatmul.mubr.bf16.gmra.mrb[0].mxu0 %v7378
        %v7541 = vpop.f32.mrb[0].mxu0
        %v7542 = vadd.f32 0.0, %v7541
        %v7543 = vpop.f32.mrb[0].mxu0
        %v7544 = vpop.f32.mrb[0].mxu0
        %v7545 = vadd.f32 0.0, %v7544
        %v7546 = vpop.f32.mrb[0].mxu0
        %7547 = vmatprep.mubr.bf16.mxu0 0
        %7548 = vmatmul.mubr.bf16.gmra.mrb[0].mxu0 %v7379
        %v7549 = vpop.f32.mrb[0].mxu0
        %v7550 = vadd.f32 0.0, %v7549
        %v7551 = vpop.f32.mrb[0].mxu0
        %v7552 = vpop.f32.mrb[0].mxu0
        %v7553 = vadd.f32 0.0, %v7552
        %v7554 = vpop.f32.mrb[0].mxu0
        %7555 = vmatprep.mubr.bf16.mxu0 0
        %7556 = vmatmul.mubr.bf16.gmra.mrb[0].mxu0 %v7380
        %v7557 = vpop.f32.mrb[0].mxu0
        %v7558 = vadd.f32 0.0, %v7557
        %v7559 = vpop.f32.mrb[0].mxu0
        %v7560 = vpop.f32.mrb[0].mxu0
        %v7561 = vadd.f32 0.0, %v7560
        %v7562 = vpop.f32.mrb[0].mxu0
        %7563 = vmatprep.mubr.bf16.mxu0 0
        %7564 = vmatmul.mubr.bf16.gmra.mrb[0].mxu0 %v7381
        %v7565 = vpop.f32.mrb[0].mxu0
        %v7566 = vadd.f32 0.0, %v7565
        %v7567 = vpop.f32.mrb[0].mxu0
        %v7568 = vpop.f32.mrb[0].mxu0
        %v7569 = vadd.f32 0.0, %v7568
        %v7570 = vpop.f32.mrb[0].mxu0
        %7571 = vmatprep.mubr.bf16.mxu0 0
        %7572 = vmatmul.mubr.bf16.gmra.mrb[0].mxu0 %v7382
        %v7573 = vpop.f32.mrb[0].mxu0
        %v7574 = vadd.f32 0.0, %v7573
        %v7575 = vpop.f32.mrb[0].mxu0
        %v7576 = vpop.f32.mrb[0].mxu0
        %v7577 = vadd.f32 0.0, %v7576
        %v7578 = vpop.f32.mrb[0].mxu0
        %7579 = vmatprep.mubr.bf16.mxu0 0
        %7580 = vmatmul.mubr.bf16.gmra.mrb[0].mxu0 %v7383
        %v7581 = vpop.f32.mrb[0].mxu0
        %v7582 = vadd.f32 0.0, %v7581
        %v7583 = vpop.f32.mrb[0].mxu0
        %v7584 = vpop.f32.mrb[0].mxu0
        %v7585 = vadd.f32 0.0, %v7584
        %v7586 = vpop.f32.mrb[0].mxu0
        %7587 = vmatprep.mubr.bf16.mxu0 0
        %7588 = vmatmul.mubr.bf16.gmra.mrb[0].mxu0 %v7384
        %v7589 = vpop.f32.mrb[0].mxu0
        %v7590 = vadd.f32 0.0, %v7589
        %v7591 = vpop.f32.mrb[0].mxu0
        %v7592 = vpop.f32.mrb[0].mxu0
        %v7593 = vadd.f32 0.0, %v7592
        %v7594 = vpop.f32.mrb[0].mxu0
        %7595 = vmatprep.mubr.bf16.mxu0 0
        %7596 = vmatmul.mubr.bf16.gmra.mrb[0].mxu0 %v7385
        %v7597 = vpop.f32.mrb[0].mxu0
        %v7598 = vadd.f32 0.0, %v7597
        %v7599 = vpop.f32.mrb[0].mxu0
        %v7600 = vpop.f32.mrb[0].mxu0
        %v7601 = vadd.f32 0.0, %v7600
        %v7602 = vpop.f32.mrb[0].mxu0
        %7603 = vmatprep.mubr.bf16.mxu0 0
        %7604 = vmatmul.mubr.bf16.gmra.mrb[0].mxu0 %v7386
        %v7605 = vpop.f32.mrb[0].mxu0
        %v7606 = vadd.f32 0.0, %v7605
        %v7607 = vpop.f32.mrb[0].mxu0
        %v7608 = vpop.f32.mrb[0].mxu0
        %v7609 = vadd.f32 0.0, %v7608
        %v7610 = vpop.f32.mrb[0].mxu0
        %7611 = vdwg.mxu0
        %v7612 = vadd.f32 %v6341, %v7486
        %v7613 = vadd.f32 %v6342, %v7489
        %v7614 = vadd.f32 %v6343, %v7494
        %v7615 = vadd.f32 %v6344, %v7497
        %v7616 = vadd.f32 %v6345, %v7502
        %v7617 = vadd.f32 %v6346, %v7505
        %v7618 = vadd.f32 %v6347, %v7510
        %v7619 = vadd.f32 %v6348, %v7513
        %v7620 = vadd.f32 %v6349, %v7518
        %v7621 = vadd.f32 %v6350, %v7521
        %v7622 = vadd.f32 %v6351, %v7526
        %v7623 = vadd.f32 %v6352, %v7529
        %v7624 = vadd.f32 %v6353, %v7534
        %v7625 = vadd.f32 %v6354, %v7537
        %v7626 = vadd.f32 %v6355, %v7542
        %v7627 = vadd.f32 %v6356, %v7545
        %v7628 = vadd.f32 %v6357, %v7550
        %v7629 = vadd.f32 %v6358, %v7553
        %v7630 = vadd.f32 %v6359, %v7558
        %v7631 = vadd.f32 %v6360, %v7561
        %v7632 = vadd.f32 %v6361, %v7566
        %v7633 = vadd.f32 %v6362, %v7569
        %v7634 = vadd.f32 %v6363, %v7574
        %v7635 = vadd.f32 %v6364, %v7577
        %v7636 = vadd.f32 %v6365, %v7582
        %v7637 = vadd.f32 %v6366, %v7585
        %v7638 = vadd.f32 %v6367, %v7590
        %v7639 = vadd.f32 %v6368, %v7593
        %v7640 = vadd.f32 %v6369, %v7598
        %v7641 = vadd.f32 %v6370, %v7601
        %v7642 = vadd.f32 %v6371, %v7606
        %v7643 = vadd.f32 %v6372, %v7609
        %v7644 = vld [vmem:[%s939] sm:$0x1]
        %v7646 = vlaneseq
        %v7647 = vshrl.u32 %v7646, 7
        %v7648 = vsub.s32 0, %v7647
        %v7649 = vrot.slane %v7644, %v7648
        %v7651 = vadd.f32 %v7612, %v7649
        %v7652 = vadd.f32 %v7613, %v7649
        %v7653 = vadd.f32 %v7614, %v7649
        %v7654 = vadd.f32 %v7615, %v7649
        %v7655 = vadd.f32 %v7616, %v7649
        %v7656 = vadd.f32 %v7617, %v7649
        %v7657 = vadd.f32 %v7618, %v7649
        %v7658 = vadd.f32 %v7619, %v7649
        %v7659 = vadd.f32 %v7620, %v7649
        %v7660 = vadd.f32 %v7621, %v7649
        %v7661 = vadd.f32 %v7622, %v7649
        %v7662 = vadd.f32 %v7623, %v7649
        %v7663 = vadd.f32 %v7624, %v7649
        %v7664 = vadd.f32 %v7625, %v7649
        %v7665 = vadd.f32 %v7626, %v7649
        %v7666 = vadd.f32 %v7627, %v7649
        %v7667 = vadd.f32 %v7628, %v7649
        %v7668 = vadd.f32 %v7629, %v7649
        %v7669 = vadd.f32 %v7630, %v7649
        %v7670 = vadd.f32 %v7631, %v7649
        %v7671 = vadd.f32 %v7632, %v7649
        %v7672 = vadd.f32 %v7633, %v7649
        %v7673 = vadd.f32 %v7634, %v7649
        %v7674 = vadd.f32 %v7635, %v7649
        %v7675 = vadd.f32 %v7636, %v7649
        %v7676 = vadd.f32 %v7637, %v7649
        %v7677 = vadd.f32 %v7638, %v7649
        %v7678 = vadd.f32 %v7639, %v7649
        %v7679 = vadd.f32 %v7640, %v7649
        %v7680 = vadd.f32 %v7641, %v7649
        %v7681 = vadd.f32 %v7642, %v7649
        %v7682 = vadd.f32 %v7643, %v7649
        %7683 = vst.msk [vmem:[#allocation25] sm:$0xff] %vm1236, %v7651
        %7684 = vst.msk [vmem:[#allocation25 + $0x8] sm:$0xff] %vm1236, %v7652
        %7685 = vst.msk [vmem:[#allocation25 + $0x10] sm:$0xff] %vm1236, %v7653
        %7686 = vst.msk [vmem:[#allocation25 + $0x18] sm:$0xff] %vm1236, %v7654
        %7687 = vst.msk [vmem:[#allocation25 + $0x20] sm:$0xff] %vm1236, %v7655
        %7688 = vst.msk [vmem:[#allocation25 + $0x28] sm:$0xff] %vm1236, %v7656
        %7689 = vst.msk [vmem:[#allocation25 + $0x30] sm:$0xff] %vm1236, %v7657
        %7690 = vst.msk [vmem:[#allocation25 + $0x38] sm:$0xff] %vm1236, %v7658
        %7691 = vst.msk [vmem:[#allocation25 + $0x40] sm:$0xff] %vm1236, %v7659
        %7692 = vst.msk [vmem:[#allocation25 + $0x48] sm:$0xff] %vm1236, %v7660
        %7693 = vst.msk [vmem:[#allocation25 + $0x50] sm:$0xff] %vm1236, %v7661
        %7694 = vst.msk [vmem:[#allocation25 + $0x58] sm:$0xff] %vm1236, %v7662
        %7695 = vst.msk [vmem:[#allocation25 + $0x60] sm:$0xff] %vm1236, %v7663
        %7696 = vst.msk [vmem:[#allocation25 + $0x68] sm:$0xff] %vm1236, %v7664
        %7697 = vst.msk [vmem:[#allocation25 + $0x70] sm:$0xff] %vm1236, %v7665
        %7698 = vst.msk [vmem:[#allocation25 + $0x78] sm:$0xff] %vm1236, %v7666
        %7699 = vst.msk [vmem:[#allocation25 + $0x80] sm:$0xff] %vm1236, %v7667
        %7700 = vst.msk [vmem:[#allocation25 + $0x88] sm:$0xff] %vm1236, %v7668
        %7701 = vst.msk [vmem:[#allocation25 + $0x90] sm:$0xff] %vm1236, %v7669
        %7702 = vst.msk [vmem:[#allocation25 + $0x98] sm:$0xff] %vm1236, %v7670
        %7703 = vst.msk [vmem:[#allocation25 + $0xa0] sm:$0xff] %vm1236, %v7671
        %7704 = vst.msk [vmem:[#allocation25 + $0xa8] sm:$0xff] %vm1236, %v7672
        %7705 = vst.msk [vmem:[#allocation25 + $0xb0] sm:$0xff] %vm1236, %v7673
        %7706 = vst.msk [vmem:[#allocation25 + $0xb8] sm:$0xff] %vm1236, %v7674
        %7707 = vst.msk [vmem:[#allocation25 + $0xc0] sm:$0xff] %vm1236, %v7675
        %7708 = vst.msk [vmem:[#allocation25 + $0xc8] sm:$0xff] %vm1236, %v7676
        %7709 = vst.msk [vmem:[#allocation25 + $0xd0] sm:$0xff] %vm1236, %v7677
        %7710 = vst.msk [vmem:[#allocation25 + $0xd8] sm:$0xff] %vm1236, %v7678
        %7711 = vst.msk [vmem:[#allocation25 + $0xe0] sm:$0xff] %vm1236, %v7679
        %7712 = vst.msk [vmem:[#allocation25 + $0xe8] sm:$0xff] %vm1236, %v7680
        %7713 = vst.msk [vmem:[#allocation25 + $0xf0] sm:$0xff] %vm1236, %v7681
        %7714 = vst.msk [vmem:[#allocation25 + $0xf8] sm:$0xff] %vm1236, %v7682
        %p7715 = scmp.eq.s32.totalorder %s40, 1
        // Predicated region
        $region161: #{_lambda_.1} parent=87 // pred_check
          %p7716 = pneg %p7715
        $region162: #{_lambda_.1} parent=87 // pred_check_branch
          %7718 = sbr.rel (%p7716) target = $region164
        $region163: #{_lambda_.1} parent=87 // pred_region
          %v7719 = vld [vmem:[#allocation25] sm:$0xff]
          %v7720 = vld [vmem:[#allocation25 + $0x8] sm:$0xff]
          %v7721 = vld [vmem:[#allocation25 + $0x10] sm:$0xff]
          %v7722 = vld [vmem:[#allocation25 + $0x18] sm:$0xff]
          %v7723 = vld [vmem:[#allocation25 + $0x20] sm:$0xff]
          %v7724 = vld [vmem:[#allocation25 + $0x28] sm:$0xff]
          %v7725 = vld [vmem:[#allocation25 + $0x30] sm:$0xff]
          %v7726 = vld [vmem:[#allocation25 + $0x38] sm:$0xff]
          %v7727 = vld [vmem:[#allocation25 + $0x40] sm:$0xff]
          %v7728 = vld [vmem:[#allocation25 + $0x48] sm:$0xff]
          %v7729 = vld [vmem:[#allocation25 + $0x50] sm:$0xff]
          %v7730 = vld [vmem:[#allocation25 + $0x58] sm:$0xff]
          %v7731 = vld [vmem:[#allocation25 + $0x60] sm:$0xff]
          %v7732 = vld [vmem:[#allocation25 + $0x68] sm:$0xff]
          %v7733 = vld [vmem:[#allocation25 + $0x70] sm:$0xff]
          %v7734 = vld [vmem:[#allocation25 + $0x78] sm:$0xff]
          %v7735 = vld [vmem:[#allocation25 + $0x80] sm:$0xff]
          %v7736 = vld [vmem:[#allocation25 + $0x88] sm:$0xff]
          %v7737 = vld [vmem:[#allocation25 + $0x90] sm:$0xff]
          %v7738 = vld [vmem:[#allocation25 + $0x98] sm:$0xff]
          %v7739 = vld [vmem:[#allocation25 + $0xa0] sm:$0xff]
          %v7740 = vld [vmem:[#allocation25 + $0xa8] sm:$0xff]
          %v7741 = vld [vmem:[#allocation25 + $0xb0] sm:$0xff]
          %v7742 = vld [vmem:[#allocation25 + $0xb8] sm:$0xff]
          %v7743 = vld [vmem:[#allocation25 + $0xc0] sm:$0xff]
          %v7744 = vld [vmem:[#allocation25 + $0xc8] sm:$0xff]
          %v7745 = vld [vmem:[#allocation25 + $0xd0] sm:$0xff]
          %v7746 = vld [vmem:[#allocation25 + $0xd8] sm:$0xff]
          %v7747 = vld [vmem:[#allocation25 + $0xe0] sm:$0xff]
          %v7748 = vld [vmem:[#allocation25 + $0xe8] sm:$0xff]
          %v7749 = vld [vmem:[#allocation25 + $0xf0] sm:$0xff]
          %v7750 = vld [vmem:[#allocation25 + $0xf8] sm:$0xff]
          %v7751 = vld [vmem:[#allocation20] sm:$0x1]
          %v7752 = vld [vmem:[#allocation21] sm:$0x1]
          %v7753 = vsel %vm1236, %v7719, 0.0
          %7754 = vadd.xlane.f32.xlu0 %v7753
          %v7755 = vpop.xlane.xlu0 %7754
          %v7756 = vsel %vm1236, %v7720, 0.0
          %7757 = vadd.xlane.f32.xlu0 %v7756
          %v7758 = vpop.xlane.xlu0 %7757
          %v7759 = vsel %vm1236, %v7721, 0.0
          %7760 = vadd.xlane.f32.xlu0 %v7759
          %v7761 = vpop.xlane.xlu0 %7760
          %v7762 = vsel %vm1236, %v7722, 0.0
          %7763 = vadd.xlane.f32.xlu0 %v7762
          %v7764 = vpop.xlane.xlu0 %7763
          %v7765 = vsel %vm1236, %v7723, 0.0
          %7766 = vadd.xlane.f32.xlu0 %v7765
          %v7767 = vpop.xlane.xlu0 %7766
          %v7768 = vsel %vm1236, %v7724, 0.0
          %7769 = vadd.xlane.f32.xlu0 %v7768
          %v7770 = vpop.xlane.xlu0 %7769
          %v7771 = vsel %vm1236, %v7725, 0.0
          %7772 = vadd.xlane.f32.xlu0 %v7771
          %v7773 = vpop.xlane.xlu0 %7772
          %v7774 = vsel %vm1236, %v7726, 0.0
          %7775 = vadd.xlane.f32.xlu0 %v7774
          %v7776 = vpop.xlane.xlu0 %7775
          %v7777 = vsel %vm1236, %v7727, 0.0
          %7778 = vadd.xlane.f32.xlu0 %v7777
          %v7779 = vpop.xlane.xlu0 %7778
          %v7780 = vsel %vm1236, %v7728, 0.0
          %7781 = vadd.xlane.f32.xlu0 %v7780
          %v7782 = vpop.xlane.xlu0 %7781
          %v7783 = vsel %vm1236, %v7729, 0.0
          %7784 = vadd.xlane.f32.xlu0 %v7783
          %v7785 = vpop.xlane.xlu0 %7784
          %v7786 = vsel %vm1236, %v7730, 0.0
          %7787 = vadd.xlane.f32.xlu0 %v7786
          %v7788 = vpop.xlane.xlu0 %7787
          %v7789 = vsel %vm1236, %v7731, 0.0
          %7790 = vadd.xlane.f32.xlu0 %v7789
          %v7791 = vpop.xlane.xlu0 %7790
          %v7792 = vsel %vm1236, %v7732, 0.0
          %7793 = vadd.xlane.f32.xlu0 %v7792
          %v7794 = vpop.xlane.xlu0 %7793
          %v7795 = vsel %vm1236, %v7733, 0.0
          %7796 = vadd.xlane.f32.xlu0 %v7795
          %v7797 = vpop.xlane.xlu0 %7796
          %v7798 = vsel %vm1236, %v7734, 0.0
          %7799 = vadd.xlane.f32.xlu0 %v7798
          %v7800 = vpop.xlane.xlu0 %7799
          %v7801 = vsel %vm1236, %v7735, 0.0
          %7802 = vadd.xlane.f32.xlu0 %v7801
          %v7803 = vpop.xlane.xlu0 %7802
          %v7804 = vsel %vm1236, %v7736, 0.0
          %7805 = vadd.xlane.f32.xlu0 %v7804
          %v7806 = vpop.xlane.xlu0 %7805
          %v7807 = vsel %vm1236, %v7737, 0.0
          %7808 = vadd.xlane.f32.xlu0 %v7807
          %v7809 = vpop.xlane.xlu0 %7808
          %v7810 = vsel %vm1236, %v7738, 0.0
          %7811 = vadd.xlane.f32.xlu0 %v7810
          %v7812 = vpop.xlane.xlu0 %7811
          %v7813 = vsel %vm1236, %v7739, 0.0
          %7814 = vadd.xlane.f32.xlu0 %v7813
          %v7815 = vpop.xlane.xlu0 %7814
          %v7816 = vsel %vm1236, %v7740, 0.0
          %7817 = vadd.xlane.f32.xlu0 %v7816
          %v7818 = vpop.xlane.xlu0 %7817
          %v7819 = vsel %vm1236, %v7741, 0.0
          %7820 = vadd.xlane.f32.xlu0 %v7819
          %v7821 = vpop.xlane.xlu0 %7820
          %v7822 = vsel %vm1236, %v7742, 0.0
          %7823 = vadd.xlane.f32.xlu0 %v7822
          %v7824 = vpop.xlane.xlu0 %7823
          %v7825 = vsel %vm1236, %v7743, 0.0
          %7826 = vadd.xlane.f32.xlu0 %v7825
          %v7827 = vpop.xlane.xlu0 %7826
          %v7828 = vsel %vm1236, %v7744, 0.0
          %7829 = vadd.xlane.f32.xlu0 %v7828
          %v7830 = vpop.xlane.xlu0 %7829
          %v7831 = vsel %vm1236, %v7745, 0.0
          %7832 = vadd.xlane.f32.xlu0 %v7831
          %v7833 = vpop.xlane.xlu0 %7832
          %v7834 = vsel %vm1236, %v7746, 0.0
          %7835 = vadd.xlane.f32.xlu0 %v7834
          %v7836 = vpop.xlane.xlu0 %7835
          %v7837 = vsel %vm1236, %v7747, 0.0
          %7838 = vadd.xlane.f32.xlu0 %v7837
          %v7839 = vpop.xlane.xlu0 %7838
          %v7840 = vsel %vm1236, %v7748, 0.0
          %7841 = vadd.xlane.f32.xlu0 %v7840
          %v7842 = vpop.xlane.xlu0 %7841
          %v7843 = vsel %vm1236, %v7749, 0.0
          %7844 = vadd.xlane.f32.xlu0 %v7843
          %v7845 = vpop.xlane.xlu0 %7844
          %v7846 = vsel %vm1236, %v7750, 0.0
          %7847 = vadd.xlane.f32.xlu0 %v7846
          %v7848 = vpop.xlane.xlu0 %7847
          %v7849 = vmul.f32 %v7755, %v1333
          %v7850 = vmul.f32 %v7758, %v1333
          %v7851 = vmul.f32 %v7761, %v1333
          %v7852 = vmul.f32 %v7764, %v1333
          %v7853 = vmul.f32 %v7767, %v1333
          %v7854 = vmul.f32 %v7770, %v1333
          %v7855 = vmul.f32 %v7773, %v1333
          %v7856 = vmul.f32 %v7776, %v1333
          %v7857 = vmul.f32 %v7779, %v1333
          %v7858 = vmul.f32 %v7782, %v1333
          %v7859 = vmul.f32 %v7785, %v1333
          %v7860 = vmul.f32 %v7788, %v1333
          %v7861 = vmul.f32 %v7791, %v1333
          %v7862 = vmul.f32 %v7794, %v1333
          %v7863 = vmul.f32 %v7797, %v1333
          %v7864 = vmul.f32 %v7800, %v1333
          %v7865 = vmul.f32 %v7803, %v1333
          %v7866 = vmul.f32 %v7806, %v1333
          %v7867 = vmul.f32 %v7809, %v1333
          %v7868 = vmul.f32 %v7812, %v1333
          %v7869 = vmul.f32 %v7815, %v1333
          %v7870 = vmul.f32 %v7818, %v1333
          %v7871 = vmul.f32 %v7821, %v1333
          %v7872 = vmul.f32 %v7824, %v1333
          %v7873 = vmul.f32 %v7827, %v1333
          %v7874 = vmul.f32 %v7830, %v1333
          %v7875 = vmul.f32 %v7833, %v1333
          %v7876 = vmul.f32 %v7836, %v1333
          %v7877 = vmul.f32 %v7839, %v1333
          %v7878 = vmul.f32 %v7842, %v1333
          %v7879 = vmul.f32 %v7845, %v1333
          %v7880 = vmul.f32 %v7848, %v1333
          %v7881 = vsub.f32 %v7719, %v7849
          %v7882 = vsub.f32 %v7720, %v7850
          %v7883 = vsub.f32 %v7721, %v7851
          %v7884 = vsub.f32 %v7722, %v7852
          %v7885 = vsub.f32 %v7723, %v7853
          %v7886 = vsub.f32 %v7724, %v7854
          %v7887 = vsub.f32 %v7725, %v7855
          %v7888 = vsub.f32 %v7726, %v7856
          %v7889 = vsub.f32 %v7727, %v7857
          %v7890 = vsub.f32 %v7728, %v7858
          %v7891 = vsub.f32 %v7729, %v7859
          %v7892 = vsub.f32 %v7730, %v7860
          %v7893 = vsub.f32 %v7731, %v7861
          %v7894 = vsub.f32 %v7732, %v7862
          %v7895 = vsub.f32 %v7733, %v7863
          %v7896 = vsub.f32 %v7734, %v7864
          %v7897 = vsub.f32 %v7735, %v7865
          %v7898 = vsub.f32 %v7736, %v7866
          %v7899 = vsub.f32 %v7737, %v7867
          %v7900 = vsub.f32 %v7738, %v7868
          %v7901 = vsub.f32 %v7739, %v7869
          %v7902 = vsub.f32 %v7740, %v7870
          %v7903 = vsub.f32 %v7741, %v7871
          %v7904 = vsub.f32 %v7742, %v7872
          %v7905 = vsub.f32 %v7743, %v7873
          %v7906 = vsub.f32 %v7744, %v7874
          %v7907 = vsub.f32 %v7745, %v7875
          %v7908 = vsub.f32 %v7746, %v7876
          %v7909 = vsub.f32 %v7747, %v7877
          %v7910 = vsub.f32 %v7748, %v7878
          %v7911 = vsub.f32 %v7749, %v7879
          %v7912 = vsub.f32 %v7750, %v7880
          %v7913 = vmul.f32 %v7881, %v7881
          %v7914 = vmul.f32 %v7882, %v7882
          %v7915 = vmul.f32 %v7883, %v7883
          %v7916 = vmul.f32 %v7884, %v7884
          %v7917 = vmul.f32 %v7885, %v7885
          %v7918 = vmul.f32 %v7886, %v7886
          %v7919 = vmul.f32 %v7887, %v7887
          %v7920 = vmul.f32 %v7888, %v7888
          %v7921 = vmul.f32 %v7889, %v7889
          %v7922 = vmul.f32 %v7890, %v7890
          %v7923 = vmul.f32 %v7891, %v7891
          %v7924 = vmul.f32 %v7892, %v7892
          %v7925 = vmul.f32 %v7893, %v7893
          %v7926 = vmul.f32 %v7894, %v7894
          %v7927 = vmul.f32 %v7895, %v7895
          %v7928 = vmul.f32 %v7896, %v7896
          %v7929 = vmul.f32 %v7897, %v7897
          %v7930 = vmul.f32 %v7898, %v7898
          %v7931 = vmul.f32 %v7899, %v7899
          %v7932 = vmul.f32 %v7900, %v7900
          %v7933 = vmul.f32 %v7901, %v7901
          %v7934 = vmul.f32 %v7902, %v7902
          %v7935 = vmul.f32 %v7903, %v7903
          %v7936 = vmul.f32 %v7904, %v7904
          %v7937 = vmul.f32 %v7905, %v7905
          %v7938 = vmul.f32 %v7906, %v7906
          %v7939 = vmul.f32 %v7907, %v7907
          %v7940 = vmul.f32 %v7908, %v7908
          %v7941 = vmul.f32 %v7909, %v7909
          %v7942 = vmul.f32 %v7910, %v7910
          %v7943 = vmul.f32 %v7911, %v7911
          %v7944 = vmul.f32 %v7912, %v7912
          %v7945 = vsel %vm1236, %v7913, 0.0
          %7946 = vadd.xlane.f32.xlu0 %v7945
          %v7947 = vpop.xlane.xlu0 %7946
          %v7948 = vsel %vm1236, %v7914, 0.0
          %7949 = vadd.xlane.f32.xlu0 %v7948
          %v7950 = vpop.xlane.xlu0 %7949
          %v7951 = vsel %vm1236, %v7915, 0.0
          %7952 = vadd.xlane.f32.xlu0 %v7951
          %v7953 = vpop.xlane.xlu0 %7952
          %v7954 = vsel %vm1236, %v7916, 0.0
          %7955 = vadd.xlane.f32.xlu0 %v7954
          %v7956 = vpop.xlane.xlu0 %7955
          %v7957 = vsel %vm1236, %v7917, 0.0
          %7958 = vadd.xlane.f32.xlu0 %v7957
          %v7959 = vpop.xlane.xlu0 %7958
          %v7960 = vsel %vm1236, %v7918, 0.0
          %7961 = vadd.xlane.f32.xlu0 %v7960
          %v7962 = vpop.xlane.xlu0 %7961
          %v7963 = vsel %vm1236, %v7919, 0.0
          %7964 = vadd.xlane.f32.xlu0 %v7963
          %v7965 = vpop.xlane.xlu0 %7964
          %v7966 = vsel %vm1236, %v7920, 0.0
          %7967 = vadd.xlane.f32.xlu0 %v7966
          %v7968 = vpop.xlane.xlu0 %7967
          %v7969 = vsel %vm1236, %v7921, 0.0
          %7970 = vadd.xlane.f32.xlu0 %v7969
          %v7971 = vpop.xlane.xlu0 %7970
          %v7972 = vsel %vm1236, %v7922, 0.0
          %7973 = vadd.xlane.f32.xlu0 %v7972
          %v7974 = vpop.xlane.xlu0 %7973
          %v7975 = vsel %vm1236, %v7923, 0.0
          %7976 = vadd.xlane.f32.xlu0 %v7975
          %v7977 = vpop.xlane.xlu0 %7976
          %v7978 = vsel %vm1236, %v7924, 0.0
          %7979 = vadd.xlane.f32.xlu0 %v7978
          %v7980 = vpop.xlane.xlu0 %7979
          %v7981 = vsel %vm1236, %v7925, 0.0
          %7982 = vadd.xlane.f32.xlu0 %v7981
          %v7983 = vpop.xlane.xlu0 %7982
          %v7984 = vsel %vm1236, %v7926, 0.0
          %7985 = vadd.xlane.f32.xlu0 %v7984
          %v7986 = vpop.xlane.xlu0 %7985
          %v7987 = vsel %vm1236, %v7927, 0.0
          %7988 = vadd.xlane.f32.xlu0 %v7987
          %v7989 = vpop.xlane.xlu0 %7988
          %v7990 = vsel %vm1236, %v7928, 0.0
          %7991 = vadd.xlane.f32.xlu0 %v7990
          %v7992 = vpop.xlane.xlu0 %7991
          %v7993 = vsel %vm1236, %v7929, 0.0
          %7994 = vadd.xlane.f32.xlu0 %v7993
          %v7995 = vpop.xlane.xlu0 %7994
          %v7996 = vsel %vm1236, %v7930, 0.0
          %7997 = vadd.xlane.f32.xlu0 %v7996
          %v7998 = vpop.xlane.xlu0 %7997
          %v7999 = vsel %vm1236, %v7931, 0.0
          %8000 = vadd.xlane.f32.xlu0 %v7999
          %v8001 = vpop.xlane.xlu0 %8000
          %v8002 = vsel %vm1236, %v7932, 0.0
          %8003 = vadd.xlane.f32.xlu0 %v8002
          %v8004 = vpop.xlane.xlu0 %8003
          %v8005 = vsel %vm1236, %v7933, 0.0
          %8006 = vadd.xlane.f32.xlu0 %v8005
          %v8007 = vpop.xlane.xlu0 %8006
          %v8008 = vsel %vm1236, %v7934, 0.0
          %8009 = vadd.xlane.f32.xlu0 %v8008
          %v8010 = vpop.xlane.xlu0 %8009
          %v8011 = vsel %vm1236, %v7935, 0.0
          %8012 = vadd.xlane.f32.xlu0 %v8011
          %v8013 = vpop.xlane.xlu0 %8012
          %v8014 = vsel %vm1236, %v7936, 0.0
          %8015 = vadd.xlane.f32.xlu0 %v8014
          %v8016 = vpop.xlane.xlu0 %8015
          %v8017 = vsel %vm1236, %v7937, 0.0
          %8018 = vadd.xlane.f32.xlu0 %v8017
          %v8019 = vpop.xlane.xlu0 %8018
          %v8020 = vsel %vm1236, %v7938, 0.0
          %8021 = vadd.xlane.f32.xlu0 %v8020
          %v8022 = vpop.xlane.xlu0 %8021
          %v8023 = vsel %vm1236, %v7939, 0.0
          %8024 = vadd.xlane.f32.xlu0 %v8023
          %v8025 = vpop.xlane.xlu0 %8024
          %v8026 = vsel %vm1236, %v7940, 0.0
          %8027 = vadd.xlane.f32.xlu0 %v8026
          %v8028 = vpop.xlane.xlu0 %8027
          %v8029 = vsel %vm1236, %v7941, 0.0
          %8030 = vadd.xlane.f32.xlu0 %v8029
          %v8031 = vpop.xlane.xlu0 %8030
          %v8032 = vsel %vm1236, %v7942, 0.0
          %8033 = vadd.xlane.f32.xlu0 %v8032
          %v8034 = vpop.xlane.xlu0 %8033
          %v8035 = vsel %vm1236, %v7943, 0.0
          %8036 = vadd.xlane.f32.xlu0 %v8035
          %v8037 = vpop.xlane.xlu0 %8036
          %v8038 = vsel %vm1236, %v7944, 0.0
          %8039 = vadd.xlane.f32.xlu0 %v8038
          %v8040 = vpop.xlane.xlu0 %8039
          %v8041 = vmul.f32 %v7947, %v1333
          %v8042 = vmul.f32 %v7950, %v1333
          %v8043 = vmul.f32 %v7953, %v1333
          %v8044 = vmul.f32 %v7956, %v1333
          %v8045 = vmul.f32 %v7959, %v1333
          %v8046 = vmul.f32 %v7962, %v1333
          %v8047 = vmul.f32 %v7965, %v1333
          %v8048 = vmul.f32 %v7968, %v1333
          %v8049 = vmul.f32 %v7971, %v1333
          %v8050 = vmul.f32 %v7974, %v1333
          %v8051 = vmul.f32 %v7977, %v1333
          %v8052 = vmul.f32 %v7980, %v1333
          %v8053 = vmul.f32 %v7983, %v1333
          %v8054 = vmul.f32 %v7986, %v1333
          %v8055 = vmul.f32 %v7989, %v1333
          %v8056 = vmul.f32 %v7992, %v1333
          %v8057 = vmul.f32 %v7995, %v1333
          %v8058 = vmul.f32 %v7998, %v1333
          %v8059 = vmul.f32 %v8001, %v1333
          %v8060 = vmul.f32 %v8004, %v1333
          %v8061 = vmul.f32 %v8007, %v1333
          %v8062 = vmul.f32 %v8010, %v1333
          %v8063 = vmul.f32 %v8013, %v1333
          %v8064 = vmul.f32 %v8016, %v1333
          %v8065 = vmul.f32 %v8019, %v1333
          %v8066 = vmul.f32 %v8022, %v1333
          %v8067 = vmul.f32 %v8025, %v1333
          %v8068 = vmul.f32 %v8028, %v1333
          %v8069 = vmul.f32 %v8031, %v1333
          %v8070 = vmul.f32 %v8034, %v1333
          %v8071 = vmul.f32 %v8037, %v1333
          %v8072 = vmul.f32 %v8040, %v1333
          %v8073 = vadd.f32 %v8041, 1e-05
          %v8074 = vadd.f32 %v8042, 1e-05
          %v8075 = vadd.f32 %v8043, 1e-05
          %v8076 = vadd.f32 %v8044, 1e-05
          %v8077 = vadd.f32 %v8045, 1e-05
          %v8078 = vadd.f32 %v8046, 1e-05
          %v8079 = vadd.f32 %v8047, 1e-05
          %v8080 = vadd.f32 %v8048, 1e-05
          %v8081 = vadd.f32 %v8049, 1e-05
          %v8082 = vadd.f32 %v8050, 1e-05
          %v8083 = vadd.f32 %v8051, 1e-05
          %v8084 = vadd.f32 %v8052, 1e-05
          %v8085 = vadd.f32 %v8053, 1e-05
          %v8086 = vadd.f32 %v8054, 1e-05
          %v8087 = vadd.f32 %v8055, 1e-05
          %v8088 = vadd.f32 %v8056, 1e-05
          %v8089 = vadd.f32 %v8057, 1e-05
          %v8090 = vadd.f32 %v8058, 1e-05
          %v8091 = vadd.f32 %v8059, 1e-05
          %v8092 = vadd.f32 %v8060, 1e-05
          %v8093 = vadd.f32 %v8061, 1e-05
          %v8094 = vadd.f32 %v8062, 1e-05
          %v8095 = vadd.f32 %v8063, 1e-05
          %v8096 = vadd.f32 %v8064, 1e-05
          %v8097 = vadd.f32 %v8065, 1e-05
          %v8098 = vadd.f32 %v8066, 1e-05
          %v8099 = vadd.f32 %v8067, 1e-05
          %v8100 = vadd.f32 %v8068, 1e-05
          %v8101 = vadd.f32 %v8069, 1e-05
          %v8102 = vadd.f32 %v8070, 1e-05
          %v8103 = vadd.f32 %v8071, 1e-05
          %v8104 = vadd.f32 %v8072, 1e-05
          %v8105 = vrsqrt.pop %v8073
          %v8106 = vrsqrt.pop %v8074
          %v8107 = vrsqrt.pop %v8075
          %v8108 = vrsqrt.pop %v8076
          %v8109 = vrsqrt.pop %v8077
          %v8110 = vrsqrt.pop %v8078
          %v8111 = vrsqrt.pop %v8079
          %v8112 = vrsqrt.pop %v8080
          %v8113 = vrsqrt.pop %v8081
          %v8114 = vrsqrt.pop %v8082
          %v8115 = vrsqrt.pop %v8083
          %v8116 = vrsqrt.pop %v8084
          %v8117 = vrsqrt.pop %v8085
          %v8118 = vrsqrt.pop %v8086
          %v8119 = vrsqrt.pop %v8087
          %v8120 = vrsqrt.pop %v8088
          %v8121 = vrsqrt.pop %v8089
          %v8122 = vrsqrt.pop %v8090
          %v8123 = vrsqrt.pop %v8091
          %v8124 = vrsqrt.pop %v8092
          %v8125 = vrsqrt.pop %v8093
          %v8126 = vrsqrt.pop %v8094
          %v8127 = vrsqrt.pop %v8095
          %v8128 = vrsqrt.pop %v8096
          %v8129 = vrsqrt.pop %v8097
          %v8130 = vrsqrt.pop %v8098
          %v8131 = vrsqrt.pop %v8099
          %v8132 = vrsqrt.pop %v8100
          %v8133 = vrsqrt.pop %v8101
          %v8134 = vrsqrt.pop %v8102
          %v8135 = vrsqrt.pop %v8103
          %v8136 = vrsqrt.pop %v8104
          %v8137 = vmul.f32 %v7881, %v8105
          %v8138 = vmul.f32 %v7882, %v8106
          %v8139 = vmul.f32 %v7883, %v8107
          %v8140 = vmul.f32 %v7884, %v8108
          %v8141 = vmul.f32 %v7885, %v8109
          %v8142 = vmul.f32 %v7886, %v8110
          %v8143 = vmul.f32 %v7887, %v8111
          %v8144 = vmul.f32 %v7888, %v8112
          %v8145 = vmul.f32 %v7889, %v8113
          %v8146 = vmul.f32 %v7890, %v8114
          %v8147 = vmul.f32 %v7891, %v8115
          %v8148 = vmul.f32 %v7892, %v8116
          %v8149 = vmul.f32 %v7893, %v8117
          %v8150 = vmul.f32 %v7894, %v8118
          %v8151 = vmul.f32 %v7895, %v8119
          %v8152 = vmul.f32 %v7896, %v8120
          %v8153 = vmul.f32 %v7897, %v8121
          %v8154 = vmul.f32 %v7898, %v8122
          %v8155 = vmul.f32 %v7899, %v8123
          %v8156 = vmul.f32 %v7900, %v8124
          %v8157 = vmul.f32 %v7901, %v8125
          %v8158 = vmul.f32 %v7902, %v8126
          %v8159 = vmul.f32 %v7903, %v8127
          %v8160 = vmul.f32 %v7904, %v8128
          %v8161 = vmul.f32 %v7905, %v8129
          %v8162 = vmul.f32 %v7906, %v8130
          %v8163 = vmul.f32 %v7907, %v8131
          %v8164 = vmul.f32 %v7908, %v8132
          %v8165 = vmul.f32 %v7909, %v8133
          %v8166 = vmul.f32 %v7910, %v8134
          %v8167 = vmul.f32 %v7911, %v8135
          %v8168 = vmul.f32 %v7912, %v8136
          %v8170 = vlaneseq
          %v8171 = vshrl.u32 %v8170, 7
          %v8172 = vsub.s32 0, %v8171
          %v8173 = vrot.slane %v7751, %v8172
          %v8175 = vmul.f32 %v8137, %v8173
          %v8176 = vmul.f32 %v8138, %v8173
          %v8177 = vmul.f32 %v8139, %v8173
          %v8178 = vmul.f32 %v8140, %v8173
          %v8179 = vmul.f32 %v8141, %v8173
          %v8180 = vmul.f32 %v8142, %v8173
          %v8181 = vmul.f32 %v8143, %v8173
          %v8182 = vmul.f32 %v8144, %v8173
          %v8183 = vmul.f32 %v8145, %v8173
          %v8184 = vmul.f32 %v8146, %v8173
          %v8185 = vmul.f32 %v8147, %v8173
          %v8186 = vmul.f32 %v8148, %v8173
          %v8187 = vmul.f32 %v8149, %v8173
          %v8188 = vmul.f32 %v8150, %v8173
          %v8189 = vmul.f32 %v8151, %v8173
          %v8190 = vmul.f32 %v8152, %v8173
          %v8191 = vmul.f32 %v8153, %v8173
          %v8192 = vmul.f32 %v8154, %v8173
          %v8193 = vmul.f32 %v8155, %v8173
          %v8194 = vmul.f32 %v8156, %v8173
          %v8195 = vmul.f32 %v8157, %v8173
          %v8196 = vmul.f32 %v8158, %v8173
          %v8197 = vmul.f32 %v8159, %v8173
          %v8198 = vmul.f32 %v8160, %v8173
          %v8199 = vmul.f32 %v8161, %v8173
          %v8200 = vmul.f32 %v8162, %v8173
          %v8201 = vmul.f32 %v8163, %v8173
          %v8202 = vmul.f32 %v8164, %v8173
          %v8203 = vmul.f32 %v8165, %v8173
          %v8204 = vmul.f32 %v8166, %v8173
          %v8205 = vmul.f32 %v8167, %v8173
          %v8206 = vmul.f32 %v8168, %v8173
          %v8208 = vlaneseq
          %v8209 = vshrl.u32 %v8208, 7
          %v8210 = vsub.s32 0, %v8209
          %v8211 = vrot.slane %v7752, %v8210
          %v8213 = vadd.f32 %v8175, %v8211
          %v8214 = vadd.f32 %v8176, %v8211
          %v8215 = vadd.f32 %v8177, %v8211
          %v8216 = vadd.f32 %v8178, %v8211
          %v8217 = vadd.f32 %v8179, %v8211
          %v8218 = vadd.f32 %v8180, %v8211
          %v8219 = vadd.f32 %v8181, %v8211
          %v8220 = vadd.f32 %v8182, %v8211
          %v8221 = vadd.f32 %v8183, %v8211
          %v8222 = vadd.f32 %v8184, %v8211
          %v8223 = vadd.f32 %v8185, %v8211
          %v8224 = vadd.f32 %v8186, %v8211
          %v8225 = vadd.f32 %v8187, %v8211
          %v8226 = vadd.f32 %v8188, %v8211
          %v8227 = vadd.f32 %v8189, %v8211
          %v8228 = vadd.f32 %v8190, %v8211
          %v8229 = vadd.f32 %v8191, %v8211
          %v8230 = vadd.f32 %v8192, %v8211
          %v8231 = vadd.f32 %v8193, %v8211
          %v8232 = vadd.f32 %v8194, %v8211
          %v8233 = vadd.f32 %v8195, %v8211
          %v8234 = vadd.f32 %v8196, %v8211
          %v8235 = vadd.f32 %v8197, %v8211
          %v8236 = vadd.f32 %v8198, %v8211
          %v8237 = vadd.f32 %v8199, %v8211
          %v8238 = vadd.f32 %v8200, %v8211
          %v8239 = vadd.f32 %v8201, %v8211
          %v8240 = vadd.f32 %v8202, %v8211
          %v8241 = vadd.f32 %v8203, %v8211
          %v8242 = vadd.f32 %v8204, %v8211
          %v8243 = vadd.f32 %v8205, %v8211
          %v8244 = vadd.f32 %v8206, %v8211
          %8245 = vst.msk [vmem:[#allocation25] sm:$0xff] %vm1236, %v8213
          %8246 = vst.msk [vmem:[#allocation25 + $0x8] sm:$0xff] %vm1236, %v8214
          %8247 = vst.msk [vmem:[#allocation25 + $0x10] sm:$0xff] %vm1236, %v8215
          %8248 = vst.msk [vmem:[#allocation25 + $0x18] sm:$0xff] %vm1236, %v8216
          %8249 = vst.msk [vmem:[#allocation25 + $0x20] sm:$0xff] %vm1236, %v8217
          %8250 = vst.msk [vmem:[#allocation25 + $0x28] sm:$0xff] %vm1236, %v8218
          %8251 = vst.msk [vmem:[#allocation25 + $0x30] sm:$0xff] %vm1236, %v8219
          %8252 = vst.msk [vmem:[#allocation25 + $0x38] sm:$0xff] %vm1236, %v8220
          %8253 = vst.msk [vmem:[#allocation25 + $0x40] sm:$0xff] %vm1236, %v8221
          %8254 = vst.msk [vmem:[#allocation25 + $0x48] sm:$0xff] %vm1236, %v8222
          %8255 = vst.msk [vmem:[#allocation25 + $0x50] sm:$0xff] %vm1236, %v8223
          %8256 = vst.msk [vmem:[#allocation25 + $0x58] sm:$0xff] %vm1236, %v8224
          %8257 = vst.msk [vmem:[#allocation25 + $0x60] sm:$0xff] %vm1236, %v8225
          %8258 = vst.msk [vmem:[#allocation25 + $0x68] sm:$0xff] %vm1236, %v8226
          %8259 = vst.msk [vmem:[#allocation25 + $0x70] sm:$0xff] %vm1236, %v8227
          %8260 = vst.msk [vmem:[#allocation25 + $0x78] sm:$0xff] %vm1236, %v8228
          %8261 = vst.msk [vmem:[#allocation25 + $0x80] sm:$0xff] %vm1236, %v8229
          %8262 = vst.msk [vmem:[#allocation25 + $0x88] sm:$0xff] %vm1236, %v8230
          %8263 = vst.msk [vmem:[#allocation25 + $0x90] sm:$0xff] %vm1236, %v8231
          %8264 = vst.msk [vmem:[#allocation25 + $0x98] sm:$0xff] %vm1236, %v8232
          %8265 = vst.msk [vmem:[#allocation25 + $0xa0] sm:$0xff] %vm1236, %v8233
          %8266 = vst.msk [vmem:[#allocation25 + $0xa8] sm:$0xff] %vm1236, %v8234
          %8267 = vst.msk [vmem:[#allocation25 + $0xb0] sm:$0xff] %vm1236, %v8235
          %8268 = vst.msk [vmem:[#allocation25 + $0xb8] sm:$0xff] %vm1236, %v8236
          %8269 = vst.msk [vmem:[#allocation25 + $0xc0] sm:$0xff] %vm1236, %v8237
          %8270 = vst.msk [vmem:[#allocation25 + $0xc8] sm:$0xff] %vm1236, %v8238
          %8271 = vst.msk [vmem:[#allocation25 + $0xd0] sm:$0xff] %vm1236, %v8239
          %8272 = vst.msk [vmem:[#allocation25 + $0xd8] sm:$0xff] %vm1236, %v8240
          %8273 = vst.msk [vmem:[#allocation25 + $0xe0] sm:$0xff] %vm1236, %v8241
          %8274 = vst.msk [vmem:[#allocation25 + $0xe8] sm:$0xff] %vm1236, %v8242
          %8275 = vst.msk [vmem:[#allocation25 + $0xf0] sm:$0xff] %vm1236, %v8243
          %8276 = vst.msk [vmem:[#allocation25 + $0xf8] sm:$0xff] %vm1236, %v8244
          %v8277 = vld [vmem:[#allocation6] sm:$0xff]
          %v8278 = vld [vmem:[#allocation6 + $0x8] sm:$0xff]
          %v8279 = vld [vmem:[#allocation6 + $0x10] sm:$0xff]
          %v8280 = vld [vmem:[#allocation6 + $0x18] sm:$0xff]
          %v8281 = vld [vmem:[#allocation6 + $0x20] sm:$0xff]
          %v8282 = vld [vmem:[#allocation6 + $0x28] sm:$0xff]
          %v8283 = vld [vmem:[#allocation6 + $0x30] sm:$0xff]
          %v8284 = vld [vmem:[#allocation6 + $0x38] sm:$0xff]
          %v8285 = vld [vmem:[#allocation6 + $0x40] sm:$0xff]
          %v8286 = vld [vmem:[#allocation6 + $0x48] sm:$0xff]
          %v8287 = vld [vmem:[#allocation6 + $0x50] sm:$0xff]
          %v8288 = vld [vmem:[#allocation6 + $0x58] sm:$0xff]
          %v8289 = vld [vmem:[#allocation6 + $0x60] sm:$0xff]
          %v8290 = vld [vmem:[#allocation6 + $0x68] sm:$0xff]
          %v8291 = vld [vmem:[#allocation6 + $0x70] sm:$0xff]
          %v8292 = vld [vmem:[#allocation6 + $0x78] sm:$0xff]
          %v8293 = vld [vmem:[#allocation6 + $0x80] sm:$0xff]
          %v8294 = vld [vmem:[#allocation6 + $0x88] sm:$0xff]
          %v8295 = vld [vmem:[#allocation6 + $0x90] sm:$0xff]
          %v8296 = vld [vmem:[#allocation6 + $0x98] sm:$0xff]
          %v8297 = vld [vmem:[#allocation6 + $0xa0] sm:$0xff]
          %v8298 = vld [vmem:[#allocation6 + $0xa8] sm:$0xff]
          %v8299 = vld [vmem:[#allocation6 + $0xb0] sm:$0xff]
          %v8300 = vld [vmem:[#allocation6 + $0xb8] sm:$0xff]
          %v8301 = vld [vmem:[#allocation6 + $0xc0] sm:$0xff]
          %v8302 = vld [vmem:[#allocation6 + $0xc8] sm:$0xff]
          %v8303 = vld [vmem:[#allocation6 + $0xd0] sm:$0xff]
          %v8304 = vld [vmem:[#allocation6 + $0xd8] sm:$0xff]
          %v8305 = vld [vmem:[#allocation6 + $0xe0] sm:$0xff]
          %v8306 = vld [vmem:[#allocation6 + $0xe8] sm:$0xff]
          %v8307 = vld [vmem:[#allocation6 + $0xf0] sm:$0xff]
          %v8308 = vld [vmem:[#allocation6 + $0xf8] sm:$0xff]
          %8310 = vset.pattern.permute.xlu0 0
          %8311 = vperm.xlu0 %8310, %v8277
          %v8312 = vpop.permute.xlu0 %8311
          %8315 = vset.pattern.permute.xlu0 0
          %8316 = vperm.xlu0 %8315, %v8278
          %v8317 = vpop.permute.xlu0 %8316
          %8320 = vset.pattern.permute.xlu0 0
          %8321 = vperm.xlu0 %8320, %v8279
          %v8322 = vpop.permute.xlu0 %8321
          %8325 = vset.pattern.permute.xlu0 0
          %8326 = vperm.xlu0 %8325, %v8280
          %v8327 = vpop.permute.xlu0 %8326
          %8330 = vset.pattern.permute.xlu0 0
          %8331 = vperm.xlu0 %8330, %v8281
          %v8332 = vpop.permute.xlu0 %8331
          %8335 = vset.pattern.permute.xlu0 0
          %8336 = vperm.xlu0 %8335, %v8282
          %v8337 = vpop.permute.xlu0 %8336
          %8340 = vset.pattern.permute.xlu0 0
          %8341 = vperm.xlu0 %8340, %v8283
          %v8342 = vpop.permute.xlu0 %8341
          %8345 = vset.pattern.permute.xlu0 0
          %8346 = vperm.xlu0 %8345, %v8284
          %v8347 = vpop.permute.xlu0 %8346
          %8350 = vset.pattern.permute.xlu0 0
          %8351 = vperm.xlu0 %8350, %v8285
          %v8352 = vpop.permute.xlu0 %8351
          %8355 = vset.pattern.permute.xlu0 0
          %8356 = vperm.xlu0 %8355, %v8286
          %v8357 = vpop.permute.xlu0 %8356
          %8360 = vset.pattern.permute.xlu0 0
          %8361 = vperm.xlu0 %8360, %v8287
          %v8362 = vpop.permute.xlu0 %8361
          %8365 = vset.pattern.permute.xlu0 0
          %8366 = vperm.xlu0 %8365, %v8288
          %v8367 = vpop.permute.xlu0 %8366
          %8370 = vset.pattern.permute.xlu0 0
          %8371 = vperm.xlu0 %8370, %v8289
          %v8372 = vpop.permute.xlu0 %8371
          %8375 = vset.pattern.permute.xlu0 0
          %8376 = vperm.xlu0 %8375, %v8290
          %v8377 = vpop.permute.xlu0 %8376
          %8380 = vset.pattern.permute.xlu0 0
          %8381 = vperm.xlu0 %8380, %v8291
          %v8382 = vpop.permute.xlu0 %8381
          %8385 = vset.pattern.permute.xlu0 0
          %8386 = vperm.xlu0 %8385, %v8292
          %v8387 = vpop.permute.xlu0 %8386
          %8390 = vset.pattern.permute.xlu0 0
          %8391 = vperm.xlu0 %8390, %v8293
          %v8392 = vpop.permute.xlu0 %8391
          %8395 = vset.pattern.permute.xlu0 0
          %8396 = vperm.xlu0 %8395, %v8294
          %v8397 = vpop.permute.xlu0 %8396
          %8400 = vset.pattern.permute.xlu0 0
          %8401 = vperm.xlu0 %8400, %v8295
          %v8402 = vpop.permute.xlu0 %8401
          %8405 = vset.pattern.permute.xlu0 0
          %8406 = vperm.xlu0 %8405, %v8296
          %v8407 = vpop.permute.xlu0 %8406
          %8410 = vset.pattern.permute.xlu0 0
          %8411 = vperm.xlu0 %8410, %v8297
          %v8412 = vpop.permute.xlu0 %8411
          %8415 = vset.pattern.permute.xlu0 0
          %8416 = vperm.xlu0 %8415, %v8298
          %v8417 = vpop.permute.xlu0 %8416
          %8420 = vset.pattern.permute.xlu0 0
          %8421 = vperm.xlu0 %8420, %v8299
          %v8422 = vpop.permute.xlu0 %8421
          %8425 = vset.pattern.permute.xlu0 0
          %8426 = vperm.xlu0 %8425, %v8300
          %v8427 = vpop.permute.xlu0 %8426
          %8430 = vset.pattern.permute.xlu0 0
          %8431 = vperm.xlu0 %8430, %v8301
          %v8432 = vpop.permute.xlu0 %8431
          %8435 = vset.pattern.permute.xlu0 0
          %8436 = vperm.xlu0 %8435, %v8302
          %v8437 = vpop.permute.xlu0 %8436
          %8440 = vset.pattern.permute.xlu0 0
          %8441 = vperm.xlu0 %8440, %v8303
          %v8442 = vpop.permute.xlu0 %8441
          %8445 = vset.pattern.permute.xlu0 0
          %8446 = vperm.xlu0 %8445, %v8304
          %v8447 = vpop.permute.xlu0 %8446
          %8450 = vset.pattern.permute.xlu0 0
          %8451 = vperm.xlu0 %8450, %v8305
          %v8452 = vpop.permute.xlu0 %8451
          %8455 = vset.pattern.permute.xlu0 0
          %8456 = vperm.xlu0 %8455, %v8306
          %v8457 = vpop.permute.xlu0 %8456
          %8460 = vset.pattern.permute.xlu0 0
          %8461 = vperm.xlu0 %8460, %v8307
          %v8462 = vpop.permute.xlu0 %8461
          %8465 = vset.pattern.permute.xlu0 0
          %8466 = vperm.xlu0 %8465, %v8308
          %v8467 = vpop.permute.xlu0 %8466
          %v8469 = vmul.f32 %v8213, %v8312
          %v8470 = vmul.f32 %v8214, %v8317
          %v8471 = vmul.f32 %v8215, %v8322
          %v8472 = vmul.f32 %v8216, %v8327
          %v8473 = vmul.f32 %v8217, %v8332
          %v8474 = vmul.f32 %v8218, %v8337
          %v8475 = vmul.f32 %v8219, %v8342
          %v8476 = vmul.f32 %v8220, %v8347
          %v8477 = vmul.f32 %v8221, %v8352
          %v8478 = vmul.f32 %v8222, %v8357
          %v8479 = vmul.f32 %v8223, %v8362
          %v8480 = vmul.f32 %v8224, %v8367
          %v8481 = vmul.f32 %v8225, %v8372
          %v8482 = vmul.f32 %v8226, %v8377
          %v8483 = vmul.f32 %v8227, %v8382
          %v8484 = vmul.f32 %v8228, %v8387
          %v8485 = vmul.f32 %v8229, %v8392
          %v8486 = vmul.f32 %v8230, %v8397
          %v8487 = vmul.f32 %v8231, %v8402
          %v8488 = vmul.f32 %v8232, %v8407
          %v8489 = vmul.f32 %v8233, %v8412
          %v8490 = vmul.f32 %v8234, %v8417
          %v8491 = vmul.f32 %v8235, %v8422
          %v8492 = vmul.f32 %v8236, %v8427
          %v8493 = vmul.f32 %v8237, %v8432
          %v8494 = vmul.f32 %v8238, %v8437
          %v8495 = vmul.f32 %v8239, %v8442
          %v8496 = vmul.f32 %v8240, %v8447
          %v8497 = vmul.f32 %v8241, %v8452
          %v8498 = vmul.f32 %v8242, %v8457
          %v8499 = vmul.f32 %v8243, %v8462
          %v8500 = vmul.f32 %v8244, %v8467
          %v8501 = vsel %vm1236, %v8469, 0.0
          %v8502 = vsel %vm1236, %v8470, 0.0
          %v8503 = vadd.f32 %v8501, %v8502
          %v8504 = vsel %vm1236, %v8471, 0.0
          %v8505 = vadd.f32 %v8503, %v8504
          %v8506 = vsel %vm1236, %v8472, 0.0
          %v8507 = vadd.f32 %v8505, %v8506
          %v8508 = vsel %vm1236, %v8473, 0.0
          %v8509 = vadd.f32 %v8507, %v8508
          %v8510 = vsel %vm1236, %v8474, 0.0
          %v8511 = vadd.f32 %v8509, %v8510
          %v8512 = vsel %vm1236, %v8475, 0.0
          %v8513 = vadd.f32 %v8511, %v8512
          %v8514 = vsel %vm1236, %v8476, 0.0
          %v8515 = vadd.f32 %v8513, %v8514
          %v8516 = vsel %vm1236, %v8477, 0.0
          %v8517 = vadd.f32 %v8515, %v8516
          %v8518 = vsel %vm1236, %v8478, 0.0
          %v8519 = vadd.f32 %v8517, %v8518
          %v8520 = vsel %vm1236, %v8479, 0.0
          %v8521 = vadd.f32 %v8519, %v8520
          %v8522 = vsel %vm1236, %v8480, 0.0
          %v8523 = vadd.f32 %v8521, %v8522
          %v8524 = vsel %vm1236, %v8481, 0.0
          %v8525 = vadd.f32 %v8523, %v8524
          %v8526 = vsel %vm1236, %v8482, 0.0
          %v8527 = vadd.f32 %v8525, %v8526
          %v8528 = vsel %vm1236, %v8483, 0.0
          %v8529 = vadd.f32 %v8527, %v8528
          %v8530 = vsel %vm1236, %v8484, 0.0
          %v8531 = vadd.f32 %v8529, %v8530
          %v8532 = vrot.slane %v8531, 4
          %v8533 = vadd.f32 %v8531, %v8532
          %v8534 = vrot.slane %v8533, 2
          %v8535 = vadd.f32 %v8533, %v8534
          %v8536 = vrot.slane %v8535, 1
          %v8537 = vadd.f32 %v8535, %v8536
          %v8538 = vsel %vm1236, %v8485, 0.0
          %v8539 = vsel %vm1236, %v8486, 0.0
          %v8540 = vadd.f32 %v8538, %v8539
          %v8541 = vsel %vm1236, %v8487, 0.0
          %v8542 = vadd.f32 %v8540, %v8541
          %v8543 = vsel %vm1236, %v8488, 0.0
          %v8544 = vadd.f32 %v8542, %v8543
          %v8545 = vsel %vm1236, %v8489, 0.0
          %v8546 = vadd.f32 %v8544, %v8545
          %v8547 = vsel %vm1236, %v8490, 0.0
          %v8548 = vadd.f32 %v8546, %v8547
          %v8549 = vsel %vm1236, %v8491, 0.0
          %v8550 = vadd.f32 %v8548, %v8549
          %v8551 = vsel %vm1236, %v8492, 0.0
          %v8552 = vadd.f32 %v8550, %v8551
          %v8553 = vsel %vm1236, %v8493, 0.0
          %v8554 = vadd.f32 %v8552, %v8553
          %v8555 = vsel %vm1236, %v8494, 0.0
          %v8556 = vadd.f32 %v8554, %v8555
          %v8557 = vsel %vm1236, %v8495, 0.0
          %v8558 = vadd.f32 %v8556, %v8557
          %v8559 = vsel %vm1236, %v8496, 0.0
          %v8560 = vadd.f32 %v8558, %v8559
          %v8561 = vsel %vm1236, %v8497, 0.0
          %v8562 = vadd.f32 %v8560, %v8561
          %v8563 = vsel %vm1236, %v8498, 0.0
          %v8564 = vadd.f32 %v8562, %v8563
          %v8565 = vsel %vm1236, %v8499, 0.0
          %v8566 = vadd.f32 %v8564, %v8565
          %v8567 = vsel %vm1236, %v8500, 0.0
          %v8568 = vadd.f32 %v8566, %v8567
          %v8569 = vrot.slane %v8568, 4
          %v8570 = vadd.f32 %v8568, %v8569
          %v8571 = vrot.slane %v8570, 2
          %v8572 = vadd.f32 %v8570, %v8571
          %v8573 = vrot.slane %v8572, 1
          %v8574 = vadd.f32 %v8572, %v8573
          %v8575 = vld [vmem:[#allocation23] sm:$0xff]
          %v8576 = vld [vmem:[#allocation23 + $0x8] sm:$0xff]
          %v8577 = vld [vmem:[#allocation23 + $0x10] sm:$0xff]
          %v8578 = vld [vmem:[#allocation23 + $0x18] sm:$0xff]
          %vm8581 = vcmask 1041409
          %v8582 = vsel %vm8581, %v8574, %v8537
          %v8583 = vsel %vm1236, %v8582, 0
          %8585 = vmatprep.subr.mxu0 0.0
          %8586 = vmatpush1.msra.mxu0 %v8575
          %8587 = vmatprep.subr.mxu0 0.0
          %8588 = vmatpush1.msra.mxu0 %v8576
          %8589 = vmatprep.subr.mxu0 0.0
          %8590 = vmatpush1.msra.mxu0 %v8577
          %8591 = vmatprep.subr.mxu0 0.0
          %8592 = vmatpush1.msra.mxu0 %v8578
          %8593 = vmatprep.subr.mxu0 0.0
          %8594 = vmatpush1.msra.mxu0 0.0
          %8595 = vmatprep.subr.mxu0 0.0
          %8596 = vmatpush1.msra.mxu0 0.0
          %8597 = vmatprep.subr.mxu0 0.0
          %8598 = vmatpush1.msra.mxu0 0.0
          %8599 = vmatprep.subr.mxu0 0.0
          %8600 = vmatpush1.msra.mxu0 0.0
          %8601 = vmatprep.subr.mxu0 0.0
          %8602 = vmatpush1.msra.mxu0 0.0
          %8603 = vmatprep.subr.mxu0 0.0
          %8604 = vmatpush1.msra.mxu0 0.0
          %8605 = vmatprep.subr.mxu0 0.0
          %8606 = vmatpush1.msra.mxu0 0.0
          %8607 = vmatprep.subr.mxu0 0.0
          %8608 = vmatpush1.msra.mxu0 0.0
          %8609 = vmatprep.subr.mxu0 0.0
          %8610 = vmatpush1.msra.mxu0 0.0
          %8611 = vmatprep.subr.mxu0 0.0
          %8612 = vmatpush1.msra.mxu0 0.0
          %8613 = vmatprep.subr.mxu0 0.0
          %8614 = vmatpush1.msra.mxu0 0.0
          %8615 = vmatprep.subr.mxu0 0.0
          %8616 = vmatpush1.msra.mxu0 0.0
          %8617 = vmatprep.subr.mxu0 0.0
          %8618 = vmatpush1.msra.mxu0 0.0
          %8619 = vmatprep.subr.mxu0 0.0
          %8620 = vmatpush1.msra.mxu0 0.0
          %8621 = vmatprep.subr.mxu0 0.0
          %8622 = vmatpush1.msra.mxu0 0.0
          %8623 = vmatprep.subr.mxu0 0.0
          %8624 = vmatpush1.msra.mxu0 0.0
          %8625 = vmatprep.subr.mxu0 0.0
          %8626 = vmatpush1.msra.mxu0 0.0
          %8627 = vmatprep.subr.mxu0 0.0
          %8628 = vmatpush1.msra.mxu0 0.0
          %8629 = vmatprep.subr.mxu0 0.0
          %8630 = vmatpush1.msra.mxu0 0.0
          %8631 = vmatprep.subr.mxu0 0.0
          %8632 = vmatpush1.msra.mxu0 0.0
          %8633 = vmatprep.subr.mxu0 0.0
          %8634 = vmatpush1.msra.mxu0 0.0
          %8635 = vmatprep.subr.mxu0 0.0
          %8636 = vmatpush1.msra.mxu0 0.0
          %8637 = vmatprep.subr.mxu0 0.0
          %8638 = vmatpush1.msra.mxu0 0.0
          %8639 = vmatprep.subr.mxu0 0.0
          %8640 = vmatpush1.msra.mxu0 0.0
          %8641 = vmatprep.subr.mxu0 0.0
          %8642 = vmatpush1.msra.mxu0 0.0
          %8643 = vmatprep.subr.mxu0 0.0
          %8644 = vmatpush1.msra.mxu0 0.0
          %8645 = vmatprep.subr.mxu0 0.0
          %8646 = vmatpush1.msra.mxu0 0.0
          %8647 = vmatprep.subr.mxu0 0.0
          %8648 = vmatpush1.msra.mxu0 0.0
          %8649 = vmatprep.mubr.f32.mxu0 0.0
          %8650 = vmatmul.mubr.f32.gmra.mrb[0].mxu0 %v8583
          %v8651 = vpop.f32.mrb[0].mxu0
          %v8652 = vadd.f32 0.0, %v8651
          %v8653 = vpop.f32.mrb[0].mxu0
          %8654 = vdwg.mxu0
          %vm8655 = vcmask 123904
          %8656 = vst.msk [vmem:[#allocation24] sm:$0x3] %vm8655, %v8652
        $region164: #{_lambda_.1} parent=87 // pred_fallthru
          _
        // Predicated region
        $region165: #{_lambda_.1} parent=87 // pred_check
          %p8657 = pneg %p492
        $region166: #{_lambda_.1} parent=87 // pred_check_branch
          %8659 = sbr.rel (%p8657) target = $region168
        $region167: #{_lambda_.1} parent=87 // pred_region
          %s8661 = ssub.s32 32, 32
          %8662 = vsyncadd [#allocation5], %s8661
          %s8663 = smul.addr %s39, 32
          %s8664 = scalar_lea.hbm %s17, %s8663
          %s8666 = sshll.u32 [#allocation24], 4
          %s8667 = int_to_ptr.vmem [resolvable:$true] %s8666
          %8669 = dma.vmem_to_hbm [thread:$0]  %s8667, 32, %s8664, [#allocation5]
        $region168: #{_lambda_.1} parent=87 // pred_fallthru
          _
        // Predicated region
        $region169: #{_lambda_.1} parent=87 // pred_check
          %p8670 = pneg %p518
        $region170: #{_lambda_.1} parent=87 // pred_check_branch
          %8672 = sbr.rel (%p8670) target = $region172
        $region171: #{_lambda_.1} parent=87 // pred_region
          %s8673 = smul.u32 2, %s39
          %s8675 = ssub.s32 4096, 4096
          %8676 = vsyncadd [#allocation26], %s8675
          %s8677 = smul.addr %s8673, 16
          %s8678 = smul.addr %s8677, 128
          %s8679 = scalar_lea.hbm %s18, %s8678
          %s8680 = sshll.u32 [#allocation25], 4
          %s8681 = int_to_ptr.vmem [resolvable:$true] %s8680
          %8686 = dma.vmem_to_hbm [thread:$0]  %s8681, 4096, %s8679, [#allocation26], 128, 128, 8
        $region172: #{_lambda_.1} parent=87 // pred_fallthru
          _
        // Predicated region
        $region173: #{_lambda_.1} parent=87 // pred_check
          %p8687 = pneg %p492
        $region174: #{_lambda_.1} parent=87 // pred_check_branch
          %8689 = sbr.rel (%p8687) target = $region176
        $region175: #{_lambda_.1} parent=87 // pred_region
          %8690 = dma.done [#allocation5], 32
        $region176: #{_lambda_.1} parent=87 // pred_fallthru
          _
        // Predicated region
        $region177: #{_lambda_.1} parent=87 // pred_check
          %p8691 = pneg %p518
        $region178: #{_lambda_.1} parent=87 // pred_check_branch
          %8693 = sbr.rel (%p8691) target = $region180
        $region179: #{_lambda_.1} parent=87 // pred_region
          %8694 = dma.done [#allocation26], 4096
        $region180: #{_lambda_.1} parent=87 // pred_fallthru
          _
      $region88: #{_lambda_.1} parent=5 // pred_fallthru
        _
      %p8695 = scmp.le.s32.totalorder 2, %s30
      // Predicated region
      $region181: #{_lambda_.1} parent=5 // pred_check
        %p8696 = pneg %p8695
      $region182: #{_lambda_.1} parent=5 // pred_check_branch
        %8698 = sbr.rel (%p8696) target = $region184
      $region183: #{_lambda_.1} parent=5 // pred_region
        %s8699 = ssub.s32 %s30, 2
      $region184: #{_lambda_.1} parent=5 // pred_fallthru
        _
    $region6: #{_lambda_.1} parent=1 // loop_footer
      %s34 = sadd.s32 1, %s30
    $region7: #{_lambda_.1} parent=1 // loop_footer_branch
      %29 = sbr.rel target = $region3
    $region8: #{_lambda_.1} parent=1 // loop_exit
      _
    %8700 = vsyncpa [#allocation4], 1
    %s8701 = scalar_lea.sflag [#allocation4], 1
    %8702 = vsyncpa %s8701, 1
    %8703 = vsyncpa [#allocation7], 1
    %8704 = vsyncpa [#allocation22], 1
    %8705 = vsyncpa [#allocation5], 1
    %s8706 = scalar_lea.sflag [#allocation5], 1
    %8707 = vsyncpa %s8706, 1
    %8708 = vsyncpa [#allocation26], 1

</llo_original>
